<compile_context>
chip_gen: v5e
topology: v5e:2x2
jax: 0.10.0
libtpu: 0.0.40
codegen_flags: <defaults>
</compile_context>

<pallas_src>
import jax
import jax.numpy as jnp
from jax import lax
from jax.experimental import pallas as pl
from jax.experimental.pallas import tpu as pltpu

LANE = 128


def _round_up(x, m):
    return (x + m - 1) // m * m


# ----------------------------- Pallas kernel --------------------------------

def bilstm_kernel(x_ref, len_ref, h0_ref, c0_ref,
                  wih_ref, whf_ref, whb_ref, b_ref,
                  o_ref, hn_ref, cn_ref,
                  gin, hf, cf, hb, cb):
    """Fused bidirectional single-layer LSTM with length masking.

    x_ref  : (S*B, E)     bf16  embedded input, time-major, rows = t*B + b
    len_ref: (B, 1)       int32 valid lengths
    h0/c0  : (2, B, Hp)   f32   initial states (0 = fwd, 1 = bwd), lane-padded
    wih_ref: (E, 8*Hp)    bf16  [Wih_f | Wih_b], gate-lane-padded, pre-transposed
    whf/whb: (Hp, 4*Hp)   bf16  recurrent weights (fwd / bwd)
    b_ref  : (1, 8*Hp)    f32   (b_ih + b_hh) per direction, gate-lane-padded
    o_ref  : (S, B, 2*Hp) f32   fwd output in lanes [0:Hp], bwd in [Hp:2Hp]
    hn/cn  : (2, B, Hp)   f32   final states per direction
    gin    : (S, B, 8*Hp) f32   scratch: hoisted input projection (+ bias)
    hf/cf/hb/cb : (B, Hp) f32   carried states
    """
    S, B, _ = o_ref.shape
    Hp = hf.shape[1]

    # ---- hoisted input projection + folded bias: one big MXU matmul ----------
    gin[...] = (
        jnp.dot(x_ref[...], wih_ref[...], preferred_element_type=jnp.float32)
        + b_ref[...]
    ).reshape(S, B, 8 * Hp)

    # ---- init carried states --------------------------------------------------
    hf[...] = h0_ref[0]
    cf[...] = c0_ref[0]
    hb[...] = h0_ref[1]
    cb[...] = c0_ref[1]

    lens = len_ref[...]                       # (B, 1) int32, loop-invariant

    def cell(pre, c):
        # gate order matches PyTorch: (i, f, g, o); each slice is 128-lane aligned
        i_g = jax.nn.sigmoid(pre[:, 0 * Hp:1 * Hp])
        f_g = jax.nn.sigmoid(pre[:, 1 * Hp:2 * Hp])
        g_g = jnp.tanh(pre[:, 2 * Hp:3 * Hp])
        o_g = jax.nn.sigmoid(pre[:, 3 * Hp:4 * Hp])
        c_new = f_g * c + i_g * g_g
        h_new = o_g * jnp.tanh(c_new)
        return h_new, c_new

    def step(t, carry):
        tb = S - 1 - t

        h_f = hf[...]
        c_f = cf[...]
        h_b = hb[...]
        c_b = cb[...]

        # two independent recurrent matmuls, issued back-to-back (bf16 in, f32 acc)
        rec_f = jnp.dot(h_f.astype(jnp.bfloat16), whf_ref[...],
                        preferred_element_type=jnp.float32)
        rec_b = jnp.dot(h_b.astype(jnp.bfloat16), whb_ref[...],
                        preferred_element_type=jnp.float32)

        gin_f = gin[t, :, pl.ds(0, 4 * Hp)]          # precomputed x@Wih_f + b_f
        gin_b = gin[tb, :, pl.ds(4 * Hp, 4 * Hp)]    # precomputed x@Wih_b + b_b

        hnew_f, cnew_f = cell(gin_f + rec_f, c_f)
        hnew_b, cnew_b = cell(gin_b + rec_b, c_b)

        valid_f = lens > t                            # (B, 1) bool
        valid_b = lens > tb

        # packed-sequence semantics: freeze state past length
        hf[...] = jnp.where(valid_f, hnew_f, h_f)
        cf[...] = jnp.where(valid_f, cnew_f, c_f)
        hb[...] = jnp.where(valid_b, hnew_b, h_b)
        cb[...] = jnp.where(valid_b, cnew_b, c_b)

        # outputs are zero past length; both stores are full 128-lane stores
        o_ref[t, :, pl.ds(0, Hp)] = jnp.where(valid_f, hnew_f, 0.0)
        o_ref[tb, :, pl.ds(Hp, Hp)] = jnp.where(valid_b, hnew_b, 0.0)
        return carry

    lax.fori_loop(0, S, step, 0, unroll=True)

    hn_ref[0] = hf[...]
    hn_ref[1] = hb[...]
    cn_ref[0] = cf[...]
    cn_ref[1] = cb[...]


# ----------------------------- parameters ------------------------------------

def make_encoder_params(key, vocab_size, embedding_dim, hidden_dim):
    """Init mirroring NotSuchABetterEncoder.reset_parameters:
       xavier_uniform for W_ih, orthogonal for W_hh, zeros for biases,
       default normal(0,1) for the embedding table. PyTorch layout (4H, E)/(4H, H),
       gate order (i, f, g, o)."""
    keys = jax.random.split(key, 5)
    glorot = jax.nn.initializers.glorot_uniform()
    ortho = jax.nn.initializers.orthogonal()
    E, H = embedding_dim, hidden_dim
    return {
        "emb":   jax.random.normal(keys[0], (vocab_size, E), jnp.float32),
        "wih_f": glorot(keys[1], (4 * H, E), jnp.float32),
        "whh_f": ortho(keys[2], (4 * H, H), jnp.float32),
        "b_f":   jnp.zeros((4 * H,), jnp.float32),   # b_ih + b_hh, both zero
        "wih_b": glorot(keys[3], (4 * H, E), jnp.float32),
        "whh_b": ortho(keys[4], (4 * H, H), jnp.float32),
        "b_b":   jnp.zeros((4 * H,), jnp.float32),
    }


def init_hidden(batch_size, hidden_dim):
    # NotSuchABetterEncoder.init_hidden: ones((1 + bidirectional, B, H))
    h0 = jnp.ones((2, batch_size, hidden_dim), jnp.float32)
    c0 = jnp.ones((2, batch_size, hidden_dim), jnp.float32)
    return h0, c0


def _pad_dir_weights(w_ih, w_hh, b, H, Hp):
    """PyTorch (4H, E)/(4H, H)/(4H,) -> pre-transposed, per-gate lane-padded
       (E, 4Hp), (Hp, 4Hp), (4Hp,). Padded lanes carry zero weights/bias so the
       padded part of the state stays inert (and is sliced away afterwards)."""
    E = w_ih.shape[1]
    wi = jnp.zeros((E, 4 * Hp), jnp.float32)
    wh = jnp.zeros((Hp, 4 * Hp), jnp.float32)
    bb = jnp.zeros((4 * Hp,), jnp.float32)
    for g in range(4):
        wi = wi.at[:, g * Hp:g * Hp + H].set(w_ih[g * H:(g + 1) * H, :].T)
        wh = wh.at[:H, g * Hp:g * Hp + H].set(w_hh[g * H:(g + 1) * H, :].T)
        bb = bb.at[g * Hp:g * Hp + H].set(b[g * H:(g + 1) * H])
    return wi, wh, bb


# ----------------------------- wrapper ---------------------------------------

def encoder_forward(x_tokens, h, params, padding_idx=0):
    """Pallas implementation of NotSuchABetterEncoder.forward (LSTM mode,
    enable_layer_norm=False, residual=False).

    x_tokens: (B, S) int32 token ids (suffix-padded with padding_idx)
    h       : (h0, c0), each (2, B, H)
    returns : (o_unsort (S,B,2H), h_flat (B,2H), (h_n, c_n), mask (B,S))
    """
    h0, c0 = h
    B, S = x_tokens.shape
    H = h0.shape[-1]
    E = params["emb"].shape[-1]
    Hp = max(LANE, _round_up(H, LANE))          # lane-aligned hidden dim

    # tu.compute_mask(x, padding_idx) and lengths
    mask = (x_tokens != padding_idx).astype(jnp.float32)             # (B, S)
    lengths = jnp.sum(mask, axis=1).astype(jnp.int32)[:, None]       # (B, 1)

    # embedding lookup + transpose(0, 1)  (glue, not the hot path)
    # TODO(synk): dropout(p) on packed data is identity here (eval mode).
    x_emb = jnp.take(params["emb"], x_tokens, axis=0)                # (B, S, E)
    x_emb = jnp.transpose(x_emb, (1, 0, 2))                          # (S, B, E)
    x2d = x_emb.reshape(S * B, E).astype(jnp.bfloat16)               # (S*B, E)

    # pack / pad weights (cheap; in practice cache these across calls)
    wi_f, wh_f, b_f = _pad_dir_weights(params["wih_f"], params["whh_f"],
                                       params["b_f"], H, Hp)
    wi_b, wh_b, b_b = _pad_dir_weights(params["wih_b"], params["whh_b"],
                                       params["b_b"], H, Hp)
    wih_all = jnp.concatenate([wi_f, wi_b], axis=1).astype(jnp.bfloat16)  # (E, 8Hp)
    bias_all = jnp.concatenate([b_f, b_b])[None, :]                       # (1, 8Hp)
    wh_f = wh_f.astype(jnp.bfloat16)
    wh_b = wh_b.astype(jnp.bfloat16)

    # lane-pad initial states (padded lanes zero -> stay inert)
    h0p = jnp.zeros((2, B, Hp), jnp.float32).at[:, :, :H].set(h0)
    c0p = jnp.zeros((2, B, Hp), jnp.float32).at[:, :, :H].set(c0)

    vmem = pl.BlockSpec(memory_space=pltpu.MemorySpace.VMEM)

    out_shapes = (
        jax.ShapeDtypeStruct((S, B, 2 * Hp), jnp.float32),   # [fwd | bwd] outputs
        jax.ShapeDtypeStruct((2, B, Hp), jnp.float32),       # h_n
        jax.ShapeDtypeStruct((2, B, Hp), jnp.float32),       # c_n
    )

    o_pad, hn_pad, cn_pad = pl.pallas_call(
        bilstm_kernel,
        out_shape=out_shapes,
        in_specs=[vmem] * 8,
        out_specs=(vmem, vmem, vmem),
        scratch_shapes=[
            pltpu.VMEM((S, B, 8 * Hp), jnp.float32),   # hoisted input projection
            pltpu.VMEM((B, Hp), jnp.float32),          # h forward
            pltpu.VMEM((B, Hp), jnp.float32),          # c forward
            pltpu.VMEM((B, Hp), jnp.float32),          # h backward
            pltpu.VMEM((B, Hp), jnp.float32),          # c backward
        ],
        compiler_params=pltpu.CompilerParams(
            vmem_limit_bytes=32 * 1024 * 1024),
    )(x2d, lengths, h0p, c0p, wih_all, wh_f, wh_b, bias_all)

    # pad_packed_sequence output, already unsorted (mask-equivalent formulation)
    if Hp == H:
        o_unsort = o_pad                                              # (S, B, 2H)
    else:
        o_unsort = jnp.concatenate(
            [o_pad[:, :, :H], o_pad[:, :, Hp:Hp + H]], axis=-1)       # (S, B, 2H)

    h_n = hn_pad[:, :, :H]
    c_n = cn_pad[:, :, :H]

    # h_unsort[0].transpose(1, 0).contiguous().view(B, -1)
    h_flat = jnp.transpose(h_n, (1, 0, 2)).reshape(B, 2 * H)          # (B, 2H)

    return o_unsort, h_flat, (h_n, c_n), mask


# ----------------------------- demo ------------------------------------------

if __name__ == "__main__":
    VOCAB, EMB, HID = 50, 32, 32
    B, S = 8, 8

    key = jax.random.PRNGKey(0)
    k_tok, k_par = jax.random.split(key)

    # token ids in [1, VOCAB), then pad (id 0) the tail of some sequences
    tokens = jax.random.randint(k_tok, (B, S), 1, VOCAB, dtype=jnp.int32)
    lengths = jnp.array([8, 7, 6, 5, 8, 4, 3, 8], dtype=jnp.int32)
    valid = (jnp.arange(S)[None, :] < lengths[:, None])
    x = jnp.where(valid, tokens, 0).astype(jnp.int32)

    params = make_encoder_params(k_par, VOCAB, EMB, HID)
    h = init_hidden(B, HID)

    fwd = jax.jit(lambda xt, h0, c0: encoder_forward(xt, (h0, c0), params))
    o_unsort, h_flat, (h_n, c_n), mask = fwd(x, h[0], h[1])
    jax.block_until_ready((o_unsort, h_flat, h_n, c_n, mask))

    assert o_unsort.shape == (S, B, 2 * HID)
    assert h_flat.shape == (B, 2 * HID)
    assert h_n.shape == (2, B, HID) and c_n.shape == (2, B, HID)
    assert mask.shape == (B, S)
    assert bool(jnp.all(jnp.isfinite(o_unsort)))
    # padded timesteps of the LSTM output must be exactly zero (packed semantics)
    pad_pos = jnp.transpose(1.0 - mask, (1, 0))[:, :, None]           # (S, B, 1)
    assert float(jnp.max(jnp.abs(o_unsort * pad_pos))) == 0.0

    print("KERNEL_OK")
</pallas_src>

<mosaic_0001>
module attributes {stable_mosaic.version = 11 : i64} {
  func.func @bilstm_kernel(%arg0: memref<64x32xbf16, #tpu.memory_space<vmem>>, %arg1: memref<8x1xi32, #tpu.memory_space<vmem>>, %arg2: memref<2x8x128xf32, #tpu.memory_space<vmem>>, %arg3: memref<2x8x128xf32, #tpu.memory_space<vmem>>, %arg4: memref<32x1024xbf16, #tpu.memory_space<vmem>>, %arg5: memref<128x512xbf16, #tpu.memory_space<vmem>>, %arg6: memref<128x512xbf16, #tpu.memory_space<vmem>>, %arg7: memref<1x1024xf32, #tpu.memory_space<vmem>>, %arg8: memref<8x8x256xf32, #tpu.memory_space<vmem>>, %arg9: memref<2x8x128xf32, #tpu.memory_space<vmem>>, %arg10: memref<2x8x128xf32, #tpu.memory_space<vmem>>, %arg11: memref<8x8x1024xf32, #tpu.memory_space<vmem>>, %arg12: memref<8x128xf32, #tpu.memory_space<vmem>>, %arg13: memref<8x128xf32, #tpu.memory_space<vmem>>, %arg14: memref<8x128xf32, #tpu.memory_space<vmem>>, %arg15: memref<8x128xf32, #tpu.memory_space<vmem>>) attributes {dimension_semantics = [], scalar_prefetch = 0 : i64, scratch_operands = 5 : i64, tpu.core_type = #tpu.core_type<tc>} {
    %c0 = arith.constant 0 : index
    %c0_0 = arith.constant 0 : index
    %0 = vector.load %arg0[%c0, %c0_0] : memref<64x32xbf16, #tpu.memory_space<vmem>>, vector<64x32xbf16>
    %c0_1 = arith.constant 0 : index
    %c0_2 = arith.constant 0 : index
    %1 = vector.load %arg4[%c0_1, %c0_2] : memref<32x1024xbf16, #tpu.memory_space<vmem>>, vector<32x1024xbf16>
    %cst = arith.constant dense<0.000000e+00> : vector<64x1024xf32>
    %2 = tpu.matmul %0, %1, %cst {dimension_numbers = #tpu.dot_dimension_numbers<[1], [0], [0], [1], [0, 0, 1, 1], [], []>} : vector<64x32xbf16>, vector<32x1024xbf16>, vector<64x1024xf32> -> vector<64x1024xf32>
    %c0_3 = arith.constant 0 : index
    %c0_4 = arith.constant 0 : index
    %3 = vector.load %arg7[%c0_3, %c0_4] : memref<1x1024xf32, #tpu.memory_space<vmem>>, vector<1x1024xf32>
    %4 = vector.broadcast %3 : vector<1x1024xf32> to vector<64x1024xf32>
    %5 = arith.addf %2, %4 : vector<64x1024xf32>
    %6 = vector.shape_cast %5 : vector<64x1024xf32> to vector<8x8x1024xf32>
    %c0_5 = arith.constant 0 : index
    %c0_6 = arith.constant 0 : index
    %c0_7 = arith.constant 0 : index
    %7 = vector.load %arg11[%c0_5, %c0_6, %c0_7] : memref<8x8x1024xf32, #tpu.memory_space<vmem>>, vector<8x8x1024xf32>
    tpu.vector_store %arg11[%c0_5, %c0_6, %c0_7], %6 {strides = array<i32>} : memref<8x8x1024xf32, #tpu.memory_space<vmem>>, vector<8x8x1024xf32>,
    %c0_8 = arith.constant 0 : index
    %c0_9 = arith.constant 0 : index
    %c0_10 = arith.constant 0 : index
    %8 = vector.load %arg2[%c0_8, %c0_9, %c0_10] : memref<2x8x128xf32, #tpu.memory_space<vmem>>, vector<1x8x128xf32>
    %9 = vector.shape_cast %8 : vector<1x8x128xf32> to vector<8x128xf32>
    %c0_11 = arith.constant 0 : index
    %c0_12 = arith.constant 0 : index
    %10 = vector.load %arg12[%c0_11, %c0_12] : memref<8x128xf32, #tpu.memory_space<vmem>>, vector<8x128xf32>
    tpu.vector_store %arg12[%c0_11, %c0_12], %9 {strides = array<i32>} : memref<8x128xf32, #tpu.memory_space<vmem>>, vector<8x128xf32>,
    %c0_13 = arith.constant 0 : index
    %c0_14 = arith.constant 0 : index
    %c0_15 = arith.constant 0 : index
    %11 = vector.load %arg3[%c0_13, %c0_14, %c0_15] : memref<2x8x128xf32, #tpu.memory_space<vmem>>, vector<1x8x128xf32>
    %12 = vector.shape_cast %11 : vector<1x8x128xf32> to vector<8x128xf32>
    %c0_16 = arith.constant 0 : index
    %c0_17 = arith.constant 0 : index
    %13 = vector.load %arg13[%c0_16, %c0_17] : memref<8x128xf32, #tpu.memory_space<vmem>>, vector<8x128xf32>
    tpu.vector_store %arg13[%c0_16, %c0_17], %12 {strides = array<i32>} : memref<8x128xf32, #tpu.memory_space<vmem>>, vector<8x128xf32>,
    %c1 = arith.constant 1 : index
    %c0_18 = arith.constant 0 : index
    %c0_19 = arith.constant 0 : index
    %14 = vector.load %arg2[%c1, %c0_18, %c0_19] : memref<2x8x128xf32, #tpu.memory_space<vmem>>, vector<1x8x128xf32>
    %15 = vector.shape_cast %14 : vector<1x8x128xf32> to vector<8x128xf32>
    %c0_20 = arith.constant 0 : index
    %c0_21 = arith.constant 0 : index
    %16 = vector.load %arg14[%c0_20, %c0_21] : memref<8x128xf32, #tpu.memory_space<vmem>>, vector<8x128xf32>
    tpu.vector_store %arg14[%c0_20, %c0_21], %15 {strides = array<i32>} : memref<8x128xf32, #tpu.memory_space<vmem>>, vector<8x128xf32>,
    %c1_22 = arith.constant 1 : index
    %c0_23 = arith.constant 0 : index
    %c0_24 = arith.constant 0 : index
    %17 = vector.load %arg3[%c1_22, %c0_23, %c0_24] : memref<2x8x128xf32, #tpu.memory_space<vmem>>, vector<1x8x128xf32>
    %18 = vector.shape_cast %17 : vector<1x8x128xf32> to vector<8x128xf32>
    %c0_25 = arith.constant 0 : index
    %c0_26 = arith.constant 0 : index
    %19 = vector.load %arg15[%c0_25, %c0_26] : memref<8x128xf32, #tpu.memory_space<vmem>>, vector<8x128xf32>
    tpu.vector_store %arg15[%c0_25, %c0_26], %18 {strides = array<i32>} : memref<8x128xf32, #tpu.memory_space<vmem>>, vector<8x128xf32>,
    %c0_27 = arith.constant 0 : index
    %c0_28 = arith.constant 0 : index
    %20 = vector.load %arg1[%c0_27, %c0_28] : memref<8x1xi32, #tpu.memory_space<vmem>>, vector<8x1xi32>
    %c0_i32 = arith.constant 0 : i32
    %c7_i32 = arith.constant 7 : i32
    %21 = arith.subi %c7_i32, %c0_i32 : i32
    %c0_29 = arith.constant 0 : index
    %c0_30 = arith.constant 0 : index
    %22 = vector.load %arg12[%c0_29, %c0_30] : memref<8x128xf32, #tpu.memory_space<vmem>>, vector<8x128xf32>
    %c0_31 = arith.constant 0 : index
    %c0_32 = arith.constant 0 : index
    %23 = vector.load %arg13[%c0_31, %c0_32] : memref<8x128xf32, #tpu.memory_space<vmem>>, vector<8x128xf32>
    %c0_33 = arith.constant 0 : index
    %c0_34 = arith.constant 0 : index
    %24 = vector.load %arg14[%c0_33, %c0_34] : memref<8x128xf32, #tpu.memory_space<vmem>>, vector<8x128xf32>
    %c0_35 = arith.constant 0 : index
    %c0_36 = arith.constant 0 : index
    %25 = vector.load %arg15[%c0_35, %c0_36] : memref<8x128xf32, #tpu.memory_space<vmem>>, vector<8x128xf32>
    %26 = arith.truncf %22 : vector<8x128xf32> to vector<8x128xbf16>
    %c0_37 = arith.constant 0 : index
    %c0_38 = arith.constant 0 : index
    %27 = vector.load %arg5[%c0_37, %c0_38] : memref<128x512xbf16, #tpu.memory_space<vmem>>, vector<128x512xbf16>
    %cst_39 = arith.constant dense<0.000000e+00> : vector<8x512xf32>
    %28 = tpu.matmul %26, %27, %cst_39 {dimension_numbers = #tpu.dot_dimension_numbers<[1], [0], [0], [1], [0, 0, 1, 1], [], []>} : vector<8x128xbf16>, vector<128x512xbf16>, vector<8x512xf32> -> vector<8x512xf32>
    %29 = arith.truncf %24 : vector<8x128xf32> to vector<8x128xbf16>
    %c0_40 = arith.constant 0 : index
    %c0_41 = arith.constant 0 : index
    %30 = vector.load %arg6[%c0_40, %c0_41] : memref<128x512xbf16, #tpu.memory_space<vmem>>, vector<128x512xbf16>
    %cst_42 = arith.constant dense<0.000000e+00> : vector<8x512xf32>
    %31 = tpu.matmul %29, %30, %cst_42 {dimension_numbers = #tpu.dot_dimension_numbers<[1], [0], [0], [1], [0, 0, 1, 1], [], []>} : vector<8x128xbf16>, vector<128x512xbf16>, vector<8x512xf32> -> vector<8x512xf32>
    %32 = arith.index_cast %c0_i32 : i32 to index
    %c0_43 = arith.constant 0 : index
    %c0_44 = arith.constant 0 : index
    %33 = vector.load %arg11[%32, %c0_43, %c0_44] : memref<8x8x1024xf32, #tpu.memory_space<vmem>>, vector<1x8x512xf32>
    %34 = vector.shape_cast %33 : vector<1x8x512xf32> to vector<8x512xf32>
    %35 = arith.index_cast %21 : i32 to index
    %c0_45 = arith.constant 0 : index
    %c512 = arith.constant 512 : index
    %36 = vector.load %arg11[%35, %c0_45, %c512] : memref<8x8x1024xf32, #tpu.memory_space<vmem>>, vector<1x8x512xf32>
    %37 = vector.shape_cast %36 : vector<1x8x512xf32> to vector<8x512xf32>
    %38 = arith.addf %34, %28 : vector<8x512xf32>
    %39 = vector.extract_strided_slice %38 {offsets = [0, 0], sizes = [8, 128], strides = [1, 1]} : vector<8x512xf32> to vector<8x128xf32>
    %40 = arith.negf %39 : vector<8x128xf32>
    %41 = math.exp %40 : vector<8x128xf32>
    %cst_46 = arith.constant 1.000000e+00 : f32
    %42 = vector.broadcast %cst_46 : f32 to vector<8x128xf32>
    %43 = arith.addf %42, %41 : vector<8x128xf32>
    %44 = arith.divf %42, %43 : vector<8x128xf32>
    %45 = vector.extract_strided_slice %38 {offsets = [0, 128], sizes = [8, 128], strides = [1, 1]} : vector<8x512xf32> to vector<8x128xf32>
    %46 = arith.negf %45 : vector<8x128xf32>
    %47 = math.exp %46 : vector<8x128xf32>
    %cst_47 = arith.constant 1.000000e+00 : f32
    %48 = vector.broadcast %cst_47 : f32 to vector<8x128xf32>
    %49 = arith.addf %48, %47 : vector<8x128xf32>
    %50 = arith.divf %48, %49 : vector<8x128xf32>
    %51 = vector.extract_strided_slice %38 {offsets = [0, 256], sizes = [8, 128], strides = [1, 1]} : vector<8x512xf32> to vector<8x128xf32>
    %52 = math.tanh %51 : vector<8x128xf32>
    %53 = vector.extract_strided_slice %38 {offsets = [0, 384], sizes = [8, 128], strides = [1, 1]} : vector<8x512xf32> to vector<8x128xf32>
    %54 = arith.negf %53 : vector<8x128xf32>
    %55 = math.exp %54 : vector<8x128xf32>
    %cst_48 = arith.constant 1.000000e+00 : f32
    %56 = vector.broadcast %cst_48 : f32 to vector<8x128xf32>
    %57 = arith.addf %56, %55 : vector<8x128xf32>
    %58 = arith.divf %56, %57 : vector<8x128xf32>
    %59 = arith.mulf %50, %23 : vector<8x128xf32>
    %60 = arith.mulf %44, %52 : vector<8x128xf32>
    %61 = arith.addf %59, %60 : vector<8x128xf32>
    %62 = math.tanh %61 : vector<8x128xf32>
    %63 = arith.mulf %58, %62 : vector<8x128xf32>
    %64 = arith.addf %37, %31 : vector<8x512xf32>
    %65 = vector.extract_strided_slice %64 {offsets = [0, 0], sizes = [8, 128], strides = [1, 1]} : vector<8x512xf32> to vector<8x128xf32>
    %66 = arith.negf %65 : vector<8x128xf32>
    %67 = math.exp %66 : vector<8x128xf32>
    %cst_49 = arith.constant 1.000000e+00 : f32
    %68 = vector.broadcast %cst_49 : f32 to vector<8x128xf32>
    %69 = arith.addf %68, %67 : vector<8x128xf32>
    %70 = arith.divf %68, %69 : vector<8x128xf32>
    %71 = vector.extract_strided_slice %64 {offsets = [0, 128], sizes = [8, 128], strides = [1, 1]} : vector<8x512xf32> to vector<8x128xf32>
    %72 = arith.negf %71 : vector<8x128xf32>
    %73 = math.exp %72 : vector<8x128xf32>
    %cst_50 = arith.constant 1.000000e+00 : f32
    %74 = vector.broadcast %cst_50 : f32 to vector<8x128xf32>
    %75 = arith.addf %74, %73 : vector<8x128xf32>
    %76 = arith.divf %74, %75 : vector<8x128xf32>
    %77 = vector.extract_strided_slice %64 {offsets = [0, 256], sizes = [8, 128], strides = [1, 1]} : vector<8x512xf32> to vector<8x128xf32>
    %78 = math.tanh %77 : vector<8x128xf32>
    %79 = vector.extract_strided_slice %64 {offsets = [0, 384], sizes = [8, 128], strides = [1, 1]} : vector<8x512xf32> to vector<8x128xf32>
    %80 = arith.negf %79 : vector<8x128xf32>
    %81 = math.exp %80 : vector<8x128xf32>
    %cst_51 = arith.constant 1.000000e+00 : f32
    %82 = vector.broadcast %cst_51 : f32 to vector<8x128xf32>
    %83 = arith.addf %82, %81 : vector<8x128xf32>
    %84 = arith.divf %82, %83 : vector<8x128xf32>
    %85 = arith.mulf %76, %25 : vector<8x128xf32>
    %86 = arith.mulf %70, %78 : vector<8x128xf32>
    %87 = arith.addf %85, %86 : vector<8x128xf32>
    %88 = math.tanh %87 : vector<8x128xf32>
    %89 = arith.mulf %84, %88 : vector<8x128xf32>
    %90 = vector.broadcast %c0_i32 : i32 to vector<8x1xi32>
    %91 = arith.cmpi sgt, %20, %90 : vector<8x1xi32>
    %92 = vector.broadcast %21 : i32 to vector<8x1xi32>
    %93 = arith.cmpi sgt, %20, %92 : vector<8x1xi32>
    %94 = vector.shape_cast %91 : vector<8x1xi1> to vector<8x1xi1>
    %95 = vector.broadcast %94 : vector<8x1xi1> to vector<8x128xi1>
    %96 = arith.select %95, %63, %22 : vector<8x128xi1>, vector<8x128xf32>
    %c0_52 = arith.constant 0 : index
    %c0_53 = arith.constant 0 : index
    %97 = vector.load %arg12[%c0_52, %c0_53] : memref<8x128xf32, #tpu.memory_space<vmem>>, vector<8x128xf32>
    tpu.vector_store %arg12[%c0_52, %c0_53], %96 {strides = array<i32>} : memref<8x128xf32, #tpu.memory_space<vmem>>, vector<8x128xf32>,
    %98 = vector.shape_cast %91 : vector<8x1xi1> to vector<8x1xi1>
    %99 = vector.broadcast %98 : vector<8x1xi1> to vector<8x128xi1>
    %100 = arith.select %99, %61, %23 : vector<8x128xi1>, vector<8x128xf32>
    %c0_54 = arith.constant 0 : index
    %c0_55 = arith.constant 0 : index
    %101 = vector.load %arg13[%c0_54, %c0_55] : memref<8x128xf32, #tpu.memory_space<vmem>>, vector<8x128xf32>
    tpu.vector_store %arg13[%c0_54, %c0_55], %100 {strides = array<i32>} : memref<8x128xf32, #tpu.memory_space<vmem>>, vector<8x128xf32>,
    %102 = vector.shape_cast %93 : vector<8x1xi1> to vector<8x1xi1>
    %103 = vector.broadcast %102 : vector<8x1xi1> to vector<8x128xi1>
    %104 = arith.select %103, %89, %24 : vector<8x128xi1>, vector<8x128xf32>
    %c0_56 = arith.constant 0 : index
    %c0_57 = arith.constant 0 : index
    %105 = vector.load %arg14[%c0_56, %c0_57] : memref<8x128xf32, #tpu.memory_space<vmem>>, vector<8x128xf32>
    tpu.vector_store %arg14[%c0_56, %c0_57], %104 {strides = array<i32>} : memref<8x128xf32, #tpu.memory_space<vmem>>, vector<8x128xf32>,
    %106 = vector.shape_cast %93 : vector<8x1xi1> to vector<8x1xi1>
    %107 = vector.broadcast %106 : vector<8x1xi1> to vector<8x128xi1>
    %108 = arith.select %107, %87, %25 : vector<8x128xi1>, vector<8x128xf32>
    %c0_58 = arith.constant 0 : index
    %c0_59 = arith.constant 0 : index
    %109 = vector.load %arg15[%c0_58, %c0_59] : memref<8x128xf32, #tpu.memory_space<vmem>>, vector<8x128xf32>
    tpu.vector_store %arg15[%c0_58, %c0_59], %108 {strides = array<i32>} : memref<8x128xf32, #tpu.memory_space<vmem>>, vector<8x128xf32>,
    %cst_60 = arith.constant 0.000000e+00 : f32
    %110 = vector.shape_cast %91 : vector<8x1xi1> to vector<8x1xi1>
    %111 = vector.broadcast %110 : vector<8x1xi1> to vector<8x128xi1>
    %112 = vector.broadcast %cst_60 : f32 to vector<8x128xf32>
    %113 = arith.select %111, %63, %112 : vector<8x128xi1>, vector<8x128xf32>
    %114 = arith.index_cast %c0_i32 : i32 to index
    %c0_61 = arith.constant 0 : index
    %c0_62 = arith.constant 0 : index
    %115 = vector.load %arg8[%114, %c0_61, %c0_62] : memref<8x8x256xf32, #tpu.memory_space<vmem>>, vector<1x8x128xf32>
    %116 = vector.shape_cast %115 : vector<1x8x128xf32> to vector<8x128xf32>
    %117 = vector.shape_cast %113 : vector<8x128xf32> to vector<1x8x128xf32>
    tpu.vector_store %arg8[%114, %c0_61, %c0_62], %117 {strides = array<i32>} : memref<8x8x256xf32, #tpu.memory_space<vmem>>, vector<1x8x128xf32>,
    %cst_63 = arith.constant 0.000000e+00 : f32
    %118 = vector.shape_cast %93 : vector<8x1xi1> to vector<8x1xi1>
    %119 = vector.broadcast %118 : vector<8x1xi1> to vector<8x128xi1>
    %120 = vector.broadcast %cst_63 : f32 to vector<8x128xf32>
    %121 = arith.select %119, %89, %120 : vector<8x128xi1>, vector<8x128xf32>
    %122 = arith.index_cast %21 : i32 to index
    %c0_64 = arith.constant 0 : index
    %c128 = arith.constant 128 : index
    %123 = vector.load %arg8[%122, %c0_64, %c128] : memref<8x8x256xf32, #tpu.memory_space<vmem>>, vector<1x8x128xf32>
    %124 = vector.shape_cast %123 : vector<1x8x128xf32> to vector<8x128xf32>
    %125 = vector.shape_cast %121 : vector<8x128xf32> to vector<1x8x128xf32>
    tpu.vector_store %arg8[%122, %c0_64, %c128], %125 {strides = array<i32>} : memref<8x8x256xf32, #tpu.memory_space<vmem>>, vector<1x8x128xf32>,
    %c1_i32 = arith.constant 1 : i32
    %c7_i32_65 = arith.constant 7 : i32
    %126 = arith.subi %c7_i32_65, %c1_i32 : i32
    %c0_66 = arith.constant 0 : index
    %c0_67 = arith.constant 0 : index
    %127 = vector.load %arg12[%c0_66, %c0_67] : memref<8x128xf32, #tpu.memory_space<vmem>>, vector<8x128xf32>
    %c0_68 = arith.constant 0 : index
    %c0_69 = arith.constant 0 : index
    %128 = vector.load %arg13[%c0_68, %c0_69] : memref<8x128xf32, #tpu.memory_space<vmem>>, vector<8x128xf32>
    %c0_70 = arith.constant 0 : index
    %c0_71 = arith.constant 0 : index
    %129 = vector.load %arg14[%c0_70, %c0_71] : memref<8x128xf32, #tpu.memory_space<vmem>>, vector<8x128xf32>
    %c0_72 = arith.constant 0 : index
    %c0_73 = arith.constant 0 : index
    %130 = vector.load %arg15[%c0_72, %c0_73] : memref<8x128xf32, #tpu.memory_space<vmem>>, vector<8x128xf32>
    %131 = arith.truncf %127 : vector<8x128xf32> to vector<8x128xbf16>
    %c0_74 = arith.constant 0 : index
    %c0_75 = arith.constant 0 : index
    %132 = vector.load %arg5[%c0_74, %c0_75] : memref<128x512xbf16, #tpu.memory_space<vmem>>, vector<128x512xbf16>
    %cst_76 = arith.constant dense<0.000000e+00> : vector<8x512xf32>
    %133 = tpu.matmul %131, %132, %cst_76 {dimension_numbers = #tpu.dot_dimension_numbers<[1], [0], [0], [1], [0, 0, 1, 1], [], []>} : vector<8x128xbf16>, vector<128x512xbf16>, vector<8x512xf32> -> vector<8x512xf32>
    %134 = arith.truncf %129 : vector<8x128xf32> to vector<8x128xbf16>
    %c0_77 = arith.constant 0 : index
    %c0_78 = arith.constant 0 : index
    %135 = vector.load %arg6[%c0_77, %c0_78] : memref<128x512xbf16, #tpu.memory_space<vmem>>, vector<128x512xbf16>
    %cst_79 = arith.constant dense<0.000000e+00> : vector<8x512xf32>
    %136 = tpu.matmul %134, %135, %cst_79 {dimension_numbers = #tpu.dot_dimension_numbers<[1], [0], [0], [1], [0, 0, 1, 1], [], []>} : vector<8x128xbf16>, vector<128x512xbf16>, vector<8x512xf32> -> vector<8x512xf32>
    %137 = arith.index_cast %c1_i32 : i32 to index
    %c0_80 = arith.constant 0 : index
    %c0_81 = arith.constant 0 : index
    %138 = vector.load %arg11[%137, %c0_80, %c0_81] : memref<8x8x1024xf32, #tpu.memory_space<vmem>>, vector<1x8x512xf32>
    %139 = vector.shape_cast %138 : vector<1x8x512xf32> to vector<8x512xf32>
    %140 = arith.index_cast %126 : i32 to index
    %c0_82 = arith.constant 0 : index
    %c512_83 = arith.constant 512 : index
    %141 = vector.load %arg11[%140, %c0_82, %c512_83] : memref<8x8x1024xf32, #tpu.memory_space<vmem>>, vector<1x8x512xf32>
    %142 = vector.shape_cast %141 : vector<1x8x512xf32> to vector<8x512xf32>
    %143 = arith.addf %139, %133 : vector<8x512xf32>
    %144 = vector.extract_strided_slice %143 {offsets = [0, 0], sizes = [8, 128], strides = [1, 1]} : vector<8x512xf32> to vector<8x128xf32>
    %145 = arith.negf %144 : vector<8x128xf32>
    %146 = math.exp %145 : vector<8x128xf32>
    %cst_84 = arith.constant 1.000000e+00 : f32
    %147 = vector.broadcast %cst_84 : f32 to vector<8x128xf32>
    %148 = arith.addf %147, %146 : vector<8x128xf32>
    %149 = arith.divf %147, %148 : vector<8x128xf32>
    %150 = vector.extract_strided_slice %143 {offsets = [0, 128], sizes = [8, 128], strides = [1, 1]} : vector<8x512xf32> to vector<8x128xf32>
    %151 = arith.negf %150 : vector<8x128xf32>
    %152 = math.exp %151 : vector<8x128xf32>
    %cst_85 = arith.constant 1.000000e+00 : f32
    %153 = vector.broadcast %cst_85 : f32 to vector<8x128xf32>
    %154 = arith.addf %153, %152 : vector<8x128xf32>
    %155 = arith.divf %153, %154 : vector<8x128xf32>
    %156 = vector.extract_strided_slice %143 {offsets = [0, 256], sizes = [8, 128], strides = [1, 1]} : vector<8x512xf32> to vector<8x128xf32>
    %157 = math.tanh %156 : vector<8x128xf32>
    %158 = vector.extract_strided_slice %143 {offsets = [0, 384], sizes = [8, 128], strides = [1, 1]} : vector<8x512xf32> to vector<8x128xf32>
    %159 = arith.negf %158 : vector<8x128xf32>
    %160 = math.exp %159 : vector<8x128xf32>
    %cst_86 = arith.constant 1.000000e+00 : f32
    %161 = vector.broadcast %cst_86 : f32 to vector<8x128xf32>
    %162 = arith.addf %161, %160 : vector<8x128xf32>
    %163 = arith.divf %161, %162 : vector<8x128xf32>
    %164 = arith.mulf %155, %128 : vector<8x128xf32>
    %165 = arith.mulf %149, %157 : vector<8x128xf32>
    %166 = arith.addf %164, %165 : vector<8x128xf32>
    %167 = math.tanh %166 : vector<8x128xf32>
    %168 = arith.mulf %163, %167 : vector<8x128xf32>
    %169 = arith.addf %142, %136 : vector<8x512xf32>
    %170 = vector.extract_strided_slice %169 {offsets = [0, 0], sizes = [8, 128], strides = [1, 1]} : vector<8x512xf32> to vector<8x128xf32>
    %171 = arith.negf %170 : vector<8x128xf32>
    %172 = math.exp %171 : vector<8x128xf32>
    %cst_87 = arith.constant 1.000000e+00 : f32
    %173 = vector.broadcast %cst_87 : f32 to vector<8x128xf32>
    %174 = arith.addf %173, %172 : vector<8x128xf32>
    %175 = arith.divf %173, %174 : vector<8x128xf32>
    %176 = vector.extract_strided_slice %169 {offsets = [0, 128], sizes = [8, 128], strides = [1, 1]} : vector<8x512xf32> to vector<8x128xf32>
    %177 = arith.negf %176 : vector<8x128xf32>
    %178 = math.exp %177 : vector<8x128xf32>
    %cst_88 = arith.constant 1.000000e+00 : f32
    %179 = vector.broadcast %cst_88 : f32 to vector<8x128xf32>
    %180 = arith.addf %179, %178 : vector<8x128xf32>
    %181 = arith.divf %179, %180 : vector<8x128xf32>
    %182 = vector.extract_strided_slice %169 {offsets = [0, 256], sizes = [8, 128], strides = [1, 1]} : vector<8x512xf32> to vector<8x128xf32>
    %183 = math.tanh %182 : vector<8x128xf32>
    %184 = vector.extract_strided_slice %169 {offsets = [0, 384], sizes = [8, 128], strides = [1, 1]} : vector<8x512xf32> to vector<8x128xf32>
    %185 = arith.negf %184 : vector<8x128xf32>
    %186 = math.exp %185 : vector<8x128xf32>
    %cst_89 = arith.constant 1.000000e+00 : f32
    %187 = vector.broadcast %cst_89 : f32 to vector<8x128xf32>
    %188 = arith.addf %187, %186 : vector<8x128xf32>
    %189 = arith.divf %187, %188 : vector<8x128xf32>
    %190 = arith.mulf %181, %130 : vector<8x128xf32>
    %191 = arith.mulf %175, %183 : vector<8x128xf32>
    %192 = arith.addf %190, %191 : vector<8x128xf32>
    %193 = math.tanh %192 : vector<8x128xf32>
    %194 = arith.mulf %189, %193 : vector<8x128xf32>
    %195 = vector.broadcast %c1_i32 : i32 to vector<8x1xi32>
    %196 = arith.cmpi sgt, %20, %195 : vector<8x1xi32>
    %197 = vector.broadcast %126 : i32 to vector<8x1xi32>
    %198 = arith.cmpi sgt, %20, %197 : vector<8x1xi32>
    %199 = vector.shape_cast %196 : vector<8x1xi1> to vector<8x1xi1>
    %200 = vector.broadcast %199 : vector<8x1xi1> to vector<8x128xi1>
    %201 = arith.select %200, %168, %127 : vector<8x128xi1>, vector<8x128xf32>
    %c0_90 = arith.constant 0 : index
    %c0_91 = arith.constant 0 : index
    %202 = vector.load %arg12[%c0_90, %c0_91] : memref<8x128xf32, #tpu.memory_space<vmem>>, vector<8x128xf32>
    tpu.vector_store %arg12[%c0_90, %c0_91], %201 {strides = array<i32>} : memref<8x128xf32, #tpu.memory_space<vmem>>, vector<8x128xf32>,
    %203 = vector.shape_cast %196 : vector<8x1xi1> to vector<8x1xi1>
    %204 = vector.broadcast %203 : vector<8x1xi1> to vector<8x128xi1>
    %205 = arith.select %204, %166, %128 : vector<8x128xi1>, vector<8x128xf32>
    %c0_92 = arith.constant 0 : index
    %c0_93 = arith.constant 0 : index
    %206 = vector.load %arg13[%c0_92, %c0_93] : memref<8x128xf32, #tpu.memory_space<vmem>>, vector<8x128xf32>
    tpu.vector_store %arg13[%c0_92, %c0_93], %205 {strides = array<i32>} : memref<8x128xf32, #tpu.memory_space<vmem>>, vector<8x128xf32>,
    %207 = vector.shape_cast %198 : vector<8x1xi1> to vector<8x1xi1>
    %208 = vector.broadcast %207 : vector<8x1xi1> to vector<8x128xi1>
    %209 = arith.select %208, %194, %129 : vector<8x128xi1>, vector<8x128xf32>
    %c0_94 = arith.constant 0 : index
    %c0_95 = arith.constant 0 : index
    %210 = vector.load %arg14[%c0_94, %c0_95] : memref<8x128xf32, #tpu.memory_space<vmem>>, vector<8x128xf32>
    tpu.vector_store %arg14[%c0_94, %c0_95], %209 {strides = array<i32>} : memref<8x128xf32, #tpu.memory_space<vmem>>, vector<8x128xf32>,
    %211 = vector.shape_cast %198 : vector<8x1xi1> to vector<8x1xi1>
    %212 = vector.broadcast %211 : vector<8x1xi1> to vector<8x128xi1>
    %213 = arith.select %212, %192, %130 : vector<8x128xi1>, vector<8x128xf32>
    %c0_96 = arith.constant 0 : index
    %c0_97 = arith.constant 0 : index
    %214 = vector.load %arg15[%c0_96, %c0_97] : memref<8x128xf32, #tpu.memory_space<vmem>>, vector<8x128xf32>
    tpu.vector_store %arg15[%c0_96, %c0_97], %213 {strides = array<i32>} : memref<8x128xf32, #tpu.memory_space<vmem>>, vector<8x128xf32>,
    %cst_98 = arith.constant 0.000000e+00 : f32
    %215 = vector.shape_cast %196 : vector<8x1xi1> to vector<8x1xi1>
    %216 = vector.broadcast %215 : vector<8x1xi1> to vector<8x128xi1>
    %217 = vector.broadcast %cst_98 : f32 to vector<8x128xf32>
    %218 = arith.select %216, %168, %217 : vector<8x128xi1>, vector<8x128xf32>
    %219 = arith.index_cast %c1_i32 : i32 to index
    %c0_99 = arith.constant 0 : index
    %c0_100 = arith.constant 0 : index
    %220 = vector.load %arg8[%219, %c0_99, %c0_100] : memref<8x8x256xf32, #tpu.memory_space<vmem>>, vector<1x8x128xf32>
    %221 = vector.shape_cast %220 : vector<1x8x128xf32> to vector<8x128xf32>
    %222 = vector.shape_cast %218 : vector<8x128xf32> to vector<1x8x128xf32>
    tpu.vector_store %arg8[%219, %c0_99, %c0_100], %222 {strides = array<i32>} : memref<8x8x256xf32, #tpu.memory_space<vmem>>, vector<1x8x128xf32>,
    %cst_101 = arith.constant 0.000000e+00 : f32
    %223 = vector.shape_cast %198 : vector<8x1xi1> to vector<8x1xi1>
    %224 = vector.broadcast %223 : vector<8x1xi1> to vector<8x128xi1>
    %225 = vector.broadcast %cst_101 : f32 to vector<8x128xf32>
    %226 = arith.select %224, %194, %225 : vector<8x128xi1>, vector<8x128xf32>
    %227 = arith.index_cast %126 : i32 to index
    %c0_102 = arith.constant 0 : index
    %c128_103 = arith.constant 128 : index
    %228 = vector.load %arg8[%227, %c0_102, %c128_103] : memref<8x8x256xf32, #tpu.memory_space<vmem>>, vector<1x8x128xf32>
    %229 = vector.shape_cast %228 : vector<1x8x128xf32> to vector<8x128xf32>
    %230 = vector.shape_cast %226 : vector<8x128xf32> to vector<1x8x128xf32>
    tpu.vector_store %arg8[%227, %c0_102, %c128_103], %230 {strides = array<i32>} : memref<8x8x256xf32, #tpu.memory_space<vmem>>, vector<1x8x128xf32>,
    %c2_i32 = arith.constant 2 : i32
    %c7_i32_104 = arith.constant 7 : i32
    %231 = arith.subi %c7_i32_104, %c2_i32 : i32
    %c0_105 = arith.constant 0 : index
    %c0_106 = arith.constant 0 : index
    %232 = vector.load %arg12[%c0_105, %c0_106] : memref<8x128xf32, #tpu.memory_space<vmem>>, vector<8x128xf32>
    %c0_107 = arith.constant 0 : index
    %c0_108 = arith.constant 0 : index
    %233 = vector.load %arg13[%c0_107, %c0_108] : memref<8x128xf32, #tpu.memory_space<vmem>>, vector<8x128xf32>
    %c0_109 = arith.constant 0 : index
    %c0_110 = arith.constant 0 : index
    %234 = vector.load %arg14[%c0_109, %c0_110] : memref<8x128xf32, #tpu.memory_space<vmem>>, vector<8x128xf32>
    %c0_111 = arith.constant 0 : index
    %c0_112 = arith.constant 0 : index
    %235 = vector.load %arg15[%c0_111, %c0_112] : memref<8x128xf32, #tpu.memory_space<vmem>>, vector<8x128xf32>
    %236 = arith.truncf %232 : vector<8x128xf32> to vector<8x128xbf16>
    %c0_113 = arith.constant 0 : index
    %c0_114 = arith.constant 0 : index
    %237 = vector.load %arg5[%c0_113, %c0_114] : memref<128x512xbf16, #tpu.memory_space<vmem>>, vector<128x512xbf16>
    %cst_115 = arith.constant dense<0.000000e+00> : vector<8x512xf32>
    %238 = tpu.matmul %236, %237, %cst_115 {dimension_numbers = #tpu.dot_dimension_numbers<[1], [0], [0], [1], [0, 0, 1, 1], [], []>} : vector<8x128xbf16>, vector<128x512xbf16>, vector<8x512xf32> -> vector<8x512xf32>
    %239 = arith.truncf %234 : vector<8x128xf32> to vector<8x128xbf16>
    %c0_116 = arith.constant 0 : index
    %c0_117 = arith.constant 0 : index
    %240 = vector.load %arg6[%c0_116, %c0_117] : memref<128x512xbf16, #tpu.memory_space<vmem>>, vector<128x512xbf16>
    %cst_118 = arith.constant dense<0.000000e+00> : vector<8x512xf32>
    %241 = tpu.matmul %239, %240, %cst_118 {dimension_numbers = #tpu.dot_dimension_numbers<[1], [0], [0], [1], [0, 0, 1, 1], [], []>} : vector<8x128xbf16>, vector<128x512xbf16>, vector<8x512xf32> -> vector<8x512xf32>
    %242 = arith.index_cast %c2_i32 : i32 to index
    %c0_119 = arith.constant 0 : index
    %c0_120 = arith.constant 0 : index
    %243 = vector.load %arg11[%242, %c0_119, %c0_120] : memref<8x8x1024xf32, #tpu.memory_space<vmem>>, vector<1x8x512xf32>
    %244 = vector.shape_cast %243 : vector<1x8x512xf32> to vector<8x512xf32>
    %245 = arith.index_cast %231 : i32 to index
    %c0_121 = arith.constant 0 : index
    %c512_122 = arith.constant 512 : index
    %246 = vector.load %arg11[%245, %c0_121, %c512_122] : memref<8x8x1024xf32, #tpu.memory_space<vmem>>, vector<1x8x512xf32>
    %247 = vector.shape_cast %246 : vector<1x8x512xf32> to vector<8x512xf32>
    %248 = arith.addf %244, %238 : vector<8x512xf32>
    %249 = vector.extract_strided_slice %248 {offsets = [0, 0], sizes = [8, 128], strides = [1, 1]} : vector<8x512xf32> to vector<8x128xf32>
    %250 = arith.negf %249 : vector<8x128xf32>
    %251 = math.exp %250 : vector<8x128xf32>
    %cst_123 = arith.constant 1.000000e+00 : f32
    %252 = vector.broadcast %cst_123 : f32 to vector<8x128xf32>
    %253 = arith.addf %252, %251 : vector<8x128xf32>
    %254 = arith.divf %252, %253 : vector<8x128xf32>
    %255 = vector.extract_strided_slice %248 {offsets = [0, 128], sizes = [8, 128], strides = [1, 1]} : vector<8x512xf32> to vector<8x128xf32>
    %256 = arith.negf %255 : vector<8x128xf32>
    %257 = math.exp %256 : vector<8x128xf32>
    %cst_124 = arith.constant 1.000000e+00 : f32
    %258 = vector.broadcast %cst_124 : f32 to vector<8x128xf32>
    %259 = arith.addf %258, %257 : vector<8x128xf32>
    %260 = arith.divf %258, %259 : vector<8x128xf32>
    %261 = vector.extract_strided_slice %248 {offsets = [0, 256], sizes = [8, 128], strides = [1, 1]} : vector<8x512xf32> to vector<8x128xf32>
    %262 = math.tanh %261 : vector<8x128xf32>
    %263 = vector.extract_strided_slice %248 {offsets = [0, 384], sizes = [8, 128], strides = [1, 1]} : vector<8x512xf32> to vector<8x128xf32>
    %264 = arith.negf %263 : vector<8x128xf32>
    %265 = math.exp %264 : vector<8x128xf32>
    %cst_125 = arith.constant 1.000000e+00 : f32
    %266 = vector.broadcast %cst_125 : f32 to vector<8x128xf32>
    %267 = arith.addf %266, %265 : vector<8x128xf32>
    %268 = arith.divf %266, %267 : vector<8x128xf32>
    %269 = arith.mulf %260, %233 : vector<8x128xf32>
    %270 = arith.mulf %254, %262 : vector<8x128xf32>
    %271 = arith.addf %269, %270 : vector<8x128xf32>
    %272 = math.tanh %271 : vector<8x128xf32>
    %273 = arith.mulf %268, %272 : vector<8x128xf32>
    %274 = arith.addf %247, %241 : vector<8x512xf32>
    %275 = vector.extract_strided_slice %274 {offsets = [0, 0], sizes = [8, 128], strides = [1, 1]} : vector<8x512xf32> to vector<8x128xf32>
    %276 = arith.negf %275 : vector<8x128xf32>
    %277 = math.exp %276 : vector<8x128xf32>
    %cst_126 = arith.constant 1.000000e+00 : f32
    %278 = vector.broadcast %cst_126 : f32 to vector<8x128xf32>
    %279 = arith.addf %278, %277 : vector<8x128xf32>
    %280 = arith.divf %278, %279 : vector<8x128xf32>
    %281 = vector.extract_strided_slice %274 {offsets = [0, 128], sizes = [8, 128], strides = [1, 1]} : vector<8x512xf32> to vector<8x128xf32>
    %282 = arith.negf %281 : vector<8x128xf32>
    %283 = math.exp %282 : vector<8x128xf32>
    %cst_127 = arith.constant 1.000000e+00 : f32
    %284 = vector.broadcast %cst_127 : f32 to vector<8x128xf32>
    %285 = arith.addf %284, %283 : vector<8x128xf32>
    %286 = arith.divf %284, %285 : vector<8x128xf32>
    %287 = vector.extract_strided_slice %274 {offsets = [0, 256], sizes = [8, 128], strides = [1, 1]} : vector<8x512xf32> to vector<8x128xf32>
    %288 = math.tanh %287 : vector<8x128xf32>
    %289 = vector.extract_strided_slice %274 {offsets = [0, 384], sizes = [8, 128], strides = [1, 1]} : vector<8x512xf32> to vector<8x128xf32>
    %290 = arith.negf %289 : vector<8x128xf32>
    %291 = math.exp %290 : vector<8x128xf32>
    %cst_128 = arith.constant 1.000000e+00 : f32
    %292 = vector.broadcast %cst_128 : f32 to vector<8x128xf32>
    %293 = arith.addf %292, %291 : vector<8x128xf32>
    %294 = arith.divf %292, %293 : vector<8x128xf32>
    %295 = arith.mulf %286, %235 : vector<8x128xf32>
    %296 = arith.mulf %280, %288 : vector<8x128xf32>
    %297 = arith.addf %295, %296 : vector<8x128xf32>
    %298 = math.tanh %297 : vector<8x128xf32>
    %299 = arith.mulf %294, %298 : vector<8x128xf32>
    %300 = vector.broadcast %c2_i32 : i32 to vector<8x1xi32>
    %301 = arith.cmpi sgt, %20, %300 : vector<8x1xi32>
    %302 = vector.broadcast %231 : i32 to vector<8x1xi32>
    %303 = arith.cmpi sgt, %20, %302 : vector<8x1xi32>
    %304 = vector.shape_cast %301 : vector<8x1xi1> to vector<8x1xi1>
    %305 = vector.broadcast %304 : vector<8x1xi1> to vector<8x128xi1>
    %306 = arith.select %305, %273, %232 : vector<8x128xi1>, vector<8x128xf32>
    %c0_129 = arith.constant 0 : index
    %c0_130 = arith.constant 0 : index
    %307 = vector.load %arg12[%c0_129, %c0_130] : memref<8x128xf32, #tpu.memory_space<vmem>>, vector<8x128xf32>
    tpu.vector_store %arg12[%c0_129, %c0_130], %306 {strides = array<i32>} : memref<8x128xf32, #tpu.memory_space<vmem>>, vector<8x128xf32>,
    %308 = vector.shape_cast %301 : vector<8x1xi1> to vector<8x1xi1>
    %309 = vector.broadcast %308 : vector<8x1xi1> to vector<8x128xi1>
    %310 = arith.select %309, %271, %233 : vector<8x128xi1>, vector<8x128xf32>
    %c0_131 = arith.constant 0 : index
    %c0_132 = arith.constant 0 : index
    %311 = vector.load %arg13[%c0_131, %c0_132] : memref<8x128xf32, #tpu.memory_space<vmem>>, vector<8x128xf32>
    tpu.vector_store %arg13[%c0_131, %c0_132], %310 {strides = array<i32>} : memref<8x128xf32, #tpu.memory_space<vmem>>, vector<8x128xf32>,
    %312 = vector.shape_cast %303 : vector<8x1xi1> to vector<8x1xi1>
    %313 = vector.broadcast %312 : vector<8x1xi1> to vector<8x128xi1>
    %314 = arith.select %313, %299, %234 : vector<8x128xi1>, vector<8x128xf32>
    %c0_133 = arith.constant 0 : index
    %c0_134 = arith.constant 0 : index
    %315 = vector.load %arg14[%c0_133, %c0_134] : memref<8x128xf32, #tpu.memory_space<vmem>>, vector<8x128xf32>
    tpu.vector_store %arg14[%c0_133, %c0_134], %314 {strides = array<i32>} : memref<8x128xf32, #tpu.memory_space<vmem>>, vector<8x128xf32>,
    %316 = vector.shape_cast %303 : vector<8x1xi1> to vector<8x1xi1>
    %317 = vector.broadcast %316 : vector<8x1xi1> to vector<8x128xi1>
    %318 = arith.select %317, %297, %235 : vector<8x128xi1>, vector<8x128xf32>
    %c0_135 = arith.constant 0 : index
    %c0_136 = arith.constant 0 : index
    %319 = vector.load %arg15[%c0_135, %c0_136] : memref<8x128xf32, #tpu.memory_space<vmem>>, vector<8x128xf32>
    tpu.vector_store %arg15[%c0_135, %c0_136], %318 {strides = array<i32>} : memref<8x128xf32, #tpu.memory_space<vmem>>, vector<8x128xf32>,
    %cst_137 = arith.constant 0.000000e+00 : f32
    %320 = vector.shape_cast %301 : vector<8x1xi1> to vector<8x1xi1>
    %321 = vector.broadcast %320 : vector<8x1xi1> to vector<8x128xi1>
    %322 = vector.broadcast %cst_137 : f32 to vector<8x128xf32>
    %323 = arith.select %321, %273, %322 : vector<8x128xi1>, vector<8x128xf32>
    %324 = arith.index_cast %c2_i32 : i32 to index
    %c0_138 = arith.constant 0 : index
    %c0_139 = arith.constant 0 : index
    %325 = vector.load %arg8[%324, %c0_138, %c0_139] : memref<8x8x256xf32, #tpu.memory_space<vmem>>, vector<1x8x128xf32>
    %326 = vector.shape_cast %325 : vector<1x8x128xf32> to vector<8x128xf32>
    %327 = vector.shape_cast %323 : vector<8x128xf32> to vector<1x8x128xf32>
    tpu.vector_store %arg8[%324, %c0_138, %c0_139], %327 {strides = array<i32>} : memref<8x8x256xf32, #tpu.memory_space<vmem>>, vector<1x8x128xf32>,
    %cst_140 = arith.constant 0.000000e+00 : f32
    %328 = vector.shape_cast %303 : vector<8x1xi1> to vector<8x1xi1>
    %329 = vector.broadcast %328 : vector<8x1xi1> to vector<8x128xi1>
    %330 = vector.broadcast %cst_140 : f32 to vector<8x128xf32>
    %331 = arith.select %329, %299, %330 : vector<8x128xi1>, vector<8x128xf32>
    %332 = arith.index_cast %231 : i32 to index
    %c0_141 = arith.constant 0 : index
    %c128_142 = arith.constant 128 : index
    %333 = vector.load %arg8[%332, %c0_141, %c128_142] : memref<8x8x256xf32, #tpu.memory_space<vmem>>, vector<1x8x128xf32>
    %334 = vector.shape_cast %333 : vector<1x8x128xf32> to vector<8x128xf32>
    %335 = vector.shape_cast %331 : vector<8x128xf32> to vector<1x8x128xf32>
    tpu.vector_store %arg8[%332, %c0_141, %c128_142], %335 {strides = array<i32>} : memref<8x8x256xf32, #tpu.memory_space<vmem>>, vector<1x8x128xf32>,
    %c3_i32 = arith.constant 3 : i32
    %c7_i32_143 = arith.constant 7 : i32
    %336 = arith.subi %c7_i32_143, %c3_i32 : i32
    %c0_144 = arith.constant 0 : index
    %c0_145 = arith.constant 0 : index
    %337 = vector.load %arg12[%c0_144, %c0_145] : memref<8x128xf32, #tpu.memory_space<vmem>>, vector<8x128xf32>
    %c0_146 = arith.constant 0 : index
    %c0_147 = arith.constant 0 : index
    %338 = vector.load %arg13[%c0_146, %c0_147] : memref<8x128xf32, #tpu.memory_space<vmem>>, vector<8x128xf32>
    %c0_148 = arith.constant 0 : index
    %c0_149 = arith.constant 0 : index
    %339 = vector.load %arg14[%c0_148, %c0_149] : memref<8x128xf32, #tpu.memory_space<vmem>>, vector<8x128xf32>
    %c0_150 = arith.constant 0 : index
    %c0_151 = arith.constant 0 : index
    %340 = vector.load %arg15[%c0_150, %c0_151] : memref<8x128xf32, #tpu.memory_space<vmem>>, vector<8x128xf32>
    %341 = arith.truncf %337 : vector<8x128xf32> to vector<8x128xbf16>
    %c0_152 = arith.constant 0 : index
    %c0_153 = arith.constant 0 : index
    %342 = vector.load %arg5[%c0_152, %c0_153] : memref<128x512xbf16, #tpu.memory_space<vmem>>, vector<128x512xbf16>
    %cst_154 = arith.constant dense<0.000000e+00> : vector<8x512xf32>
    %343 = tpu.matmul %341, %342, %cst_154 {dimension_numbers = #tpu.dot_dimension_numbers<[1], [0], [0], [1], [0, 0, 1, 1], [], []>} : vector<8x128xbf16>, vector<128x512xbf16>, vector<8x512xf32> -> vector<8x512xf32>
    %344 = arith.truncf %339 : vector<8x128xf32> to vector<8x128xbf16>
    %c0_155 = arith.constant 0 : index
    %c0_156 = arith.constant 0 : index
    %345 = vector.load %arg6[%c0_155, %c0_156] : memref<128x512xbf16, #tpu.memory_space<vmem>>, vector<128x512xbf16>
    %cst_157 = arith.constant dense<0.000000e+00> : vector<8x512xf32>
    %346 = tpu.matmul %344, %345, %cst_157 {dimension_numbers = #tpu.dot_dimension_numbers<[1], [0], [0], [1], [0, 0, 1, 1], [], []>} : vector<8x128xbf16>, vector<128x512xbf16>, vector<8x512xf32> -> vector<8x512xf32>
    %347 = arith.index_cast %c3_i32 : i32 to index
    %c0_158 = arith.constant 0 : index
    %c0_159 = arith.constant 0 : index
    %348 = vector.load %arg11[%347, %c0_158, %c0_159] : memref<8x8x1024xf32, #tpu.memory_space<vmem>>, vector<1x8x512xf32>
    %349 = vector.shape_cast %348 : vector<1x8x512xf32> to vector<8x512xf32>
    %350 = arith.index_cast %336 : i32 to index
    %c0_160 = arith.constant 0 : index
    %c512_161 = arith.constant 512 : index
    %351 = vector.load %arg11[%350, %c0_160, %c512_161] : memref<8x8x1024xf32, #tpu.memory_space<vmem>>, vector<1x8x512xf32>
    %352 = vector.shape_cast %351 : vector<1x8x512xf32> to vector<8x512xf32>
    %353 = arith.addf %349, %343 : vector<8x512xf32>
    %354 = vector.extract_strided_slice %353 {offsets = [0, 0], sizes = [8, 128], strides = [1, 1]} : vector<8x512xf32> to vector<8x128xf32>
    %355 = arith.negf %354 : vector<8x128xf32>
    %356 = math.exp %355 : vector<8x128xf32>
    %cst_162 = arith.constant 1.000000e+00 : f32
    %357 = vector.broadcast %cst_162 : f32 to vector<8x128xf32>
    %358 = arith.addf %357, %356 : vector<8x128xf32>
    %359 = arith.divf %357, %358 : vector<8x128xf32>
    %360 = vector.extract_strided_slice %353 {offsets = [0, 128], sizes = [8, 128], strides = [1, 1]} : vector<8x512xf32> to vector<8x128xf32>
    %361 = arith.negf %360 : vector<8x128xf32>
    %362 = math.exp %361 : vector<8x128xf32>
    %cst_163 = arith.constant 1.000000e+00 : f32
    %363 = vector.broadcast %cst_163 : f32 to vector<8x128xf32>
    %364 = arith.addf %363, %362 : vector<8x128xf32>
    %365 = arith.divf %363, %364 : vector<8x128xf32>
    %366 = vector.extract_strided_slice %353 {offsets = [0, 256], sizes = [8, 128], strides = [1, 1]} : vector<8x512xf32> to vector<8x128xf32>
    %367 = math.tanh %366 : vector<8x128xf32>
    %368 = vector.extract_strided_slice %353 {offsets = [0, 384], sizes = [8, 128], strides = [1, 1]} : vector<8x512xf32> to vector<8x128xf32>
    %369 = arith.negf %368 : vector<8x128xf32>
    %370 = math.exp %369 : vector<8x128xf32>
    %cst_164 = arith.constant 1.000000e+00 : f32
    %371 = vector.broadcast %cst_164 : f32 to vector<8x128xf32>
    %372 = arith.addf %371, %370 : vector<8x128xf32>
    %373 = arith.divf %371, %372 : vector<8x128xf32>
    %374 = arith.mulf %365, %338 : vector<8x128xf32>
    %375 = arith.mulf %359, %367 : vector<8x128xf32>
    %376 = arith.addf %374, %375 : vector<8x128xf32>
    %377 = math.tanh %376 : vector<8x128xf32>
    %378 = arith.mulf %373, %377 : vector<8x128xf32>
    %379 = arith.addf %352, %346 : vector<8x512xf32>
    %380 = vector.extract_strided_slice %379 {offsets = [0, 0], sizes = [8, 128], strides = [1, 1]} : vector<8x512xf32> to vector<8x128xf32>
    %381 = arith.negf %380 : vector<8x128xf32>
    %382 = math.exp %381 : vector<8x128xf32>
    %cst_165 = arith.constant 1.000000e+00 : f32
    %383 = vector.broadcast %cst_165 : f32 to vector<8x128xf32>
    %384 = arith.addf %383, %382 : vector<8x128xf32>
    %385 = arith.divf %383, %384 : vector<8x128xf32>
    %386 = vector.extract_strided_slice %379 {offsets = [0, 128], sizes = [8, 128], strides = [1, 1]} : vector<8x512xf32> to vector<8x128xf32>
    %387 = arith.negf %386 : vector<8x128xf32>
    %388 = math.exp %387 : vector<8x128xf32>
    %cst_166 = arith.constant 1.000000e+00 : f32
    %389 = vector.broadcast %cst_166 : f32 to vector<8x128xf32>
    %390 = arith.addf %389, %388 : vector<8x128xf32>
    %391 = arith.divf %389, %390 : vector<8x128xf32>
    %392 = vector.extract_strided_slice %379 {offsets = [0, 256], sizes = [8, 128], strides = [1, 1]} : vector<8x512xf32> to vector<8x128xf32>
    %393 = math.tanh %392 : vector<8x128xf32>
    %394 = vector.extract_strided_slice %379 {offsets = [0, 384], sizes = [8, 128], strides = [1, 1]} : vector<8x512xf32> to vector<8x128xf32>
    %395 = arith.negf %394 : vector<8x128xf32>
    %396 = math.exp %395 : vector<8x128xf32>
    %cst_167 = arith.constant 1.000000e+00 : f32
    %397 = vector.broadcast %cst_167 : f32 to vector<8x128xf32>
    %398 = arith.addf %397, %396 : vector<8x128xf32>
    %399 = arith.divf %397, %398 : vector<8x128xf32>
    %400 = arith.mulf %391, %340 : vector<8x128xf32>
    %401 = arith.mulf %385, %393 : vector<8x128xf32>
    %402 = arith.addf %400, %401 : vector<8x128xf32>
    %403 = math.tanh %402 : vector<8x128xf32>
    %404 = arith.mulf %399, %403 : vector<8x128xf32>
    %405 = vector.broadcast %c3_i32 : i32 to vector<8x1xi32>
    %406 = arith.cmpi sgt, %20, %405 : vector<8x1xi32>
    %407 = vector.broadcast %336 : i32 to vector<8x1xi32>
    %408 = arith.cmpi sgt, %20, %407 : vector<8x1xi32>
    %409 = vector.shape_cast %406 : vector<8x1xi1> to vector<8x1xi1>
    %410 = vector.broadcast %409 : vector<8x1xi1> to vector<8x128xi1>
    %411 = arith.select %410, %378, %337 : vector<8x128xi1>, vector<8x128xf32>
    %c0_168 = arith.constant 0 : index
    %c0_169 = arith.constant 0 : index
    %412 = vector.load %arg12[%c0_168, %c0_169] : memref<8x128xf32, #tpu.memory_space<vmem>>, vector<8x128xf32>
    tpu.vector_store %arg12[%c0_168, %c0_169], %411 {strides = array<i32>} : memref<8x128xf32, #tpu.memory_space<vmem>>, vector<8x128xf32>,
    %413 = vector.shape_cast %406 : vector<8x1xi1> to vector<8x1xi1>
    %414 = vector.broadcast %413 : vector<8x1xi1> to vector<8x128xi1>
    %415 = arith.select %414, %376, %338 : vector<8x128xi1>, vector<8x128xf32>
    %c0_170 = arith.constant 0 : index
    %c0_171 = arith.constant 0 : index
    %416 = vector.load %arg13[%c0_170, %c0_171] : memref<8x128xf32, #tpu.memory_space<vmem>>, vector<8x128xf32>
    tpu.vector_store %arg13[%c0_170, %c0_171], %415 {strides = array<i32>} : memref<8x128xf32, #tpu.memory_space<vmem>>, vector<8x128xf32>,
    %417 = vector.shape_cast %408 : vector<8x1xi1> to vector<8x1xi1>
    %418 = vector.broadcast %417 : vector<8x1xi1> to vector<8x128xi1>
    %419 = arith.select %418, %404, %339 : vector<8x128xi1>, vector<8x128xf32>
    %c0_172 = arith.constant 0 : index
    %c0_173 = arith.constant 0 : index
    %420 = vector.load %arg14[%c0_172, %c0_173] : memref<8x128xf32, #tpu.memory_space<vmem>>, vector<8x128xf32>
    tpu.vector_store %arg14[%c0_172, %c0_173], %419 {strides = array<i32>} : memref<8x128xf32, #tpu.memory_space<vmem>>, vector<8x128xf32>,
    %421 = vector.shape_cast %408 : vector<8x1xi1> to vector<8x1xi1>
    %422 = vector.broadcast %421 : vector<8x1xi1> to vector<8x128xi1>
    %423 = arith.select %422, %402, %340 : vector<8x128xi1>, vector<8x128xf32>
    %c0_174 = arith.constant 0 : index
    %c0_175 = arith.constant 0 : index
    %424 = vector.load %arg15[%c0_174, %c0_175] : memref<8x128xf32, #tpu.memory_space<vmem>>, vector<8x128xf32>
    tpu.vector_store %arg15[%c0_174, %c0_175], %423 {strides = array<i32>} : memref<8x128xf32, #tpu.memory_space<vmem>>, vector<8x128xf32>,
    %cst_176 = arith.constant 0.000000e+00 : f32
    %425 = vector.shape_cast %406 : vector<8x1xi1> to vector<8x1xi1>
    %426 = vector.broadcast %425 : vector<8x1xi1> to vector<8x128xi1>
    %427 = vector.broadcast %cst_176 : f32 to vector<8x128xf32>
    %428 = arith.select %426, %378, %427 : vector<8x128xi1>, vector<8x128xf32>
    %429 = arith.index_cast %c3_i32 : i32 to index
    %c0_177 = arith.constant 0 : index
    %c0_178 = arith.constant 0 : index
    %430 = vector.load %arg8[%429, %c0_177, %c0_178] : memref<8x8x256xf32, #tpu.memory_space<vmem>>, vector<1x8x128xf32>
    %431 = vector.shape_cast %430 : vector<1x8x128xf32> to vector<8x128xf32>
    %432 = vector.shape_cast %428 : vector<8x128xf32> to vector<1x8x128xf32>
    tpu.vector_store %arg8[%429, %c0_177, %c0_178], %432 {strides = array<i32>} : memref<8x8x256xf32, #tpu.memory_space<vmem>>, vector<1x8x128xf32>,
    %cst_179 = arith.constant 0.000000e+00 : f32
    %433 = vector.shape_cast %408 : vector<8x1xi1> to vector<8x1xi1>
    %434 = vector.broadcast %433 : vector<8x1xi1> to vector<8x128xi1>
    %435 = vector.broadcast %cst_179 : f32 to vector<8x128xf32>
    %436 = arith.select %434, %404, %435 : vector<8x128xi1>, vector<8x128xf32>
    %437 = arith.index_cast %336 : i32 to index
    %c0_180 = arith.constant 0 : index
    %c128_181 = arith.constant 128 : index
    %438 = vector.load %arg8[%437, %c0_180, %c128_181] : memref<8x8x256xf32, #tpu.memory_space<vmem>>, vector<1x8x128xf32>
    %439 = vector.shape_cast %438 : vector<1x8x128xf32> to vector<8x128xf32>
    %440 = vector.shape_cast %436 : vector<8x128xf32> to vector<1x8x128xf32>
    tpu.vector_store %arg8[%437, %c0_180, %c128_181], %440 {strides = array<i32>} : memref<8x8x256xf32, #tpu.memory_space<vmem>>, vector<1x8x128xf32>,
    %c4_i32 = arith.constant 4 : i32
    %c7_i32_182 = arith.constant 7 : i32
    %441 = arith.subi %c7_i32_182, %c4_i32 : i32
    %c0_183 = arith.constant 0 : index
    %c0_184 = arith.constant 0 : index
    %442 = vector.load %arg12[%c0_183, %c0_184] : memref<8x128xf32, #tpu.memory_space<vmem>>, vector<8x128xf32>
    %c0_185 = arith.constant 0 : index
    %c0_186 = arith.constant 0 : index
    %443 = vector.load %arg13[%c0_185, %c0_186] : memref<8x128xf32, #tpu.memory_space<vmem>>, vector<8x128xf32>
    %c0_187 = arith.constant 0 : index
    %c0_188 = arith.constant 0 : index
    %444 = vector.load %arg14[%c0_187, %c0_188] : memref<8x128xf32, #tpu.memory_space<vmem>>, vector<8x128xf32>
    %c0_189 = arith.constant 0 : index
    %c0_190 = arith.constant 0 : index
    %445 = vector.load %arg15[%c0_189, %c0_190] : memref<8x128xf32, #tpu.memory_space<vmem>>, vector<8x128xf32>
    %446 = arith.truncf %442 : vector<8x128xf32> to vector<8x128xbf16>
    %c0_191 = arith.constant 0 : index
    %c0_192 = arith.constant 0 : index
    %447 = vector.load %arg5[%c0_191, %c0_192] : memref<128x512xbf16, #tpu.memory_space<vmem>>, vector<128x512xbf16>
    %cst_193 = arith.constant dense<0.000000e+00> : vector<8x512xf32>
    %448 = tpu.matmul %446, %447, %cst_193 {dimension_numbers = #tpu.dot_dimension_numbers<[1], [0], [0], [1], [0, 0, 1, 1], [], []>} : vector<8x128xbf16>, vector<128x512xbf16>, vector<8x512xf32> -> vector<8x512xf32>
    %449 = arith.truncf %444 : vector<8x128xf32> to vector<8x128xbf16>
    %c0_194 = arith.constant 0 : index
    %c0_195 = arith.constant 0 : index
    %450 = vector.load %arg6[%c0_194, %c0_195] : memref<128x512xbf16, #tpu.memory_space<vmem>>, vector<128x512xbf16>
    %cst_196 = arith.constant dense<0.000000e+00> : vector<8x512xf32>
    %451 = tpu.matmul %449, %450, %cst_196 {dimension_numbers = #tpu.dot_dimension_numbers<[1], [0], [0], [1], [0, 0, 1, 1], [], []>} : vector<8x128xbf16>, vector<128x512xbf16>, vector<8x512xf32> -> vector<8x512xf32>
    %452 = arith.index_cast %c4_i32 : i32 to index
    %c0_197 = arith.constant 0 : index
    %c0_198 = arith.constant 0 : index
    %453 = vector.load %arg11[%452, %c0_197, %c0_198] : memref<8x8x1024xf32, #tpu.memory_space<vmem>>, vector<1x8x512xf32>
    %454 = vector.shape_cast %453 : vector<1x8x512xf32> to vector<8x512xf32>
    %455 = arith.index_cast %441 : i32 to index
    %c0_199 = arith.constant 0 : index
    %c512_200 = arith.constant 512 : index
    %456 = vector.load %arg11[%455, %c0_199, %c512_200] : memref<8x8x1024xf32, #tpu.memory_space<vmem>>, vector<1x8x512xf32>
    %457 = vector.shape_cast %456 : vector<1x8x512xf32> to vector<8x512xf32>
    %458 = arith.addf %454, %448 : vector<8x512xf32>
    %459 = vector.extract_strided_slice %458 {offsets = [0, 0], sizes = [8, 128], strides = [1, 1]} : vector<8x512xf32> to vector<8x128xf32>
    %460 = arith.negf %459 : vector<8x128xf32>
    %461 = math.exp %460 : vector<8x128xf32>
    %cst_201 = arith.constant 1.000000e+00 : f32
    %462 = vector.broadcast %cst_201 : f32 to vector<8x128xf32>
    %463 = arith.addf %462, %461 : vector<8x128xf32>
    %464 = arith.divf %462, %463 : vector<8x128xf32>
    %465 = vector.extract_strided_slice %458 {offsets = [0, 128], sizes = [8, 128], strides = [1, 1]} : vector<8x512xf32> to vector<8x128xf32>
    %466 = arith.negf %465 : vector<8x128xf32>
    %467 = math.exp %466 : vector<8x128xf32>
    %cst_202 = arith.constant 1.000000e+00 : f32
    %468 = vector.broadcast %cst_202 : f32 to vector<8x128xf32>
    %469 = arith.addf %468, %467 : vector<8x128xf32>
    %470 = arith.divf %468, %469 : vector<8x128xf32>
    %471 = vector.extract_strided_slice %458 {offsets = [0, 256], sizes = [8, 128], strides = [1, 1]} : vector<8x512xf32> to vector<8x128xf32>
    %472 = math.tanh %471 : vector<8x128xf32>
    %473 = vector.extract_strided_slice %458 {offsets = [0, 384], sizes = [8, 128], strides = [1, 1]} : vector<8x512xf32> to vector<8x128xf32>
    %474 = arith.negf %473 : vector<8x128xf32>
    %475 = math.exp %474 : vector<8x128xf32>
    %cst_203 = arith.constant 1.000000e+00 : f32
    %476 = vector.broadcast %cst_203 : f32 to vector<8x128xf32>
    %477 = arith.addf %476, %475 : vector<8x128xf32>
    %478 = arith.divf %476, %477 : vector<8x128xf32>
    %479 = arith.mulf %470, %443 : vector<8x128xf32>
    %480 = arith.mulf %464, %472 : vector<8x128xf32>
    %481 = arith.addf %479, %480 : vector<8x128xf32>
    %482 = math.tanh %481 : vector<8x128xf32>
    %483 = arith.mulf %478, %482 : vector<8x128xf32>
    %484 = arith.addf %457, %451 : vector<8x512xf32>
    %485 = vector.extract_strided_slice %484 {offsets = [0, 0], sizes = [8, 128], strides = [1, 1]} : vector<8x512xf32> to vector<8x128xf32>
    %486 = arith.negf %485 : vector<8x128xf32>
    %487 = math.exp %486 : vector<8x128xf32>
    %cst_204 = arith.constant 1.000000e+00 : f32
    %488 = vector.broadcast %cst_204 : f32 to vector<8x128xf32>
    %489 = arith.addf %488, %487 : vector<8x128xf32>
    %490 = arith.divf %488, %489 : vector<8x128xf32>
    %491 = vector.extract_strided_slice %484 {offsets = [0, 128], sizes = [8, 128], strides = [1, 1]} : vector<8x512xf32> to vector<8x128xf32>
    %492 = arith.negf %491 : vector<8x128xf32>
    %493 = math.exp %492 : vector<8x128xf32>
    %cst_205 = arith.constant 1.000000e+00 : f32
    %494 = vector.broadcast %cst_205 : f32 to vector<8x128xf32>
    %495 = arith.addf %494, %493 : vector<8x128xf32>
    %496 = arith.divf %494, %495 : vector<8x128xf32>
    %497 = vector.extract_strided_slice %484 {offsets = [0, 256], sizes = [8, 128], strides = [1, 1]} : vector<8x512xf32> to vector<8x128xf32>
    %498 = math.tanh %497 : vector<8x128xf32>
    %499 = vector.extract_strided_slice %484 {offsets = [0, 384], sizes = [8, 128], strides = [1, 1]} : vector<8x512xf32> to vector<8x128xf32>
    %500 = arith.negf %499 : vector<8x128xf32>
    %501 = math.exp %500 : vector<8x128xf32>
    %cst_206 = arith.constant 1.000000e+00 : f32
    %502 = vector.broadcast %cst_206 : f32 to vector<8x128xf32>
    %503 = arith.addf %502, %501 : vector<8x128xf32>
    %504 = arith.divf %502, %503 : vector<8x128xf32>
    %505 = arith.mulf %496, %445 : vector<8x128xf32>
    %506 = arith.mulf %490, %498 : vector<8x128xf32>
    %507 = arith.addf %505, %506 : vector<8x128xf32>
    %508 = math.tanh %507 : vector<8x128xf32>
    %509 = arith.mulf %504, %508 : vector<8x128xf32>
    %510 = vector.broadcast %c4_i32 : i32 to vector<8x1xi32>
    %511 = arith.cmpi sgt, %20, %510 : vector<8x1xi32>
    %512 = vector.broadcast %441 : i32 to vector<8x1xi32>
    %513 = arith.cmpi sgt, %20, %512 : vector<8x1xi32>
    %514 = vector.shape_cast %511 : vector<8x1xi1> to vector<8x1xi1>
    %515 = vector.broadcast %514 : vector<8x1xi1> to vector<8x128xi1>
    %516 = arith.select %515, %483, %442 : vector<8x128xi1>, vector<8x128xf32>
    %c0_207 = arith.constant 0 : index
    %c0_208 = arith.constant 0 : index
    %517 = vector.load %arg12[%c0_207, %c0_208] : memref<8x128xf32, #tpu.memory_space<vmem>>, vector<8x128xf32>
    tpu.vector_store %arg12[%c0_207, %c0_208], %516 {strides = array<i32>} : memref<8x128xf32, #tpu.memory_space<vmem>>, vector<8x128xf32>,
    %518 = vector.shape_cast %511 : vector<8x1xi1> to vector<8x1xi1>
    %519 = vector.broadcast %518 : vector<8x1xi1> to vector<8x128xi1>
    %520 = arith.select %519, %481, %443 : vector<8x128xi1>, vector<8x128xf32>
    %c0_209 = arith.constant 0 : index
    %c0_210 = arith.constant 0 : index
    %521 = vector.load %arg13[%c0_209, %c0_210] : memref<8x128xf32, #tpu.memory_space<vmem>>, vector<8x128xf32>
    tpu.vector_store %arg13[%c0_209, %c0_210], %520 {strides = array<i32>} : memref<8x128xf32, #tpu.memory_space<vmem>>, vector<8x128xf32>,
    %522 = vector.shape_cast %513 : vector<8x1xi1> to vector<8x1xi1>
    %523 = vector.broadcast %522 : vector<8x1xi1> to vector<8x128xi1>
    %524 = arith.select %523, %509, %444 : vector<8x128xi1>, vector<8x128xf32>
    %c0_211 = arith.constant 0 : index
    %c0_212 = arith.constant 0 : index
    %525 = vector.load %arg14[%c0_211, %c0_212] : memref<8x128xf32, #tpu.memory_space<vmem>>, vector<8x128xf32>
    tpu.vector_store %arg14[%c0_211, %c0_212], %524 {strides = array<i32>} : memref<8x128xf32, #tpu.memory_space<vmem>>, vector<8x128xf32>,
    %526 = vector.shape_cast %513 : vector<8x1xi1> to vector<8x1xi1>
    %527 = vector.broadcast %526 : vector<8x1xi1> to vector<8x128xi1>
    %528 = arith.select %527, %507, %445 : vector<8x128xi1>, vector<8x128xf32>
    %c0_213 = arith.constant 0 : index
    %c0_214 = arith.constant 0 : index
    %529 = vector.load %arg15[%c0_213, %c0_214] : memref<8x128xf32, #tpu.memory_space<vmem>>, vector<8x128xf32>
    tpu.vector_store %arg15[%c0_213, %c0_214], %528 {strides = array<i32>} : memref<8x128xf32, #tpu.memory_space<vmem>>, vector<8x128xf32>,
    %cst_215 = arith.constant 0.000000e+00 : f32
    %530 = vector.shape_cast %511 : vector<8x1xi1> to vector<8x1xi1>
    %531 = vector.broadcast %530 : vector<8x1xi1> to vector<8x128xi1>
    %532 = vector.broadcast %cst_215 : f32 to vector<8x128xf32>
    %533 = arith.select %531, %483, %532 : vector<8x128xi1>, vector<8x128xf32>
    %534 = arith.index_cast %c4_i32 : i32 to index
    %c0_216 = arith.constant 0 : index
    %c0_217 = arith.constant 0 : index
    %535 = vector.load %arg8[%534, %c0_216, %c0_217] : memref<8x8x256xf32, #tpu.memory_space<vmem>>, vector<1x8x128xf32>
    %536 = vector.shape_cast %535 : vector<1x8x128xf32> to vector<8x128xf32>
    %537 = vector.shape_cast %533 : vector<8x128xf32> to vector<1x8x128xf32>
    tpu.vector_store %arg8[%534, %c0_216, %c0_217], %537 {strides = array<i32>} : memref<8x8x256xf32, #tpu.memory_space<vmem>>, vector<1x8x128xf32>,
    %cst_218 = arith.constant 0.000000e+00 : f32
    %538 = vector.shape_cast %513 : vector<8x1xi1> to vector<8x1xi1>
    %539 = vector.broadcast %538 : vector<8x1xi1> to vector<8x128xi1>
    %540 = vector.broadcast %cst_218 : f32 to vector<8x128xf32>
    %541 = arith.select %539, %509, %540 : vector<8x128xi1>, vector<8x128xf32>
    %542 = arith.index_cast %441 : i32 to index
    %c0_219 = arith.constant 0 : index
    %c128_220 = arith.constant 128 : index
    %543 = vector.load %arg8[%542, %c0_219, %c128_220] : memref<8x8x256xf32, #tpu.memory_space<vmem>>, vector<1x8x128xf32>
    %544 = vector.shape_cast %543 : vector<1x8x128xf32> to vector<8x128xf32>
    %545 = vector.shape_cast %541 : vector<8x128xf32> to vector<1x8x128xf32>
    tpu.vector_store %arg8[%542, %c0_219, %c128_220], %545 {strides = array<i32>} : memref<8x8x256xf32, #tpu.memory_space<vmem>>, vector<1x8x128xf32>,
    %c5_i32 = arith.constant 5 : i32
    %c7_i32_221 = arith.constant 7 : i32
    %546 = arith.subi %c7_i32_221, %c5_i32 : i32
    %c0_222 = arith.constant 0 : index
    %c0_223 = arith.constant 0 : index
    %547 = vector.load %arg12[%c0_222, %c0_223] : memref<8x128xf32, #tpu.memory_space<vmem>>, vector<8x128xf32>
    %c0_224 = arith.constant 0 : index
    %c0_225 = arith.constant 0 : index
    %548 = vector.load %arg13[%c0_224, %c0_225] : memref<8x128xf32, #tpu.memory_space<vmem>>, vector<8x128xf32>
    %c0_226 = arith.constant 0 : index
    %c0_227 = arith.constant 0 : index
    %549 = vector.load %arg14[%c0_226, %c0_227] : memref<8x128xf32, #tpu.memory_space<vmem>>, vector<8x128xf32>
    %c0_228 = arith.constant 0 : index
    %c0_229 = arith.constant 0 : index
    %550 = vector.load %arg15[%c0_228, %c0_229] : memref<8x128xf32, #tpu.memory_space<vmem>>, vector<8x128xf32>
    %551 = arith.truncf %547 : vector<8x128xf32> to vector<8x128xbf16>
    %c0_230 = arith.constant 0 : index
    %c0_231 = arith.constant 0 : index
    %552 = vector.load %arg5[%c0_230, %c0_231] : memref<128x512xbf16, #tpu.memory_space<vmem>>, vector<128x512xbf16>
    %cst_232 = arith.constant dense<0.000000e+00> : vector<8x512xf32>
    %553 = tpu.matmul %551, %552, %cst_232 {dimension_numbers = #tpu.dot_dimension_numbers<[1], [0], [0], [1], [0, 0, 1, 1], [], []>} : vector<8x128xbf16>, vector<128x512xbf16>, vector<8x512xf32> -> vector<8x512xf32>
    %554 = arith.truncf %549 : vector<8x128xf32> to vector<8x128xbf16>
    %c0_233 = arith.constant 0 : index
    %c0_234 = arith.constant 0 : index
    %555 = vector.load %arg6[%c0_233, %c0_234] : memref<128x512xbf16, #tpu.memory_space<vmem>>, vector<128x512xbf16>
    %cst_235 = arith.constant dense<0.000000e+00> : vector<8x512xf32>
    %556 = tpu.matmul %554, %555, %cst_235 {dimension_numbers = #tpu.dot_dimension_numbers<[1], [0], [0], [1], [0, 0, 1, 1], [], []>} : vector<8x128xbf16>, vector<128x512xbf16>, vector<8x512xf32> -> vector<8x512xf32>
    %557 = arith.index_cast %c5_i32 : i32 to index
    %c0_236 = arith.constant 0 : index
    %c0_237 = arith.constant 0 : index
    %558 = vector.load %arg11[%557, %c0_236, %c0_237] : memref<8x8x1024xf32, #tpu.memory_space<vmem>>, vector<1x8x512xf32>
    %559 = vector.shape_cast %558 : vector<1x8x512xf32> to vector<8x512xf32>
    %560 = arith.index_cast %546 : i32 to index
    %c0_238 = arith.constant 0 : index
    %c512_239 = arith.constant 512 : index
    %561 = vector.load %arg11[%560, %c0_238, %c512_239] : memref<8x8x1024xf32, #tpu.memory_space<vmem>>, vector<1x8x512xf32>
    %562 = vector.shape_cast %561 : vector<1x8x512xf32> to vector<8x512xf32>
    %563 = arith.addf %559, %553 : vector<8x512xf32>
    %564 = vector.extract_strided_slice %563 {offsets = [0, 0], sizes = [8, 128], strides = [1, 1]} : vector<8x512xf32> to vector<8x128xf32>
    %565 = arith.negf %564 : vector<8x128xf32>
    %566 = math.exp %565 : vector<8x128xf32>
    %cst_240 = arith.constant 1.000000e+00 : f32
    %567 = vector.broadcast %cst_240 : f32 to vector<8x128xf32>
    %568 = arith.addf %567, %566 : vector<8x128xf32>
    %569 = arith.divf %567, %568 : vector<8x128xf32>
    %570 = vector.extract_strided_slice %563 {offsets = [0, 128], sizes = [8, 128], strides = [1, 1]} : vector<8x512xf32> to vector<8x128xf32>
    %571 = arith.negf %570 : vector<8x128xf32>
    %572 = math.exp %571 : vector<8x128xf32>
    %cst_241 = arith.constant 1.000000e+00 : f32
    %573 = vector.broadcast %cst_241 : f32 to vector<8x128xf32>
    %574 = arith.addf %573, %572 : vector<8x128xf32>
    %575 = arith.divf %573, %574 : vector<8x128xf32>
    %576 = vector.extract_strided_slice %563 {offsets = [0, 256], sizes = [8, 128], strides = [1, 1]} : vector<8x512xf32> to vector<8x128xf32>
    %577 = math.tanh %576 : vector<8x128xf32>
    %578 = vector.extract_strided_slice %563 {offsets = [0, 384], sizes = [8, 128], strides = [1, 1]} : vector<8x512xf32> to vector<8x128xf32>
    %579 = arith.negf %578 : vector<8x128xf32>
    %580 = math.exp %579 : vector<8x128xf32>
    %cst_242 = arith.constant 1.000000e+00 : f32
    %581 = vector.broadcast %cst_242 : f32 to vector<8x128xf32>
    %582 = arith.addf %581, %580 : vector<8x128xf32>
    %583 = arith.divf %581, %582 : vector<8x128xf32>
    %584 = arith.mulf %575, %548 : vector<8x128xf32>
    %585 = arith.mulf %569, %577 : vector<8x128xf32>
    %586 = arith.addf %584, %585 : vector<8x128xf32>
    %587 = math.tanh %586 : vector<8x128xf32>
    %588 = arith.mulf %583, %587 : vector<8x128xf32>
    %589 = arith.addf %562, %556 : vector<8x512xf32>
    %590 = vector.extract_strided_slice %589 {offsets = [0, 0], sizes = [8, 128], strides = [1, 1]} : vector<8x512xf32> to vector<8x128xf32>
    %591 = arith.negf %590 : vector<8x128xf32>
    %592 = math.exp %591 : vector<8x128xf32>
    %cst_243 = arith.constant 1.000000e+00 : f32
    %593 = vector.broadcast %cst_243 : f32 to vector<8x128xf32>
    %594 = arith.addf %593, %592 : vector<8x128xf32>
    %595 = arith.divf %593, %594 : vector<8x128xf32>
    %596 = vector.extract_strided_slice %589 {offsets = [0, 128], sizes = [8, 128], strides = [1, 1]} : vector<8x512xf32> to vector<8x128xf32>
    %597 = arith.negf %596 : vector<8x128xf32>
    %598 = math.exp %597 : vector<8x128xf32>
    %cst_244 = arith.constant 1.000000e+00 : f32
    %599 = vector.broadcast %cst_244 : f32 to vector<8x128xf32>
    %600 = arith.addf %599, %598 : vector<8x128xf32>
    %601 = arith.divf %599, %600 : vector<8x128xf32>
    %602 = vector.extract_strided_slice %589 {offsets = [0, 256], sizes = [8, 128], strides = [1, 1]} : vector<8x512xf32> to vector<8x128xf32>
    %603 = math.tanh %602 : vector<8x128xf32>
    %604 = vector.extract_strided_slice %589 {offsets = [0, 384], sizes = [8, 128], strides = [1, 1]} : vector<8x512xf32> to vector<8x128xf32>
    %605 = arith.negf %604 : vector<8x128xf32>
    %606 = math.exp %605 : vector<8x128xf32>
    %cst_245 = arith.constant 1.000000e+00 : f32
    %607 = vector.broadcast %cst_245 : f32 to vector<8x128xf32>
    %608 = arith.addf %607, %606 : vector<8x128xf32>
    %609 = arith.divf %607, %608 : vector<8x128xf32>
    %610 = arith.mulf %601, %550 : vector<8x128xf32>
    %611 = arith.mulf %595, %603 : vector<8x128xf32>
    %612 = arith.addf %610, %611 : vector<8x128xf32>
    %613 = math.tanh %612 : vector<8x128xf32>
    %614 = arith.mulf %609, %613 : vector<8x128xf32>
    %615 = vector.broadcast %c5_i32 : i32 to vector<8x1xi32>
    %616 = arith.cmpi sgt, %20, %615 : vector<8x1xi32>
    %617 = vector.broadcast %546 : i32 to vector<8x1xi32>
    %618 = arith.cmpi sgt, %20, %617 : vector<8x1xi32>
    %619 = vector.shape_cast %616 : vector<8x1xi1> to vector<8x1xi1>
    %620 = vector.broadcast %619 : vector<8x1xi1> to vector<8x128xi1>
    %621 = arith.select %620, %588, %547 : vector<8x128xi1>, vector<8x128xf32>
    %c0_246 = arith.constant 0 : index
    %c0_247 = arith.constant 0 : index
    %622 = vector.load %arg12[%c0_246, %c0_247] : memref<8x128xf32, #tpu.memory_space<vmem>>, vector<8x128xf32>
    tpu.vector_store %arg12[%c0_246, %c0_247], %621 {strides = array<i32>} : memref<8x128xf32, #tpu.memory_space<vmem>>, vector<8x128xf32>,
    %623 = vector.shape_cast %616 : vector<8x1xi1> to vector<8x1xi1>
    %624 = vector.broadcast %623 : vector<8x1xi1> to vector<8x128xi1>
    %625 = arith.select %624, %586, %548 : vector<8x128xi1>, vector<8x128xf32>
    %c0_248 = arith.constant 0 : index
    %c0_249 = arith.constant 0 : index
    %626 = vector.load %arg13[%c0_248, %c0_249] : memref<8x128xf32, #tpu.memory_space<vmem>>, vector<8x128xf32>
    tpu.vector_store %arg13[%c0_248, %c0_249], %625 {strides = array<i32>} : memref<8x128xf32, #tpu.memory_space<vmem>>, vector<8x128xf32>,
    %627 = vector.shape_cast %618 : vector<8x1xi1> to vector<8x1xi1>
    %628 = vector.broadcast %627 : vector<8x1xi1> to vector<8x128xi1>
    %629 = arith.select %628, %614, %549 : vector<8x128xi1>, vector<8x128xf32>
    %c0_250 = arith.constant 0 : index
    %c0_251 = arith.constant 0 : index
    %630 = vector.load %arg14[%c0_250, %c0_251] : memref<8x128xf32, #tpu.memory_space<vmem>>, vector<8x128xf32>
    tpu.vector_store %arg14[%c0_250, %c0_251], %629 {strides = array<i32>} : memref<8x128xf32, #tpu.memory_space<vmem>>, vector<8x128xf32>,
    %631 = vector.shape_cast %618 : vector<8x1xi1> to vector<8x1xi1>
    %632 = vector.broadcast %631 : vector<8x1xi1> to vector<8x128xi1>
    %633 = arith.select %632, %612, %550 : vector<8x128xi1>, vector<8x128xf32>
    %c0_252 = arith.constant 0 : index
    %c0_253 = arith.constant 0 : index
    %634 = vector.load %arg15[%c0_252, %c0_253] : memref<8x128xf32, #tpu.memory_space<vmem>>, vector<8x128xf32>
    tpu.vector_store %arg15[%c0_252, %c0_253], %633 {strides = array<i32>} : memref<8x128xf32, #tpu.memory_space<vmem>>, vector<8x128xf32>,
    %cst_254 = arith.constant 0.000000e+00 : f32
    %635 = vector.shape_cast %616 : vector<8x1xi1> to vector<8x1xi1>
    %636 = vector.broadcast %635 : vector<8x1xi1> to vector<8x128xi1>
    %637 = vector.broadcast %cst_254 : f32 to vector<8x128xf32>
    %638 = arith.select %636, %588, %637 : vector<8x128xi1>, vector<8x128xf32>
    %639 = arith.index_cast %c5_i32 : i32 to index
    %c0_255 = arith.constant 0 : index
    %c0_256 = arith.constant 0 : index
    %640 = vector.load %arg8[%639, %c0_255, %c0_256] : memref<8x8x256xf32, #tpu.memory_space<vmem>>, vector<1x8x128xf32>
    %641 = vector.shape_cast %640 : vector<1x8x128xf32> to vector<8x128xf32>
    %642 = vector.shape_cast %638 : vector<8x128xf32> to vector<1x8x128xf32>
    tpu.vector_store %arg8[%639, %c0_255, %c0_256], %642 {strides = array<i32>} : memref<8x8x256xf32, #tpu.memory_space<vmem>>, vector<1x8x128xf32>,
    %cst_257 = arith.constant 0.000000e+00 : f32
    %643 = vector.shape_cast %618 : vector<8x1xi1> to vector<8x1xi1>
    %644 = vector.broadcast %643 : vector<8x1xi1> to vector<8x128xi1>
    %645 = vector.broadcast %cst_257 : f32 to vector<8x128xf32>
    %646 = arith.select %644, %614, %645 : vector<8x128xi1>, vector<8x128xf32>
    %647 = arith.index_cast %546 : i32 to index
    %c0_258 = arith.constant 0 : index
    %c128_259 = arith.constant 128 : index
    %648 = vector.load %arg8[%647, %c0_258, %c128_259] : memref<8x8x256xf32, #tpu.memory_space<vmem>>, vector<1x8x128xf32>
    %649 = vector.shape_cast %648 : vector<1x8x128xf32> to vector<8x128xf32>
    %650 = vector.shape_cast %646 : vector<8x128xf32> to vector<1x8x128xf32>
    tpu.vector_store %arg8[%647, %c0_258, %c128_259], %650 {strides = array<i32>} : memref<8x8x256xf32, #tpu.memory_space<vmem>>, vector<1x8x128xf32>,
    %c6_i32 = arith.constant 6 : i32
    %c7_i32_260 = arith.constant 7 : i32
    %651 = arith.subi %c7_i32_260, %c6_i32 : i32
    %c0_261 = arith.constant 0 : index
    %c0_262 = arith.constant 0 : index
    %652 = vector.load %arg12[%c0_261, %c0_262] : memref<8x128xf32, #tpu.memory_space<vmem>>, vector<8x128xf32>
    %c0_263 = arith.constant 0 : index
    %c0_264 = arith.constant 0 : index
    %653 = vector.load %arg13[%c0_263, %c0_264] : memref<8x128xf32, #tpu.memory_space<vmem>>, vector<8x128xf32>
    %c0_265 = arith.constant 0 : index
    %c0_266 = arith.constant 0 : index
    %654 = vector.load %arg14[%c0_265, %c0_266] : memref<8x128xf32, #tpu.memory_space<vmem>>, vector<8x128xf32>
    %c0_267 = arith.constant 0 : index
    %c0_268 = arith.constant 0 : index
    %655 = vector.load %arg15[%c0_267, %c0_268] : memref<8x128xf32, #tpu.memory_space<vmem>>, vector<8x128xf32>
    %656 = arith.truncf %652 : vector<8x128xf32> to vector<8x128xbf16>
    %c0_269 = arith.constant 0 : index
    %c0_270 = arith.constant 0 : index
    %657 = vector.load %arg5[%c0_269, %c0_270] : memref<128x512xbf16, #tpu.memory_space<vmem>>, vector<128x512xbf16>
    %cst_271 = arith.constant dense<0.000000e+00> : vector<8x512xf32>
    %658 = tpu.matmul %656, %657, %cst_271 {dimension_numbers = #tpu.dot_dimension_numbers<[1], [0], [0], [1], [0, 0, 1, 1], [], []>} : vector<8x128xbf16>, vector<128x512xbf16>, vector<8x512xf32> -> vector<8x512xf32>
    %659 = arith.truncf %654 : vector<8x128xf32> to vector<8x128xbf16>
    %c0_272 = arith.constant 0 : index
    %c0_273 = arith.constant 0 : index
    %660 = vector.load %arg6[%c0_272, %c0_273] : memref<128x512xbf16, #tpu.memory_space<vmem>>, vector<128x512xbf16>
    %cst_274 = arith.constant dense<0.000000e+00> : vector<8x512xf32>
    %661 = tpu.matmul %659, %660, %cst_274 {dimension_numbers = #tpu.dot_dimension_numbers<[1], [0], [0], [1], [0, 0, 1, 1], [], []>} : vector<8x128xbf16>, vector<128x512xbf16>, vector<8x512xf32> -> vector<8x512xf32>
    %662 = arith.index_cast %c6_i32 : i32 to index
    %c0_275 = arith.constant 0 : index
    %c0_276 = arith.constant 0 : index
    %663 = vector.load %arg11[%662, %c0_275, %c0_276] : memref<8x8x1024xf32, #tpu.memory_space<vmem>>, vector<1x8x512xf32>
    %664 = vector.shape_cast %663 : vector<1x8x512xf32> to vector<8x512xf32>
    %665 = arith.index_cast %651 : i32 to index
    %c0_277 = arith.constant 0 : index
    %c512_278 = arith.constant 512 : index
    %666 = vector.load %arg11[%665, %c0_277, %c512_278] : memref<8x8x1024xf32, #tpu.memory_space<vmem>>, vector<1x8x512xf32>
    %667 = vector.shape_cast %666 : vector<1x8x512xf32> to vector<8x512xf32>
    %668 = arith.addf %664, %658 : vector<8x512xf32>
    %669 = vector.extract_strided_slice %668 {offsets = [0, 0], sizes = [8, 128], strides = [1, 1]} : vector<8x512xf32> to vector<8x128xf32>
    %670 = arith.negf %669 : vector<8x128xf32>
    %671 = math.exp %670 : vector<8x128xf32>
    %cst_279 = arith.constant 1.000000e+00 : f32
    %672 = vector.broadcast %cst_279 : f32 to vector<8x128xf32>
    %673 = arith.addf %672, %671 : vector<8x128xf32>
    %674 = arith.divf %672, %673 : vector<8x128xf32>
    %675 = vector.extract_strided_slice %668 {offsets = [0, 128], sizes = [8, 128], strides = [1, 1]} : vector<8x512xf32> to vector<8x128xf32>
    %676 = arith.negf %675 : vector<8x128xf32>
    %677 = math.exp %676 : vector<8x128xf32>
    %cst_280 = arith.constant 1.000000e+00 : f32
    %678 = vector.broadcast %cst_280 : f32 to vector<8x128xf32>
    %679 = arith.addf %678, %677 : vector<8x128xf32>
    %680 = arith.divf %678, %679 : vector<8x128xf32>
    %681 = vector.extract_strided_slice %668 {offsets = [0, 256], sizes = [8, 128], strides = [1, 1]} : vector<8x512xf32> to vector<8x128xf32>
    %682 = math.tanh %681 : vector<8x128xf32>
    %683 = vector.extract_strided_slice %668 {offsets = [0, 384], sizes = [8, 128], strides = [1, 1]} : vector<8x512xf32> to vector<8x128xf32>
    %684 = arith.negf %683 : vector<8x128xf32>
    %685 = math.exp %684 : vector<8x128xf32>
    %cst_281 = arith.constant 1.000000e+00 : f32
    %686 = vector.broadcast %cst_281 : f32 to vector<8x128xf32>
    %687 = arith.addf %686, %685 : vector<8x128xf32>
    %688 = arith.divf %686, %687 : vector<8x128xf32>
    %689 = arith.mulf %680, %653 : vector<8x128xf32>
    %690 = arith.mulf %674, %682 : vector<8x128xf32>
    %691 = arith.addf %689, %690 : vector<8x128xf32>
    %692 = math.tanh %691 : vector<8x128xf32>
    %693 = arith.mulf %688, %692 : vector<8x128xf32>
    %694 = arith.addf %667, %661 : vector<8x512xf32>
    %695 = vector.extract_strided_slice %694 {offsets = [0, 0], sizes = [8, 128], strides = [1, 1]} : vector<8x512xf32> to vector<8x128xf32>
    %696 = arith.negf %695 : vector<8x128xf32>
    %697 = math.exp %696 : vector<8x128xf32>
    %cst_282 = arith.constant 1.000000e+00 : f32
    %698 = vector.broadcast %cst_282 : f32 to vector<8x128xf32>
    %699 = arith.addf %698, %697 : vector<8x128xf32>
    %700 = arith.divf %698, %699 : vector<8x128xf32>
    %701 = vector.extract_strided_slice %694 {offsets = [0, 128], sizes = [8, 128], strides = [1, 1]} : vector<8x512xf32> to vector<8x128xf32>
    %702 = arith.negf %701 : vector<8x128xf32>
    %703 = math.exp %702 : vector<8x128xf32>
    %cst_283 = arith.constant 1.000000e+00 : f32
    %704 = vector.broadcast %cst_283 : f32 to vector<8x128xf32>
    %705 = arith.addf %704, %703 : vector<8x128xf32>
    %706 = arith.divf %704, %705 : vector<8x128xf32>
    %707 = vector.extract_strided_slice %694 {offsets = [0, 256], sizes = [8, 128], strides = [1, 1]} : vector<8x512xf32> to vector<8x128xf32>
    %708 = math.tanh %707 : vector<8x128xf32>
    %709 = vector.extract_strided_slice %694 {offsets = [0, 384], sizes = [8, 128], strides = [1, 1]} : vector<8x512xf32> to vector<8x128xf32>
    %710 = arith.negf %709 : vector<8x128xf32>
    %711 = math.exp %710 : vector<8x128xf32>
    %cst_284 = arith.constant 1.000000e+00 : f32
    %712 = vector.broadcast %cst_284 : f32 to vector<8x128xf32>
    %713 = arith.addf %712, %711 : vector<8x128xf32>
    %714 = arith.divf %712, %713 : vector<8x128xf32>
    %715 = arith.mulf %706, %655 : vector<8x128xf32>
    %716 = arith.mulf %700, %708 : vector<8x128xf32>
    %717 = arith.addf %715, %716 : vector<8x128xf32>
    %718 = math.tanh %717 : vector<8x128xf32>
    %719 = arith.mulf %714, %718 : vector<8x128xf32>
    %720 = vector.broadcast %c6_i32 : i32 to vector<8x1xi32>
    %721 = arith.cmpi sgt, %20, %720 : vector<8x1xi32>
    %722 = vector.broadcast %651 : i32 to vector<8x1xi32>
    %723 = arith.cmpi sgt, %20, %722 : vector<8x1xi32>
    %724 = vector.shape_cast %721 : vector<8x1xi1> to vector<8x1xi1>
    %725 = vector.broadcast %724 : vector<8x1xi1> to vector<8x128xi1>
    %726 = arith.select %725, %693, %652 : vector<8x128xi1>, vector<8x128xf32>
    %c0_285 = arith.constant 0 : index
    %c0_286 = arith.constant 0 : index
    %727 = vector.load %arg12[%c0_285, %c0_286] : memref<8x128xf32, #tpu.memory_space<vmem>>, vector<8x128xf32>
    tpu.vector_store %arg12[%c0_285, %c0_286], %726 {strides = array<i32>} : memref<8x128xf32, #tpu.memory_space<vmem>>, vector<8x128xf32>,
    %728 = vector.shape_cast %721 : vector<8x1xi1> to vector<8x1xi1>
    %729 = vector.broadcast %728 : vector<8x1xi1> to vector<8x128xi1>
    %730 = arith.select %729, %691, %653 : vector<8x128xi1>, vector<8x128xf32>
    %c0_287 = arith.constant 0 : index
    %c0_288 = arith.constant 0 : index
    %731 = vector.load %arg13[%c0_287, %c0_288] : memref<8x128xf32, #tpu.memory_space<vmem>>, vector<8x128xf32>
    tpu.vector_store %arg13[%c0_287, %c0_288], %730 {strides = array<i32>} : memref<8x128xf32, #tpu.memory_space<vmem>>, vector<8x128xf32>,
    %732 = vector.shape_cast %723 : vector<8x1xi1> to vector<8x1xi1>
    %733 = vector.broadcast %732 : vector<8x1xi1> to vector<8x128xi1>
    %734 = arith.select %733, %719, %654 : vector<8x128xi1>, vector<8x128xf32>
    %c0_289 = arith.constant 0 : index
    %c0_290 = arith.constant 0 : index
    %735 = vector.load %arg14[%c0_289, %c0_290] : memref<8x128xf32, #tpu.memory_space<vmem>>, vector<8x128xf32>
    tpu.vector_store %arg14[%c0_289, %c0_290], %734 {strides = array<i32>} : memref<8x128xf32, #tpu.memory_space<vmem>>, vector<8x128xf32>,
    %736 = vector.shape_cast %723 : vector<8x1xi1> to vector<8x1xi1>
    %737 = vector.broadcast %736 : vector<8x1xi1> to vector<8x128xi1>
    %738 = arith.select %737, %717, %655 : vector<8x128xi1>, vector<8x128xf32>
    %c0_291 = arith.constant 0 : index
    %c0_292 = arith.constant 0 : index
    %739 = vector.load %arg15[%c0_291, %c0_292] : memref<8x128xf32, #tpu.memory_space<vmem>>, vector<8x128xf32>
    tpu.vector_store %arg15[%c0_291, %c0_292], %738 {strides = array<i32>} : memref<8x128xf32, #tpu.memory_space<vmem>>, vector<8x128xf32>,
    %cst_293 = arith.constant 0.000000e+00 : f32
    %740 = vector.shape_cast %721 : vector<8x1xi1> to vector<8x1xi1>
    %741 = vector.broadcast %740 : vector<8x1xi1> to vector<8x128xi1>
    %742 = vector.broadcast %cst_293 : f32 to vector<8x128xf32>
    %743 = arith.select %741, %693, %742 : vector<8x128xi1>, vector<8x128xf32>
    %744 = arith.index_cast %c6_i32 : i32 to index
    %c0_294 = arith.constant 0 : index
    %c0_295 = arith.constant 0 : index
    %745 = vector.load %arg8[%744, %c0_294, %c0_295] : memref<8x8x256xf32, #tpu.memory_space<vmem>>, vector<1x8x128xf32>
    %746 = vector.shape_cast %745 : vector<1x8x128xf32> to vector<8x128xf32>
    %747 = vector.shape_cast %743 : vector<8x128xf32> to vector<1x8x128xf32>
    tpu.vector_store %arg8[%744, %c0_294, %c0_295], %747 {strides = array<i32>} : memref<8x8x256xf32, #tpu.memory_space<vmem>>, vector<1x8x128xf32>,
    %cst_296 = arith.constant 0.000000e+00 : f32
    %748 = vector.shape_cast %723 : vector<8x1xi1> to vector<8x1xi1>
    %749 = vector.broadcast %748 : vector<8x1xi1> to vector<8x128xi1>
    %750 = vector.broadcast %cst_296 : f32 to vector<8x128xf32>
    %751 = arith.select %749, %719, %750 : vector<8x128xi1>, vector<8x128xf32>
    %752 = arith.index_cast %651 : i32 to index
    %c0_297 = arith.constant 0 : index
    %c128_298 = arith.constant 128 : index
    %753 = vector.load %arg8[%752, %c0_297, %c128_298] : memref<8x8x256xf32, #tpu.memory_space<vmem>>, vector<1x8x128xf32>
    %754 = vector.shape_cast %753 : vector<1x8x128xf32> to vector<8x128xf32>
    %755 = vector.shape_cast %751 : vector<8x128xf32> to vector<1x8x128xf32>
    tpu.vector_store %arg8[%752, %c0_297, %c128_298], %755 {strides = array<i32>} : memref<8x8x256xf32, #tpu.memory_space<vmem>>, vector<1x8x128xf32>,
    %c7_i32_299 = arith.constant 7 : i32
    %c7_i32_300 = arith.constant 7 : i32
    %756 = arith.subi %c7_i32_300, %c7_i32_299 : i32
    %c0_301 = arith.constant 0 : index
    %c0_302 = arith.constant 0 : index
    %757 = vector.load %arg12[%c0_301, %c0_302] : memref<8x128xf32, #tpu.memory_space<vmem>>, vector<8x128xf32>
    %c0_303 = arith.constant 0 : index
    %c0_304 = arith.constant 0 : index
    %758 = vector.load %arg13[%c0_303, %c0_304] : memref<8x128xf32, #tpu.memory_space<vmem>>, vector<8x128xf32>
    %c0_305 = arith.constant 0 : index
    %c0_306 = arith.constant 0 : index
    %759 = vector.load %arg14[%c0_305, %c0_306] : memref<8x128xf32, #tpu.memory_space<vmem>>, vector<8x128xf32>
    %c0_307 = arith.constant 0 : index
    %c0_308 = arith.constant 0 : index
    %760 = vector.load %arg15[%c0_307, %c0_308] : memref<8x128xf32, #tpu.memory_space<vmem>>, vector<8x128xf32>
    %761 = arith.truncf %757 : vector<8x128xf32> to vector<8x128xbf16>
    %c0_309 = arith.constant 0 : index
    %c0_310 = arith.constant 0 : index
    %762 = vector.load %arg5[%c0_309, %c0_310] : memref<128x512xbf16, #tpu.memory_space<vmem>>, vector<128x512xbf16>
    %cst_311 = arith.constant dense<0.000000e+00> : vector<8x512xf32>
    %763 = tpu.matmul %761, %762, %cst_311 {dimension_numbers = #tpu.dot_dimension_numbers<[1], [0], [0], [1], [0, 0, 1, 1], [], []>} : vector<8x128xbf16>, vector<128x512xbf16>, vector<8x512xf32> -> vector<8x512xf32>
    %764 = arith.truncf %759 : vector<8x128xf32> to vector<8x128xbf16>
    %c0_312 = arith.constant 0 : index
    %c0_313 = arith.constant 0 : index
    %765 = vector.load %arg6[%c0_312, %c0_313] : memref<128x512xbf16, #tpu.memory_space<vmem>>, vector<128x512xbf16>
    %cst_314 = arith.constant dense<0.000000e+00> : vector<8x512xf32>
    %766 = tpu.matmul %764, %765, %cst_314 {dimension_numbers = #tpu.dot_dimension_numbers<[1], [0], [0], [1], [0, 0, 1, 1], [], []>} : vector<8x128xbf16>, vector<128x512xbf16>, vector<8x512xf32> -> vector<8x512xf32>
    %767 = arith.index_cast %c7_i32_299 : i32 to index
    %c0_315 = arith.constant 0 : index
    %c0_316 = arith.constant 0 : index
    %768 = vector.load %arg11[%767, %c0_315, %c0_316] : memref<8x8x1024xf32, #tpu.memory_space<vmem>>, vector<1x8x512xf32>
    %769 = vector.shape_cast %768 : vector<1x8x512xf32> to vector<8x512xf32>
    %770 = arith.index_cast %756 : i32 to index
    %c0_317 = arith.constant 0 : index
    %c512_318 = arith.constant 512 : index
    %771 = vector.load %arg11[%770, %c0_317, %c512_318] : memref<8x8x1024xf32, #tpu.memory_space<vmem>>, vector<1x8x512xf32>
    %772 = vector.shape_cast %771 : vector<1x8x512xf32> to vector<8x512xf32>
    %773 = arith.addf %769, %763 : vector<8x512xf32>
    %774 = vector.extract_strided_slice %773 {offsets = [0, 0], sizes = [8, 128], strides = [1, 1]} : vector<8x512xf32> to vector<8x128xf32>
    %775 = arith.negf %774 : vector<8x128xf32>
    %776 = math.exp %775 : vector<8x128xf32>
    %cst_319 = arith.constant 1.000000e+00 : f32
    %777 = vector.broadcast %cst_319 : f32 to vector<8x128xf32>
    %778 = arith.addf %777, %776 : vector<8x128xf32>
    %779 = arith.divf %777, %778 : vector<8x128xf32>
    %780 = vector.extract_strided_slice %773 {offsets = [0, 128], sizes = [8, 128], strides = [1, 1]} : vector<8x512xf32> to vector<8x128xf32>
    %781 = arith.negf %780 : vector<8x128xf32>
    %782 = math.exp %781 : vector<8x128xf32>
    %cst_320 = arith.constant 1.000000e+00 : f32
    %783 = vector.broadcast %cst_320 : f32 to vector<8x128xf32>
    %784 = arith.addf %783, %782 : vector<8x128xf32>
    %785 = arith.divf %783, %784 : vector<8x128xf32>
    %786 = vector.extract_strided_slice %773 {offsets = [0, 256], sizes = [8, 128], strides = [1, 1]} : vector<8x512xf32> to vector<8x128xf32>
    %787 = math.tanh %786 : vector<8x128xf32>
    %788 = vector.extract_strided_slice %773 {offsets = [0, 384], sizes = [8, 128], strides = [1, 1]} : vector<8x512xf32> to vector<8x128xf32>
    %789 = arith.negf %788 : vector<8x128xf32>
    %790 = math.exp %789 : vector<8x128xf32>
    %cst_321 = arith.constant 1.000000e+00 : f32
    %791 = vector.broadcast %cst_321 : f32 to vector<8x128xf32>
    %792 = arith.addf %791, %790 : vector<8x128xf32>
    %793 = arith.divf %791, %792 : vector<8x128xf32>
    %794 = arith.mulf %785, %758 : vector<8x128xf32>
    %795 = arith.mulf %779, %787 : vector<8x128xf32>
    %796 = arith.addf %794, %795 : vector<8x128xf32>
    %797 = math.tanh %796 : vector<8x128xf32>
    %798 = arith.mulf %793, %797 : vector<8x128xf32>
    %799 = arith.addf %772, %766 : vector<8x512xf32>
    %800 = vector.extract_strided_slice %799 {offsets = [0, 0], sizes = [8, 128], strides = [1, 1]} : vector<8x512xf32> to vector<8x128xf32>
    %801 = arith.negf %800 : vector<8x128xf32>
    %802 = math.exp %801 : vector<8x128xf32>
    %cst_322 = arith.constant 1.000000e+00 : f32
    %803 = vector.broadcast %cst_322 : f32 to vector<8x128xf32>
    %804 = arith.addf %803, %802 : vector<8x128xf32>
    %805 = arith.divf %803, %804 : vector<8x128xf32>
    %806 = vector.extract_strided_slice %799 {offsets = [0, 128], sizes = [8, 128], strides = [1, 1]} : vector<8x512xf32> to vector<8x128xf32>
    %807 = arith.negf %806 : vector<8x128xf32>
    %808 = math.exp %807 : vector<8x128xf32>
    %cst_323 = arith.constant 1.000000e+00 : f32
    %809 = vector.broadcast %cst_323 : f32 to vector<8x128xf32>
    %810 = arith.addf %809, %808 : vector<8x128xf32>
    %811 = arith.divf %809, %810 : vector<8x128xf32>
    %812 = vector.extract_strided_slice %799 {offsets = [0, 256], sizes = [8, 128], strides = [1, 1]} : vector<8x512xf32> to vector<8x128xf32>
    %813 = math.tanh %812 : vector<8x128xf32>
    %814 = vector.extract_strided_slice %799 {offsets = [0, 384], sizes = [8, 128], strides = [1, 1]} : vector<8x512xf32> to vector<8x128xf32>
    %815 = arith.negf %814 : vector<8x128xf32>
    %816 = math.exp %815 : vector<8x128xf32>
    %cst_324 = arith.constant 1.000000e+00 : f32
    %817 = vector.broadcast %cst_324 : f32 to vector<8x128xf32>
    %818 = arith.addf %817, %816 : vector<8x128xf32>
    %819 = arith.divf %817, %818 : vector<8x128xf32>
    %820 = arith.mulf %811, %760 : vector<8x128xf32>
    %821 = arith.mulf %805, %813 : vector<8x128xf32>
    %822 = arith.addf %820, %821 : vector<8x128xf32>
    %823 = math.tanh %822 : vector<8x128xf32>
    %824 = arith.mulf %819, %823 : vector<8x128xf32>
    %825 = vector.broadcast %c7_i32_299 : i32 to vector<8x1xi32>
    %826 = arith.cmpi sgt, %20, %825 : vector<8x1xi32>
    %827 = vector.broadcast %756 : i32 to vector<8x1xi32>
    %828 = arith.cmpi sgt, %20, %827 : vector<8x1xi32>
    %829 = vector.shape_cast %826 : vector<8x1xi1> to vector<8x1xi1>
    %830 = vector.broadcast %829 : vector<8x1xi1> to vector<8x128xi1>
    %831 = arith.select %830, %798, %757 : vector<8x128xi1>, vector<8x128xf32>
    %c0_325 = arith.constant 0 : index
    %c0_326 = arith.constant 0 : index
    %832 = vector.load %arg12[%c0_325, %c0_326] : memref<8x128xf32, #tpu.memory_space<vmem>>, vector<8x128xf32>
    tpu.vector_store %arg12[%c0_325, %c0_326], %831 {strides = array<i32>} : memref<8x128xf32, #tpu.memory_space<vmem>>, vector<8x128xf32>,
    %833 = vector.shape_cast %826 : vector<8x1xi1> to vector<8x1xi1>
    %834 = vector.broadcast %833 : vector<8x1xi1> to vector<8x128xi1>
    %835 = arith.select %834, %796, %758 : vector<8x128xi1>, vector<8x128xf32>
    %c0_327 = arith.constant 0 : index
    %c0_328 = arith.constant 0 : index
    %836 = vector.load %arg13[%c0_327, %c0_328] : memref<8x128xf32, #tpu.memory_space<vmem>>, vector<8x128xf32>
    tpu.vector_store %arg13[%c0_327, %c0_328], %835 {strides = array<i32>} : memref<8x128xf32, #tpu.memory_space<vmem>>, vector<8x128xf32>,
    %837 = vector.shape_cast %828 : vector<8x1xi1> to vector<8x1xi1>
    %838 = vector.broadcast %837 : vector<8x1xi1> to vector<8x128xi1>
    %839 = arith.select %838, %824, %759 : vector<8x128xi1>, vector<8x128xf32>
    %c0_329 = arith.constant 0 : index
    %c0_330 = arith.constant 0 : index
    %840 = vector.load %arg14[%c0_329, %c0_330] : memref<8x128xf32, #tpu.memory_space<vmem>>, vector<8x128xf32>
    tpu.vector_store %arg14[%c0_329, %c0_330], %839 {strides = array<i32>} : memref<8x128xf32, #tpu.memory_space<vmem>>, vector<8x128xf32>,
    %841 = vector.shape_cast %828 : vector<8x1xi1> to vector<8x1xi1>
    %842 = vector.broadcast %841 : vector<8x1xi1> to vector<8x128xi1>
    %843 = arith.select %842, %822, %760 : vector<8x128xi1>, vector<8x128xf32>
    %c0_331 = arith.constant 0 : index
    %c0_332 = arith.constant 0 : index
    %844 = vector.load %arg15[%c0_331, %c0_332] : memref<8x128xf32, #tpu.memory_space<vmem>>, vector<8x128xf32>
    tpu.vector_store %arg15[%c0_331, %c0_332], %843 {strides = array<i32>} : memref<8x128xf32, #tpu.memory_space<vmem>>, vector<8x128xf32>,
    %cst_333 = arith.constant 0.000000e+00 : f32
    %845 = vector.shape_cast %826 : vector<8x1xi1> to vector<8x1xi1>
    %846 = vector.broadcast %845 : vector<8x1xi1> to vector<8x128xi1>
    %847 = vector.broadcast %cst_333 : f32 to vector<8x128xf32>
    %848 = arith.select %846, %798, %847 : vector<8x128xi1>, vector<8x128xf32>
    %849 = arith.index_cast %c7_i32_299 : i32 to index
    %c0_334 = arith.constant 0 : index
    %c0_335 = arith.constant 0 : index
    %850 = vector.load %arg8[%849, %c0_334, %c0_335] : memref<8x8x256xf32, #tpu.memory_space<vmem>>, vector<1x8x128xf32>
    %851 = vector.shape_cast %850 : vector<1x8x128xf32> to vector<8x128xf32>
    %852 = vector.shape_cast %848 : vector<8x128xf32> to vector<1x8x128xf32>
    tpu.vector_store %arg8[%849, %c0_334, %c0_335], %852 {strides = array<i32>} : memref<8x8x256xf32, #tpu.memory_space<vmem>>, vector<1x8x128xf32>,
    %cst_336 = arith.constant 0.000000e+00 : f32
    %853 = vector.shape_cast %828 : vector<8x1xi1> to vector<8x1xi1>
    %854 = vector.broadcast %853 : vector<8x1xi1> to vector<8x128xi1>
    %855 = vector.broadcast %cst_336 : f32 to vector<8x128xf32>
    %856 = arith.select %854, %824, %855 : vector<8x128xi1>, vector<8x128xf32>
    %857 = arith.index_cast %756 : i32 to index
    %c0_337 = arith.constant 0 : index
    %c128_338 = arith.constant 128 : index
    %858 = vector.load %arg8[%857, %c0_337, %c128_338] : memref<8x8x256xf32, #tpu.memory_space<vmem>>, vector<1x8x128xf32>
    %859 = vector.shape_cast %858 : vector<1x8x128xf32> to vector<8x128xf32>
    %860 = vector.shape_cast %856 : vector<8x128xf32> to vector<1x8x128xf32>
    tpu.vector_store %arg8[%857, %c0_337, %c128_338], %860 {strides = array<i32>} : memref<8x8x256xf32, #tpu.memory_space<vmem>>, vector<1x8x128xf32>,
    %c8_i32 = arith.constant 8 : i32
    %c0_339 = arith.constant 0 : index
    %c0_340 = arith.constant 0 : index
    %861 = vector.load %arg12[%c0_339, %c0_340] : memref<8x128xf32, #tpu.memory_space<vmem>>, vector<8x128xf32>
    %c0_341 = arith.constant 0 : index
    %c0_342 = arith.constant 0 : index
    %c0_343 = arith.constant 0 : index
    %862 = vector.load %arg9[%c0_341, %c0_342, %c0_343] : memref<2x8x128xf32, #tpu.memory_space<vmem>>, vector<1x8x128xf32>
    %863 = vector.shape_cast %862 : vector<1x8x128xf32> to vector<8x128xf32>
    %864 = vector.shape_cast %861 : vector<8x128xf32> to vector<1x8x128xf32>
    tpu.vector_store %arg9[%c0_341, %c0_342, %c0_343], %864 {strides = array<i32>} : memref<2x8x128xf32, #tpu.memory_space<vmem>>, vector<1x8x128xf32>,
    %c0_344 = arith.constant 0 : index
    %c0_345 = arith.constant 0 : index
    %865 = vector.load %arg14[%c0_344, %c0_345] : memref<8x128xf32, #tpu.memory_space<vmem>>, vector<8x128xf32>
    %c1_346 = arith.constant 1 : index
    %c0_347 = arith.constant 0 : index
    %c0_348 = arith.constant 0 : index
    %866 = vector.load %arg9[%c1_346, %c0_347, %c0_348] : memref<2x8x128xf32, #tpu.memory_space<vmem>>, vector<1x8x128xf32>
    %867 = vector.shape_cast %866 : vector<1x8x128xf32> to vector<8x128xf32>
    %868 = vector.shape_cast %865 : vector<8x128xf32> to vector<1x8x128xf32>
    tpu.vector_store %arg9[%c1_346, %c0_347, %c0_348], %868 {strides = array<i32>} : memref<2x8x128xf32, #tpu.memory_space<vmem>>, vector<1x8x128xf32>,
    %c0_349 = arith.constant 0 : index
    %c0_350 = arith.constant 0 : index
    %869 = vector.load %arg13[%c0_349, %c0_350] : memref<8x128xf32, #tpu.memory_space<vmem>>, vector<8x128xf32>
    %c0_351 = arith.constant 0 : index
    %c0_352 = arith.constant 0 : index
    %c0_353 = arith.constant 0 : index
    %870 = vector.load %arg10[%c0_351, %c0_352, %c0_353] : memref<2x8x128xf32, #tpu.memory_space<vmem>>, vector<1x8x128xf32>
    %871 = vector.shape_cast %870 : vector<1x8x128xf32> to vector<8x128xf32>
    %872 = vector.shape_cast %869 : vector<8x128xf32> to vector<1x8x128xf32>
    tpu.vector_store %arg10[%c0_351, %c0_352, %c0_353], %872 {strides = array<i32>} : memref<2x8x128xf32, #tpu.memory_space<vmem>>, vector<1x8x128xf32>,
    %c0_354 = arith.constant 0 : index
    %c0_355 = arith.constant 0 : index
    %873 = vector.load %arg15[%c0_354, %c0_355] : memref<8x128xf32, #tpu.memory_space<vmem>>, vector<8x128xf32>
    %c1_356 = arith.constant 1 : index
    %c0_357 = arith.constant 0 : index
    %c0_358 = arith.constant 0 : index
    %874 = vector.load %arg10[%c1_356, %c0_357, %c0_358] : memref<2x8x128xf32, #tpu.memory_space<vmem>>, vector<1x8x128xf32>
    %875 = vector.shape_cast %874 : vector<1x8x128xf32> to vector<8x128xf32>
    %876 = vector.shape_cast %873 : vector<8x128xf32> to vector<1x8x128xf32>
    tpu.vector_store %arg10[%c1_356, %c0_357, %c0_358], %876 {strides = array<i32>} : memref<2x8x128xf32, #tpu.memory_space<vmem>>, vector<1x8x128xf32>,
    return
  }
}

</mosaic_0001>

<llo_original>
// kernel: _lambda_.1
$region0: #{_lambda_.1}
  #allocation0 [shape = 'u32[]', space=smem, size = 0x4, offset = 0x4, fixed_abs, tag = 'smem constant byte address 0x4 - core index']
  #allocation1 [shape = 'u32[72,128]{1,0:T(1,128)}', space=vmem, size = 0x9000, scoped, tag = 'internal scratch']
  #allocation2 [shape = 'f32[8,8,1024]{2,1,0:T(8,128)}', space=vmem, size = 0x40000, scoped, tag = 'scratch operand']
  #allocation3 [shape = 'f32[8,128]{1,0:T(8,128)}', space=vmem, size = 0x1000, scoped, tag = 'scratch operand']
  #allocation4 [shape = 'f32[8,128]{1,0:T(8,128)}', space=vmem, size = 0x1000, scoped, tag = 'scratch operand']
  #allocation5 [shape = 'f32[8,128]{1,0:T(8,128)}', space=vmem, size = 0x1000, scoped, tag = 'scratch operand']
  #allocation6 [shape = 'f32[8,128]{1,0:T(8,128)}', space=vmem, size = 0x1000, scoped, tag = 'scratch operand']
  %s0 = inlined_call_operand.vmem [shape: bf16[64,32], index: 0, kind: input, shape index: {}]
  %s1 = inlined_call_operand.vmem [shape: s32[8,1], index: 1, kind: input, shape index: {}]
  %s2 = inlined_call_operand.vmem [shape: f32[2,8,128], index: 2, kind: input, shape index: {}]
  %s3 = inlined_call_operand.vmem [shape: f32[2,8,128], index: 3, kind: input, shape index: {}]
  %s4 = inlined_call_operand.vmem [shape: bf16[32,1024], index: 4, kind: input, shape index: {}]
  %s5 = inlined_call_operand.vmem [shape: bf16[128,512], index: 5, kind: input, shape index: {}]
  %s6 = inlined_call_operand.vmem [shape: bf16[128,512], index: 6, kind: input, shape index: {}]
  %s7 = inlined_call_operand.vmem [shape: f32[1,1024], index: 7, kind: input, shape index: {}]
  %s8 = inlined_call_operand.vmem [shape: f32[8,8,256], index: 8, kind: output, shape index: {0}]
  %s9 = inlined_call_operand.vmem [shape: f32[2,8,128], index: 9, kind: output, shape index: {1}]
  %s10 = inlined_call_operand.hbm [shape: f32[2,8,128], index: 10, kind: output, shape index: {2}]
  %11 = xla_tuple %s8, %s9, %s10
  %s12 = sld [smem:[#allocation0]]
  $region58: #{_lambda_.1} parent=0
    _
  %s14 = ssub.s32 1, %s12
  %s15 = scalar_select 0, %s14, %s12
  $region1: #{_lambda_.1} parent=0
    #allocation7 [shape = 'u8[8192]{0}', space=vmem, size = 0x2000, scoped, tag = 'output window, operand 2, single buffered']
    #allocation8 [shape = 's32[1]{0}', space=sflag, size = 0x4, scoped, tag = 'scoped memory for _lambda_.1']
    %16 = vsyncpa [#allocation8], 0
    // Predicated region
    $region2: #{_lambda_.1} parent=1 // pred_check
      _
    $region3: #{_lambda_.1} parent=1 // pred_check_branch
      %18 = sbr.rel (0) target = $region5
    $region4: #{_lambda_.1} parent=1 // pred_region
      _
    $region5: #{_lambda_.1} parent=1 // pred_fallthru
      _
    // Predicated region
    $region6: #{_lambda_.1} parent=1 // pred_check
      _
    $region7: #{_lambda_.1} parent=1 // pred_check_branch
      %20 = sbr.rel (0) target = $region9
    $region8: #{_lambda_.1} parent=1 // pred_region
      _
    $region9: #{_lambda_.1} parent=1 // pred_fallthru
      _
    // Predicated region
    $region10: #{_lambda_.1} parent=1 // pred_check
      _
    $region11: #{_lambda_.1} parent=1 // pred_check_branch
      %22 = sbr.rel (0) target = $region13
    $region12: #{_lambda_.1} parent=1 // pred_region
      _
    $region13: #{_lambda_.1} parent=1 // pred_fallthru
      _
    // Predicated region
    $region14: #{_lambda_.1} parent=1 // pred_check
      _
    $region15: #{_lambda_.1} parent=1 // pred_check_branch
      %24 = sbr.rel (0) target = $region17
    $region16: #{_lambda_.1} parent=1 // pred_region
      _
    $region17: #{_lambda_.1} parent=1 // pred_fallthru
      _
    // Predicated region
    $region18: #{_lambda_.1} parent=1 // pred_check
      _
    $region19: #{_lambda_.1} parent=1 // pred_check_branch
      %26 = sbr.rel (0) target = $region21
    $region20: #{_lambda_.1} parent=1 // pred_region
      _
    $region21: #{_lambda_.1} parent=1 // pred_fallthru
      _
    // Predicated region
    $region22: #{_lambda_.1} parent=1 // pred_check
      _
    $region23: #{_lambda_.1} parent=1 // pred_check_branch
      %28 = sbr.rel (0) target = $region25
    $region24: #{_lambda_.1} parent=1 // pred_region
      _
    $region25: #{_lambda_.1} parent=1 // pred_fallthru
      _
    // Predicated region
    $region26: #{_lambda_.1} parent=1 // pred_check
      _
    $region27: #{_lambda_.1} parent=1 // pred_check_branch
      %30 = sbr.rel (0) target = $region29
    $region28: #{_lambda_.1} parent=1 // pred_region
      _
    $region29: #{_lambda_.1} parent=1 // pred_fallthru
      _
    // Predicated region
    $region30: #{_lambda_.1} parent=1 // pred_check
      _
    $region31: #{_lambda_.1} parent=1 // pred_check_branch
      %32 = sbr.rel (0) target = $region33
    $region32: #{_lambda_.1} parent=1 // pred_region
      _
    $region33: #{_lambda_.1} parent=1 // pred_fallthru
      _
    %v34 = vld [vmem:[%s0] sm:$0xf]
    %v35 = vld [vmem:[%s0 + $0x4] sm:$0xf]
    %v36 = vld [vmem:[%s0 + $0x8] sm:$0xf]
    %v37 = vld [vmem:[%s0 + $0xc] sm:$0xf]
    %v38 = vld [vmem:[%s0 + $0x10] sm:$0xf]
    %v39 = vld [vmem:[%s0 + $0x14] sm:$0xf]
    %v40 = vld [vmem:[%s0 + $0x18] sm:$0xf]
    %v41 = vld [vmem:[%s0 + $0x1c] sm:$0xf]
    %v42 = vld [vmem:[%s4] sm:$0xff]
    %v43 = vld [vmem:[%s4 + $0x8] sm:$0xff]
    %v44 = vld [vmem:[%s4 + $0x10] sm:$0xff]
    %v45 = vld [vmem:[%s4 + $0x18] sm:$0xff]
    %v46 = vld [vmem:[%s4 + $0x20] sm:$0xff]
    %v47 = vld [vmem:[%s4 + $0x28] sm:$0xff]
    %v48 = vld [vmem:[%s4 + $0x30] sm:$0xff]
    %v49 = vld [vmem:[%s4 + $0x38] sm:$0xff]
    %v50 = vld [vmem:[%s4 + $0x40] sm:$0xff]
    %v51 = vld [vmem:[%s4 + $0x48] sm:$0xff]
    %v52 = vld [vmem:[%s4 + $0x50] sm:$0xff]
    %v53 = vld [vmem:[%s4 + $0x58] sm:$0xff]
    %v54 = vld [vmem:[%s4 + $0x60] sm:$0xff]
    %v55 = vld [vmem:[%s4 + $0x68] sm:$0xff]
    %v56 = vld [vmem:[%s4 + $0x70] sm:$0xff]
    %v57 = vld [vmem:[%s4 + $0x78] sm:$0xff]
    %v58 = vld [vmem:[%s7] sm:$0xff]
    %v60 = vperm.slane %v58, 0
    %v61 = vperm.slane %v58, 1
    %v62 = vperm.slane %v58, 2
    %v63 = vperm.slane %v58, 3
    %v64 = vperm.slane %v58, 4
    %v65 = vperm.slane %v58, 5
    %v66 = vperm.slane %v58, 6
    %v67 = vperm.slane %v58, 7
    %v84 = vunpack.c.l.b16 %v34
    %v85 = vunpack.c.l.b16 %v35
    %v86 = vunpack.c.l.b16 %v36
    %v87 = vunpack.c.l.b16 %v37
    %v88 = vunpack.c.l.b16 %v38
    %v89 = vunpack.c.l.b16 %v39
    %v90 = vunpack.c.l.b16 %v40
    %v91 = vunpack.c.l.b16 %v41
    %v92 = vpack.c.b16 %v85, %v84
    %v93 = vpack.c.b16 %v87, %v86
    %v94 = vpack.c.b16 %v89, %v88
    %v95 = vpack.c.b16 %v91, %v90
    %v112 = vunpack.c.l.b16 %v42
    %v113 = vunpack.c.h.b16 %v42
    %v114 = vunpack.c.l.b16 %v43
    %v115 = vunpack.c.h.b16 %v43
    %v116 = vunpack.c.l.b16 %v44
    %v117 = vunpack.c.h.b16 %v44
    %v118 = vunpack.c.l.b16 %v45
    %v119 = vunpack.c.h.b16 %v45
    %v120 = vunpack.c.l.b16 %v46
    %v121 = vunpack.c.h.b16 %v46
    %v122 = vunpack.c.l.b16 %v47
    %v123 = vunpack.c.h.b16 %v47
    %v124 = vunpack.c.l.b16 %v48
    %v125 = vunpack.c.h.b16 %v48
    %v126 = vunpack.c.l.b16 %v49
    %v127 = vunpack.c.h.b16 %v49
    %v128 = vunpack.c.l.b16 %v50
    %v129 = vunpack.c.h.b16 %v50
    %v130 = vunpack.c.l.b16 %v51
    %v131 = vunpack.c.h.b16 %v51
    %v132 = vunpack.c.l.b16 %v52
    %v133 = vunpack.c.h.b16 %v52
    %v134 = vunpack.c.l.b16 %v53
    %v135 = vunpack.c.h.b16 %v53
    %v136 = vunpack.c.l.b16 %v54
    %v137 = vunpack.c.h.b16 %v54
    %v138 = vunpack.c.l.b16 %v55
    %v139 = vunpack.c.h.b16 %v55
    %v140 = vunpack.c.l.b16 %v56
    %v141 = vunpack.c.h.b16 %v56
    %v142 = vunpack.c.l.b16 %v57
    %v143 = vunpack.c.h.b16 %v57
    %v144 = vpack.c.b16 %v120, %v112
    %v145 = vpack.c.b16 %v121, %v113
    %v146 = vpack.c.b16 %v122, %v114
    %v147 = vpack.c.b16 %v123, %v115
    %v148 = vpack.c.b16 %v124, %v116
    %v149 = vpack.c.b16 %v125, %v117
    %v150 = vpack.c.b16 %v126, %v118
    %v151 = vpack.c.b16 %v127, %v119
    %v152 = vpack.c.b16 %v136, %v128
    %v153 = vpack.c.b16 %v137, %v129
    %v154 = vpack.c.b16 %v138, %v130
    %v155 = vpack.c.b16 %v139, %v131
    %v156 = vpack.c.b16 %v140, %v132
    %v157 = vpack.c.b16 %v141, %v133
    %v158 = vpack.c.b16 %v142, %v134
    %v159 = vpack.c.b16 %v143, %v135
    %vm176 = vcmask 261120
    %v178 = vsel %vm176, %v92, 0
    %v181 = vsel %vm176, %v93, 0
    %v184 = vsel %vm176, %v94, 0
    %v187 = vsel %vm176, %v95, 0
    %189 = vmatpush.bf16.msra.mxu0 0
    %190 = vmatpush.bf16.msra.mxu0 0
    %191 = vmatpush.bf16.msra.mxu0 0
    %192 = vmatpush.bf16.msra.mxu0 0
    %193 = vmatpush.bf16.msra.mxu0 0
    %194 = vmatpush.bf16.msra.mxu0 0
    %195 = vmatpush.bf16.msra.mxu0 %v152
    %196 = vmatpush.bf16.msra.mxu0 %v144
    %197 = vmatmul.bf16.gmra.mxu0 %v178
    %v198 = vpop.f32.mrf.mxu0
    %v199 = vadd.f32 %v60, %v198
    %v200 = vpop.f32.mrf.mxu0
    %v201 = vadd.f32 %v60, %v200
    %202 = vmatmul.bf16.gmra.mxu0 %v181
    %v203 = vpop.f32.mrf.mxu0
    %v204 = vadd.f32 %v60, %v203
    %v205 = vpop.f32.mrf.mxu0
    %v206 = vadd.f32 %v60, %v205
    %207 = vmatmul.bf16.gmra.mxu0 %v184
    %v208 = vpop.f32.mrf.mxu0
    %v209 = vadd.f32 %v60, %v208
    %v210 = vpop.f32.mrf.mxu0
    %v211 = vadd.f32 %v60, %v210
    %212 = vmatmul.bf16.gmra.mxu0 %v187
    %v213 = vpop.f32.mrf.mxu0
    %v214 = vadd.f32 %v60, %v213
    %v215 = vpop.f32.mrf.mxu0
    %v216 = vadd.f32 %v60, %v215
    %217 = vdwg.mxu0
    %218 = vmatpush.bf16.msra.mxu0 0
    %219 = vmatpush.bf16.msra.mxu0 0
    %220 = vmatpush.bf16.msra.mxu0 0
    %221 = vmatpush.bf16.msra.mxu0 0
    %222 = vmatpush.bf16.msra.mxu0 0
    %223 = vmatpush.bf16.msra.mxu0 0
    %224 = vmatpush.bf16.msra.mxu0 %v153
    %225 = vmatpush.bf16.msra.mxu0 %v145
    %226 = vmatmul.bf16.gmra.mxu0 %v178
    %v227 = vpop.f32.mrf.mxu0
    %v228 = vadd.f32 %v61, %v227
    %v229 = vpop.f32.mrf.mxu0
    %v230 = vadd.f32 %v61, %v229
    %231 = vmatmul.bf16.gmra.mxu0 %v181
    %v232 = vpop.f32.mrf.mxu0
    %v233 = vadd.f32 %v61, %v232
    %v234 = vpop.f32.mrf.mxu0
    %v235 = vadd.f32 %v61, %v234
    %236 = vmatmul.bf16.gmra.mxu0 %v184
    %v237 = vpop.f32.mrf.mxu0
    %v238 = vadd.f32 %v61, %v237
    %v239 = vpop.f32.mrf.mxu0
    %v240 = vadd.f32 %v61, %v239
    %241 = vmatmul.bf16.gmra.mxu0 %v187
    %v242 = vpop.f32.mrf.mxu0
    %v243 = vadd.f32 %v61, %v242
    %v244 = vpop.f32.mrf.mxu0
    %v245 = vadd.f32 %v61, %v244
    %246 = vdwg.mxu0
    %247 = vmatpush.bf16.msra.mxu0 0
    %248 = vmatpush.bf16.msra.mxu0 0
    %249 = vmatpush.bf16.msra.mxu0 0
    %250 = vmatpush.bf16.msra.mxu0 0
    %251 = vmatpush.bf16.msra.mxu0 0
    %252 = vmatpush.bf16.msra.mxu0 0
    %253 = vmatpush.bf16.msra.mxu0 %v154
    %254 = vmatpush.bf16.msra.mxu0 %v146
    %255 = vmatmul.bf16.gmra.mxu0 %v178
    %v256 = vpop.f32.mrf.mxu0
    %v257 = vadd.f32 %v62, %v256
    %v258 = vpop.f32.mrf.mxu0
    %v259 = vadd.f32 %v62, %v258
    %260 = vmatmul.bf16.gmra.mxu0 %v181
    %v261 = vpop.f32.mrf.mxu0
    %v262 = vadd.f32 %v62, %v261
    %v263 = vpop.f32.mrf.mxu0
    %v264 = vadd.f32 %v62, %v263
    %265 = vmatmul.bf16.gmra.mxu0 %v184
    %v266 = vpop.f32.mrf.mxu0
    %v267 = vadd.f32 %v62, %v266
    %v268 = vpop.f32.mrf.mxu0
    %v269 = vadd.f32 %v62, %v268
    %270 = vmatmul.bf16.gmra.mxu0 %v187
    %v271 = vpop.f32.mrf.mxu0
    %v272 = vadd.f32 %v62, %v271
    %v273 = vpop.f32.mrf.mxu0
    %v274 = vadd.f32 %v62, %v273
    %275 = vdwg.mxu0
    %276 = vmatpush.bf16.msra.mxu0 0
    %277 = vmatpush.bf16.msra.mxu0 0
    %278 = vmatpush.bf16.msra.mxu0 0
    %279 = vmatpush.bf16.msra.mxu0 0
    %280 = vmatpush.bf16.msra.mxu0 0
    %281 = vmatpush.bf16.msra.mxu0 0
    %282 = vmatpush.bf16.msra.mxu0 %v155
    %283 = vmatpush.bf16.msra.mxu0 %v147
    %284 = vmatmul.bf16.gmra.mxu0 %v178
    %v285 = vpop.f32.mrf.mxu0
    %v286 = vadd.f32 %v63, %v285
    %v287 = vpop.f32.mrf.mxu0
    %v288 = vadd.f32 %v63, %v287
    %289 = vmatmul.bf16.gmra.mxu0 %v181
    %v290 = vpop.f32.mrf.mxu0
    %v291 = vadd.f32 %v63, %v290
    %v292 = vpop.f32.mrf.mxu0
    %v293 = vadd.f32 %v63, %v292
    %294 = vmatmul.bf16.gmra.mxu0 %v184
    %v295 = vpop.f32.mrf.mxu0
    %v296 = vadd.f32 %v63, %v295
    %v297 = vpop.f32.mrf.mxu0
    %v298 = vadd.f32 %v63, %v297
    %299 = vmatmul.bf16.gmra.mxu0 %v187
    %v300 = vpop.f32.mrf.mxu0
    %v301 = vadd.f32 %v63, %v300
    %v302 = vpop.f32.mrf.mxu0
    %v303 = vadd.f32 %v63, %v302
    %304 = vdwg.mxu0
    %305 = vmatpush.bf16.msra.mxu0 0
    %306 = vmatpush.bf16.msra.mxu0 0
    %307 = vmatpush.bf16.msra.mxu0 0
    %308 = vmatpush.bf16.msra.mxu0 0
    %309 = vmatpush.bf16.msra.mxu0 0
    %310 = vmatpush.bf16.msra.mxu0 0
    %311 = vmatpush.bf16.msra.mxu0 %v156
    %312 = vmatpush.bf16.msra.mxu0 %v148
    %313 = vmatmul.bf16.gmra.mxu0 %v178
    %v314 = vpop.f32.mrf.mxu0
    %v315 = vadd.f32 %v64, %v314
    %v316 = vpop.f32.mrf.mxu0
    %v317 = vadd.f32 %v64, %v316
    %318 = vmatmul.bf16.gmra.mxu0 %v181
    %v319 = vpop.f32.mrf.mxu0
    %v320 = vadd.f32 %v64, %v319
    %v321 = vpop.f32.mrf.mxu0
    %v322 = vadd.f32 %v64, %v321
    %323 = vmatmul.bf16.gmra.mxu0 %v184
    %v324 = vpop.f32.mrf.mxu0
    %v325 = vadd.f32 %v64, %v324
    %v326 = vpop.f32.mrf.mxu0
    %v327 = vadd.f32 %v64, %v326
    %328 = vmatmul.bf16.gmra.mxu0 %v187
    %v329 = vpop.f32.mrf.mxu0
    %v330 = vadd.f32 %v64, %v329
    %v331 = vpop.f32.mrf.mxu0
    %v332 = vadd.f32 %v64, %v331
    %333 = vdwg.mxu0
    %334 = vmatpush.bf16.msra.mxu0 0
    %335 = vmatpush.bf16.msra.mxu0 0
    %336 = vmatpush.bf16.msra.mxu0 0
    %337 = vmatpush.bf16.msra.mxu0 0
    %338 = vmatpush.bf16.msra.mxu0 0
    %339 = vmatpush.bf16.msra.mxu0 0
    %340 = vmatpush.bf16.msra.mxu0 %v157
    %341 = vmatpush.bf16.msra.mxu0 %v149
    %342 = vmatmul.bf16.gmra.mxu0 %v178
    %v343 = vpop.f32.mrf.mxu0
    %v344 = vadd.f32 %v65, %v343
    %v345 = vpop.f32.mrf.mxu0
    %v346 = vadd.f32 %v65, %v345
    %347 = vmatmul.bf16.gmra.mxu0 %v181
    %v348 = vpop.f32.mrf.mxu0
    %v349 = vadd.f32 %v65, %v348
    %v350 = vpop.f32.mrf.mxu0
    %v351 = vadd.f32 %v65, %v350
    %352 = vmatmul.bf16.gmra.mxu0 %v184
    %v353 = vpop.f32.mrf.mxu0
    %v354 = vadd.f32 %v65, %v353
    %v355 = vpop.f32.mrf.mxu0
    %v356 = vadd.f32 %v65, %v355
    %357 = vmatmul.bf16.gmra.mxu0 %v187
    %v358 = vpop.f32.mrf.mxu0
    %v359 = vadd.f32 %v65, %v358
    %v360 = vpop.f32.mrf.mxu0
    %v361 = vadd.f32 %v65, %v360
    %362 = vdwg.mxu0
    %363 = vmatpush.bf16.msra.mxu0 0
    %364 = vmatpush.bf16.msra.mxu0 0
    %365 = vmatpush.bf16.msra.mxu0 0
    %366 = vmatpush.bf16.msra.mxu0 0
    %367 = vmatpush.bf16.msra.mxu0 0
    %368 = vmatpush.bf16.msra.mxu0 0
    %369 = vmatpush.bf16.msra.mxu0 %v158
    %370 = vmatpush.bf16.msra.mxu0 %v150
    %371 = vmatmul.bf16.gmra.mxu0 %v178
    %v372 = vpop.f32.mrf.mxu0
    %v373 = vadd.f32 %v66, %v372
    %v374 = vpop.f32.mrf.mxu0
    %v375 = vadd.f32 %v66, %v374
    %376 = vmatmul.bf16.gmra.mxu0 %v181
    %v377 = vpop.f32.mrf.mxu0
    %v378 = vadd.f32 %v66, %v377
    %v379 = vpop.f32.mrf.mxu0
    %v380 = vadd.f32 %v66, %v379
    %381 = vmatmul.bf16.gmra.mxu0 %v184
    %v382 = vpop.f32.mrf.mxu0
    %v383 = vadd.f32 %v66, %v382
    %v384 = vpop.f32.mrf.mxu0
    %v385 = vadd.f32 %v66, %v384
    %386 = vmatmul.bf16.gmra.mxu0 %v187
    %v387 = vpop.f32.mrf.mxu0
    %v388 = vadd.f32 %v66, %v387
    %v389 = vpop.f32.mrf.mxu0
    %v390 = vadd.f32 %v66, %v389
    %391 = vdwg.mxu0
    %392 = vmatpush.bf16.msra.mxu0 0
    %393 = vmatpush.bf16.msra.mxu0 0
    %394 = vmatpush.bf16.msra.mxu0 0
    %395 = vmatpush.bf16.msra.mxu0 0
    %396 = vmatpush.bf16.msra.mxu0 0
    %397 = vmatpush.bf16.msra.mxu0 0
    %398 = vmatpush.bf16.msra.mxu0 %v159
    %399 = vmatpush.bf16.msra.mxu0 %v151
    %400 = vmatmul.bf16.gmra.mxu0 %v178
    %v401 = vpop.f32.mrf.mxu0
    %v402 = vadd.f32 %v67, %v401
    %v403 = vpop.f32.mrf.mxu0
    %v404 = vadd.f32 %v67, %v403
    %405 = vmatmul.bf16.gmra.mxu0 %v181
    %v406 = vpop.f32.mrf.mxu0
    %v407 = vadd.f32 %v67, %v406
    %v408 = vpop.f32.mrf.mxu0
    %v409 = vadd.f32 %v67, %v408
    %410 = vmatmul.bf16.gmra.mxu0 %v184
    %v411 = vpop.f32.mrf.mxu0
    %v412 = vadd.f32 %v67, %v411
    %v413 = vpop.f32.mrf.mxu0
    %v414 = vadd.f32 %v67, %v413
    %415 = vmatmul.bf16.gmra.mxu0 %v187
    %v416 = vpop.f32.mrf.mxu0
    %v417 = vadd.f32 %v67, %v416
    %v418 = vpop.f32.mrf.mxu0
    %v419 = vadd.f32 %v67, %v418
    %420 = vdwg.mxu0
    %421 = vst [vmem:[#allocation2] sm:$0xff] %v199
    %422 = vst [vmem:[#allocation2 + $0x8] sm:$0xff] %v228
    %423 = vst [vmem:[#allocation2 + $0x10] sm:$0xff] %v257
    %424 = vst [vmem:[#allocation2 + $0x18] sm:$0xff] %v286
    %425 = vst [vmem:[#allocation2 + $0x20] sm:$0xff] %v315
    %426 = vst [vmem:[#allocation2 + $0x28] sm:$0xff] %v344
    %427 = vst [vmem:[#allocation2 + $0x30] sm:$0xff] %v373
    %428 = vst [vmem:[#allocation2 + $0x38] sm:$0xff] %v402
    %429 = vst [vmem:[#allocation2 + $0x40] sm:$0xff] %v201
    %430 = vst [vmem:[#allocation2 + $0x48] sm:$0xff] %v230
    %431 = vst [vmem:[#allocation2 + $0x50] sm:$0xff] %v259
    %432 = vst [vmem:[#allocation2 + $0x58] sm:$0xff] %v288
    %433 = vst [vmem:[#allocation2 + $0x60] sm:$0xff] %v317
    %434 = vst [vmem:[#allocation2 + $0x68] sm:$0xff] %v346
    %435 = vst [vmem:[#allocation2 + $0x70] sm:$0xff] %v375
    %436 = vst [vmem:[#allocation2 + $0x78] sm:$0xff] %v404
    %437 = vst [vmem:[#allocation2 + $0x80] sm:$0xff] %v204
    %438 = vst [vmem:[#allocation2 + $0x88] sm:$0xff] %v233
    %439 = vst [vmem:[#allocation2 + $0x90] sm:$0xff] %v262
    %440 = vst [vmem:[#allocation2 + $0x98] sm:$0xff] %v291
    %441 = vst [vmem:[#allocation2 + $0xa0] sm:$0xff] %v320
    %442 = vst [vmem:[#allocation2 + $0xa8] sm:$0xff] %v349
    %443 = vst [vmem:[#allocation2 + $0xb0] sm:$0xff] %v378
    %444 = vst [vmem:[#allocation2 + $0xb8] sm:$0xff] %v407
    %445 = vst [vmem:[#allocation2 + $0xc0] sm:$0xff] %v206
    %446 = vst [vmem:[#allocation2 + $0xc8] sm:$0xff] %v235
    %447 = vst [vmem:[#allocation2 + $0xd0] sm:$0xff] %v264
    %448 = vst [vmem:[#allocation2 + $0xd8] sm:$0xff] %v293
    %449 = vst [vmem:[#allocation2 + $0xe0] sm:$0xff] %v322
    %450 = vst [vmem:[#allocation2 + $0xe8] sm:$0xff] %v351
    %451 = vst [vmem:[#allocation2 + $0xf0] sm:$0xff] %v380
    %452 = vst [vmem:[#allocation2 + $0xf8] sm:$0xff] %v409
    %453 = vst [vmem:[#allocation2 + $0x100] sm:$0xff] %v209
    %454 = vst [vmem:[#allocation2 + $0x108] sm:$0xff] %v238
    %455 = vst [vmem:[#allocation2 + $0x110] sm:$0xff] %v267
    %456 = vst [vmem:[#allocation2 + $0x118] sm:$0xff] %v296
    %457 = vst [vmem:[#allocation2 + $0x120] sm:$0xff] %v325
    %458 = vst [vmem:[#allocation2 + $0x128] sm:$0xff] %v354
    %459 = vst [vmem:[#allocation2 + $0x130] sm:$0xff] %v383
    %460 = vst [vmem:[#allocation2 + $0x138] sm:$0xff] %v412
    %461 = vst [vmem:[#allocation2 + $0x140] sm:$0xff] %v211
    %462 = vst [vmem:[#allocation2 + $0x148] sm:$0xff] %v240
    %463 = vst [vmem:[#allocation2 + $0x150] sm:$0xff] %v269
    %464 = vst [vmem:[#allocation2 + $0x158] sm:$0xff] %v298
    %465 = vst [vmem:[#allocation2 + $0x160] sm:$0xff] %v327
    %466 = vst [vmem:[#allocation2 + $0x168] sm:$0xff] %v356
    %467 = vst [vmem:[#allocation2 + $0x170] sm:$0xff] %v385
    %468 = vst [vmem:[#allocation2 + $0x178] sm:$0xff] %v414
    %469 = vst [vmem:[#allocation2 + $0x180] sm:$0xff] %v214
    %470 = vst [vmem:[#allocation2 + $0x188] sm:$0xff] %v243
    %471 = vst [vmem:[#allocation2 + $0x190] sm:$0xff] %v272
    %472 = vst [vmem:[#allocation2 + $0x198] sm:$0xff] %v301
    %473 = vst [vmem:[#allocation2 + $0x1a0] sm:$0xff] %v330
    %474 = vst [vmem:[#allocation2 + $0x1a8] sm:$0xff] %v359
    %475 = vst [vmem:[#allocation2 + $0x1b0] sm:$0xff] %v388
    %476 = vst [vmem:[#allocation2 + $0x1b8] sm:$0xff] %v417
    %477 = vst [vmem:[#allocation2 + $0x1c0] sm:$0xff] %v216
    %478 = vst [vmem:[#allocation2 + $0x1c8] sm:$0xff] %v245
    %479 = vst [vmem:[#allocation2 + $0x1d0] sm:$0xff] %v274
    %480 = vst [vmem:[#allocation2 + $0x1d8] sm:$0xff] %v303
    %481 = vst [vmem:[#allocation2 + $0x1e0] sm:$0xff] %v332
    %482 = vst [vmem:[#allocation2 + $0x1e8] sm:$0xff] %v361
    %483 = vst [vmem:[#allocation2 + $0x1f0] sm:$0xff] %v390
    %484 = vst [vmem:[#allocation2 + $0x1f8] sm:$0xff] %v419
    %v485 = vld [vmem:[%s2] sm:$0xff]
    %486 = vst [vmem:[#allocation3] sm:$0xff] %v485
    %v487 = vld [vmem:[%s3] sm:$0xff]
    %488 = vst [vmem:[#allocation4] sm:$0xff] %v487
    %s489 = scalar_lea.vmem %s2, 8
    %v490 = vld [vmem:[%s489] sm:$0xff]
    %491 = vst [vmem:[#allocation5] sm:$0xff] %v490
    %s492 = scalar_lea.vmem %s3, 8
    %v493 = vld [vmem:[%s492] sm:$0xff]
    %494 = vst [vmem:[#allocation6] sm:$0xff] %v493
    %v495 = vld [vmem:[%s1] sm:$0xff]
    %v496 = vld [vmem:[#allocation3] sm:$0xff]
    %v497 = vld [vmem:[#allocation4] sm:$0xff]
    %v498 = vld [vmem:[#allocation5] sm:$0xff]
    %v499 = vld [vmem:[#allocation6] sm:$0xff]
    %v500 = vpack.c.bf16 %v496, %v496
    %v501 = vld [vmem:[%s5] sm:$0xff]
    %v502 = vld [vmem:[%s5 + $0x8] sm:$0xff]
    %v503 = vld [vmem:[%s5 + $0x10] sm:$0xff]
    %v504 = vld [vmem:[%s5 + $0x18] sm:$0xff]
    %v505 = vld [vmem:[%s5 + $0x20] sm:$0xff]
    %v506 = vld [vmem:[%s5 + $0x28] sm:$0xff]
    %v507 = vld [vmem:[%s5 + $0x30] sm:$0xff]
    %v508 = vld [vmem:[%s5 + $0x38] sm:$0xff]
    %v509 = vld [vmem:[%s5 + $0x40] sm:$0xff]
    %v510 = vld [vmem:[%s5 + $0x48] sm:$0xff]
    %v511 = vld [vmem:[%s5 + $0x50] sm:$0xff]
    %v512 = vld [vmem:[%s5 + $0x58] sm:$0xff]
    %v513 = vld [vmem:[%s5 + $0x60] sm:$0xff]
    %v514 = vld [vmem:[%s5 + $0x68] sm:$0xff]
    %v515 = vld [vmem:[%s5 + $0x70] sm:$0xff]
    %v516 = vld [vmem:[%s5 + $0x78] sm:$0xff]
    %v517 = vld [vmem:[%s5 + $0x80] sm:$0xff]
    %v518 = vld [vmem:[%s5 + $0x88] sm:$0xff]
    %v519 = vld [vmem:[%s5 + $0x90] sm:$0xff]
    %v520 = vld [vmem:[%s5 + $0x98] sm:$0xff]
    %v521 = vld [vmem:[%s5 + $0xa0] sm:$0xff]
    %v522 = vld [vmem:[%s5 + $0xa8] sm:$0xff]
    %v523 = vld [vmem:[%s5 + $0xb0] sm:$0xff]
    %v524 = vld [vmem:[%s5 + $0xb8] sm:$0xff]
    %v525 = vld [vmem:[%s5 + $0xc0] sm:$0xff]
    %v526 = vld [vmem:[%s5 + $0xc8] sm:$0xff]
    %v527 = vld [vmem:[%s5 + $0xd0] sm:$0xff]
    %v528 = vld [vmem:[%s5 + $0xd8] sm:$0xff]
    %v529 = vld [vmem:[%s5 + $0xe0] sm:$0xff]
    %v530 = vld [vmem:[%s5 + $0xe8] sm:$0xff]
    %v531 = vld [vmem:[%s5 + $0xf0] sm:$0xff]
    %v532 = vld [vmem:[%s5 + $0xf8] sm:$0xff]
    %v565 = vunpack.c.l.b16 %v501
    %v566 = vunpack.c.h.b16 %v501
    %v567 = vunpack.c.l.b16 %v502
    %v568 = vunpack.c.h.b16 %v502
    %v569 = vunpack.c.l.b16 %v503
    %v570 = vunpack.c.h.b16 %v503
    %v571 = vunpack.c.l.b16 %v504
    %v572 = vunpack.c.h.b16 %v504
    %v573 = vunpack.c.l.b16 %v505
    %v574 = vunpack.c.h.b16 %v505
    %v575 = vunpack.c.l.b16 %v506
    %v576 = vunpack.c.h.b16 %v506
    %v577 = vunpack.c.l.b16 %v507
    %v578 = vunpack.c.h.b16 %v507
    %v579 = vunpack.c.l.b16 %v508
    %v580 = vunpack.c.h.b16 %v508
    %v581 = vunpack.c.l.b16 %v509
    %v582 = vunpack.c.h.b16 %v509
    %v583 = vunpack.c.l.b16 %v510
    %v584 = vunpack.c.h.b16 %v510
    %v585 = vunpack.c.l.b16 %v511
    %v586 = vunpack.c.h.b16 %v511
    %v587 = vunpack.c.l.b16 %v512
    %v588 = vunpack.c.h.b16 %v512
    %v589 = vunpack.c.l.b16 %v513
    %v590 = vunpack.c.h.b16 %v513
    %v591 = vunpack.c.l.b16 %v514
    %v592 = vunpack.c.h.b16 %v514
    %v593 = vunpack.c.l.b16 %v515
    %v594 = vunpack.c.h.b16 %v515
    %v595 = vunpack.c.l.b16 %v516
    %v596 = vunpack.c.h.b16 %v516
    %v597 = vunpack.c.l.b16 %v517
    %v598 = vunpack.c.h.b16 %v517
    %v599 = vunpack.c.l.b16 %v518
    %v600 = vunpack.c.h.b16 %v518
    %v601 = vunpack.c.l.b16 %v519
    %v602 = vunpack.c.h.b16 %v519
    %v603 = vunpack.c.l.b16 %v520
    %v604 = vunpack.c.h.b16 %v520
    %v605 = vunpack.c.l.b16 %v521
    %v606 = vunpack.c.h.b16 %v521
    %v607 = vunpack.c.l.b16 %v522
    %v608 = vunpack.c.h.b16 %v522
    %v609 = vunpack.c.l.b16 %v523
    %v610 = vunpack.c.h.b16 %v523
    %v611 = vunpack.c.l.b16 %v524
    %v612 = vunpack.c.h.b16 %v524
    %v613 = vunpack.c.l.b16 %v525
    %v614 = vunpack.c.h.b16 %v525
    %v615 = vunpack.c.l.b16 %v526
    %v616 = vunpack.c.h.b16 %v526
    %v617 = vunpack.c.l.b16 %v527
    %v618 = vunpack.c.h.b16 %v527
    %v619 = vunpack.c.l.b16 %v528
    %v620 = vunpack.c.h.b16 %v528
    %v621 = vunpack.c.l.b16 %v529
    %v622 = vunpack.c.h.b16 %v529
    %v623 = vunpack.c.l.b16 %v530
    %v624 = vunpack.c.h.b16 %v530
    %v625 = vunpack.c.l.b16 %v531
    %v626 = vunpack.c.h.b16 %v531
    %v627 = vunpack.c.l.b16 %v532
    %v628 = vunpack.c.h.b16 %v532
    %v629 = vpack.c.b16 %v569, %v565
    %v630 = vpack.c.b16 %v570, %v566
    %v631 = vpack.c.b16 %v571, %v567
    %v632 = vpack.c.b16 %v572, %v568
    %v633 = vpack.c.b16 %v577, %v573
    %v634 = vpack.c.b16 %v578, %v574
    %v635 = vpack.c.b16 %v579, %v575
    %v636 = vpack.c.b16 %v580, %v576
    %v637 = vpack.c.b16 %v585, %v581
    %v638 = vpack.c.b16 %v586, %v582
    %v639 = vpack.c.b16 %v587, %v583
    %v640 = vpack.c.b16 %v588, %v584
    %v641 = vpack.c.b16 %v593, %v589
    %v642 = vpack.c.b16 %v594, %v590
    %v643 = vpack.c.b16 %v595, %v591
    %v644 = vpack.c.b16 %v596, %v592
    %v645 = vpack.c.b16 %v601, %v597
    %v646 = vpack.c.b16 %v602, %v598
    %v647 = vpack.c.b16 %v603, %v599
    %v648 = vpack.c.b16 %v604, %v600
    %v649 = vpack.c.b16 %v609, %v605
    %v650 = vpack.c.b16 %v610, %v606
    %v651 = vpack.c.b16 %v611, %v607
    %v652 = vpack.c.b16 %v612, %v608
    %v653 = vpack.c.b16 %v617, %v613
    %v654 = vpack.c.b16 %v618, %v614
    %v655 = vpack.c.b16 %v619, %v615
    %v656 = vpack.c.b16 %v620, %v616
    %v657 = vpack.c.b16 %v625, %v621
    %v658 = vpack.c.b16 %v626, %v622
    %v659 = vpack.c.b16 %v627, %v623
    %v660 = vpack.c.b16 %v628, %v624
    %693 = vmatpush.bf16.msra.mxu0 %v657
    %694 = vmatpush.bf16.msra.mxu0 %v653
    %695 = vmatpush.bf16.msra.mxu0 %v649
    %696 = vmatpush.bf16.msra.mxu0 %v645
    %697 = vmatpush.bf16.msra.mxu0 %v641
    %698 = vmatpush.bf16.msra.mxu0 %v637
    %699 = vmatpush.bf16.msra.mxu0 %v633
    %700 = vmatpush.bf16.msra.mxu0 %v629
    %701 = vmatmul.bf16.gmra.mxu0 %v500
    %v702 = vpop.f32.mrf.mxu0
    %v703 = vadd.f32 0.0, %v702
    %v704 = vpop.f32.mrf.mxu0
    %705 = vdwg.mxu0
    %706 = vmatpush.bf16.msra.mxu0 %v658
    %707 = vmatpush.bf16.msra.mxu0 %v654
    %708 = vmatpush.bf16.msra.mxu0 %v650
    %709 = vmatpush.bf16.msra.mxu0 %v646
    %710 = vmatpush.bf16.msra.mxu0 %v642
    %711 = vmatpush.bf16.msra.mxu0 %v638
    %712 = vmatpush.bf16.msra.mxu0 %v634
    %713 = vmatpush.bf16.msra.mxu0 %v630
    %714 = vmatmul.bf16.gmra.mxu0 %v500
    %v715 = vpop.f32.mrf.mxu0
    %v716 = vadd.f32 0.0, %v715
    %v717 = vpop.f32.mrf.mxu0
    %718 = vdwg.mxu0
    %719 = vmatpush.bf16.msra.mxu0 %v659
    %720 = vmatpush.bf16.msra.mxu0 %v655
    %721 = vmatpush.bf16.msra.mxu0 %v651
    %722 = vmatpush.bf16.msra.mxu0 %v647
    %723 = vmatpush.bf16.msra.mxu0 %v643
    %724 = vmatpush.bf16.msra.mxu0 %v639
    %725 = vmatpush.bf16.msra.mxu0 %v635
    %726 = vmatpush.bf16.msra.mxu0 %v631
    %727 = vmatmul.bf16.gmra.mxu0 %v500
    %v728 = vpop.f32.mrf.mxu0
    %v729 = vadd.f32 0.0, %v728
    %v730 = vpop.f32.mrf.mxu0
    %731 = vdwg.mxu0
    %732 = vmatpush.bf16.msra.mxu0 %v660
    %733 = vmatpush.bf16.msra.mxu0 %v656
    %734 = vmatpush.bf16.msra.mxu0 %v652
    %735 = vmatpush.bf16.msra.mxu0 %v648
    %736 = vmatpush.bf16.msra.mxu0 %v644
    %737 = vmatpush.bf16.msra.mxu0 %v640
    %738 = vmatpush.bf16.msra.mxu0 %v636
    %739 = vmatpush.bf16.msra.mxu0 %v632
    %740 = vmatmul.bf16.gmra.mxu0 %v500
    %v741 = vpop.f32.mrf.mxu0
    %v742 = vadd.f32 0.0, %v741
    %v743 = vpop.f32.mrf.mxu0
    %744 = vdwg.mxu0
    %v745 = vpack.c.bf16 %v498, %v498
    %v746 = vld [vmem:[%s6] sm:$0xff]
    %v747 = vld [vmem:[%s6 + $0x8] sm:$0xff]
    %v748 = vld [vmem:[%s6 + $0x10] sm:$0xff]
    %v749 = vld [vmem:[%s6 + $0x18] sm:$0xff]
    %v750 = vld [vmem:[%s6 + $0x20] sm:$0xff]
    %v751 = vld [vmem:[%s6 + $0x28] sm:$0xff]
    %v752 = vld [vmem:[%s6 + $0x30] sm:$0xff]
    %v753 = vld [vmem:[%s6 + $0x38] sm:$0xff]
    %v754 = vld [vmem:[%s6 + $0x40] sm:$0xff]
    %v755 = vld [vmem:[%s6 + $0x48] sm:$0xff]
    %v756 = vld [vmem:[%s6 + $0x50] sm:$0xff]
    %v757 = vld [vmem:[%s6 + $0x58] sm:$0xff]
    %v758 = vld [vmem:[%s6 + $0x60] sm:$0xff]
    %v759 = vld [vmem:[%s6 + $0x68] sm:$0xff]
    %v760 = vld [vmem:[%s6 + $0x70] sm:$0xff]
    %v761 = vld [vmem:[%s6 + $0x78] sm:$0xff]
    %v762 = vld [vmem:[%s6 + $0x80] sm:$0xff]
    %v763 = vld [vmem:[%s6 + $0x88] sm:$0xff]
    %v764 = vld [vmem:[%s6 + $0x90] sm:$0xff]
    %v765 = vld [vmem:[%s6 + $0x98] sm:$0xff]
    %v766 = vld [vmem:[%s6 + $0xa0] sm:$0xff]
    %v767 = vld [vmem:[%s6 + $0xa8] sm:$0xff]
    %v768 = vld [vmem:[%s6 + $0xb0] sm:$0xff]
    %v769 = vld [vmem:[%s6 + $0xb8] sm:$0xff]
    %v770 = vld [vmem:[%s6 + $0xc0] sm:$0xff]
    %v771 = vld [vmem:[%s6 + $0xc8] sm:$0xff]
    %v772 = vld [vmem:[%s6 + $0xd0] sm:$0xff]
    %v773 = vld [vmem:[%s6 + $0xd8] sm:$0xff]
    %v774 = vld [vmem:[%s6 + $0xe0] sm:$0xff]
    %v775 = vld [vmem:[%s6 + $0xe8] sm:$0xff]
    %v776 = vld [vmem:[%s6 + $0xf0] sm:$0xff]
    %v777 = vld [vmem:[%s6 + $0xf8] sm:$0xff]
    %v810 = vunpack.c.l.b16 %v746
    %v811 = vunpack.c.h.b16 %v746
    %v812 = vunpack.c.l.b16 %v747
    %v813 = vunpack.c.h.b16 %v747
    %v814 = vunpack.c.l.b16 %v748
    %v815 = vunpack.c.h.b16 %v748
    %v816 = vunpack.c.l.b16 %v749
    %v817 = vunpack.c.h.b16 %v749
    %v818 = vunpack.c.l.b16 %v750
    %v819 = vunpack.c.h.b16 %v750
    %v820 = vunpack.c.l.b16 %v751
    %v821 = vunpack.c.h.b16 %v751
    %v822 = vunpack.c.l.b16 %v752
    %v823 = vunpack.c.h.b16 %v752
    %v824 = vunpack.c.l.b16 %v753
    %v825 = vunpack.c.h.b16 %v753
    %v826 = vunpack.c.l.b16 %v754
    %v827 = vunpack.c.h.b16 %v754
    %v828 = vunpack.c.l.b16 %v755
    %v829 = vunpack.c.h.b16 %v755
    %v830 = vunpack.c.l.b16 %v756
    %v831 = vunpack.c.h.b16 %v756
    %v832 = vunpack.c.l.b16 %v757
    %v833 = vunpack.c.h.b16 %v757
    %v834 = vunpack.c.l.b16 %v758
    %v835 = vunpack.c.h.b16 %v758
    %v836 = vunpack.c.l.b16 %v759
    %v837 = vunpack.c.h.b16 %v759
    %v838 = vunpack.c.l.b16 %v760
    %v839 = vunpack.c.h.b16 %v760
    %v840 = vunpack.c.l.b16 %v761
    %v841 = vunpack.c.h.b16 %v761
    %v842 = vunpack.c.l.b16 %v762
    %v843 = vunpack.c.h.b16 %v762
    %v844 = vunpack.c.l.b16 %v763
    %v845 = vunpack.c.h.b16 %v763
    %v846 = vunpack.c.l.b16 %v764
    %v847 = vunpack.c.h.b16 %v764
    %v848 = vunpack.c.l.b16 %v765
    %v849 = vunpack.c.h.b16 %v765
    %v850 = vunpack.c.l.b16 %v766
    %v851 = vunpack.c.h.b16 %v766
    %v852 = vunpack.c.l.b16 %v767
    %v853 = vunpack.c.h.b16 %v767
    %v854 = vunpack.c.l.b16 %v768
    %v855 = vunpack.c.h.b16 %v768
    %v856 = vunpack.c.l.b16 %v769
    %v857 = vunpack.c.h.b16 %v769
    %v858 = vunpack.c.l.b16 %v770
    %v859 = vunpack.c.h.b16 %v770
    %v860 = vunpack.c.l.b16 %v771
    %v861 = vunpack.c.h.b16 %v771
    %v862 = vunpack.c.l.b16 %v772
    %v863 = vunpack.c.h.b16 %v772
    %v864 = vunpack.c.l.b16 %v773
    %v865 = vunpack.c.h.b16 %v773
    %v866 = vunpack.c.l.b16 %v774
    %v867 = vunpack.c.h.b16 %v774
    %v868 = vunpack.c.l.b16 %v775
    %v869 = vunpack.c.h.b16 %v775
    %v870 = vunpack.c.l.b16 %v776
    %v871 = vunpack.c.h.b16 %v776
    %v872 = vunpack.c.l.b16 %v777
    %v873 = vunpack.c.h.b16 %v777
    %v874 = vpack.c.b16 %v814, %v810
    %v875 = vpack.c.b16 %v815, %v811
    %v876 = vpack.c.b16 %v816, %v812
    %v877 = vpack.c.b16 %v817, %v813
    %v878 = vpack.c.b16 %v822, %v818
    %v879 = vpack.c.b16 %v823, %v819
    %v880 = vpack.c.b16 %v824, %v820
    %v881 = vpack.c.b16 %v825, %v821
    %v882 = vpack.c.b16 %v830, %v826
    %v883 = vpack.c.b16 %v831, %v827
    %v884 = vpack.c.b16 %v832, %v828
    %v885 = vpack.c.b16 %v833, %v829
    %v886 = vpack.c.b16 %v838, %v834
    %v887 = vpack.c.b16 %v839, %v835
    %v888 = vpack.c.b16 %v840, %v836
    %v889 = vpack.c.b16 %v841, %v837
    %v890 = vpack.c.b16 %v846, %v842
    %v891 = vpack.c.b16 %v847, %v843
    %v892 = vpack.c.b16 %v848, %v844
    %v893 = vpack.c.b16 %v849, %v845
    %v894 = vpack.c.b16 %v854, %v850
    %v895 = vpack.c.b16 %v855, %v851
    %v896 = vpack.c.b16 %v856, %v852
    %v897 = vpack.c.b16 %v857, %v853
    %v898 = vpack.c.b16 %v862, %v858
    %v899 = vpack.c.b16 %v863, %v859
    %v900 = vpack.c.b16 %v864, %v860
    %v901 = vpack.c.b16 %v865, %v861
    %v902 = vpack.c.b16 %v870, %v866
    %v903 = vpack.c.b16 %v871, %v867
    %v904 = vpack.c.b16 %v872, %v868
    %v905 = vpack.c.b16 %v873, %v869
    %938 = vmatpush.bf16.msra.mxu0 %v902
    %939 = vmatpush.bf16.msra.mxu0 %v898
    %940 = vmatpush.bf16.msra.mxu0 %v894
    %941 = vmatpush.bf16.msra.mxu0 %v890
    %942 = vmatpush.bf16.msra.mxu0 %v886
    %943 = vmatpush.bf16.msra.mxu0 %v882
    %944 = vmatpush.bf16.msra.mxu0 %v878
    %945 = vmatpush.bf16.msra.mxu0 %v874
    %946 = vmatmul.bf16.gmra.mxu0 %v745
    %v947 = vpop.f32.mrf.mxu0
    %v948 = vadd.f32 0.0, %v947
    %v949 = vpop.f32.mrf.mxu0
    %950 = vdwg.mxu0
    %951 = vmatpush.bf16.msra.mxu0 %v903
    %952 = vmatpush.bf16.msra.mxu0 %v899
    %953 = vmatpush.bf16.msra.mxu0 %v895
    %954 = vmatpush.bf16.msra.mxu0 %v891
    %955 = vmatpush.bf16.msra.mxu0 %v887
    %956 = vmatpush.bf16.msra.mxu0 %v883
    %957 = vmatpush.bf16.msra.mxu0 %v879
    %958 = vmatpush.bf16.msra.mxu0 %v875
    %959 = vmatmul.bf16.gmra.mxu0 %v745
    %v960 = vpop.f32.mrf.mxu0
    %v961 = vadd.f32 0.0, %v960
    %v962 = vpop.f32.mrf.mxu0
    %963 = vdwg.mxu0
    %964 = vmatpush.bf16.msra.mxu0 %v904
    %965 = vmatpush.bf16.msra.mxu0 %v900
    %966 = vmatpush.bf16.msra.mxu0 %v896
    %967 = vmatpush.bf16.msra.mxu0 %v892
    %968 = vmatpush.bf16.msra.mxu0 %v888
    %969 = vmatpush.bf16.msra.mxu0 %v884
    %970 = vmatpush.bf16.msra.mxu0 %v880
    %971 = vmatpush.bf16.msra.mxu0 %v876
    %972 = vmatmul.bf16.gmra.mxu0 %v745
    %v973 = vpop.f32.mrf.mxu0
    %v974 = vadd.f32 0.0, %v973
    %v975 = vpop.f32.mrf.mxu0
    %976 = vdwg.mxu0
    %977 = vmatpush.bf16.msra.mxu0 %v905
    %978 = vmatpush.bf16.msra.mxu0 %v901
    %979 = vmatpush.bf16.msra.mxu0 %v897
    %980 = vmatpush.bf16.msra.mxu0 %v893
    %981 = vmatpush.bf16.msra.mxu0 %v889
    %982 = vmatpush.bf16.msra.mxu0 %v885
    %983 = vmatpush.bf16.msra.mxu0 %v881
    %984 = vmatpush.bf16.msra.mxu0 %v877
    %985 = vmatmul.bf16.gmra.mxu0 %v745
    %v986 = vpop.f32.mrf.mxu0
    %v987 = vadd.f32 0.0, %v986
    %v988 = vpop.f32.mrf.mxu0
    %989 = vdwg.mxu0
    %v990 = vld [vmem:[#allocation2] sm:$0xff]
    %v991 = vld [vmem:[#allocation2 + $0x8] sm:$0xff]
    %v992 = vld [vmem:[#allocation2 + $0x10] sm:$0xff]
    %v993 = vld [vmem:[#allocation2 + $0x18] sm:$0xff]
    %s994 = scalar_lea.vmem [#allocation2], 448
    %v995 = vld [vmem:[%s994 + $0x20] sm:$0xff]
    %v996 = vld [vmem:[%s994 + $0x28] sm:$0xff]
    %v997 = vld [vmem:[%s994 + $0x30] sm:$0xff]
    %v998 = vld [vmem:[%s994 + $0x38] sm:$0xff]
    %v999 = vadd.f32 %v990, %v703
    %v1000 = vadd.f32 %v991, %v716
    %v1001 = vadd.f32 %v992, %v729
    %v1002 = vadd.f32 %v993, %v742
    %v1003 = vxor.u32 %v999, 2147483648
    %v1004 = vmul.f32 %v1003, 1.442695
    %v1005 = vpow.pop %v1004
    %v1006 = vadd.f32 %v1005, 1.0
    %v1007 = vrcp.pop %v1006
    %v1008 = vmul.f32 %v1006, %v1007
    %v1009 = vsub.f32 1.0, %v1008
    %v1010 = vmul.f32 %v1007, %v1009
    %v1011 = vadd.f32 %v1007, %v1010
    %vm1012 = vweird.f32 %v1006
    %vm1013 = vweird.f32 %v1007
    %vm1014 = vmor %vm1012, %vm1013
    %v1015 = vsel %vm1014, %v1007, %v1011
    %v1016 = vand.u32 2147483647, %v1006
    %vm1017 = vcmp.eq.f32.partialorder %v1016, 8.507059e+37
    %v1018 = vand.u32 %v1006, 2147483648
    %v1019 = vor.u32 1.1754944e-38, %v1018
    %v1020 = vsel %vm1017, %v1019, %v1015
    %v1021 = vmul.f32 1.0, %v1020
    %v1022 = vxor.u32 %v1000, 2147483648
    %v1023 = vmul.f32 %v1022, 1.442695
    %v1024 = vpow.pop %v1023
    %v1025 = vadd.f32 %v1024, 1.0
    %v1026 = vrcp.pop %v1025
    %v1027 = vmul.f32 %v1025, %v1026
    %v1028 = vsub.f32 1.0, %v1027
    %v1029 = vmul.f32 %v1026, %v1028
    %v1030 = vadd.f32 %v1026, %v1029
    %vm1031 = vweird.f32 %v1025
    %vm1032 = vweird.f32 %v1026
    %vm1033 = vmor %vm1031, %vm1032
    %v1034 = vsel %vm1033, %v1026, %v1030
    %v1035 = vand.u32 2147483647, %v1025
    %vm1036 = vcmp.eq.f32.partialorder %v1035, 8.507059e+37
    %v1037 = vand.u32 %v1025, 2147483648
    %v1038 = vor.u32 1.1754944e-38, %v1037
    %v1039 = vsel %vm1036, %v1038, %v1034
    %v1040 = vmul.f32 1.0, %v1039
    %v1041 = vtanh.pop %v1001
    %v1042 = vxor.u32 %v1002, 2147483648
    %v1043 = vmul.f32 %v1042, 1.442695
    %v1044 = vpow.pop %v1043
    %v1045 = vadd.f32 %v1044, 1.0
    %v1046 = vrcp.pop %v1045
    %v1047 = vmul.f32 %v1045, %v1046
    %v1048 = vsub.f32 1.0, %v1047
    %v1049 = vmul.f32 %v1046, %v1048
    %v1050 = vadd.f32 %v1046, %v1049
    %vm1051 = vweird.f32 %v1045
    %vm1052 = vweird.f32 %v1046
    %vm1053 = vmor %vm1051, %vm1052
    %v1054 = vsel %vm1053, %v1046, %v1050
    %v1055 = vand.u32 2147483647, %v1045
    %vm1056 = vcmp.eq.f32.partialorder %v1055, 8.507059e+37
    %v1057 = vand.u32 %v1045, 2147483648
    %v1058 = vor.u32 1.1754944e-38, %v1057
    %v1059 = vsel %vm1056, %v1058, %v1054
    %v1060 = vmul.f32 1.0, %v1059
    %v1061 = vmul.f32 %v1040, %v497
    %v1062 = vmul.f32 %v1021, %v1041
    %v1063 = vadd.f32 %v1061, %v1062
    %v1064 = vtanh.pop %v1063
    %v1065 = vmul.f32 %v1060, %v1064
    %v1066 = vadd.f32 %v995, %v948
    %v1067 = vadd.f32 %v996, %v961
    %v1068 = vadd.f32 %v997, %v974
    %v1069 = vadd.f32 %v998, %v987
    %v1070 = vxor.u32 %v1066, 2147483648
    %v1071 = vmul.f32 %v1070, 1.442695
    %v1072 = vpow.pop %v1071
    %v1073 = vadd.f32 %v1072, 1.0
    %v1074 = vrcp.pop %v1073
    %v1075 = vmul.f32 %v1073, %v1074
    %v1076 = vsub.f32 1.0, %v1075
    %v1077 = vmul.f32 %v1074, %v1076
    %v1078 = vadd.f32 %v1074, %v1077
    %vm1079 = vweird.f32 %v1073
    %vm1080 = vweird.f32 %v1074
    %vm1081 = vmor %vm1079, %vm1080
    %v1082 = vsel %vm1081, %v1074, %v1078
    %v1083 = vand.u32 2147483647, %v1073
    %vm1084 = vcmp.eq.f32.partialorder %v1083, 8.507059e+37
    %v1085 = vand.u32 %v1073, 2147483648
    %v1086 = vor.u32 1.1754944e-38, %v1085
    %v1087 = vsel %vm1084, %v1086, %v1082
    %v1088 = vmul.f32 1.0, %v1087
    %v1089 = vxor.u32 %v1067, 2147483648
    %v1090 = vmul.f32 %v1089, 1.442695
    %v1091 = vpow.pop %v1090
    %v1092 = vadd.f32 %v1091, 1.0
    %v1093 = vrcp.pop %v1092
    %v1094 = vmul.f32 %v1092, %v1093
    %v1095 = vsub.f32 1.0, %v1094
    %v1096 = vmul.f32 %v1093, %v1095
    %v1097 = vadd.f32 %v1093, %v1096
    %vm1098 = vweird.f32 %v1092
    %vm1099 = vweird.f32 %v1093
    %vm1100 = vmor %vm1098, %vm1099
    %v1101 = vsel %vm1100, %v1093, %v1097
    %v1102 = vand.u32 2147483647, %v1092
    %vm1103 = vcmp.eq.f32.partialorder %v1102, 8.507059e+37
    %v1104 = vand.u32 %v1092, 2147483648
    %v1105 = vor.u32 1.1754944e-38, %v1104
    %v1106 = vsel %vm1103, %v1105, %v1101
    %v1107 = vmul.f32 1.0, %v1106
    %v1108 = vtanh.pop %v1068
    %v1109 = vxor.u32 %v1069, 2147483648
    %v1110 = vmul.f32 %v1109, 1.442695
    %v1111 = vpow.pop %v1110
    %v1112 = vadd.f32 %v1111, 1.0
    %v1113 = vrcp.pop %v1112
    %v1114 = vmul.f32 %v1112, %v1113
    %v1115 = vsub.f32 1.0, %v1114
    %v1116 = vmul.f32 %v1113, %v1115
    %v1117 = vadd.f32 %v1113, %v1116
    %vm1118 = vweird.f32 %v1112
    %vm1119 = vweird.f32 %v1113
    %vm1120 = vmor %vm1118, %vm1119
    %v1121 = vsel %vm1120, %v1113, %v1117
    %v1122 = vand.u32 2147483647, %v1112
    %vm1123 = vcmp.eq.f32.partialorder %v1122, 8.507059e+37
    %v1124 = vand.u32 %v1112, 2147483648
    %v1125 = vor.u32 1.1754944e-38, %v1124
    %v1126 = vsel %vm1123, %v1125, %v1121
    %v1127 = vmul.f32 1.0, %v1126
    %v1128 = vmul.f32 %v1107, %v499
    %v1129 = vmul.f32 %v1088, %v1108
    %v1130 = vadd.f32 %v1128, %v1129
    %v1131 = vtanh.pop %v1130
    %v1132 = vmul.f32 %v1127, %v1131
    %vm1133 = vcmp.gt.s32.totalorder %v495, 0
    %vm1134 = vcmp.gt.s32.totalorder %v495, 7
    %v1135 = vsel %vm1133, 1, 0
    %1136 = vset.pattern.permute.xlu0 0
    %1137 = vperm.xlu0 %1136, %v1135
    %v1138 = vpop.permute.xlu0 %1137
    %vm1139 = vcmp.eq.s32.totalorder %v1138, 1
    %v1140 = vsel %vm1139, %v1065, %v496
    %1141 = vst [vmem:[#allocation3] sm:$0xff] %v1140
    %v1142 = vsel %vm1139, %v1063, %v497
    %1143 = vst [vmem:[#allocation4] sm:$0xff] %v1142
    %v1144 = vsel %vm1134, 1, 0
    %1145 = vset.pattern.permute.xlu0 0
    %1146 = vperm.xlu0 %1145, %v1144
    %v1147 = vpop.permute.xlu0 %1146
    %vm1148 = vcmp.eq.s32.totalorder %v1147, 1
    %v1149 = vsel %vm1148, %v1132, %v498
    %1150 = vst [vmem:[#allocation5] sm:$0xff] %v1149
    %v1151 = vsel %vm1148, %v1130, %v499
    %1152 = vst [vmem:[#allocation6] sm:$0xff] %v1151
    %v1153 = vsel %vm1139, %v1065, 0.0
    %1154 = vst [vmem:[%s8] sm:$0xff] %v1153
    %v1155 = vsel %vm1148, %v1132, 0.0
    %s1156 = scalar_lea.vmem %s8, 112
    %1157 = vst [vmem:[%s1156 + $0x8] sm:$0xff] %v1155
    %v1158 = vld [vmem:[#allocation3] sm:$0xff]
    %v1159 = vld [vmem:[#allocation4] sm:$0xff]
    %v1160 = vld [vmem:[#allocation5] sm:$0xff]
    %v1161 = vld [vmem:[#allocation6] sm:$0xff]
    %v1162 = vpack.c.bf16 %v1158, %v1158
    %v1163 = vld [vmem:[%s5] sm:$0xff]
    %v1164 = vld [vmem:[%s5 + $0x8] sm:$0xff]
    %v1165 = vld [vmem:[%s5 + $0x10] sm:$0xff]
    %v1166 = vld [vmem:[%s5 + $0x18] sm:$0xff]
    %v1167 = vld [vmem:[%s5 + $0x20] sm:$0xff]
    %v1168 = vld [vmem:[%s5 + $0x28] sm:$0xff]
    %v1169 = vld [vmem:[%s5 + $0x30] sm:$0xff]
    %v1170 = vld [vmem:[%s5 + $0x38] sm:$0xff]
    %v1171 = vld [vmem:[%s5 + $0x40] sm:$0xff]
    %v1172 = vld [vmem:[%s5 + $0x48] sm:$0xff]
    %v1173 = vld [vmem:[%s5 + $0x50] sm:$0xff]
    %v1174 = vld [vmem:[%s5 + $0x58] sm:$0xff]
    %v1175 = vld [vmem:[%s5 + $0x60] sm:$0xff]
    %v1176 = vld [vmem:[%s5 + $0x68] sm:$0xff]
    %v1177 = vld [vmem:[%s5 + $0x70] sm:$0xff]
    %v1178 = vld [vmem:[%s5 + $0x78] sm:$0xff]
    %v1179 = vld [vmem:[%s5 + $0x80] sm:$0xff]
    %v1180 = vld [vmem:[%s5 + $0x88] sm:$0xff]
    %v1181 = vld [vmem:[%s5 + $0x90] sm:$0xff]
    %v1182 = vld [vmem:[%s5 + $0x98] sm:$0xff]
    %v1183 = vld [vmem:[%s5 + $0xa0] sm:$0xff]
    %v1184 = vld [vmem:[%s5 + $0xa8] sm:$0xff]
    %v1185 = vld [vmem:[%s5 + $0xb0] sm:$0xff]
    %v1186 = vld [vmem:[%s5 + $0xb8] sm:$0xff]
    %v1187 = vld [vmem:[%s5 + $0xc0] sm:$0xff]
    %v1188 = vld [vmem:[%s5 + $0xc8] sm:$0xff]
    %v1189 = vld [vmem:[%s5 + $0xd0] sm:$0xff]
    %v1190 = vld [vmem:[%s5 + $0xd8] sm:$0xff]
    %v1191 = vld [vmem:[%s5 + $0xe0] sm:$0xff]
    %v1192 = vld [vmem:[%s5 + $0xe8] sm:$0xff]
    %v1193 = vld [vmem:[%s5 + $0xf0] sm:$0xff]
    %v1194 = vld [vmem:[%s5 + $0xf8] sm:$0xff]
    %v1227 = vunpack.c.l.b16 %v1163
    %v1228 = vunpack.c.h.b16 %v1163
    %v1229 = vunpack.c.l.b16 %v1164
    %v1230 = vunpack.c.h.b16 %v1164
    %v1231 = vunpack.c.l.b16 %v1165
    %v1232 = vunpack.c.h.b16 %v1165
    %v1233 = vunpack.c.l.b16 %v1166
    %v1234 = vunpack.c.h.b16 %v1166
    %v1235 = vunpack.c.l.b16 %v1167
    %v1236 = vunpack.c.h.b16 %v1167
    %v1237 = vunpack.c.l.b16 %v1168
    %v1238 = vunpack.c.h.b16 %v1168
    %v1239 = vunpack.c.l.b16 %v1169
    %v1240 = vunpack.c.h.b16 %v1169
    %v1241 = vunpack.c.l.b16 %v1170
    %v1242 = vunpack.c.h.b16 %v1170
    %v1243 = vunpack.c.l.b16 %v1171
    %v1244 = vunpack.c.h.b16 %v1171
    %v1245 = vunpack.c.l.b16 %v1172
    %v1246 = vunpack.c.h.b16 %v1172
    %v1247 = vunpack.c.l.b16 %v1173
    %v1248 = vunpack.c.h.b16 %v1173
    %v1249 = vunpack.c.l.b16 %v1174
    %v1250 = vunpack.c.h.b16 %v1174
    %v1251 = vunpack.c.l.b16 %v1175
    %v1252 = vunpack.c.h.b16 %v1175
    %v1253 = vunpack.c.l.b16 %v1176
    %v1254 = vunpack.c.h.b16 %v1176
    %v1255 = vunpack.c.l.b16 %v1177
    %v1256 = vunpack.c.h.b16 %v1177
    %v1257 = vunpack.c.l.b16 %v1178
    %v1258 = vunpack.c.h.b16 %v1178
    %v1259 = vunpack.c.l.b16 %v1179
    %v1260 = vunpack.c.h.b16 %v1179
    %v1261 = vunpack.c.l.b16 %v1180
    %v1262 = vunpack.c.h.b16 %v1180
    %v1263 = vunpack.c.l.b16 %v1181
    %v1264 = vunpack.c.h.b16 %v1181
    %v1265 = vunpack.c.l.b16 %v1182
    %v1266 = vunpack.c.h.b16 %v1182
    %v1267 = vunpack.c.l.b16 %v1183
    %v1268 = vunpack.c.h.b16 %v1183
    %v1269 = vunpack.c.l.b16 %v1184
    %v1270 = vunpack.c.h.b16 %v1184
    %v1271 = vunpack.c.l.b16 %v1185
    %v1272 = vunpack.c.h.b16 %v1185
    %v1273 = vunpack.c.l.b16 %v1186
    %v1274 = vunpack.c.h.b16 %v1186
    %v1275 = vunpack.c.l.b16 %v1187
    %v1276 = vunpack.c.h.b16 %v1187
    %v1277 = vunpack.c.l.b16 %v1188
    %v1278 = vunpack.c.h.b16 %v1188
    %v1279 = vunpack.c.l.b16 %v1189
    %v1280 = vunpack.c.h.b16 %v1189
    %v1281 = vunpack.c.l.b16 %v1190
    %v1282 = vunpack.c.h.b16 %v1190
    %v1283 = vunpack.c.l.b16 %v1191
    %v1284 = vunpack.c.h.b16 %v1191
    %v1285 = vunpack.c.l.b16 %v1192
    %v1286 = vunpack.c.h.b16 %v1192
    %v1287 = vunpack.c.l.b16 %v1193
    %v1288 = vunpack.c.h.b16 %v1193
    %v1289 = vunpack.c.l.b16 %v1194
    %v1290 = vunpack.c.h.b16 %v1194
    %v1291 = vpack.c.b16 %v1231, %v1227
    %v1292 = vpack.c.b16 %v1232, %v1228
    %v1293 = vpack.c.b16 %v1233, %v1229
    %v1294 = vpack.c.b16 %v1234, %v1230
    %v1295 = vpack.c.b16 %v1239, %v1235
    %v1296 = vpack.c.b16 %v1240, %v1236
    %v1297 = vpack.c.b16 %v1241, %v1237
    %v1298 = vpack.c.b16 %v1242, %v1238
    %v1299 = vpack.c.b16 %v1247, %v1243
    %v1300 = vpack.c.b16 %v1248, %v1244
    %v1301 = vpack.c.b16 %v1249, %v1245
    %v1302 = vpack.c.b16 %v1250, %v1246
    %v1303 = vpack.c.b16 %v1255, %v1251
    %v1304 = vpack.c.b16 %v1256, %v1252
    %v1305 = vpack.c.b16 %v1257, %v1253
    %v1306 = vpack.c.b16 %v1258, %v1254
    %v1307 = vpack.c.b16 %v1263, %v1259
    %v1308 = vpack.c.b16 %v1264, %v1260
    %v1309 = vpack.c.b16 %v1265, %v1261
    %v1310 = vpack.c.b16 %v1266, %v1262
    %v1311 = vpack.c.b16 %v1271, %v1267
    %v1312 = vpack.c.b16 %v1272, %v1268
    %v1313 = vpack.c.b16 %v1273, %v1269
    %v1314 = vpack.c.b16 %v1274, %v1270
    %v1315 = vpack.c.b16 %v1279, %v1275
    %v1316 = vpack.c.b16 %v1280, %v1276
    %v1317 = vpack.c.b16 %v1281, %v1277
    %v1318 = vpack.c.b16 %v1282, %v1278
    %v1319 = vpack.c.b16 %v1287, %v1283
    %v1320 = vpack.c.b16 %v1288, %v1284
    %v1321 = vpack.c.b16 %v1289, %v1285
    %v1322 = vpack.c.b16 %v1290, %v1286
    %1355 = vmatpush.bf16.msra.mxu0 %v1319
    %1356 = vmatpush.bf16.msra.mxu0 %v1315
    %1357 = vmatpush.bf16.msra.mxu0 %v1311
    %1358 = vmatpush.bf16.msra.mxu0 %v1307
    %1359 = vmatpush.bf16.msra.mxu0 %v1303
    %1360 = vmatpush.bf16.msra.mxu0 %v1299
    %1361 = vmatpush.bf16.msra.mxu0 %v1295
    %1362 = vmatpush.bf16.msra.mxu0 %v1291
    %1363 = vmatmul.bf16.gmra.mxu0 %v1162
    %v1364 = vpop.f32.mrf.mxu0
    %v1365 = vadd.f32 0.0, %v1364
    %v1366 = vpop.f32.mrf.mxu0
    %1367 = vdwg.mxu0
    %1368 = vmatpush.bf16.msra.mxu0 %v1320
    %1369 = vmatpush.bf16.msra.mxu0 %v1316
    %1370 = vmatpush.bf16.msra.mxu0 %v1312
    %1371 = vmatpush.bf16.msra.mxu0 %v1308
    %1372 = vmatpush.bf16.msra.mxu0 %v1304
    %1373 = vmatpush.bf16.msra.mxu0 %v1300
    %1374 = vmatpush.bf16.msra.mxu0 %v1296
    %1375 = vmatpush.bf16.msra.mxu0 %v1292
    %1376 = vmatmul.bf16.gmra.mxu0 %v1162
    %v1377 = vpop.f32.mrf.mxu0
    %v1378 = vadd.f32 0.0, %v1377
    %v1379 = vpop.f32.mrf.mxu0
    %1380 = vdwg.mxu0
    %1381 = vmatpush.bf16.msra.mxu0 %v1321
    %1382 = vmatpush.bf16.msra.mxu0 %v1317
    %1383 = vmatpush.bf16.msra.mxu0 %v1313
    %1384 = vmatpush.bf16.msra.mxu0 %v1309
    %1385 = vmatpush.bf16.msra.mxu0 %v1305
    %1386 = vmatpush.bf16.msra.mxu0 %v1301
    %1387 = vmatpush.bf16.msra.mxu0 %v1297
    %1388 = vmatpush.bf16.msra.mxu0 %v1293
    %1389 = vmatmul.bf16.gmra.mxu0 %v1162
    %v1390 = vpop.f32.mrf.mxu0
    %v1391 = vadd.f32 0.0, %v1390
    %v1392 = vpop.f32.mrf.mxu0
    %1393 = vdwg.mxu0
    %1394 = vmatpush.bf16.msra.mxu0 %v1322
    %1395 = vmatpush.bf16.msra.mxu0 %v1318
    %1396 = vmatpush.bf16.msra.mxu0 %v1314
    %1397 = vmatpush.bf16.msra.mxu0 %v1310
    %1398 = vmatpush.bf16.msra.mxu0 %v1306
    %1399 = vmatpush.bf16.msra.mxu0 %v1302
    %1400 = vmatpush.bf16.msra.mxu0 %v1298
    %1401 = vmatpush.bf16.msra.mxu0 %v1294
    %1402 = vmatmul.bf16.gmra.mxu0 %v1162
    %v1403 = vpop.f32.mrf.mxu0
    %v1404 = vadd.f32 0.0, %v1403
    %v1405 = vpop.f32.mrf.mxu0
    %1406 = vdwg.mxu0
    %v1407 = vpack.c.bf16 %v1160, %v1160
    %v1408 = vld [vmem:[%s6] sm:$0xff]
    %v1409 = vld [vmem:[%s6 + $0x8] sm:$0xff]
    %v1410 = vld [vmem:[%s6 + $0x10] sm:$0xff]
    %v1411 = vld [vmem:[%s6 + $0x18] sm:$0xff]
    %v1412 = vld [vmem:[%s6 + $0x20] sm:$0xff]
    %v1413 = vld [vmem:[%s6 + $0x28] sm:$0xff]
    %v1414 = vld [vmem:[%s6 + $0x30] sm:$0xff]
    %v1415 = vld [vmem:[%s6 + $0x38] sm:$0xff]
    %v1416 = vld [vmem:[%s6 + $0x40] sm:$0xff]
    %v1417 = vld [vmem:[%s6 + $0x48] sm:$0xff]
    %v1418 = vld [vmem:[%s6 + $0x50] sm:$0xff]
    %v1419 = vld [vmem:[%s6 + $0x58] sm:$0xff]
    %v1420 = vld [vmem:[%s6 + $0x60] sm:$0xff]
    %v1421 = vld [vmem:[%s6 + $0x68] sm:$0xff]
    %v1422 = vld [vmem:[%s6 + $0x70] sm:$0xff]
    %v1423 = vld [vmem:[%s6 + $0x78] sm:$0xff]
    %v1424 = vld [vmem:[%s6 + $0x80] sm:$0xff]
    %v1425 = vld [vmem:[%s6 + $0x88] sm:$0xff]
    %v1426 = vld [vmem:[%s6 + $0x90] sm:$0xff]
    %v1427 = vld [vmem:[%s6 + $0x98] sm:$0xff]
    %v1428 = vld [vmem:[%s6 + $0xa0] sm:$0xff]
    %v1429 = vld [vmem:[%s6 + $0xa8] sm:$0xff]
    %v1430 = vld [vmem:[%s6 + $0xb0] sm:$0xff]
    %v1431 = vld [vmem:[%s6 + $0xb8] sm:$0xff]
    %v1432 = vld [vmem:[%s6 + $0xc0] sm:$0xff]
    %v1433 = vld [vmem:[%s6 + $0xc8] sm:$0xff]
    %v1434 = vld [vmem:[%s6 + $0xd0] sm:$0xff]
    %v1435 = vld [vmem:[%s6 + $0xd8] sm:$0xff]
    %v1436 = vld [vmem:[%s6 + $0xe0] sm:$0xff]
    %v1437 = vld [vmem:[%s6 + $0xe8] sm:$0xff]
    %v1438 = vld [vmem:[%s6 + $0xf0] sm:$0xff]
    %v1439 = vld [vmem:[%s6 + $0xf8] sm:$0xff]
    %v1472 = vunpack.c.l.b16 %v1408
    %v1473 = vunpack.c.h.b16 %v1408
    %v1474 = vunpack.c.l.b16 %v1409
    %v1475 = vunpack.c.h.b16 %v1409
    %v1476 = vunpack.c.l.b16 %v1410
    %v1477 = vunpack.c.h.b16 %v1410
    %v1478 = vunpack.c.l.b16 %v1411
    %v1479 = vunpack.c.h.b16 %v1411
    %v1480 = vunpack.c.l.b16 %v1412
    %v1481 = vunpack.c.h.b16 %v1412
    %v1482 = vunpack.c.l.b16 %v1413
    %v1483 = vunpack.c.h.b16 %v1413
    %v1484 = vunpack.c.l.b16 %v1414
    %v1485 = vunpack.c.h.b16 %v1414
    %v1486 = vunpack.c.l.b16 %v1415
    %v1487 = vunpack.c.h.b16 %v1415
    %v1488 = vunpack.c.l.b16 %v1416
    %v1489 = vunpack.c.h.b16 %v1416
    %v1490 = vunpack.c.l.b16 %v1417
    %v1491 = vunpack.c.h.b16 %v1417
    %v1492 = vunpack.c.l.b16 %v1418
    %v1493 = vunpack.c.h.b16 %v1418
    %v1494 = vunpack.c.l.b16 %v1419
    %v1495 = vunpack.c.h.b16 %v1419
    %v1496 = vunpack.c.l.b16 %v1420
    %v1497 = vunpack.c.h.b16 %v1420
    %v1498 = vunpack.c.l.b16 %v1421
    %v1499 = vunpack.c.h.b16 %v1421
    %v1500 = vunpack.c.l.b16 %v1422
    %v1501 = vunpack.c.h.b16 %v1422
    %v1502 = vunpack.c.l.b16 %v1423
    %v1503 = vunpack.c.h.b16 %v1423
    %v1504 = vunpack.c.l.b16 %v1424
    %v1505 = vunpack.c.h.b16 %v1424
    %v1506 = vunpack.c.l.b16 %v1425
    %v1507 = vunpack.c.h.b16 %v1425
    %v1508 = vunpack.c.l.b16 %v1426
    %v1509 = vunpack.c.h.b16 %v1426
    %v1510 = vunpack.c.l.b16 %v1427
    %v1511 = vunpack.c.h.b16 %v1427
    %v1512 = vunpack.c.l.b16 %v1428
    %v1513 = vunpack.c.h.b16 %v1428
    %v1514 = vunpack.c.l.b16 %v1429
    %v1515 = vunpack.c.h.b16 %v1429
    %v1516 = vunpack.c.l.b16 %v1430
    %v1517 = vunpack.c.h.b16 %v1430
    %v1518 = vunpack.c.l.b16 %v1431
    %v1519 = vunpack.c.h.b16 %v1431
    %v1520 = vunpack.c.l.b16 %v1432
    %v1521 = vunpack.c.h.b16 %v1432
    %v1522 = vunpack.c.l.b16 %v1433
    %v1523 = vunpack.c.h.b16 %v1433
    %v1524 = vunpack.c.l.b16 %v1434
    %v1525 = vunpack.c.h.b16 %v1434
    %v1526 = vunpack.c.l.b16 %v1435
    %v1527 = vunpack.c.h.b16 %v1435
    %v1528 = vunpack.c.l.b16 %v1436
    %v1529 = vunpack.c.h.b16 %v1436
    %v1530 = vunpack.c.l.b16 %v1437
    %v1531 = vunpack.c.h.b16 %v1437
    %v1532 = vunpack.c.l.b16 %v1438
    %v1533 = vunpack.c.h.b16 %v1438
    %v1534 = vunpack.c.l.b16 %v1439
    %v1535 = vunpack.c.h.b16 %v1439
    %v1536 = vpack.c.b16 %v1476, %v1472
    %v1537 = vpack.c.b16 %v1477, %v1473
    %v1538 = vpack.c.b16 %v1478, %v1474
    %v1539 = vpack.c.b16 %v1479, %v1475
    %v1540 = vpack.c.b16 %v1484, %v1480
    %v1541 = vpack.c.b16 %v1485, %v1481
    %v1542 = vpack.c.b16 %v1486, %v1482
    %v1543 = vpack.c.b16 %v1487, %v1483
    %v1544 = vpack.c.b16 %v1492, %v1488
    %v1545 = vpack.c.b16 %v1493, %v1489
    %v1546 = vpack.c.b16 %v1494, %v1490
    %v1547 = vpack.c.b16 %v1495, %v1491
    %v1548 = vpack.c.b16 %v1500, %v1496
    %v1549 = vpack.c.b16 %v1501, %v1497
    %v1550 = vpack.c.b16 %v1502, %v1498
    %v1551 = vpack.c.b16 %v1503, %v1499
    %v1552 = vpack.c.b16 %v1508, %v1504
    %v1553 = vpack.c.b16 %v1509, %v1505
    %v1554 = vpack.c.b16 %v1510, %v1506
    %v1555 = vpack.c.b16 %v1511, %v1507
    %v1556 = vpack.c.b16 %v1516, %v1512
    %v1557 = vpack.c.b16 %v1517, %v1513
    %v1558 = vpack.c.b16 %v1518, %v1514
    %v1559 = vpack.c.b16 %v1519, %v1515
    %v1560 = vpack.c.b16 %v1524, %v1520
    %v1561 = vpack.c.b16 %v1525, %v1521
    %v1562 = vpack.c.b16 %v1526, %v1522
    %v1563 = vpack.c.b16 %v1527, %v1523
    %v1564 = vpack.c.b16 %v1532, %v1528
    %v1565 = vpack.c.b16 %v1533, %v1529
    %v1566 = vpack.c.b16 %v1534, %v1530
    %v1567 = vpack.c.b16 %v1535, %v1531
    %1600 = vmatpush.bf16.msra.mxu0 %v1564
    %1601 = vmatpush.bf16.msra.mxu0 %v1560
    %1602 = vmatpush.bf16.msra.mxu0 %v1556
    %1603 = vmatpush.bf16.msra.mxu0 %v1552
    %1604 = vmatpush.bf16.msra.mxu0 %v1548
    %1605 = vmatpush.bf16.msra.mxu0 %v1544
    %1606 = vmatpush.bf16.msra.mxu0 %v1540
    %1607 = vmatpush.bf16.msra.mxu0 %v1536
    %1608 = vmatmul.bf16.gmra.mxu0 %v1407
    %v1609 = vpop.f32.mrf.mxu0
    %v1610 = vadd.f32 0.0, %v1609
    %v1611 = vpop.f32.mrf.mxu0
    %1612 = vdwg.mxu0
    %1613 = vmatpush.bf16.msra.mxu0 %v1565
    %1614 = vmatpush.bf16.msra.mxu0 %v1561
    %1615 = vmatpush.bf16.msra.mxu0 %v1557
    %1616 = vmatpush.bf16.msra.mxu0 %v1553
    %1617 = vmatpush.bf16.msra.mxu0 %v1549
    %1618 = vmatpush.bf16.msra.mxu0 %v1545
    %1619 = vmatpush.bf16.msra.mxu0 %v1541
    %1620 = vmatpush.bf16.msra.mxu0 %v1537
    %1621 = vmatmul.bf16.gmra.mxu0 %v1407
    %v1622 = vpop.f32.mrf.mxu0
    %v1623 = vadd.f32 0.0, %v1622
    %v1624 = vpop.f32.mrf.mxu0
    %1625 = vdwg.mxu0
    %1626 = vmatpush.bf16.msra.mxu0 %v1566
    %1627 = vmatpush.bf16.msra.mxu0 %v1562
    %1628 = vmatpush.bf16.msra.mxu0 %v1558
    %1629 = vmatpush.bf16.msra.mxu0 %v1554
    %1630 = vmatpush.bf16.msra.mxu0 %v1550
    %1631 = vmatpush.bf16.msra.mxu0 %v1546
    %1632 = vmatpush.bf16.msra.mxu0 %v1542
    %1633 = vmatpush.bf16.msra.mxu0 %v1538
    %1634 = vmatmul.bf16.gmra.mxu0 %v1407
    %v1635 = vpop.f32.mrf.mxu0
    %v1636 = vadd.f32 0.0, %v1635
    %v1637 = vpop.f32.mrf.mxu0
    %1638 = vdwg.mxu0
    %1639 = vmatpush.bf16.msra.mxu0 %v1567
    %1640 = vmatpush.bf16.msra.mxu0 %v1563
    %1641 = vmatpush.bf16.msra.mxu0 %v1559
    %1642 = vmatpush.bf16.msra.mxu0 %v1555
    %1643 = vmatpush.bf16.msra.mxu0 %v1551
    %1644 = vmatpush.bf16.msra.mxu0 %v1547
    %1645 = vmatpush.bf16.msra.mxu0 %v1543
    %1646 = vmatpush.bf16.msra.mxu0 %v1539
    %1647 = vmatmul.bf16.gmra.mxu0 %v1407
    %v1648 = vpop.f32.mrf.mxu0
    %v1649 = vadd.f32 0.0, %v1648
    %v1650 = vpop.f32.mrf.mxu0
    %1651 = vdwg.mxu0
    %s1652 = scalar_lea.vmem [#allocation2], 64
    %v1653 = vld [vmem:[%s1652] sm:$0xff]
    %v1654 = vld [vmem:[%s1652 + $0x8] sm:$0xff]
    %v1655 = vld [vmem:[%s1652 + $0x10] sm:$0xff]
    %v1656 = vld [vmem:[%s1652 + $0x18] sm:$0xff]
    %s1657 = scalar_lea.vmem [#allocation2], 384
    %v1658 = vld [vmem:[%s1657 + $0x20] sm:$0xff]
    %v1659 = vld [vmem:[%s1657 + $0x28] sm:$0xff]
    %v1660 = vld [vmem:[%s1657 + $0x30] sm:$0xff]
    %v1661 = vld [vmem:[%s1657 + $0x38] sm:$0xff]
    %v1662 = vadd.f32 %v1653, %v1365
    %v1663 = vadd.f32 %v1654, %v1378
    %v1664 = vadd.f32 %v1655, %v1391
    %v1665 = vadd.f32 %v1656, %v1404
    %v1666 = vxor.u32 %v1662, 2147483648
    %v1667 = vmul.f32 %v1666, 1.442695
    %v1668 = vpow.pop %v1667
    %v1669 = vadd.f32 %v1668, 1.0
    %v1670 = vrcp.pop %v1669
    %v1671 = vmul.f32 %v1669, %v1670
    %v1672 = vsub.f32 1.0, %v1671
    %v1673 = vmul.f32 %v1670, %v1672
    %v1674 = vadd.f32 %v1670, %v1673
    %vm1675 = vweird.f32 %v1669
    %vm1676 = vweird.f32 %v1670
    %vm1677 = vmor %vm1675, %vm1676
    %v1678 = vsel %vm1677, %v1670, %v1674
    %v1679 = vand.u32 2147483647, %v1669
    %vm1680 = vcmp.eq.f32.partialorder %v1679, 8.507059e+37
    %v1681 = vand.u32 %v1669, 2147483648
    %v1682 = vor.u32 1.1754944e-38, %v1681
    %v1683 = vsel %vm1680, %v1682, %v1678
    %v1684 = vmul.f32 1.0, %v1683
    %v1685 = vxor.u32 %v1663, 2147483648
    %v1686 = vmul.f32 %v1685, 1.442695
    %v1687 = vpow.pop %v1686
    %v1688 = vadd.f32 %v1687, 1.0
    %v1689 = vrcp.pop %v1688
    %v1690 = vmul.f32 %v1688, %v1689
    %v1691 = vsub.f32 1.0, %v1690
    %v1692 = vmul.f32 %v1689, %v1691
    %v1693 = vadd.f32 %v1689, %v1692
    %vm1694 = vweird.f32 %v1688
    %vm1695 = vweird.f32 %v1689
    %vm1696 = vmor %vm1694, %vm1695
    %v1697 = vsel %vm1696, %v1689, %v1693
    %v1698 = vand.u32 2147483647, %v1688
    %vm1699 = vcmp.eq.f32.partialorder %v1698, 8.507059e+37
    %v1700 = vand.u32 %v1688, 2147483648
    %v1701 = vor.u32 1.1754944e-38, %v1700
    %v1702 = vsel %vm1699, %v1701, %v1697
    %v1703 = vmul.f32 1.0, %v1702
    %v1704 = vtanh.pop %v1664
    %v1705 = vxor.u32 %v1665, 2147483648
    %v1706 = vmul.f32 %v1705, 1.442695
    %v1707 = vpow.pop %v1706
    %v1708 = vadd.f32 %v1707, 1.0
    %v1709 = vrcp.pop %v1708
    %v1710 = vmul.f32 %v1708, %v1709
    %v1711 = vsub.f32 1.0, %v1710
    %v1712 = vmul.f32 %v1709, %v1711
    %v1713 = vadd.f32 %v1709, %v1712
    %vm1714 = vweird.f32 %v1708
    %vm1715 = vweird.f32 %v1709
    %vm1716 = vmor %vm1714, %vm1715
    %v1717 = vsel %vm1716, %v1709, %v1713
    %v1718 = vand.u32 2147483647, %v1708
    %vm1719 = vcmp.eq.f32.partialorder %v1718, 8.507059e+37
    %v1720 = vand.u32 %v1708, 2147483648
    %v1721 = vor.u32 1.1754944e-38, %v1720
    %v1722 = vsel %vm1719, %v1721, %v1717
    %v1723 = vmul.f32 1.0, %v1722
    %v1724 = vmul.f32 %v1703, %v1159
    %v1725 = vmul.f32 %v1684, %v1704
    %v1726 = vadd.f32 %v1724, %v1725
    %v1727 = vtanh.pop %v1726
    %v1728 = vmul.f32 %v1723, %v1727
    %v1729 = vadd.f32 %v1658, %v1610
    %v1730 = vadd.f32 %v1659, %v1623
    %v1731 = vadd.f32 %v1660, %v1636
    %v1732 = vadd.f32 %v1661, %v1649
    %v1733 = vxor.u32 %v1729, 2147483648
    %v1734 = vmul.f32 %v1733, 1.442695
    %v1735 = vpow.pop %v1734
    %v1736 = vadd.f32 %v1735, 1.0
    %v1737 = vrcp.pop %v1736
    %v1738 = vmul.f32 %v1736, %v1737
    %v1739 = vsub.f32 1.0, %v1738
    %v1740 = vmul.f32 %v1737, %v1739
    %v1741 = vadd.f32 %v1737, %v1740
    %vm1742 = vweird.f32 %v1736
    %vm1743 = vweird.f32 %v1737
    %vm1744 = vmor %vm1742, %vm1743
    %v1745 = vsel %vm1744, %v1737, %v1741
    %v1746 = vand.u32 2147483647, %v1736
    %vm1747 = vcmp.eq.f32.partialorder %v1746, 8.507059e+37
    %v1748 = vand.u32 %v1736, 2147483648
    %v1749 = vor.u32 1.1754944e-38, %v1748
    %v1750 = vsel %vm1747, %v1749, %v1745
    %v1751 = vmul.f32 1.0, %v1750
    %v1752 = vxor.u32 %v1730, 2147483648
    %v1753 = vmul.f32 %v1752, 1.442695
    %v1754 = vpow.pop %v1753
    %v1755 = vadd.f32 %v1754, 1.0
    %v1756 = vrcp.pop %v1755
    %v1757 = vmul.f32 %v1755, %v1756
    %v1758 = vsub.f32 1.0, %v1757
    %v1759 = vmul.f32 %v1756, %v1758
    %v1760 = vadd.f32 %v1756, %v1759
    %vm1761 = vweird.f32 %v1755
    %vm1762 = vweird.f32 %v1756
    %vm1763 = vmor %vm1761, %vm1762
    %v1764 = vsel %vm1763, %v1756, %v1760
    %v1765 = vand.u32 2147483647, %v1755
    %vm1766 = vcmp.eq.f32.partialorder %v1765, 8.507059e+37
    %v1767 = vand.u32 %v1755, 2147483648
    %v1768 = vor.u32 1.1754944e-38, %v1767
    %v1769 = vsel %vm1766, %v1768, %v1764
    %v1770 = vmul.f32 1.0, %v1769
    %v1771 = vtanh.pop %v1731
    %v1772 = vxor.u32 %v1732, 2147483648
    %v1773 = vmul.f32 %v1772, 1.442695
    %v1774 = vpow.pop %v1773
    %v1775 = vadd.f32 %v1774, 1.0
    %v1776 = vrcp.pop %v1775
    %v1777 = vmul.f32 %v1775, %v1776
    %v1778 = vsub.f32 1.0, %v1777
    %v1779 = vmul.f32 %v1776, %v1778
    %v1780 = vadd.f32 %v1776, %v1779
    %vm1781 = vweird.f32 %v1775
    %vm1782 = vweird.f32 %v1776
    %vm1783 = vmor %vm1781, %vm1782
    %v1784 = vsel %vm1783, %v1776, %v1780
    %v1785 = vand.u32 2147483647, %v1775
    %vm1786 = vcmp.eq.f32.partialorder %v1785, 8.507059e+37
    %v1787 = vand.u32 %v1775, 2147483648
    %v1788 = vor.u32 1.1754944e-38, %v1787
    %v1789 = vsel %vm1786, %v1788, %v1784
    %v1790 = vmul.f32 1.0, %v1789
    %v1791 = vmul.f32 %v1770, %v1161
    %v1792 = vmul.f32 %v1751, %v1771
    %v1793 = vadd.f32 %v1791, %v1792
    %v1794 = vtanh.pop %v1793
    %v1795 = vmul.f32 %v1790, %v1794
    %vm1796 = vcmp.gt.s32.totalorder %v495, 1
    %vm1797 = vcmp.gt.s32.totalorder %v495, 6
    %v1798 = vsel %vm1796, 1, 0
    %1799 = vset.pattern.permute.xlu0 0
    %1800 = vperm.xlu0 %1799, %v1798
    %v1801 = vpop.permute.xlu0 %1800
    %vm1802 = vcmp.eq.s32.totalorder %v1801, 1
    %v1803 = vsel %vm1802, %v1728, %v1158
    %1804 = vst [vmem:[#allocation3] sm:$0xff] %v1803
    %v1805 = vsel %vm1802, %v1726, %v1159
    %1806 = vst [vmem:[#allocation4] sm:$0xff] %v1805
    %v1807 = vsel %vm1797, 1, 0
    %1808 = vset.pattern.permute.xlu0 0
    %1809 = vperm.xlu0 %1808, %v1807
    %v1810 = vpop.permute.xlu0 %1809
    %vm1811 = vcmp.eq.s32.totalorder %v1810, 1
    %v1812 = vsel %vm1811, %v1795, %v1160
    %1813 = vst [vmem:[#allocation5] sm:$0xff] %v1812
    %v1814 = vsel %vm1811, %v1793, %v1161
    %1815 = vst [vmem:[#allocation6] sm:$0xff] %v1814
    %v1816 = vsel %vm1802, %v1728, 0.0
    %s1817 = scalar_lea.vmem %s8, 16
    %1818 = vst [vmem:[%s1817] sm:$0xff] %v1816
    %v1819 = vsel %vm1811, %v1795, 0.0
    %s1820 = scalar_lea.vmem %s8, 96
    %1821 = vst [vmem:[%s1820 + $0x8] sm:$0xff] %v1819
    %v1822 = vld [vmem:[#allocation3] sm:$0xff]
    %v1823 = vld [vmem:[#allocation4] sm:$0xff]
    %v1824 = vld [vmem:[#allocation5] sm:$0xff]
    %v1825 = vld [vmem:[#allocation6] sm:$0xff]
    %v1826 = vpack.c.bf16 %v1822, %v1822
    %v1827 = vld [vmem:[%s5] sm:$0xff]
    %v1828 = vld [vmem:[%s5 + $0x8] sm:$0xff]
    %v1829 = vld [vmem:[%s5 + $0x10] sm:$0xff]
    %v1830 = vld [vmem:[%s5 + $0x18] sm:$0xff]
    %v1831 = vld [vmem:[%s5 + $0x20] sm:$0xff]
    %v1832 = vld [vmem:[%s5 + $0x28] sm:$0xff]
    %v1833 = vld [vmem:[%s5 + $0x30] sm:$0xff]
    %v1834 = vld [vmem:[%s5 + $0x38] sm:$0xff]
    %v1835 = vld [vmem:[%s5 + $0x40] sm:$0xff]
    %v1836 = vld [vmem:[%s5 + $0x48] sm:$0xff]
    %v1837 = vld [vmem:[%s5 + $0x50] sm:$0xff]
    %v1838 = vld [vmem:[%s5 + $0x58] sm:$0xff]
    %v1839 = vld [vmem:[%s5 + $0x60] sm:$0xff]
    %v1840 = vld [vmem:[%s5 + $0x68] sm:$0xff]
    %v1841 = vld [vmem:[%s5 + $0x70] sm:$0xff]
    %v1842 = vld [vmem:[%s5 + $0x78] sm:$0xff]
    %v1843 = vld [vmem:[%s5 + $0x80] sm:$0xff]
    %v1844 = vld [vmem:[%s5 + $0x88] sm:$0xff]
    %v1845 = vld [vmem:[%s5 + $0x90] sm:$0xff]
    %v1846 = vld [vmem:[%s5 + $0x98] sm:$0xff]
    %v1847 = vld [vmem:[%s5 + $0xa0] sm:$0xff]
    %v1848 = vld [vmem:[%s5 + $0xa8] sm:$0xff]
    %v1849 = vld [vmem:[%s5 + $0xb0] sm:$0xff]
    %v1850 = vld [vmem:[%s5 + $0xb8] sm:$0xff]
    %v1851 = vld [vmem:[%s5 + $0xc0] sm:$0xff]
    %v1852 = vld [vmem:[%s5 + $0xc8] sm:$0xff]
    %v1853 = vld [vmem:[%s5 + $0xd0] sm:$0xff]
    %v1854 = vld [vmem:[%s5 + $0xd8] sm:$0xff]
    %v1855 = vld [vmem:[%s5 + $0xe0] sm:$0xff]
    %v1856 = vld [vmem:[%s5 + $0xe8] sm:$0xff]
    %v1857 = vld [vmem:[%s5 + $0xf0] sm:$0xff]
    %v1858 = vld [vmem:[%s5 + $0xf8] sm:$0xff]
    %v1891 = vunpack.c.l.b16 %v1827
    %v1892 = vunpack.c.h.b16 %v1827
    %v1893 = vunpack.c.l.b16 %v1828
    %v1894 = vunpack.c.h.b16 %v1828
    %v1895 = vunpack.c.l.b16 %v1829
    %v1896 = vunpack.c.h.b16 %v1829
    %v1897 = vunpack.c.l.b16 %v1830
    %v1898 = vunpack.c.h.b16 %v1830
    %v1899 = vunpack.c.l.b16 %v1831
    %v1900 = vunpack.c.h.b16 %v1831
    %v1901 = vunpack.c.l.b16 %v1832
    %v1902 = vunpack.c.h.b16 %v1832
    %v1903 = vunpack.c.l.b16 %v1833
    %v1904 = vunpack.c.h.b16 %v1833
    %v1905 = vunpack.c.l.b16 %v1834
    %v1906 = vunpack.c.h.b16 %v1834
    %v1907 = vunpack.c.l.b16 %v1835
    %v1908 = vunpack.c.h.b16 %v1835
    %v1909 = vunpack.c.l.b16 %v1836
    %v1910 = vunpack.c.h.b16 %v1836
    %v1911 = vunpack.c.l.b16 %v1837
    %v1912 = vunpack.c.h.b16 %v1837
    %v1913 = vunpack.c.l.b16 %v1838
    %v1914 = vunpack.c.h.b16 %v1838
    %v1915 = vunpack.c.l.b16 %v1839
    %v1916 = vunpack.c.h.b16 %v1839
    %v1917 = vunpack.c.l.b16 %v1840
    %v1918 = vunpack.c.h.b16 %v1840
    %v1919 = vunpack.c.l.b16 %v1841
    %v1920 = vunpack.c.h.b16 %v1841
    %v1921 = vunpack.c.l.b16 %v1842
    %v1922 = vunpack.c.h.b16 %v1842
    %v1923 = vunpack.c.l.b16 %v1843
    %v1924 = vunpack.c.h.b16 %v1843
    %v1925 = vunpack.c.l.b16 %v1844
    %v1926 = vunpack.c.h.b16 %v1844
    %v1927 = vunpack.c.l.b16 %v1845
    %v1928 = vunpack.c.h.b16 %v1845
    %v1929 = vunpack.c.l.b16 %v1846
    %v1930 = vunpack.c.h.b16 %v1846
    %v1931 = vunpack.c.l.b16 %v1847
    %v1932 = vunpack.c.h.b16 %v1847
    %v1933 = vunpack.c.l.b16 %v1848
    %v1934 = vunpack.c.h.b16 %v1848
    %v1935 = vunpack.c.l.b16 %v1849
    %v1936 = vunpack.c.h.b16 %v1849
    %v1937 = vunpack.c.l.b16 %v1850
    %v1938 = vunpack.c.h.b16 %v1850
    %v1939 = vunpack.c.l.b16 %v1851
    %v1940 = vunpack.c.h.b16 %v1851
    %v1941 = vunpack.c.l.b16 %v1852
    %v1942 = vunpack.c.h.b16 %v1852
    %v1943 = vunpack.c.l.b16 %v1853
    %v1944 = vunpack.c.h.b16 %v1853
    %v1945 = vunpack.c.l.b16 %v1854
    %v1946 = vunpack.c.h.b16 %v1854
    %v1947 = vunpack.c.l.b16 %v1855
    %v1948 = vunpack.c.h.b16 %v1855
    %v1949 = vunpack.c.l.b16 %v1856
    %v1950 = vunpack.c.h.b16 %v1856
    %v1951 = vunpack.c.l.b16 %v1857
    %v1952 = vunpack.c.h.b16 %v1857
    %v1953 = vunpack.c.l.b16 %v1858
    %v1954 = vunpack.c.h.b16 %v1858
    %v1955 = vpack.c.b16 %v1895, %v1891
    %v1956 = vpack.c.b16 %v1896, %v1892
    %v1957 = vpack.c.b16 %v1897, %v1893
    %v1958 = vpack.c.b16 %v1898, %v1894
    %v1959 = vpack.c.b16 %v1903, %v1899
    %v1960 = vpack.c.b16 %v1904, %v1900
    %v1961 = vpack.c.b16 %v1905, %v1901
    %v1962 = vpack.c.b16 %v1906, %v1902
    %v1963 = vpack.c.b16 %v1911, %v1907
    %v1964 = vpack.c.b16 %v1912, %v1908
    %v1965 = vpack.c.b16 %v1913, %v1909
    %v1966 = vpack.c.b16 %v1914, %v1910
    %v1967 = vpack.c.b16 %v1919, %v1915
    %v1968 = vpack.c.b16 %v1920, %v1916
    %v1969 = vpack.c.b16 %v1921, %v1917
    %v1970 = vpack.c.b16 %v1922, %v1918
    %v1971 = vpack.c.b16 %v1927, %v1923
    %v1972 = vpack.c.b16 %v1928, %v1924
    %v1973 = vpack.c.b16 %v1929, %v1925
    %v1974 = vpack.c.b16 %v1930, %v1926
    %v1975 = vpack.c.b16 %v1935, %v1931
    %v1976 = vpack.c.b16 %v1936, %v1932
    %v1977 = vpack.c.b16 %v1937, %v1933
    %v1978 = vpack.c.b16 %v1938, %v1934
    %v1979 = vpack.c.b16 %v1943, %v1939
    %v1980 = vpack.c.b16 %v1944, %v1940
    %v1981 = vpack.c.b16 %v1945, %v1941
    %v1982 = vpack.c.b16 %v1946, %v1942
    %v1983 = vpack.c.b16 %v1951, %v1947
    %v1984 = vpack.c.b16 %v1952, %v1948
    %v1985 = vpack.c.b16 %v1953, %v1949
    %v1986 = vpack.c.b16 %v1954, %v1950
    %2019 = vmatpush.bf16.msra.mxu0 %v1983
    %2020 = vmatpush.bf16.msra.mxu0 %v1979
    %2021 = vmatpush.bf16.msra.mxu0 %v1975
    %2022 = vmatpush.bf16.msra.mxu0 %v1971
    %2023 = vmatpush.bf16.msra.mxu0 %v1967
    %2024 = vmatpush.bf16.msra.mxu0 %v1963
    %2025 = vmatpush.bf16.msra.mxu0 %v1959
    %2026 = vmatpush.bf16.msra.mxu0 %v1955
    %2027 = vmatmul.bf16.gmra.mxu0 %v1826
    %v2028 = vpop.f32.mrf.mxu0
    %v2029 = vadd.f32 0.0, %v2028
    %v2030 = vpop.f32.mrf.mxu0
    %2031 = vdwg.mxu0
    %2032 = vmatpush.bf16.msra.mxu0 %v1984
    %2033 = vmatpush.bf16.msra.mxu0 %v1980
    %2034 = vmatpush.bf16.msra.mxu0 %v1976
    %2035 = vmatpush.bf16.msra.mxu0 %v1972
    %2036 = vmatpush.bf16.msra.mxu0 %v1968
    %2037 = vmatpush.bf16.msra.mxu0 %v1964
    %2038 = vmatpush.bf16.msra.mxu0 %v1960
    %2039 = vmatpush.bf16.msra.mxu0 %v1956
    %2040 = vmatmul.bf16.gmra.mxu0 %v1826
    %v2041 = vpop.f32.mrf.mxu0
    %v2042 = vadd.f32 0.0, %v2041
    %v2043 = vpop.f32.mrf.mxu0
    %2044 = vdwg.mxu0
    %2045 = vmatpush.bf16.msra.mxu0 %v1985
    %2046 = vmatpush.bf16.msra.mxu0 %v1981
    %2047 = vmatpush.bf16.msra.mxu0 %v1977
    %2048 = vmatpush.bf16.msra.mxu0 %v1973
    %2049 = vmatpush.bf16.msra.mxu0 %v1969
    %2050 = vmatpush.bf16.msra.mxu0 %v1965
    %2051 = vmatpush.bf16.msra.mxu0 %v1961
    %2052 = vmatpush.bf16.msra.mxu0 %v1957
    %2053 = vmatmul.bf16.gmra.mxu0 %v1826
    %v2054 = vpop.f32.mrf.mxu0
    %v2055 = vadd.f32 0.0, %v2054
    %v2056 = vpop.f32.mrf.mxu0
    %2057 = vdwg.mxu0
    %2058 = vmatpush.bf16.msra.mxu0 %v1986
    %2059 = vmatpush.bf16.msra.mxu0 %v1982
    %2060 = vmatpush.bf16.msra.mxu0 %v1978
    %2061 = vmatpush.bf16.msra.mxu0 %v1974
    %2062 = vmatpush.bf16.msra.mxu0 %v1970
    %2063 = vmatpush.bf16.msra.mxu0 %v1966
    %2064 = vmatpush.bf16.msra.mxu0 %v1962
    %2065 = vmatpush.bf16.msra.mxu0 %v1958
    %2066 = vmatmul.bf16.gmra.mxu0 %v1826
    %v2067 = vpop.f32.mrf.mxu0
    %v2068 = vadd.f32 0.0, %v2067
    %v2069 = vpop.f32.mrf.mxu0
    %2070 = vdwg.mxu0
    %v2071 = vpack.c.bf16 %v1824, %v1824
    %v2072 = vld [vmem:[%s6] sm:$0xff]
    %v2073 = vld [vmem:[%s6 + $0x8] sm:$0xff]
    %v2074 = vld [vmem:[%s6 + $0x10] sm:$0xff]
    %v2075 = vld [vmem:[%s6 + $0x18] sm:$0xff]
    %v2076 = vld [vmem:[%s6 + $0x20] sm:$0xff]
    %v2077 = vld [vmem:[%s6 + $0x28] sm:$0xff]
    %v2078 = vld [vmem:[%s6 + $0x30] sm:$0xff]
    %v2079 = vld [vmem:[%s6 + $0x38] sm:$0xff]
    %v2080 = vld [vmem:[%s6 + $0x40] sm:$0xff]
    %v2081 = vld [vmem:[%s6 + $0x48] sm:$0xff]
    %v2082 = vld [vmem:[%s6 + $0x50] sm:$0xff]
    %v2083 = vld [vmem:[%s6 + $0x58] sm:$0xff]
    %v2084 = vld [vmem:[%s6 + $0x60] sm:$0xff]
    %v2085 = vld [vmem:[%s6 + $0x68] sm:$0xff]
    %v2086 = vld [vmem:[%s6 + $0x70] sm:$0xff]
    %v2087 = vld [vmem:[%s6 + $0x78] sm:$0xff]
    %v2088 = vld [vmem:[%s6 + $0x80] sm:$0xff]
    %v2089 = vld [vmem:[%s6 + $0x88] sm:$0xff]
    %v2090 = vld [vmem:[%s6 + $0x90] sm:$0xff]
    %v2091 = vld [vmem:[%s6 + $0x98] sm:$0xff]
    %v2092 = vld [vmem:[%s6 + $0xa0] sm:$0xff]
    %v2093 = vld [vmem:[%s6 + $0xa8] sm:$0xff]
    %v2094 = vld [vmem:[%s6 + $0xb0] sm:$0xff]
    %v2095 = vld [vmem:[%s6 + $0xb8] sm:$0xff]
    %v2096 = vld [vmem:[%s6 + $0xc0] sm:$0xff]
    %v2097 = vld [vmem:[%s6 + $0xc8] sm:$0xff]
    %v2098 = vld [vmem:[%s6 + $0xd0] sm:$0xff]
    %v2099 = vld [vmem:[%s6 + $0xd8] sm:$0xff]
    %v2100 = vld [vmem:[%s6 + $0xe0] sm:$0xff]
    %v2101 = vld [vmem:[%s6 + $0xe8] sm:$0xff]
    %v2102 = vld [vmem:[%s6 + $0xf0] sm:$0xff]
    %v2103 = vld [vmem:[%s6 + $0xf8] sm:$0xff]
    %v2136 = vunpack.c.l.b16 %v2072
    %v2137 = vunpack.c.h.b16 %v2072
    %v2138 = vunpack.c.l.b16 %v2073
    %v2139 = vunpack.c.h.b16 %v2073
    %v2140 = vunpack.c.l.b16 %v2074
    %v2141 = vunpack.c.h.b16 %v2074
    %v2142 = vunpack.c.l.b16 %v2075
    %v2143 = vunpack.c.h.b16 %v2075
    %v2144 = vunpack.c.l.b16 %v2076
    %v2145 = vunpack.c.h.b16 %v2076
    %v2146 = vunpack.c.l.b16 %v2077
    %v2147 = vunpack.c.h.b16 %v2077
    %v2148 = vunpack.c.l.b16 %v2078
    %v2149 = vunpack.c.h.b16 %v2078
    %v2150 = vunpack.c.l.b16 %v2079
    %v2151 = vunpack.c.h.b16 %v2079
    %v2152 = vunpack.c.l.b16 %v2080
    %v2153 = vunpack.c.h.b16 %v2080
    %v2154 = vunpack.c.l.b16 %v2081
    %v2155 = vunpack.c.h.b16 %v2081
    %v2156 = vunpack.c.l.b16 %v2082
    %v2157 = vunpack.c.h.b16 %v2082
    %v2158 = vunpack.c.l.b16 %v2083
    %v2159 = vunpack.c.h.b16 %v2083
    %v2160 = vunpack.c.l.b16 %v2084
    %v2161 = vunpack.c.h.b16 %v2084
    %v2162 = vunpack.c.l.b16 %v2085
    %v2163 = vunpack.c.h.b16 %v2085
    %v2164 = vunpack.c.l.b16 %v2086
    %v2165 = vunpack.c.h.b16 %v2086
    %v2166 = vunpack.c.l.b16 %v2087
    %v2167 = vunpack.c.h.b16 %v2087
    %v2168 = vunpack.c.l.b16 %v2088
    %v2169 = vunpack.c.h.b16 %v2088
    %v2170 = vunpack.c.l.b16 %v2089
    %v2171 = vunpack.c.h.b16 %v2089
    %v2172 = vunpack.c.l.b16 %v2090
    %v2173 = vunpack.c.h.b16 %v2090
    %v2174 = vunpack.c.l.b16 %v2091
    %v2175 = vunpack.c.h.b16 %v2091
    %v2176 = vunpack.c.l.b16 %v2092
    %v2177 = vunpack.c.h.b16 %v2092
    %v2178 = vunpack.c.l.b16 %v2093
    %v2179 = vunpack.c.h.b16 %v2093
    %v2180 = vunpack.c.l.b16 %v2094
    %v2181 = vunpack.c.h.b16 %v2094
    %v2182 = vunpack.c.l.b16 %v2095
    %v2183 = vunpack.c.h.b16 %v2095
    %v2184 = vunpack.c.l.b16 %v2096
    %v2185 = vunpack.c.h.b16 %v2096
    %v2186 = vunpack.c.l.b16 %v2097
    %v2187 = vunpack.c.h.b16 %v2097
    %v2188 = vunpack.c.l.b16 %v2098
    %v2189 = vunpack.c.h.b16 %v2098
    %v2190 = vunpack.c.l.b16 %v2099
    %v2191 = vunpack.c.h.b16 %v2099
    %v2192 = vunpack.c.l.b16 %v2100
    %v2193 = vunpack.c.h.b16 %v2100
    %v2194 = vunpack.c.l.b16 %v2101
    %v2195 = vunpack.c.h.b16 %v2101
    %v2196 = vunpack.c.l.b16 %v2102
    %v2197 = vunpack.c.h.b16 %v2102
    %v2198 = vunpack.c.l.b16 %v2103
    %v2199 = vunpack.c.h.b16 %v2103
    %v2200 = vpack.c.b16 %v2140, %v2136
    %v2201 = vpack.c.b16 %v2141, %v2137
    %v2202 = vpack.c.b16 %v2142, %v2138
    %v2203 = vpack.c.b16 %v2143, %v2139
    %v2204 = vpack.c.b16 %v2148, %v2144
    %v2205 = vpack.c.b16 %v2149, %v2145
    %v2206 = vpack.c.b16 %v2150, %v2146
    %v2207 = vpack.c.b16 %v2151, %v2147
    %v2208 = vpack.c.b16 %v2156, %v2152
    %v2209 = vpack.c.b16 %v2157, %v2153
    %v2210 = vpack.c.b16 %v2158, %v2154
    %v2211 = vpack.c.b16 %v2159, %v2155
    %v2212 = vpack.c.b16 %v2164, %v2160
    %v2213 = vpack.c.b16 %v2165, %v2161
    %v2214 = vpack.c.b16 %v2166, %v2162
    %v2215 = vpack.c.b16 %v2167, %v2163
    %v2216 = vpack.c.b16 %v2172, %v2168
    %v2217 = vpack.c.b16 %v2173, %v2169
    %v2218 = vpack.c.b16 %v2174, %v2170
    %v2219 = vpack.c.b16 %v2175, %v2171
    %v2220 = vpack.c.b16 %v2180, %v2176
    %v2221 = vpack.c.b16 %v2181, %v2177
    %v2222 = vpack.c.b16 %v2182, %v2178
    %v2223 = vpack.c.b16 %v2183, %v2179
    %v2224 = vpack.c.b16 %v2188, %v2184
    %v2225 = vpack.c.b16 %v2189, %v2185
    %v2226 = vpack.c.b16 %v2190, %v2186
    %v2227 = vpack.c.b16 %v2191, %v2187
    %v2228 = vpack.c.b16 %v2196, %v2192
    %v2229 = vpack.c.b16 %v2197, %v2193
    %v2230 = vpack.c.b16 %v2198, %v2194
    %v2231 = vpack.c.b16 %v2199, %v2195
    %2264 = vmatpush.bf16.msra.mxu0 %v2228
    %2265 = vmatpush.bf16.msra.mxu0 %v2224
    %2266 = vmatpush.bf16.msra.mxu0 %v2220
    %2267 = vmatpush.bf16.msra.mxu0 %v2216
    %2268 = vmatpush.bf16.msra.mxu0 %v2212
    %2269 = vmatpush.bf16.msra.mxu0 %v2208
    %2270 = vmatpush.bf16.msra.mxu0 %v2204
    %2271 = vmatpush.bf16.msra.mxu0 %v2200
    %2272 = vmatmul.bf16.gmra.mxu0 %v2071
    %v2273 = vpop.f32.mrf.mxu0
    %v2274 = vadd.f32 0.0, %v2273
    %v2275 = vpop.f32.mrf.mxu0
    %2276 = vdwg.mxu0
    %2277 = vmatpush.bf16.msra.mxu0 %v2229
    %2278 = vmatpush.bf16.msra.mxu0 %v2225
    %2279 = vmatpush.bf16.msra.mxu0 %v2221
    %2280 = vmatpush.bf16.msra.mxu0 %v2217
    %2281 = vmatpush.bf16.msra.mxu0 %v2213
    %2282 = vmatpush.bf16.msra.mxu0 %v2209
    %2283 = vmatpush.bf16.msra.mxu0 %v2205
    %2284 = vmatpush.bf16.msra.mxu0 %v2201
    %2285 = vmatmul.bf16.gmra.mxu0 %v2071
    %v2286 = vpop.f32.mrf.mxu0
    %v2287 = vadd.f32 0.0, %v2286
    %v2288 = vpop.f32.mrf.mxu0
    %2289 = vdwg.mxu0
    %2290 = vmatpush.bf16.msra.mxu0 %v2230
    %2291 = vmatpush.bf16.msra.mxu0 %v2226
    %2292 = vmatpush.bf16.msra.mxu0 %v2222
    %2293 = vmatpush.bf16.msra.mxu0 %v2218
    %2294 = vmatpush.bf16.msra.mxu0 %v2214
    %2295 = vmatpush.bf16.msra.mxu0 %v2210
    %2296 = vmatpush.bf16.msra.mxu0 %v2206
    %2297 = vmatpush.bf16.msra.mxu0 %v2202
    %2298 = vmatmul.bf16.gmra.mxu0 %v2071
    %v2299 = vpop.f32.mrf.mxu0
    %v2300 = vadd.f32 0.0, %v2299
    %v2301 = vpop.f32.mrf.mxu0
    %2302 = vdwg.mxu0
    %2303 = vmatpush.bf16.msra.mxu0 %v2231
    %2304 = vmatpush.bf16.msra.mxu0 %v2227
    %2305 = vmatpush.bf16.msra.mxu0 %v2223
    %2306 = vmatpush.bf16.msra.mxu0 %v2219
    %2307 = vmatpush.bf16.msra.mxu0 %v2215
    %2308 = vmatpush.bf16.msra.mxu0 %v2211
    %2309 = vmatpush.bf16.msra.mxu0 %v2207
    %2310 = vmatpush.bf16.msra.mxu0 %v2203
    %2311 = vmatmul.bf16.gmra.mxu0 %v2071
    %v2312 = vpop.f32.mrf.mxu0
    %v2313 = vadd.f32 0.0, %v2312
    %v2314 = vpop.f32.mrf.mxu0
    %2315 = vdwg.mxu0
    %s2316 = scalar_lea.vmem [#allocation2], 128
    %v2317 = vld [vmem:[%s2316] sm:$0xff]
    %v2318 = vld [vmem:[%s2316 + $0x8] sm:$0xff]
    %v2319 = vld [vmem:[%s2316 + $0x10] sm:$0xff]
    %v2320 = vld [vmem:[%s2316 + $0x18] sm:$0xff]
    %s2321 = scalar_lea.vmem [#allocation2], 320
    %v2322 = vld [vmem:[%s2321 + $0x20] sm:$0xff]
    %v2323 = vld [vmem:[%s2321 + $0x28] sm:$0xff]
    %v2324 = vld [vmem:[%s2321 + $0x30] sm:$0xff]
    %v2325 = vld [vmem:[%s2321 + $0x38] sm:$0xff]
    %v2326 = vadd.f32 %v2317, %v2029
    %v2327 = vadd.f32 %v2318, %v2042
    %v2328 = vadd.f32 %v2319, %v2055
    %v2329 = vadd.f32 %v2320, %v2068
    %v2330 = vxor.u32 %v2326, 2147483648
    %v2331 = vmul.f32 %v2330, 1.442695
    %v2332 = vpow.pop %v2331
    %v2333 = vadd.f32 %v2332, 1.0
    %v2334 = vrcp.pop %v2333
    %v2335 = vmul.f32 %v2333, %v2334
    %v2336 = vsub.f32 1.0, %v2335
    %v2337 = vmul.f32 %v2334, %v2336
    %v2338 = vadd.f32 %v2334, %v2337
    %vm2339 = vweird.f32 %v2333
    %vm2340 = vweird.f32 %v2334
    %vm2341 = vmor %vm2339, %vm2340
    %v2342 = vsel %vm2341, %v2334, %v2338
    %v2343 = vand.u32 2147483647, %v2333
    %vm2344 = vcmp.eq.f32.partialorder %v2343, 8.507059e+37
    %v2345 = vand.u32 %v2333, 2147483648
    %v2346 = vor.u32 1.1754944e-38, %v2345
    %v2347 = vsel %vm2344, %v2346, %v2342
    %v2348 = vmul.f32 1.0, %v2347
    %v2349 = vxor.u32 %v2327, 2147483648
    %v2350 = vmul.f32 %v2349, 1.442695
    %v2351 = vpow.pop %v2350
    %v2352 = vadd.f32 %v2351, 1.0
    %v2353 = vrcp.pop %v2352
    %v2354 = vmul.f32 %v2352, %v2353
    %v2355 = vsub.f32 1.0, %v2354
    %v2356 = vmul.f32 %v2353, %v2355
    %v2357 = vadd.f32 %v2353, %v2356
    %vm2358 = vweird.f32 %v2352
    %vm2359 = vweird.f32 %v2353
    %vm2360 = vmor %vm2358, %vm2359
    %v2361 = vsel %vm2360, %v2353, %v2357
    %v2362 = vand.u32 2147483647, %v2352
    %vm2363 = vcmp.eq.f32.partialorder %v2362, 8.507059e+37
    %v2364 = vand.u32 %v2352, 2147483648
    %v2365 = vor.u32 1.1754944e-38, %v2364
    %v2366 = vsel %vm2363, %v2365, %v2361
    %v2367 = vmul.f32 1.0, %v2366
    %v2368 = vtanh.pop %v2328
    %v2369 = vxor.u32 %v2329, 2147483648
    %v2370 = vmul.f32 %v2369, 1.442695
    %v2371 = vpow.pop %v2370
    %v2372 = vadd.f32 %v2371, 1.0
    %v2373 = vrcp.pop %v2372
    %v2374 = vmul.f32 %v2372, %v2373
    %v2375 = vsub.f32 1.0, %v2374
    %v2376 = vmul.f32 %v2373, %v2375
    %v2377 = vadd.f32 %v2373, %v2376
    %vm2378 = vweird.f32 %v2372
    %vm2379 = vweird.f32 %v2373
    %vm2380 = vmor %vm2378, %vm2379
    %v2381 = vsel %vm2380, %v2373, %v2377
    %v2382 = vand.u32 2147483647, %v2372
    %vm2383 = vcmp.eq.f32.partialorder %v2382, 8.507059e+37
    %v2384 = vand.u32 %v2372, 2147483648
    %v2385 = vor.u32 1.1754944e-38, %v2384
    %v2386 = vsel %vm2383, %v2385, %v2381
    %v2387 = vmul.f32 1.0, %v2386
    %v2388 = vmul.f32 %v2367, %v1823
    %v2389 = vmul.f32 %v2348, %v2368
    %v2390 = vadd.f32 %v2388, %v2389
    %v2391 = vtanh.pop %v2390
    %v2392 = vmul.f32 %v2387, %v2391
    %v2393 = vadd.f32 %v2322, %v2274
    %v2394 = vadd.f32 %v2323, %v2287
    %v2395 = vadd.f32 %v2324, %v2300
    %v2396 = vadd.f32 %v2325, %v2313
    %v2397 = vxor.u32 %v2393, 2147483648
    %v2398 = vmul.f32 %v2397, 1.442695
    %v2399 = vpow.pop %v2398
    %v2400 = vadd.f32 %v2399, 1.0
    %v2401 = vrcp.pop %v2400
    %v2402 = vmul.f32 %v2400, %v2401
    %v2403 = vsub.f32 1.0, %v2402
    %v2404 = vmul.f32 %v2401, %v2403
    %v2405 = vadd.f32 %v2401, %v2404
    %vm2406 = vweird.f32 %v2400
    %vm2407 = vweird.f32 %v2401
    %vm2408 = vmor %vm2406, %vm2407
    %v2409 = vsel %vm2408, %v2401, %v2405
    %v2410 = vand.u32 2147483647, %v2400
    %vm2411 = vcmp.eq.f32.partialorder %v2410, 8.507059e+37
    %v2412 = vand.u32 %v2400, 2147483648
    %v2413 = vor.u32 1.1754944e-38, %v2412
    %v2414 = vsel %vm2411, %v2413, %v2409
    %v2415 = vmul.f32 1.0, %v2414
    %v2416 = vxor.u32 %v2394, 2147483648
    %v2417 = vmul.f32 %v2416, 1.442695
    %v2418 = vpow.pop %v2417
    %v2419 = vadd.f32 %v2418, 1.0
    %v2420 = vrcp.pop %v2419
    %v2421 = vmul.f32 %v2419, %v2420
    %v2422 = vsub.f32 1.0, %v2421
    %v2423 = vmul.f32 %v2420, %v2422
    %v2424 = vadd.f32 %v2420, %v2423
    %vm2425 = vweird.f32 %v2419
    %vm2426 = vweird.f32 %v2420
    %vm2427 = vmor %vm2425, %vm2426
    %v2428 = vsel %vm2427, %v2420, %v2424
    %v2429 = vand.u32 2147483647, %v2419
    %vm2430 = vcmp.eq.f32.partialorder %v2429, 8.507059e+37
    %v2431 = vand.u32 %v2419, 2147483648
    %v2432 = vor.u32 1.1754944e-38, %v2431
    %v2433 = vsel %vm2430, %v2432, %v2428
    %v2434 = vmul.f32 1.0, %v2433
    %v2435 = vtanh.pop %v2395
    %v2436 = vxor.u32 %v2396, 2147483648
    %v2437 = vmul.f32 %v2436, 1.442695
    %v2438 = vpow.pop %v2437
    %v2439 = vadd.f32 %v2438, 1.0
    %v2440 = vrcp.pop %v2439
    %v2441 = vmul.f32 %v2439, %v2440
    %v2442 = vsub.f32 1.0, %v2441
    %v2443 = vmul.f32 %v2440, %v2442
    %v2444 = vadd.f32 %v2440, %v2443
    %vm2445 = vweird.f32 %v2439
    %vm2446 = vweird.f32 %v2440
    %vm2447 = vmor %vm2445, %vm2446
    %v2448 = vsel %vm2447, %v2440, %v2444
    %v2449 = vand.u32 2147483647, %v2439
    %vm2450 = vcmp.eq.f32.partialorder %v2449, 8.507059e+37
    %v2451 = vand.u32 %v2439, 2147483648
    %v2452 = vor.u32 1.1754944e-38, %v2451
    %v2453 = vsel %vm2450, %v2452, %v2448
    %v2454 = vmul.f32 1.0, %v2453
    %v2455 = vmul.f32 %v2434, %v1825
    %v2456 = vmul.f32 %v2415, %v2435
    %v2457 = vadd.f32 %v2455, %v2456
    %v2458 = vtanh.pop %v2457
    %v2459 = vmul.f32 %v2454, %v2458
    %vm2460 = vcmp.gt.s32.totalorder %v495, 2
    %vm2461 = vcmp.gt.s32.totalorder %v495, 5
    %v2462 = vsel %vm2460, 1, 0
    %2463 = vset.pattern.permute.xlu0 0
    %2464 = vperm.xlu0 %2463, %v2462
    %v2465 = vpop.permute.xlu0 %2464
    %vm2466 = vcmp.eq.s32.totalorder %v2465, 1
    %v2467 = vsel %vm2466, %v2392, %v1822
    %2468 = vst [vmem:[#allocation3] sm:$0xff] %v2467
    %v2469 = vsel %vm2466, %v2390, %v1823
    %2470 = vst [vmem:[#allocation4] sm:$0xff] %v2469
    %v2471 = vsel %vm2461, 1, 0
    %2472 = vset.pattern.permute.xlu0 0
    %2473 = vperm.xlu0 %2472, %v2471
    %v2474 = vpop.permute.xlu0 %2473
    %vm2475 = vcmp.eq.s32.totalorder %v2474, 1
    %v2476 = vsel %vm2475, %v2459, %v1824
    %2477 = vst [vmem:[#allocation5] sm:$0xff] %v2476
    %v2478 = vsel %vm2475, %v2457, %v1825
    %2479 = vst [vmem:[#allocation6] sm:$0xff] %v2478
    %v2480 = vsel %vm2466, %v2392, 0.0
    %s2481 = scalar_lea.vmem %s8, 32
    %2482 = vst [vmem:[%s2481] sm:$0xff] %v2480
    %v2483 = vsel %vm2475, %v2459, 0.0
    %s2484 = scalar_lea.vmem %s8, 80
    %2485 = vst [vmem:[%s2484 + $0x8] sm:$0xff] %v2483
    %v2486 = vld [vmem:[#allocation3] sm:$0xff]
    %v2487 = vld [vmem:[#allocation4] sm:$0xff]
    %v2488 = vld [vmem:[#allocation5] sm:$0xff]
    %v2489 = vld [vmem:[#allocation6] sm:$0xff]
    %v2490 = vpack.c.bf16 %v2486, %v2486
    %v2491 = vld [vmem:[%s5] sm:$0xff]
    %v2492 = vld [vmem:[%s5 + $0x8] sm:$0xff]
    %v2493 = vld [vmem:[%s5 + $0x10] sm:$0xff]
    %v2494 = vld [vmem:[%s5 + $0x18] sm:$0xff]
    %v2495 = vld [vmem:[%s5 + $0x20] sm:$0xff]
    %v2496 = vld [vmem:[%s5 + $0x28] sm:$0xff]
    %v2497 = vld [vmem:[%s5 + $0x30] sm:$0xff]
    %v2498 = vld [vmem:[%s5 + $0x38] sm:$0xff]
    %v2499 = vld [vmem:[%s5 + $0x40] sm:$0xff]
    %v2500 = vld [vmem:[%s5 + $0x48] sm:$0xff]
    %v2501 = vld [vmem:[%s5 + $0x50] sm:$0xff]
    %v2502 = vld [vmem:[%s5 + $0x58] sm:$0xff]
    %v2503 = vld [vmem:[%s5 + $0x60] sm:$0xff]
    %v2504 = vld [vmem:[%s5 + $0x68] sm:$0xff]
    %v2505 = vld [vmem:[%s5 + $0x70] sm:$0xff]
    %v2506 = vld [vmem:[%s5 + $0x78] sm:$0xff]
    %v2507 = vld [vmem:[%s5 + $0x80] sm:$0xff]
    %v2508 = vld [vmem:[%s5 + $0x88] sm:$0xff]
    %v2509 = vld [vmem:[%s5 + $0x90] sm:$0xff]
    %v2510 = vld [vmem:[%s5 + $0x98] sm:$0xff]
    %v2511 = vld [vmem:[%s5 + $0xa0] sm:$0xff]
    %v2512 = vld [vmem:[%s5 + $0xa8] sm:$0xff]
    %v2513 = vld [vmem:[%s5 + $0xb0] sm:$0xff]
    %v2514 = vld [vmem:[%s5 + $0xb8] sm:$0xff]
    %v2515 = vld [vmem:[%s5 + $0xc0] sm:$0xff]
    %v2516 = vld [vmem:[%s5 + $0xc8] sm:$0xff]
    %v2517 = vld [vmem:[%s5 + $0xd0] sm:$0xff]
    %v2518 = vld [vmem:[%s5 + $0xd8] sm:$0xff]
    %v2519 = vld [vmem:[%s5 + $0xe0] sm:$0xff]
    %v2520 = vld [vmem:[%s5 + $0xe8] sm:$0xff]
    %v2521 = vld [vmem:[%s5 + $0xf0] sm:$0xff]
    %v2522 = vld [vmem:[%s5 + $0xf8] sm:$0xff]
    %v2555 = vunpack.c.l.b16 %v2491
    %v2556 = vunpack.c.h.b16 %v2491
    %v2557 = vunpack.c.l.b16 %v2492
    %v2558 = vunpack.c.h.b16 %v2492
    %v2559 = vunpack.c.l.b16 %v2493
    %v2560 = vunpack.c.h.b16 %v2493
    %v2561 = vunpack.c.l.b16 %v2494
    %v2562 = vunpack.c.h.b16 %v2494
    %v2563 = vunpack.c.l.b16 %v2495
    %v2564 = vunpack.c.h.b16 %v2495
    %v2565 = vunpack.c.l.b16 %v2496
    %v2566 = vunpack.c.h.b16 %v2496
    %v2567 = vunpack.c.l.b16 %v2497
    %v2568 = vunpack.c.h.b16 %v2497
    %v2569 = vunpack.c.l.b16 %v2498
    %v2570 = vunpack.c.h.b16 %v2498
    %v2571 = vunpack.c.l.b16 %v2499
    %v2572 = vunpack.c.h.b16 %v2499
    %v2573 = vunpack.c.l.b16 %v2500
    %v2574 = vunpack.c.h.b16 %v2500
    %v2575 = vunpack.c.l.b16 %v2501
    %v2576 = vunpack.c.h.b16 %v2501
    %v2577 = vunpack.c.l.b16 %v2502
    %v2578 = vunpack.c.h.b16 %v2502
    %v2579 = vunpack.c.l.b16 %v2503
    %v2580 = vunpack.c.h.b16 %v2503
    %v2581 = vunpack.c.l.b16 %v2504
    %v2582 = vunpack.c.h.b16 %v2504
    %v2583 = vunpack.c.l.b16 %v2505
    %v2584 = vunpack.c.h.b16 %v2505
    %v2585 = vunpack.c.l.b16 %v2506
    %v2586 = vunpack.c.h.b16 %v2506
    %v2587 = vunpack.c.l.b16 %v2507
    %v2588 = vunpack.c.h.b16 %v2507
    %v2589 = vunpack.c.l.b16 %v2508
    %v2590 = vunpack.c.h.b16 %v2508
    %v2591 = vunpack.c.l.b16 %v2509
    %v2592 = vunpack.c.h.b16 %v2509
    %v2593 = vunpack.c.l.b16 %v2510
    %v2594 = vunpack.c.h.b16 %v2510
    %v2595 = vunpack.c.l.b16 %v2511
    %v2596 = vunpack.c.h.b16 %v2511
    %v2597 = vunpack.c.l.b16 %v2512
    %v2598 = vunpack.c.h.b16 %v2512
    %v2599 = vunpack.c.l.b16 %v2513
    %v2600 = vunpack.c.h.b16 %v2513
    %v2601 = vunpack.c.l.b16 %v2514
    %v2602 = vunpack.c.h.b16 %v2514
    %v2603 = vunpack.c.l.b16 %v2515
    %v2604 = vunpack.c.h.b16 %v2515
    %v2605 = vunpack.c.l.b16 %v2516
    %v2606 = vunpack.c.h.b16 %v2516
    %v2607 = vunpack.c.l.b16 %v2517
    %v2608 = vunpack.c.h.b16 %v2517
    %v2609 = vunpack.c.l.b16 %v2518
    %v2610 = vunpack.c.h.b16 %v2518
    %v2611 = vunpack.c.l.b16 %v2519
    %v2612 = vunpack.c.h.b16 %v2519
    %v2613 = vunpack.c.l.b16 %v2520
    %v2614 = vunpack.c.h.b16 %v2520
    %v2615 = vunpack.c.l.b16 %v2521
    %v2616 = vunpack.c.h.b16 %v2521
    %v2617 = vunpack.c.l.b16 %v2522
    %v2618 = vunpack.c.h.b16 %v2522
    %v2619 = vpack.c.b16 %v2559, %v2555
    %v2620 = vpack.c.b16 %v2560, %v2556
    %v2621 = vpack.c.b16 %v2561, %v2557
    %v2622 = vpack.c.b16 %v2562, %v2558
    %v2623 = vpack.c.b16 %v2567, %v2563
    %v2624 = vpack.c.b16 %v2568, %v2564
    %v2625 = vpack.c.b16 %v2569, %v2565
    %v2626 = vpack.c.b16 %v2570, %v2566
    %v2627 = vpack.c.b16 %v2575, %v2571
    %v2628 = vpack.c.b16 %v2576, %v2572
    %v2629 = vpack.c.b16 %v2577, %v2573
    %v2630 = vpack.c.b16 %v2578, %v2574
    %v2631 = vpack.c.b16 %v2583, %v2579
    %v2632 = vpack.c.b16 %v2584, %v2580
    %v2633 = vpack.c.b16 %v2585, %v2581
    %v2634 = vpack.c.b16 %v2586, %v2582
    %v2635 = vpack.c.b16 %v2591, %v2587
    %v2636 = vpack.c.b16 %v2592, %v2588
    %v2637 = vpack.c.b16 %v2593, %v2589
    %v2638 = vpack.c.b16 %v2594, %v2590
    %v2639 = vpack.c.b16 %v2599, %v2595
    %v2640 = vpack.c.b16 %v2600, %v2596
    %v2641 = vpack.c.b16 %v2601, %v2597
    %v2642 = vpack.c.b16 %v2602, %v2598
    %v2643 = vpack.c.b16 %v2607, %v2603
    %v2644 = vpack.c.b16 %v2608, %v2604
    %v2645 = vpack.c.b16 %v2609, %v2605
    %v2646 = vpack.c.b16 %v2610, %v2606
    %v2647 = vpack.c.b16 %v2615, %v2611
    %v2648 = vpack.c.b16 %v2616, %v2612
    %v2649 = vpack.c.b16 %v2617, %v2613
    %v2650 = vpack.c.b16 %v2618, %v2614
    %2683 = vmatpush.bf16.msra.mxu0 %v2647
    %2684 = vmatpush.bf16.msra.mxu0 %v2643
    %2685 = vmatpush.bf16.msra.mxu0 %v2639
    %2686 = vmatpush.bf16.msra.mxu0 %v2635
    %2687 = vmatpush.bf16.msra.mxu0 %v2631
    %2688 = vmatpush.bf16.msra.mxu0 %v2627
    %2689 = vmatpush.bf16.msra.mxu0 %v2623
    %2690 = vmatpush.bf16.msra.mxu0 %v2619
    %2691 = vmatmul.bf16.gmra.mxu0 %v2490
    %v2692 = vpop.f32.mrf.mxu0
    %v2693 = vadd.f32 0.0, %v2692
    %v2694 = vpop.f32.mrf.mxu0
    %2695 = vdwg.mxu0
    %2696 = vmatpush.bf16.msra.mxu0 %v2648
    %2697 = vmatpush.bf16.msra.mxu0 %v2644
    %2698 = vmatpush.bf16.msra.mxu0 %v2640
    %2699 = vmatpush.bf16.msra.mxu0 %v2636
    %2700 = vmatpush.bf16.msra.mxu0 %v2632
    %2701 = vmatpush.bf16.msra.mxu0 %v2628
    %2702 = vmatpush.bf16.msra.mxu0 %v2624
    %2703 = vmatpush.bf16.msra.mxu0 %v2620
    %2704 = vmatmul.bf16.gmra.mxu0 %v2490
    %v2705 = vpop.f32.mrf.mxu0
    %v2706 = vadd.f32 0.0, %v2705
    %v2707 = vpop.f32.mrf.mxu0
    %2708 = vdwg.mxu0
    %2709 = vmatpush.bf16.msra.mxu0 %v2649
    %2710 = vmatpush.bf16.msra.mxu0 %v2645
    %2711 = vmatpush.bf16.msra.mxu0 %v2641
    %2712 = vmatpush.bf16.msra.mxu0 %v2637
    %2713 = vmatpush.bf16.msra.mxu0 %v2633
    %2714 = vmatpush.bf16.msra.mxu0 %v2629
    %2715 = vmatpush.bf16.msra.mxu0 %v2625
    %2716 = vmatpush.bf16.msra.mxu0 %v2621
    %2717 = vmatmul.bf16.gmra.mxu0 %v2490
    %v2718 = vpop.f32.mrf.mxu0
    %v2719 = vadd.f32 0.0, %v2718
    %v2720 = vpop.f32.mrf.mxu0
    %2721 = vdwg.mxu0
    %2722 = vmatpush.bf16.msra.mxu0 %v2650
    %2723 = vmatpush.bf16.msra.mxu0 %v2646
    %2724 = vmatpush.bf16.msra.mxu0 %v2642
    %2725 = vmatpush.bf16.msra.mxu0 %v2638
    %2726 = vmatpush.bf16.msra.mxu0 %v2634
    %2727 = vmatpush.bf16.msra.mxu0 %v2630
    %2728 = vmatpush.bf16.msra.mxu0 %v2626
    %2729 = vmatpush.bf16.msra.mxu0 %v2622
    %2730 = vmatmul.bf16.gmra.mxu0 %v2490
    %v2731 = vpop.f32.mrf.mxu0
    %v2732 = vadd.f32 0.0, %v2731
    %v2733 = vpop.f32.mrf.mxu0
    %2734 = vdwg.mxu0
    %v2735 = vpack.c.bf16 %v2488, %v2488
    %v2736 = vld [vmem:[%s6] sm:$0xff]
    %v2737 = vld [vmem:[%s6 + $0x8] sm:$0xff]
    %v2738 = vld [vmem:[%s6 + $0x10] sm:$0xff]
    %v2739 = vld [vmem:[%s6 + $0x18] sm:$0xff]
    %v2740 = vld [vmem:[%s6 + $0x20] sm:$0xff]
    %v2741 = vld [vmem:[%s6 + $0x28] sm:$0xff]
    %v2742 = vld [vmem:[%s6 + $0x30] sm:$0xff]
    %v2743 = vld [vmem:[%s6 + $0x38] sm:$0xff]
    %v2744 = vld [vmem:[%s6 + $0x40] sm:$0xff]
    %v2745 = vld [vmem:[%s6 + $0x48] sm:$0xff]
    %v2746 = vld [vmem:[%s6 + $0x50] sm:$0xff]
    %v2747 = vld [vmem:[%s6 + $0x58] sm:$0xff]
    %v2748 = vld [vmem:[%s6 + $0x60] sm:$0xff]
    %v2749 = vld [vmem:[%s6 + $0x68] sm:$0xff]
    %v2750 = vld [vmem:[%s6 + $0x70] sm:$0xff]
    %v2751 = vld [vmem:[%s6 + $0x78] sm:$0xff]
    %v2752 = vld [vmem:[%s6 + $0x80] sm:$0xff]
    %v2753 = vld [vmem:[%s6 + $0x88] sm:$0xff]
    %v2754 = vld [vmem:[%s6 + $0x90] sm:$0xff]
    %v2755 = vld [vmem:[%s6 + $0x98] sm:$0xff]
    %v2756 = vld [vmem:[%s6 + $0xa0] sm:$0xff]
    %v2757 = vld [vmem:[%s6 + $0xa8] sm:$0xff]
    %v2758 = vld [vmem:[%s6 + $0xb0] sm:$0xff]
    %v2759 = vld [vmem:[%s6 + $0xb8] sm:$0xff]
    %v2760 = vld [vmem:[%s6 + $0xc0] sm:$0xff]
    %v2761 = vld [vmem:[%s6 + $0xc8] sm:$0xff]
    %v2762 = vld [vmem:[%s6 + $0xd0] sm:$0xff]
    %v2763 = vld [vmem:[%s6 + $0xd8] sm:$0xff]
    %v2764 = vld [vmem:[%s6 + $0xe0] sm:$0xff]
    %v2765 = vld [vmem:[%s6 + $0xe8] sm:$0xff]
    %v2766 = vld [vmem:[%s6 + $0xf0] sm:$0xff]
    %v2767 = vld [vmem:[%s6 + $0xf8] sm:$0xff]
    %v2800 = vunpack.c.l.b16 %v2736
    %v2801 = vunpack.c.h.b16 %v2736
    %v2802 = vunpack.c.l.b16 %v2737
    %v2803 = vunpack.c.h.b16 %v2737
    %v2804 = vunpack.c.l.b16 %v2738
    %v2805 = vunpack.c.h.b16 %v2738
    %v2806 = vunpack.c.l.b16 %v2739
    %v2807 = vunpack.c.h.b16 %v2739
    %v2808 = vunpack.c.l.b16 %v2740
    %v2809 = vunpack.c.h.b16 %v2740
    %v2810 = vunpack.c.l.b16 %v2741
    %v2811 = vunpack.c.h.b16 %v2741
    %v2812 = vunpack.c.l.b16 %v2742
    %v2813 = vunpack.c.h.b16 %v2742
    %v2814 = vunpack.c.l.b16 %v2743
    %v2815 = vunpack.c.h.b16 %v2743
    %v2816 = vunpack.c.l.b16 %v2744
    %v2817 = vunpack.c.h.b16 %v2744
    %v2818 = vunpack.c.l.b16 %v2745
    %v2819 = vunpack.c.h.b16 %v2745
    %v2820 = vunpack.c.l.b16 %v2746
    %v2821 = vunpack.c.h.b16 %v2746
    %v2822 = vunpack.c.l.b16 %v2747
    %v2823 = vunpack.c.h.b16 %v2747
    %v2824 = vunpack.c.l.b16 %v2748
    %v2825 = vunpack.c.h.b16 %v2748
    %v2826 = vunpack.c.l.b16 %v2749
    %v2827 = vunpack.c.h.b16 %v2749
    %v2828 = vunpack.c.l.b16 %v2750
    %v2829 = vunpack.c.h.b16 %v2750
    %v2830 = vunpack.c.l.b16 %v2751
    %v2831 = vunpack.c.h.b16 %v2751
    %v2832 = vunpack.c.l.b16 %v2752
    %v2833 = vunpack.c.h.b16 %v2752
    %v2834 = vunpack.c.l.b16 %v2753
    %v2835 = vunpack.c.h.b16 %v2753
    %v2836 = vunpack.c.l.b16 %v2754
    %v2837 = vunpack.c.h.b16 %v2754
    %v2838 = vunpack.c.l.b16 %v2755
    %v2839 = vunpack.c.h.b16 %v2755
    %v2840 = vunpack.c.l.b16 %v2756
    %v2841 = vunpack.c.h.b16 %v2756
    %v2842 = vunpack.c.l.b16 %v2757
    %v2843 = vunpack.c.h.b16 %v2757
    %v2844 = vunpack.c.l.b16 %v2758
    %v2845 = vunpack.c.h.b16 %v2758
    %v2846 = vunpack.c.l.b16 %v2759
    %v2847 = vunpack.c.h.b16 %v2759
    %v2848 = vunpack.c.l.b16 %v2760
    %v2849 = vunpack.c.h.b16 %v2760
    %v2850 = vunpack.c.l.b16 %v2761
    %v2851 = vunpack.c.h.b16 %v2761
    %v2852 = vunpack.c.l.b16 %v2762
    %v2853 = vunpack.c.h.b16 %v2762
    %v2854 = vunpack.c.l.b16 %v2763
    %v2855 = vunpack.c.h.b16 %v2763
    %v2856 = vunpack.c.l.b16 %v2764
    %v2857 = vunpack.c.h.b16 %v2764
    %v2858 = vunpack.c.l.b16 %v2765
    %v2859 = vunpack.c.h.b16 %v2765
    %v2860 = vunpack.c.l.b16 %v2766
    %v2861 = vunpack.c.h.b16 %v2766
    %v2862 = vunpack.c.l.b16 %v2767
    %v2863 = vunpack.c.h.b16 %v2767
    %v2864 = vpack.c.b16 %v2804, %v2800
    %v2865 = vpack.c.b16 %v2805, %v2801
    %v2866 = vpack.c.b16 %v2806, %v2802
    %v2867 = vpack.c.b16 %v2807, %v2803
    %v2868 = vpack.c.b16 %v2812, %v2808
    %v2869 = vpack.c.b16 %v2813, %v2809
    %v2870 = vpack.c.b16 %v2814, %v2810
    %v2871 = vpack.c.b16 %v2815, %v2811
    %v2872 = vpack.c.b16 %v2820, %v2816
    %v2873 = vpack.c.b16 %v2821, %v2817
    %v2874 = vpack.c.b16 %v2822, %v2818
    %v2875 = vpack.c.b16 %v2823, %v2819
    %v2876 = vpack.c.b16 %v2828, %v2824
    %v2877 = vpack.c.b16 %v2829, %v2825
    %v2878 = vpack.c.b16 %v2830, %v2826
    %v2879 = vpack.c.b16 %v2831, %v2827
    %v2880 = vpack.c.b16 %v2836, %v2832
    %v2881 = vpack.c.b16 %v2837, %v2833
    %v2882 = vpack.c.b16 %v2838, %v2834
    %v2883 = vpack.c.b16 %v2839, %v2835
    %v2884 = vpack.c.b16 %v2844, %v2840
    %v2885 = vpack.c.b16 %v2845, %v2841
    %v2886 = vpack.c.b16 %v2846, %v2842
    %v2887 = vpack.c.b16 %v2847, %v2843
    %v2888 = vpack.c.b16 %v2852, %v2848
    %v2889 = vpack.c.b16 %v2853, %v2849
    %v2890 = vpack.c.b16 %v2854, %v2850
    %v2891 = vpack.c.b16 %v2855, %v2851
    %v2892 = vpack.c.b16 %v2860, %v2856
    %v2893 = vpack.c.b16 %v2861, %v2857
    %v2894 = vpack.c.b16 %v2862, %v2858
    %v2895 = vpack.c.b16 %v2863, %v2859
    %2928 = vmatpush.bf16.msra.mxu0 %v2892
    %2929 = vmatpush.bf16.msra.mxu0 %v2888
    %2930 = vmatpush.bf16.msra.mxu0 %v2884
    %2931 = vmatpush.bf16.msra.mxu0 %v2880
    %2932 = vmatpush.bf16.msra.mxu0 %v2876
    %2933 = vmatpush.bf16.msra.mxu0 %v2872
    %2934 = vmatpush.bf16.msra.mxu0 %v2868
    %2935 = vmatpush.bf16.msra.mxu0 %v2864
    %2936 = vmatmul.bf16.gmra.mxu0 %v2735
    %v2937 = vpop.f32.mrf.mxu0
    %v2938 = vadd.f32 0.0, %v2937
    %v2939 = vpop.f32.mrf.mxu0
    %2940 = vdwg.mxu0
    %2941 = vmatpush.bf16.msra.mxu0 %v2893
    %2942 = vmatpush.bf16.msra.mxu0 %v2889
    %2943 = vmatpush.bf16.msra.mxu0 %v2885
    %2944 = vmatpush.bf16.msra.mxu0 %v2881
    %2945 = vmatpush.bf16.msra.mxu0 %v2877
    %2946 = vmatpush.bf16.msra.mxu0 %v2873
    %2947 = vmatpush.bf16.msra.mxu0 %v2869
    %2948 = vmatpush.bf16.msra.mxu0 %v2865
    %2949 = vmatmul.bf16.gmra.mxu0 %v2735
    %v2950 = vpop.f32.mrf.mxu0
    %v2951 = vadd.f32 0.0, %v2950
    %v2952 = vpop.f32.mrf.mxu0
    %2953 = vdwg.mxu0
    %2954 = vmatpush.bf16.msra.mxu0 %v2894
    %2955 = vmatpush.bf16.msra.mxu0 %v2890
    %2956 = vmatpush.bf16.msra.mxu0 %v2886
    %2957 = vmatpush.bf16.msra.mxu0 %v2882
    %2958 = vmatpush.bf16.msra.mxu0 %v2878
    %2959 = vmatpush.bf16.msra.mxu0 %v2874
    %2960 = vmatpush.bf16.msra.mxu0 %v2870
    %2961 = vmatpush.bf16.msra.mxu0 %v2866
    %2962 = vmatmul.bf16.gmra.mxu0 %v2735
    %v2963 = vpop.f32.mrf.mxu0
    %v2964 = vadd.f32 0.0, %v2963
    %v2965 = vpop.f32.mrf.mxu0
    %2966 = vdwg.mxu0
    %2967 = vmatpush.bf16.msra.mxu0 %v2895
    %2968 = vmatpush.bf16.msra.mxu0 %v2891
    %2969 = vmatpush.bf16.msra.mxu0 %v2887
    %2970 = vmatpush.bf16.msra.mxu0 %v2883
    %2971 = vmatpush.bf16.msra.mxu0 %v2879
    %2972 = vmatpush.bf16.msra.mxu0 %v2875
    %2973 = vmatpush.bf16.msra.mxu0 %v2871
    %2974 = vmatpush.bf16.msra.mxu0 %v2867
    %2975 = vmatmul.bf16.gmra.mxu0 %v2735
    %v2976 = vpop.f32.mrf.mxu0
    %v2977 = vadd.f32 0.0, %v2976
    %v2978 = vpop.f32.mrf.mxu0
    %2979 = vdwg.mxu0
    %s2980 = scalar_lea.vmem [#allocation2], 192
    %v2981 = vld [vmem:[%s2980] sm:$0xff]
    %v2982 = vld [vmem:[%s2980 + $0x8] sm:$0xff]
    %v2983 = vld [vmem:[%s2980 + $0x10] sm:$0xff]
    %v2984 = vld [vmem:[%s2980 + $0x18] sm:$0xff]
    %s2985 = scalar_lea.vmem [#allocation2], 256
    %v2986 = vld [vmem:[%s2985 + $0x20] sm:$0xff]
    %v2987 = vld [vmem:[%s2985 + $0x28] sm:$0xff]
    %v2988 = vld [vmem:[%s2985 + $0x30] sm:$0xff]
    %v2989 = vld [vmem:[%s2985 + $0x38] sm:$0xff]
    %v2990 = vadd.f32 %v2981, %v2693
    %v2991 = vadd.f32 %v2982, %v2706
    %v2992 = vadd.f32 %v2983, %v2719
    %v2993 = vadd.f32 %v2984, %v2732
    %v2994 = vxor.u32 %v2990, 2147483648
    %v2995 = vmul.f32 %v2994, 1.442695
    %v2996 = vpow.pop %v2995
    %v2997 = vadd.f32 %v2996, 1.0
    %v2998 = vrcp.pop %v2997
    %v2999 = vmul.f32 %v2997, %v2998
    %v3000 = vsub.f32 1.0, %v2999
    %v3001 = vmul.f32 %v2998, %v3000
    %v3002 = vadd.f32 %v2998, %v3001
    %vm3003 = vweird.f32 %v2997
    %vm3004 = vweird.f32 %v2998
    %vm3005 = vmor %vm3003, %vm3004
    %v3006 = vsel %vm3005, %v2998, %v3002
    %v3007 = vand.u32 2147483647, %v2997
    %vm3008 = vcmp.eq.f32.partialorder %v3007, 8.507059e+37
    %v3009 = vand.u32 %v2997, 2147483648
    %v3010 = vor.u32 1.1754944e-38, %v3009
    %v3011 = vsel %vm3008, %v3010, %v3006
    %v3012 = vmul.f32 1.0, %v3011
    %v3013 = vxor.u32 %v2991, 2147483648
    %v3014 = vmul.f32 %v3013, 1.442695
    %v3015 = vpow.pop %v3014
    %v3016 = vadd.f32 %v3015, 1.0
    %v3017 = vrcp.pop %v3016
    %v3018 = vmul.f32 %v3016, %v3017
    %v3019 = vsub.f32 1.0, %v3018
    %v3020 = vmul.f32 %v3017, %v3019
    %v3021 = vadd.f32 %v3017, %v3020
    %vm3022 = vweird.f32 %v3016
    %vm3023 = vweird.f32 %v3017
    %vm3024 = vmor %vm3022, %vm3023
    %v3025 = vsel %vm3024, %v3017, %v3021
    %v3026 = vand.u32 2147483647, %v3016
    %vm3027 = vcmp.eq.f32.partialorder %v3026, 8.507059e+37
    %v3028 = vand.u32 %v3016, 2147483648
    %v3029 = vor.u32 1.1754944e-38, %v3028
    %v3030 = vsel %vm3027, %v3029, %v3025
    %v3031 = vmul.f32 1.0, %v3030
    %v3032 = vtanh.pop %v2992
    %v3033 = vxor.u32 %v2993, 2147483648
    %v3034 = vmul.f32 %v3033, 1.442695
    %v3035 = vpow.pop %v3034
    %v3036 = vadd.f32 %v3035, 1.0
    %v3037 = vrcp.pop %v3036
    %v3038 = vmul.f32 %v3036, %v3037
    %v3039 = vsub.f32 1.0, %v3038
    %v3040 = vmul.f32 %v3037, %v3039
    %v3041 = vadd.f32 %v3037, %v3040
    %vm3042 = vweird.f32 %v3036
    %vm3043 = vweird.f32 %v3037
    %vm3044 = vmor %vm3042, %vm3043
    %v3045 = vsel %vm3044, %v3037, %v3041
    %v3046 = vand.u32 2147483647, %v3036
    %vm3047 = vcmp.eq.f32.partialorder %v3046, 8.507059e+37
    %v3048 = vand.u32 %v3036, 2147483648
    %v3049 = vor.u32 1.1754944e-38, %v3048
    %v3050 = vsel %vm3047, %v3049, %v3045
    %v3051 = vmul.f32 1.0, %v3050
    %v3052 = vmul.f32 %v3031, %v2487
    %v3053 = vmul.f32 %v3012, %v3032
    %v3054 = vadd.f32 %v3052, %v3053
    %v3055 = vtanh.pop %v3054
    %v3056 = vmul.f32 %v3051, %v3055
    %v3057 = vadd.f32 %v2986, %v2938
    %v3058 = vadd.f32 %v2987, %v2951
    %v3059 = vadd.f32 %v2988, %v2964
    %v3060 = vadd.f32 %v2989, %v2977
    %v3061 = vxor.u32 %v3057, 2147483648
    %v3062 = vmul.f32 %v3061, 1.442695
    %v3063 = vpow.pop %v3062
    %v3064 = vadd.f32 %v3063, 1.0
    %v3065 = vrcp.pop %v3064
    %v3066 = vmul.f32 %v3064, %v3065
    %v3067 = vsub.f32 1.0, %v3066
    %v3068 = vmul.f32 %v3065, %v3067
    %v3069 = vadd.f32 %v3065, %v3068
    %vm3070 = vweird.f32 %v3064
    %vm3071 = vweird.f32 %v3065
    %vm3072 = vmor %vm3070, %vm3071
    %v3073 = vsel %vm3072, %v3065, %v3069
    %v3074 = vand.u32 2147483647, %v3064
    %vm3075 = vcmp.eq.f32.partialorder %v3074, 8.507059e+37
    %v3076 = vand.u32 %v3064, 2147483648
    %v3077 = vor.u32 1.1754944e-38, %v3076
    %v3078 = vsel %vm3075, %v3077, %v3073
    %v3079 = vmul.f32 1.0, %v3078
    %v3080 = vxor.u32 %v3058, 2147483648
    %v3081 = vmul.f32 %v3080, 1.442695
    %v3082 = vpow.pop %v3081
    %v3083 = vadd.f32 %v3082, 1.0
    %v3084 = vrcp.pop %v3083
    %v3085 = vmul.f32 %v3083, %v3084
    %v3086 = vsub.f32 1.0, %v3085
    %v3087 = vmul.f32 %v3084, %v3086
    %v3088 = vadd.f32 %v3084, %v3087
    %vm3089 = vweird.f32 %v3083
    %vm3090 = vweird.f32 %v3084
    %vm3091 = vmor %vm3089, %vm3090
    %v3092 = vsel %vm3091, %v3084, %v3088
    %v3093 = vand.u32 2147483647, %v3083
    %vm3094 = vcmp.eq.f32.partialorder %v3093, 8.507059e+37
    %v3095 = vand.u32 %v3083, 2147483648
    %v3096 = vor.u32 1.1754944e-38, %v3095
    %v3097 = vsel %vm3094, %v3096, %v3092
    %v3098 = vmul.f32 1.0, %v3097
    %v3099 = vtanh.pop %v3059
    %v3100 = vxor.u32 %v3060, 2147483648
    %v3101 = vmul.f32 %v3100, 1.442695
    %v3102 = vpow.pop %v3101
    %v3103 = vadd.f32 %v3102, 1.0
    %v3104 = vrcp.pop %v3103
    %v3105 = vmul.f32 %v3103, %v3104
    %v3106 = vsub.f32 1.0, %v3105
    %v3107 = vmul.f32 %v3104, %v3106
    %v3108 = vadd.f32 %v3104, %v3107
    %vm3109 = vweird.f32 %v3103
    %vm3110 = vweird.f32 %v3104
    %vm3111 = vmor %vm3109, %vm3110
    %v3112 = vsel %vm3111, %v3104, %v3108
    %v3113 = vand.u32 2147483647, %v3103
    %vm3114 = vcmp.eq.f32.partialorder %v3113, 8.507059e+37
    %v3115 = vand.u32 %v3103, 2147483648
    %v3116 = vor.u32 1.1754944e-38, %v3115
    %v3117 = vsel %vm3114, %v3116, %v3112
    %v3118 = vmul.f32 1.0, %v3117
    %v3119 = vmul.f32 %v3098, %v2489
    %v3120 = vmul.f32 %v3079, %v3099
    %v3121 = vadd.f32 %v3119, %v3120
    %v3122 = vtanh.pop %v3121
    %v3123 = vmul.f32 %v3118, %v3122
    %vm3124 = vcmp.gt.s32.totalorder %v495, 3
    %vm3125 = vcmp.gt.s32.totalorder %v495, 4
    %v3126 = vsel %vm3124, 1, 0
    %3127 = vset.pattern.permute.xlu0 0
    %3128 = vperm.xlu0 %3127, %v3126
    %v3129 = vpop.permute.xlu0 %3128
    %vm3130 = vcmp.eq.s32.totalorder %v3129, 1
    %v3131 = vsel %vm3130, %v3056, %v2486
    %3132 = vst [vmem:[#allocation3] sm:$0xff] %v3131
    %v3133 = vsel %vm3130, %v3054, %v2487
    %3134 = vst [vmem:[#allocation4] sm:$0xff] %v3133
    %v3135 = vsel %vm3125, 1, 0
    %3136 = vset.pattern.permute.xlu0 0
    %3137 = vperm.xlu0 %3136, %v3135
    %v3138 = vpop.permute.xlu0 %3137
    %vm3139 = vcmp.eq.s32.totalorder %v3138, 1
    %v3140 = vsel %vm3139, %v3123, %v2488
    %3141 = vst [vmem:[#allocation5] sm:$0xff] %v3140
    %v3142 = vsel %vm3139, %v3121, %v2489
    %3143 = vst [vmem:[#allocation6] sm:$0xff] %v3142
    %v3144 = vsel %vm3130, %v3056, 0.0
    %s3145 = scalar_lea.vmem %s8, 48
    %3146 = vst [vmem:[%s3145] sm:$0xff] %v3144
    %v3147 = vsel %vm3139, %v3123, 0.0
    %s3148 = scalar_lea.vmem %s8, 64
    %3149 = vst [vmem:[%s3148 + $0x8] sm:$0xff] %v3147
    %v3150 = vld [vmem:[#allocation3] sm:$0xff]
    %v3151 = vld [vmem:[#allocation4] sm:$0xff]
    %v3152 = vld [vmem:[#allocation5] sm:$0xff]
    %v3153 = vld [vmem:[#allocation6] sm:$0xff]
    %v3154 = vpack.c.bf16 %v3150, %v3150
    %v3155 = vld [vmem:[%s5] sm:$0xff]
    %v3156 = vld [vmem:[%s5 + $0x8] sm:$0xff]
    %v3157 = vld [vmem:[%s5 + $0x10] sm:$0xff]
    %v3158 = vld [vmem:[%s5 + $0x18] sm:$0xff]
    %v3159 = vld [vmem:[%s5 + $0x20] sm:$0xff]
    %v3160 = vld [vmem:[%s5 + $0x28] sm:$0xff]
    %v3161 = vld [vmem:[%s5 + $0x30] sm:$0xff]
    %v3162 = vld [vmem:[%s5 + $0x38] sm:$0xff]
    %v3163 = vld [vmem:[%s5 + $0x40] sm:$0xff]
    %v3164 = vld [vmem:[%s5 + $0x48] sm:$0xff]
    %v3165 = vld [vmem:[%s5 + $0x50] sm:$0xff]
    %v3166 = vld [vmem:[%s5 + $0x58] sm:$0xff]
    %v3167 = vld [vmem:[%s5 + $0x60] sm:$0xff]
    %v3168 = vld [vmem:[%s5 + $0x68] sm:$0xff]
    %v3169 = vld [vmem:[%s5 + $0x70] sm:$0xff]
    %v3170 = vld [vmem:[%s5 + $0x78] sm:$0xff]
    %v3171 = vld [vmem:[%s5 + $0x80] sm:$0xff]
    %v3172 = vld [vmem:[%s5 + $0x88] sm:$0xff]
    %v3173 = vld [vmem:[%s5 + $0x90] sm:$0xff]
    %v3174 = vld [vmem:[%s5 + $0x98] sm:$0xff]
    %v3175 = vld [vmem:[%s5 + $0xa0] sm:$0xff]
    %v3176 = vld [vmem:[%s5 + $0xa8] sm:$0xff]
    %v3177 = vld [vmem:[%s5 + $0xb0] sm:$0xff]
    %v3178 = vld [vmem:[%s5 + $0xb8] sm:$0xff]
    %v3179 = vld [vmem:[%s5 + $0xc0] sm:$0xff]
    %v3180 = vld [vmem:[%s5 + $0xc8] sm:$0xff]
    %v3181 = vld [vmem:[%s5 + $0xd0] sm:$0xff]
    %v3182 = vld [vmem:[%s5 + $0xd8] sm:$0xff]
    %v3183 = vld [vmem:[%s5 + $0xe0] sm:$0xff]
    %v3184 = vld [vmem:[%s5 + $0xe8] sm:$0xff]
    %v3185 = vld [vmem:[%s5 + $0xf0] sm:$0xff]
    %v3186 = vld [vmem:[%s5 + $0xf8] sm:$0xff]
    %v3219 = vunpack.c.l.b16 %v3155
    %v3220 = vunpack.c.h.b16 %v3155
    %v3221 = vunpack.c.l.b16 %v3156
    %v3222 = vunpack.c.h.b16 %v3156
    %v3223 = vunpack.c.l.b16 %v3157
    %v3224 = vunpack.c.h.b16 %v3157
    %v3225 = vunpack.c.l.b16 %v3158
    %v3226 = vunpack.c.h.b16 %v3158
    %v3227 = vunpack.c.l.b16 %v3159
    %v3228 = vunpack.c.h.b16 %v3159
    %v3229 = vunpack.c.l.b16 %v3160
    %v3230 = vunpack.c.h.b16 %v3160
    %v3231 = vunpack.c.l.b16 %v3161
    %v3232 = vunpack.c.h.b16 %v3161
    %v3233 = vunpack.c.l.b16 %v3162
    %v3234 = vunpack.c.h.b16 %v3162
    %v3235 = vunpack.c.l.b16 %v3163
    %v3236 = vunpack.c.h.b16 %v3163
    %v3237 = vunpack.c.l.b16 %v3164
    %v3238 = vunpack.c.h.b16 %v3164
    %v3239 = vunpack.c.l.b16 %v3165
    %v3240 = vunpack.c.h.b16 %v3165
    %v3241 = vunpack.c.l.b16 %v3166
    %v3242 = vunpack.c.h.b16 %v3166
    %v3243 = vunpack.c.l.b16 %v3167
    %v3244 = vunpack.c.h.b16 %v3167
    %v3245 = vunpack.c.l.b16 %v3168
    %v3246 = vunpack.c.h.b16 %v3168
    %v3247 = vunpack.c.l.b16 %v3169
    %v3248 = vunpack.c.h.b16 %v3169
    %v3249 = vunpack.c.l.b16 %v3170
    %v3250 = vunpack.c.h.b16 %v3170
    %v3251 = vunpack.c.l.b16 %v3171
    %v3252 = vunpack.c.h.b16 %v3171
    %v3253 = vunpack.c.l.b16 %v3172
    %v3254 = vunpack.c.h.b16 %v3172
    %v3255 = vunpack.c.l.b16 %v3173
    %v3256 = vunpack.c.h.b16 %v3173
    %v3257 = vunpack.c.l.b16 %v3174
    %v3258 = vunpack.c.h.b16 %v3174
    %v3259 = vunpack.c.l.b16 %v3175
    %v3260 = vunpack.c.h.b16 %v3175
    %v3261 = vunpack.c.l.b16 %v3176
    %v3262 = vunpack.c.h.b16 %v3176
    %v3263 = vunpack.c.l.b16 %v3177
    %v3264 = vunpack.c.h.b16 %v3177
    %v3265 = vunpack.c.l.b16 %v3178
    %v3266 = vunpack.c.h.b16 %v3178
    %v3267 = vunpack.c.l.b16 %v3179
    %v3268 = vunpack.c.h.b16 %v3179
    %v3269 = vunpack.c.l.b16 %v3180
    %v3270 = vunpack.c.h.b16 %v3180
    %v3271 = vunpack.c.l.b16 %v3181
    %v3272 = vunpack.c.h.b16 %v3181
    %v3273 = vunpack.c.l.b16 %v3182
    %v3274 = vunpack.c.h.b16 %v3182
    %v3275 = vunpack.c.l.b16 %v3183
    %v3276 = vunpack.c.h.b16 %v3183
    %v3277 = vunpack.c.l.b16 %v3184
    %v3278 = vunpack.c.h.b16 %v3184
    %v3279 = vunpack.c.l.b16 %v3185
    %v3280 = vunpack.c.h.b16 %v3185
    %v3281 = vunpack.c.l.b16 %v3186
    %v3282 = vunpack.c.h.b16 %v3186
    %v3283 = vpack.c.b16 %v3223, %v3219
    %v3284 = vpack.c.b16 %v3224, %v3220
    %v3285 = vpack.c.b16 %v3225, %v3221
    %v3286 = vpack.c.b16 %v3226, %v3222
    %v3287 = vpack.c.b16 %v3231, %v3227
    %v3288 = vpack.c.b16 %v3232, %v3228
    %v3289 = vpack.c.b16 %v3233, %v3229
    %v3290 = vpack.c.b16 %v3234, %v3230
    %v3291 = vpack.c.b16 %v3239, %v3235
    %v3292 = vpack.c.b16 %v3240, %v3236
    %v3293 = vpack.c.b16 %v3241, %v3237
    %v3294 = vpack.c.b16 %v3242, %v3238
    %v3295 = vpack.c.b16 %v3247, %v3243
    %v3296 = vpack.c.b16 %v3248, %v3244
    %v3297 = vpack.c.b16 %v3249, %v3245
    %v3298 = vpack.c.b16 %v3250, %v3246
    %v3299 = vpack.c.b16 %v3255, %v3251
    %v3300 = vpack.c.b16 %v3256, %v3252
    %v3301 = vpack.c.b16 %v3257, %v3253
    %v3302 = vpack.c.b16 %v3258, %v3254
    %v3303 = vpack.c.b16 %v3263, %v3259
    %v3304 = vpack.c.b16 %v3264, %v3260
    %v3305 = vpack.c.b16 %v3265, %v3261
    %v3306 = vpack.c.b16 %v3266, %v3262
    %v3307 = vpack.c.b16 %v3271, %v3267
    %v3308 = vpack.c.b16 %v3272, %v3268
    %v3309 = vpack.c.b16 %v3273, %v3269
    %v3310 = vpack.c.b16 %v3274, %v3270
    %v3311 = vpack.c.b16 %v3279, %v3275
    %v3312 = vpack.c.b16 %v3280, %v3276
    %v3313 = vpack.c.b16 %v3281, %v3277
    %v3314 = vpack.c.b16 %v3282, %v3278
    %3347 = vmatpush.bf16.msra.mxu0 %v3311
    %3348 = vmatpush.bf16.msra.mxu0 %v3307
    %3349 = vmatpush.bf16.msra.mxu0 %v3303
    %3350 = vmatpush.bf16.msra.mxu0 %v3299
    %3351 = vmatpush.bf16.msra.mxu0 %v3295
    %3352 = vmatpush.bf16.msra.mxu0 %v3291
    %3353 = vmatpush.bf16.msra.mxu0 %v3287
    %3354 = vmatpush.bf16.msra.mxu0 %v3283
    %3355 = vmatmul.bf16.gmra.mxu0 %v3154
    %v3356 = vpop.f32.mrf.mxu0
    %v3357 = vadd.f32 0.0, %v3356
    %v3358 = vpop.f32.mrf.mxu0
    %3359 = vdwg.mxu0
    %3360 = vmatpush.bf16.msra.mxu0 %v3312
    %3361 = vmatpush.bf16.msra.mxu0 %v3308
    %3362 = vmatpush.bf16.msra.mxu0 %v3304
    %3363 = vmatpush.bf16.msra.mxu0 %v3300
    %3364 = vmatpush.bf16.msra.mxu0 %v3296
    %3365 = vmatpush.bf16.msra.mxu0 %v3292
    %3366 = vmatpush.bf16.msra.mxu0 %v3288
    %3367 = vmatpush.bf16.msra.mxu0 %v3284
    %3368 = vmatmul.bf16.gmra.mxu0 %v3154
    %v3369 = vpop.f32.mrf.mxu0
    %v3370 = vadd.f32 0.0, %v3369
    %v3371 = vpop.f32.mrf.mxu0
    %3372 = vdwg.mxu0
    %3373 = vmatpush.bf16.msra.mxu0 %v3313
    %3374 = vmatpush.bf16.msra.mxu0 %v3309
    %3375 = vmatpush.bf16.msra.mxu0 %v3305
    %3376 = vmatpush.bf16.msra.mxu0 %v3301
    %3377 = vmatpush.bf16.msra.mxu0 %v3297
    %3378 = vmatpush.bf16.msra.mxu0 %v3293
    %3379 = vmatpush.bf16.msra.mxu0 %v3289
    %3380 = vmatpush.bf16.msra.mxu0 %v3285
    %3381 = vmatmul.bf16.gmra.mxu0 %v3154
    %v3382 = vpop.f32.mrf.mxu0
    %v3383 = vadd.f32 0.0, %v3382
    %v3384 = vpop.f32.mrf.mxu0
    %3385 = vdwg.mxu0
    %3386 = vmatpush.bf16.msra.mxu0 %v3314
    %3387 = vmatpush.bf16.msra.mxu0 %v3310
    %3388 = vmatpush.bf16.msra.mxu0 %v3306
    %3389 = vmatpush.bf16.msra.mxu0 %v3302
    %3390 = vmatpush.bf16.msra.mxu0 %v3298
    %3391 = vmatpush.bf16.msra.mxu0 %v3294
    %3392 = vmatpush.bf16.msra.mxu0 %v3290
    %3393 = vmatpush.bf16.msra.mxu0 %v3286
    %3394 = vmatmul.bf16.gmra.mxu0 %v3154
    %v3395 = vpop.f32.mrf.mxu0
    %v3396 = vadd.f32 0.0, %v3395
    %v3397 = vpop.f32.mrf.mxu0
    %3398 = vdwg.mxu0
    %v3399 = vpack.c.bf16 %v3152, %v3152
    %v3400 = vld [vmem:[%s6] sm:$0xff]
    %v3401 = vld [vmem:[%s6 + $0x8] sm:$0xff]
    %v3402 = vld [vmem:[%s6 + $0x10] sm:$0xff]
    %v3403 = vld [vmem:[%s6 + $0x18] sm:$0xff]
    %v3404 = vld [vmem:[%s6 + $0x20] sm:$0xff]
    %v3405 = vld [vmem:[%s6 + $0x28] sm:$0xff]
    %v3406 = vld [vmem:[%s6 + $0x30] sm:$0xff]
    %v3407 = vld [vmem:[%s6 + $0x38] sm:$0xff]
    %v3408 = vld [vmem:[%s6 + $0x40] sm:$0xff]
    %v3409 = vld [vmem:[%s6 + $0x48] sm:$0xff]
    %v3410 = vld [vmem:[%s6 + $0x50] sm:$0xff]
    %v3411 = vld [vmem:[%s6 + $0x58] sm:$0xff]
    %v3412 = vld [vmem:[%s6 + $0x60] sm:$0xff]
    %v3413 = vld [vmem:[%s6 + $0x68] sm:$0xff]
    %v3414 = vld [vmem:[%s6 + $0x70] sm:$0xff]
    %v3415 = vld [vmem:[%s6 + $0x78] sm:$0xff]
    %v3416 = vld [vmem:[%s6 + $0x80] sm:$0xff]
    %v3417 = vld [vmem:[%s6 + $0x88] sm:$0xff]
    %v3418 = vld [vmem:[%s6 + $0x90] sm:$0xff]
    %v3419 = vld [vmem:[%s6 + $0x98] sm:$0xff]
    %v3420 = vld [vmem:[%s6 + $0xa0] sm:$0xff]
    %v3421 = vld [vmem:[%s6 + $0xa8] sm:$0xff]
    %v3422 = vld [vmem:[%s6 + $0xb0] sm:$0xff]
    %v3423 = vld [vmem:[%s6 + $0xb8] sm:$0xff]
    %v3424 = vld [vmem:[%s6 + $0xc0] sm:$0xff]
    %v3425 = vld [vmem:[%s6 + $0xc8] sm:$0xff]
    %v3426 = vld [vmem:[%s6 + $0xd0] sm:$0xff]
    %v3427 = vld [vmem:[%s6 + $0xd8] sm:$0xff]
    %v3428 = vld [vmem:[%s6 + $0xe0] sm:$0xff]
    %v3429 = vld [vmem:[%s6 + $0xe8] sm:$0xff]
    %v3430 = vld [vmem:[%s6 + $0xf0] sm:$0xff]
    %v3431 = vld [vmem:[%s6 + $0xf8] sm:$0xff]
    %v3464 = vunpack.c.l.b16 %v3400
    %v3465 = vunpack.c.h.b16 %v3400
    %v3466 = vunpack.c.l.b16 %v3401
    %v3467 = vunpack.c.h.b16 %v3401
    %v3468 = vunpack.c.l.b16 %v3402
    %v3469 = vunpack.c.h.b16 %v3402
    %v3470 = vunpack.c.l.b16 %v3403
    %v3471 = vunpack.c.h.b16 %v3403
    %v3472 = vunpack.c.l.b16 %v3404
    %v3473 = vunpack.c.h.b16 %v3404
    %v3474 = vunpack.c.l.b16 %v3405
    %v3475 = vunpack.c.h.b16 %v3405
    %v3476 = vunpack.c.l.b16 %v3406
    %v3477 = vunpack.c.h.b16 %v3406
    %v3478 = vunpack.c.l.b16 %v3407
    %v3479 = vunpack.c.h.b16 %v3407
    %v3480 = vunpack.c.l.b16 %v3408
    %v3481 = vunpack.c.h.b16 %v3408
    %v3482 = vunpack.c.l.b16 %v3409
    %v3483 = vunpack.c.h.b16 %v3409
    %v3484 = vunpack.c.l.b16 %v3410
    %v3485 = vunpack.c.h.b16 %v3410
    %v3486 = vunpack.c.l.b16 %v3411
    %v3487 = vunpack.c.h.b16 %v3411
    %v3488 = vunpack.c.l.b16 %v3412
    %v3489 = vunpack.c.h.b16 %v3412
    %v3490 = vunpack.c.l.b16 %v3413
    %v3491 = vunpack.c.h.b16 %v3413
    %v3492 = vunpack.c.l.b16 %v3414
    %v3493 = vunpack.c.h.b16 %v3414
    %v3494 = vunpack.c.l.b16 %v3415
    %v3495 = vunpack.c.h.b16 %v3415
    %v3496 = vunpack.c.l.b16 %v3416
    %v3497 = vunpack.c.h.b16 %v3416
    %v3498 = vunpack.c.l.b16 %v3417
    %v3499 = vunpack.c.h.b16 %v3417
    %v3500 = vunpack.c.l.b16 %v3418
    %v3501 = vunpack.c.h.b16 %v3418
    %v3502 = vunpack.c.l.b16 %v3419
    %v3503 = vunpack.c.h.b16 %v3419
    %v3504 = vunpack.c.l.b16 %v3420
    %v3505 = vunpack.c.h.b16 %v3420
    %v3506 = vunpack.c.l.b16 %v3421
    %v3507 = vunpack.c.h.b16 %v3421
    %v3508 = vunpack.c.l.b16 %v3422
    %v3509 = vunpack.c.h.b16 %v3422
    %v3510 = vunpack.c.l.b16 %v3423
    %v3511 = vunpack.c.h.b16 %v3423
    %v3512 = vunpack.c.l.b16 %v3424
    %v3513 = vunpack.c.h.b16 %v3424
    %v3514 = vunpack.c.l.b16 %v3425
    %v3515 = vunpack.c.h.b16 %v3425
    %v3516 = vunpack.c.l.b16 %v3426
    %v3517 = vunpack.c.h.b16 %v3426
    %v3518 = vunpack.c.l.b16 %v3427
    %v3519 = vunpack.c.h.b16 %v3427
    %v3520 = vunpack.c.l.b16 %v3428
    %v3521 = vunpack.c.h.b16 %v3428
    %v3522 = vunpack.c.l.b16 %v3429
    %v3523 = vunpack.c.h.b16 %v3429
    %v3524 = vunpack.c.l.b16 %v3430
    %v3525 = vunpack.c.h.b16 %v3430
    %v3526 = vunpack.c.l.b16 %v3431
    %v3527 = vunpack.c.h.b16 %v3431
    %v3528 = vpack.c.b16 %v3468, %v3464
    %v3529 = vpack.c.b16 %v3469, %v3465
    %v3530 = vpack.c.b16 %v3470, %v3466
    %v3531 = vpack.c.b16 %v3471, %v3467
    %v3532 = vpack.c.b16 %v3476, %v3472
    %v3533 = vpack.c.b16 %v3477, %v3473
    %v3534 = vpack.c.b16 %v3478, %v3474
    %v3535 = vpack.c.b16 %v3479, %v3475
    %v3536 = vpack.c.b16 %v3484, %v3480
    %v3537 = vpack.c.b16 %v3485, %v3481
    %v3538 = vpack.c.b16 %v3486, %v3482
    %v3539 = vpack.c.b16 %v3487, %v3483
    %v3540 = vpack.c.b16 %v3492, %v3488
    %v3541 = vpack.c.b16 %v3493, %v3489
    %v3542 = vpack.c.b16 %v3494, %v3490
    %v3543 = vpack.c.b16 %v3495, %v3491
    %v3544 = vpack.c.b16 %v3500, %v3496
    %v3545 = vpack.c.b16 %v3501, %v3497
    %v3546 = vpack.c.b16 %v3502, %v3498
    %v3547 = vpack.c.b16 %v3503, %v3499
    %v3548 = vpack.c.b16 %v3508, %v3504
    %v3549 = vpack.c.b16 %v3509, %v3505
    %v3550 = vpack.c.b16 %v3510, %v3506
    %v3551 = vpack.c.b16 %v3511, %v3507
    %v3552 = vpack.c.b16 %v3516, %v3512
    %v3553 = vpack.c.b16 %v3517, %v3513
    %v3554 = vpack.c.b16 %v3518, %v3514
    %v3555 = vpack.c.b16 %v3519, %v3515
    %v3556 = vpack.c.b16 %v3524, %v3520
    %v3557 = vpack.c.b16 %v3525, %v3521
    %v3558 = vpack.c.b16 %v3526, %v3522
    %v3559 = vpack.c.b16 %v3527, %v3523
    %3592 = vmatpush.bf16.msra.mxu0 %v3556
    %3593 = vmatpush.bf16.msra.mxu0 %v3552
    %3594 = vmatpush.bf16.msra.mxu0 %v3548
    %3595 = vmatpush.bf16.msra.mxu0 %v3544
    %3596 = vmatpush.bf16.msra.mxu0 %v3540
    %3597 = vmatpush.bf16.msra.mxu0 %v3536
    %3598 = vmatpush.bf16.msra.mxu0 %v3532
    %3599 = vmatpush.bf16.msra.mxu0 %v3528
    %3600 = vmatmul.bf16.gmra.mxu0 %v3399
    %v3601 = vpop.f32.mrf.mxu0
    %v3602 = vadd.f32 0.0, %v3601
    %v3603 = vpop.f32.mrf.mxu0
    %3604 = vdwg.mxu0
    %3605 = vmatpush.bf16.msra.mxu0 %v3557
    %3606 = vmatpush.bf16.msra.mxu0 %v3553
    %3607 = vmatpush.bf16.msra.mxu0 %v3549
    %3608 = vmatpush.bf16.msra.mxu0 %v3545
    %3609 = vmatpush.bf16.msra.mxu0 %v3541
    %3610 = vmatpush.bf16.msra.mxu0 %v3537
    %3611 = vmatpush.bf16.msra.mxu0 %v3533
    %3612 = vmatpush.bf16.msra.mxu0 %v3529
    %3613 = vmatmul.bf16.gmra.mxu0 %v3399
    %v3614 = vpop.f32.mrf.mxu0
    %v3615 = vadd.f32 0.0, %v3614
    %v3616 = vpop.f32.mrf.mxu0
    %3617 = vdwg.mxu0
    %3618 = vmatpush.bf16.msra.mxu0 %v3558
    %3619 = vmatpush.bf16.msra.mxu0 %v3554
    %3620 = vmatpush.bf16.msra.mxu0 %v3550
    %3621 = vmatpush.bf16.msra.mxu0 %v3546
    %3622 = vmatpush.bf16.msra.mxu0 %v3542
    %3623 = vmatpush.bf16.msra.mxu0 %v3538
    %3624 = vmatpush.bf16.msra.mxu0 %v3534
    %3625 = vmatpush.bf16.msra.mxu0 %v3530
    %3626 = vmatmul.bf16.gmra.mxu0 %v3399
    %v3627 = vpop.f32.mrf.mxu0
    %v3628 = vadd.f32 0.0, %v3627
    %v3629 = vpop.f32.mrf.mxu0
    %3630 = vdwg.mxu0
    %3631 = vmatpush.bf16.msra.mxu0 %v3559
    %3632 = vmatpush.bf16.msra.mxu0 %v3555
    %3633 = vmatpush.bf16.msra.mxu0 %v3551
    %3634 = vmatpush.bf16.msra.mxu0 %v3547
    %3635 = vmatpush.bf16.msra.mxu0 %v3543
    %3636 = vmatpush.bf16.msra.mxu0 %v3539
    %3637 = vmatpush.bf16.msra.mxu0 %v3535
    %3638 = vmatpush.bf16.msra.mxu0 %v3531
    %3639 = vmatmul.bf16.gmra.mxu0 %v3399
    %v3640 = vpop.f32.mrf.mxu0
    %v3641 = vadd.f32 0.0, %v3640
    %v3642 = vpop.f32.mrf.mxu0
    %3643 = vdwg.mxu0
    %v3644 = vld [vmem:[%s2985] sm:$0xff]
    %v3645 = vld [vmem:[%s2985 + $0x8] sm:$0xff]
    %v3646 = vld [vmem:[%s2985 + $0x10] sm:$0xff]
    %v3647 = vld [vmem:[%s2985 + $0x18] sm:$0xff]
    %v3648 = vld [vmem:[%s2980 + $0x20] sm:$0xff]
    %v3649 = vld [vmem:[%s2980 + $0x28] sm:$0xff]
    %v3650 = vld [vmem:[%s2980 + $0x30] sm:$0xff]
    %v3651 = vld [vmem:[%s2980 + $0x38] sm:$0xff]
    %v3652 = vadd.f32 %v3644, %v3357
    %v3653 = vadd.f32 %v3645, %v3370
    %v3654 = vadd.f32 %v3646, %v3383
    %v3655 = vadd.f32 %v3647, %v3396
    %v3656 = vxor.u32 %v3652, 2147483648
    %v3657 = vmul.f32 %v3656, 1.442695
    %v3658 = vpow.pop %v3657
    %v3659 = vadd.f32 %v3658, 1.0
    %v3660 = vrcp.pop %v3659
    %v3661 = vmul.f32 %v3659, %v3660
    %v3662 = vsub.f32 1.0, %v3661
    %v3663 = vmul.f32 %v3660, %v3662
    %v3664 = vadd.f32 %v3660, %v3663
    %vm3665 = vweird.f32 %v3659
    %vm3666 = vweird.f32 %v3660
    %vm3667 = vmor %vm3665, %vm3666
    %v3668 = vsel %vm3667, %v3660, %v3664
    %v3669 = vand.u32 2147483647, %v3659
    %vm3670 = vcmp.eq.f32.partialorder %v3669, 8.507059e+37
    %v3671 = vand.u32 %v3659, 2147483648
    %v3672 = vor.u32 1.1754944e-38, %v3671
    %v3673 = vsel %vm3670, %v3672, %v3668
    %v3674 = vmul.f32 1.0, %v3673
    %v3675 = vxor.u32 %v3653, 2147483648
    %v3676 = vmul.f32 %v3675, 1.442695
    %v3677 = vpow.pop %v3676
    %v3678 = vadd.f32 %v3677, 1.0
    %v3679 = vrcp.pop %v3678
    %v3680 = vmul.f32 %v3678, %v3679
    %v3681 = vsub.f32 1.0, %v3680
    %v3682 = vmul.f32 %v3679, %v3681
    %v3683 = vadd.f32 %v3679, %v3682
    %vm3684 = vweird.f32 %v3678
    %vm3685 = vweird.f32 %v3679
    %vm3686 = vmor %vm3684, %vm3685
    %v3687 = vsel %vm3686, %v3679, %v3683
    %v3688 = vand.u32 2147483647, %v3678
    %vm3689 = vcmp.eq.f32.partialorder %v3688, 8.507059e+37
    %v3690 = vand.u32 %v3678, 2147483648
    %v3691 = vor.u32 1.1754944e-38, %v3690
    %v3692 = vsel %vm3689, %v3691, %v3687
    %v3693 = vmul.f32 1.0, %v3692
    %v3694 = vtanh.pop %v3654
    %v3695 = vxor.u32 %v3655, 2147483648
    %v3696 = vmul.f32 %v3695, 1.442695
    %v3697 = vpow.pop %v3696
    %v3698 = vadd.f32 %v3697, 1.0
    %v3699 = vrcp.pop %v3698
    %v3700 = vmul.f32 %v3698, %v3699
    %v3701 = vsub.f32 1.0, %v3700
    %v3702 = vmul.f32 %v3699, %v3701
    %v3703 = vadd.f32 %v3699, %v3702
    %vm3704 = vweird.f32 %v3698
    %vm3705 = vweird.f32 %v3699
    %vm3706 = vmor %vm3704, %vm3705
    %v3707 = vsel %vm3706, %v3699, %v3703
    %v3708 = vand.u32 2147483647, %v3698
    %vm3709 = vcmp.eq.f32.partialorder %v3708, 8.507059e+37
    %v3710 = vand.u32 %v3698, 2147483648
    %v3711 = vor.u32 1.1754944e-38, %v3710
    %v3712 = vsel %vm3709, %v3711, %v3707
    %v3713 = vmul.f32 1.0, %v3712
    %v3714 = vmul.f32 %v3693, %v3151
    %v3715 = vmul.f32 %v3674, %v3694
    %v3716 = vadd.f32 %v3714, %v3715
    %v3717 = vtanh.pop %v3716
    %v3718 = vmul.f32 %v3713, %v3717
    %v3719 = vadd.f32 %v3648, %v3602
    %v3720 = vadd.f32 %v3649, %v3615
    %v3721 = vadd.f32 %v3650, %v3628
    %v3722 = vadd.f32 %v3651, %v3641
    %v3723 = vxor.u32 %v3719, 2147483648
    %v3724 = vmul.f32 %v3723, 1.442695
    %v3725 = vpow.pop %v3724
    %v3726 = vadd.f32 %v3725, 1.0
    %v3727 = vrcp.pop %v3726
    %v3728 = vmul.f32 %v3726, %v3727
    %v3729 = vsub.f32 1.0, %v3728
    %v3730 = vmul.f32 %v3727, %v3729
    %v3731 = vadd.f32 %v3727, %v3730
    %vm3732 = vweird.f32 %v3726
    %vm3733 = vweird.f32 %v3727
    %vm3734 = vmor %vm3732, %vm3733
    %v3735 = vsel %vm3734, %v3727, %v3731
    %v3736 = vand.u32 2147483647, %v3726
    %vm3737 = vcmp.eq.f32.partialorder %v3736, 8.507059e+37
    %v3738 = vand.u32 %v3726, 2147483648
    %v3739 = vor.u32 1.1754944e-38, %v3738
    %v3740 = vsel %vm3737, %v3739, %v3735
    %v3741 = vmul.f32 1.0, %v3740
    %v3742 = vxor.u32 %v3720, 2147483648
    %v3743 = vmul.f32 %v3742, 1.442695
    %v3744 = vpow.pop %v3743
    %v3745 = vadd.f32 %v3744, 1.0
    %v3746 = vrcp.pop %v3745
    %v3747 = vmul.f32 %v3745, %v3746
    %v3748 = vsub.f32 1.0, %v3747
    %v3749 = vmul.f32 %v3746, %v3748
    %v3750 = vadd.f32 %v3746, %v3749
    %vm3751 = vweird.f32 %v3745
    %vm3752 = vweird.f32 %v3746
    %vm3753 = vmor %vm3751, %vm3752
    %v3754 = vsel %vm3753, %v3746, %v3750
    %v3755 = vand.u32 2147483647, %v3745
    %vm3756 = vcmp.eq.f32.partialorder %v3755, 8.507059e+37
    %v3757 = vand.u32 %v3745, 2147483648
    %v3758 = vor.u32 1.1754944e-38, %v3757
    %v3759 = vsel %vm3756, %v3758, %v3754
    %v3760 = vmul.f32 1.0, %v3759
    %v3761 = vtanh.pop %v3721
    %v3762 = vxor.u32 %v3722, 2147483648
    %v3763 = vmul.f32 %v3762, 1.442695
    %v3764 = vpow.pop %v3763
    %v3765 = vadd.f32 %v3764, 1.0
    %v3766 = vrcp.pop %v3765
    %v3767 = vmul.f32 %v3765, %v3766
    %v3768 = vsub.f32 1.0, %v3767
    %v3769 = vmul.f32 %v3766, %v3768
    %v3770 = vadd.f32 %v3766, %v3769
    %vm3771 = vweird.f32 %v3765
    %vm3772 = vweird.f32 %v3766
    %vm3773 = vmor %vm3771, %vm3772
    %v3774 = vsel %vm3773, %v3766, %v3770
    %v3775 = vand.u32 2147483647, %v3765
    %vm3776 = vcmp.eq.f32.partialorder %v3775, 8.507059e+37
    %v3777 = vand.u32 %v3765, 2147483648
    %v3778 = vor.u32 1.1754944e-38, %v3777
    %v3779 = vsel %vm3776, %v3778, %v3774
    %v3780 = vmul.f32 1.0, %v3779
    %v3781 = vmul.f32 %v3760, %v3153
    %v3782 = vmul.f32 %v3741, %v3761
    %v3783 = vadd.f32 %v3781, %v3782
    %v3784 = vtanh.pop %v3783
    %v3785 = vmul.f32 %v3780, %v3784
    %v3786 = vsel %vm3139, %v3718, %v3150
    %3787 = vst [vmem:[#allocation3] sm:$0xff] %v3786
    %v3788 = vsel %vm3139, %v3716, %v3151
    %3789 = vst [vmem:[#allocation4] sm:$0xff] %v3788
    %v3790 = vsel %vm3130, %v3785, %v3152
    %3791 = vst [vmem:[#allocation5] sm:$0xff] %v3790
    %v3792 = vsel %vm3130, %v3783, %v3153
    %3793 = vst [vmem:[#allocation6] sm:$0xff] %v3792
    %v3794 = vsel %vm3139, %v3718, 0.0
    %3795 = vst [vmem:[%s3148] sm:$0xff] %v3794
    %v3796 = vsel %vm3130, %v3785, 0.0
    %3797 = vst [vmem:[%s3145 + $0x8] sm:$0xff] %v3796
    %v3798 = vld [vmem:[#allocation3] sm:$0xff]
    %v3799 = vld [vmem:[#allocation4] sm:$0xff]
    %v3800 = vld [vmem:[#allocation5] sm:$0xff]
    %v3801 = vld [vmem:[#allocation6] sm:$0xff]
    %v3802 = vpack.c.bf16 %v3798, %v3798
    %v3803 = vld [vmem:[%s5] sm:$0xff]
    %v3804 = vld [vmem:[%s5 + $0x8] sm:$0xff]
    %v3805 = vld [vmem:[%s5 + $0x10] sm:$0xff]
    %v3806 = vld [vmem:[%s5 + $0x18] sm:$0xff]
    %v3807 = vld [vmem:[%s5 + $0x20] sm:$0xff]
    %v3808 = vld [vmem:[%s5 + $0x28] sm:$0xff]
    %v3809 = vld [vmem:[%s5 + $0x30] sm:$0xff]
    %v3810 = vld [vmem:[%s5 + $0x38] sm:$0xff]
    %v3811 = vld [vmem:[%s5 + $0x40] sm:$0xff]
    %v3812 = vld [vmem:[%s5 + $0x48] sm:$0xff]
    %v3813 = vld [vmem:[%s5 + $0x50] sm:$0xff]
    %v3814 = vld [vmem:[%s5 + $0x58] sm:$0xff]
    %v3815 = vld [vmem:[%s5 + $0x60] sm:$0xff]
    %v3816 = vld [vmem:[%s5 + $0x68] sm:$0xff]
    %v3817 = vld [vmem:[%s5 + $0x70] sm:$0xff]
    %v3818 = vld [vmem:[%s5 + $0x78] sm:$0xff]
    %v3819 = vld [vmem:[%s5 + $0x80] sm:$0xff]
    %v3820 = vld [vmem:[%s5 + $0x88] sm:$0xff]
    %v3821 = vld [vmem:[%s5 + $0x90] sm:$0xff]
    %v3822 = vld [vmem:[%s5 + $0x98] sm:$0xff]
    %v3823 = vld [vmem:[%s5 + $0xa0] sm:$0xff]
    %v3824 = vld [vmem:[%s5 + $0xa8] sm:$0xff]
    %v3825 = vld [vmem:[%s5 + $0xb0] sm:$0xff]
    %v3826 = vld [vmem:[%s5 + $0xb8] sm:$0xff]
    %v3827 = vld [vmem:[%s5 + $0xc0] sm:$0xff]
    %v3828 = vld [vmem:[%s5 + $0xc8] sm:$0xff]
    %v3829 = vld [vmem:[%s5 + $0xd0] sm:$0xff]
    %v3830 = vld [vmem:[%s5 + $0xd8] sm:$0xff]
    %v3831 = vld [vmem:[%s5 + $0xe0] sm:$0xff]
    %v3832 = vld [vmem:[%s5 + $0xe8] sm:$0xff]
    %v3833 = vld [vmem:[%s5 + $0xf0] sm:$0xff]
    %v3834 = vld [vmem:[%s5 + $0xf8] sm:$0xff]
    %v3867 = vunpack.c.l.b16 %v3803
    %v3868 = vunpack.c.h.b16 %v3803
    %v3869 = vunpack.c.l.b16 %v3804
    %v3870 = vunpack.c.h.b16 %v3804
    %v3871 = vunpack.c.l.b16 %v3805
    %v3872 = vunpack.c.h.b16 %v3805
    %v3873 = vunpack.c.l.b16 %v3806
    %v3874 = vunpack.c.h.b16 %v3806
    %v3875 = vunpack.c.l.b16 %v3807
    %v3876 = vunpack.c.h.b16 %v3807
    %v3877 = vunpack.c.l.b16 %v3808
    %v3878 = vunpack.c.h.b16 %v3808
    %v3879 = vunpack.c.l.b16 %v3809
    %v3880 = vunpack.c.h.b16 %v3809
    %v3881 = vunpack.c.l.b16 %v3810
    %v3882 = vunpack.c.h.b16 %v3810
    %v3883 = vunpack.c.l.b16 %v3811
    %v3884 = vunpack.c.h.b16 %v3811
    %v3885 = vunpack.c.l.b16 %v3812
    %v3886 = vunpack.c.h.b16 %v3812
    %v3887 = vunpack.c.l.b16 %v3813
    %v3888 = vunpack.c.h.b16 %v3813
    %v3889 = vunpack.c.l.b16 %v3814
    %v3890 = vunpack.c.h.b16 %v3814
    %v3891 = vunpack.c.l.b16 %v3815
    %v3892 = vunpack.c.h.b16 %v3815
    %v3893 = vunpack.c.l.b16 %v3816
    %v3894 = vunpack.c.h.b16 %v3816
    %v3895 = vunpack.c.l.b16 %v3817
    %v3896 = vunpack.c.h.b16 %v3817
    %v3897 = vunpack.c.l.b16 %v3818
    %v3898 = vunpack.c.h.b16 %v3818
    %v3899 = vunpack.c.l.b16 %v3819
    %v3900 = vunpack.c.h.b16 %v3819
    %v3901 = vunpack.c.l.b16 %v3820
    %v3902 = vunpack.c.h.b16 %v3820
    %v3903 = vunpack.c.l.b16 %v3821
    %v3904 = vunpack.c.h.b16 %v3821
    %v3905 = vunpack.c.l.b16 %v3822
    %v3906 = vunpack.c.h.b16 %v3822
    %v3907 = vunpack.c.l.b16 %v3823
    %v3908 = vunpack.c.h.b16 %v3823
    %v3909 = vunpack.c.l.b16 %v3824
    %v3910 = vunpack.c.h.b16 %v3824
    %v3911 = vunpack.c.l.b16 %v3825
    %v3912 = vunpack.c.h.b16 %v3825
    %v3913 = vunpack.c.l.b16 %v3826
    %v3914 = vunpack.c.h.b16 %v3826
    %v3915 = vunpack.c.l.b16 %v3827
    %v3916 = vunpack.c.h.b16 %v3827
    %v3917 = vunpack.c.l.b16 %v3828
    %v3918 = vunpack.c.h.b16 %v3828
    %v3919 = vunpack.c.l.b16 %v3829
    %v3920 = vunpack.c.h.b16 %v3829
    %v3921 = vunpack.c.l.b16 %v3830
    %v3922 = vunpack.c.h.b16 %v3830
    %v3923 = vunpack.c.l.b16 %v3831
    %v3924 = vunpack.c.h.b16 %v3831
    %v3925 = vunpack.c.l.b16 %v3832
    %v3926 = vunpack.c.h.b16 %v3832
    %v3927 = vunpack.c.l.b16 %v3833
    %v3928 = vunpack.c.h.b16 %v3833
    %v3929 = vunpack.c.l.b16 %v3834
    %v3930 = vunpack.c.h.b16 %v3834
    %v3931 = vpack.c.b16 %v3871, %v3867
    %v3932 = vpack.c.b16 %v3872, %v3868
    %v3933 = vpack.c.b16 %v3873, %v3869
    %v3934 = vpack.c.b16 %v3874, %v3870
    %v3935 = vpack.c.b16 %v3879, %v3875
    %v3936 = vpack.c.b16 %v3880, %v3876
    %v3937 = vpack.c.b16 %v3881, %v3877
    %v3938 = vpack.c.b16 %v3882, %v3878
    %v3939 = vpack.c.b16 %v3887, %v3883
    %v3940 = vpack.c.b16 %v3888, %v3884
    %v3941 = vpack.c.b16 %v3889, %v3885
    %v3942 = vpack.c.b16 %v3890, %v3886
    %v3943 = vpack.c.b16 %v3895, %v3891
    %v3944 = vpack.c.b16 %v3896, %v3892
    %v3945 = vpack.c.b16 %v3897, %v3893
    %v3946 = vpack.c.b16 %v3898, %v3894
    %v3947 = vpack.c.b16 %v3903, %v3899
    %v3948 = vpack.c.b16 %v3904, %v3900
    %v3949 = vpack.c.b16 %v3905, %v3901
    %v3950 = vpack.c.b16 %v3906, %v3902
    %v3951 = vpack.c.b16 %v3911, %v3907
    %v3952 = vpack.c.b16 %v3912, %v3908
    %v3953 = vpack.c.b16 %v3913, %v3909
    %v3954 = vpack.c.b16 %v3914, %v3910
    %v3955 = vpack.c.b16 %v3919, %v3915
    %v3956 = vpack.c.b16 %v3920, %v3916
    %v3957 = vpack.c.b16 %v3921, %v3917
    %v3958 = vpack.c.b16 %v3922, %v3918
    %v3959 = vpack.c.b16 %v3927, %v3923
    %v3960 = vpack.c.b16 %v3928, %v3924
    %v3961 = vpack.c.b16 %v3929, %v3925
    %v3962 = vpack.c.b16 %v3930, %v3926
    %3995 = vmatpush.bf16.msra.mxu0 %v3959
    %3996 = vmatpush.bf16.msra.mxu0 %v3955
    %3997 = vmatpush.bf16.msra.mxu0 %v3951
    %3998 = vmatpush.bf16.msra.mxu0 %v3947
    %3999 = vmatpush.bf16.msra.mxu0 %v3943
    %4000 = vmatpush.bf16.msra.mxu0 %v3939
    %4001 = vmatpush.bf16.msra.mxu0 %v3935
    %4002 = vmatpush.bf16.msra.mxu0 %v3931
    %4003 = vmatmul.bf16.gmra.mxu0 %v3802
    %v4004 = vpop.f32.mrf.mxu0
    %v4005 = vadd.f32 0.0, %v4004
    %v4006 = vpop.f32.mrf.mxu0
    %4007 = vdwg.mxu0
    %4008 = vmatpush.bf16.msra.mxu0 %v3960
    %4009 = vmatpush.bf16.msra.mxu0 %v3956
    %4010 = vmatpush.bf16.msra.mxu0 %v3952
    %4011 = vmatpush.bf16.msra.mxu0 %v3948
    %4012 = vmatpush.bf16.msra.mxu0 %v3944
    %4013 = vmatpush.bf16.msra.mxu0 %v3940
    %4014 = vmatpush.bf16.msra.mxu0 %v3936
    %4015 = vmatpush.bf16.msra.mxu0 %v3932
    %4016 = vmatmul.bf16.gmra.mxu0 %v3802
    %v4017 = vpop.f32.mrf.mxu0
    %v4018 = vadd.f32 0.0, %v4017
    %v4019 = vpop.f32.mrf.mxu0
    %4020 = vdwg.mxu0
    %4021 = vmatpush.bf16.msra.mxu0 %v3961
    %4022 = vmatpush.bf16.msra.mxu0 %v3957
    %4023 = vmatpush.bf16.msra.mxu0 %v3953
    %4024 = vmatpush.bf16.msra.mxu0 %v3949
    %4025 = vmatpush.bf16.msra.mxu0 %v3945
    %4026 = vmatpush.bf16.msra.mxu0 %v3941
    %4027 = vmatpush.bf16.msra.mxu0 %v3937
    %4028 = vmatpush.bf16.msra.mxu0 %v3933
    %4029 = vmatmul.bf16.gmra.mxu0 %v3802
    %v4030 = vpop.f32.mrf.mxu0
    %v4031 = vadd.f32 0.0, %v4030
    %v4032 = vpop.f32.mrf.mxu0
    %4033 = vdwg.mxu0
    %4034 = vmatpush.bf16.msra.mxu0 %v3962
    %4035 = vmatpush.bf16.msra.mxu0 %v3958
    %4036 = vmatpush.bf16.msra.mxu0 %v3954
    %4037 = vmatpush.bf16.msra.mxu0 %v3950
    %4038 = vmatpush.bf16.msra.mxu0 %v3946
    %4039 = vmatpush.bf16.msra.mxu0 %v3942
    %4040 = vmatpush.bf16.msra.mxu0 %v3938
    %4041 = vmatpush.bf16.msra.mxu0 %v3934
    %4042 = vmatmul.bf16.gmra.mxu0 %v3802
    %v4043 = vpop.f32.mrf.mxu0
    %v4044 = vadd.f32 0.0, %v4043
    %v4045 = vpop.f32.mrf.mxu0
    %4046 = vdwg.mxu0
    %v4047 = vpack.c.bf16 %v3800, %v3800
    %v4048 = vld [vmem:[%s6] sm:$0xff]
    %v4049 = vld [vmem:[%s6 + $0x8] sm:$0xff]
    %v4050 = vld [vmem:[%s6 + $0x10] sm:$0xff]
    %v4051 = vld [vmem:[%s6 + $0x18] sm:$0xff]
    %v4052 = vld [vmem:[%s6 + $0x20] sm:$0xff]
    %v4053 = vld [vmem:[%s6 + $0x28] sm:$0xff]
    %v4054 = vld [vmem:[%s6 + $0x30] sm:$0xff]
    %v4055 = vld [vmem:[%s6 + $0x38] sm:$0xff]
    %v4056 = vld [vmem:[%s6 + $0x40] sm:$0xff]
    %v4057 = vld [vmem:[%s6 + $0x48] sm:$0xff]
    %v4058 = vld [vmem:[%s6 + $0x50] sm:$0xff]
    %v4059 = vld [vmem:[%s6 + $0x58] sm:$0xff]
    %v4060 = vld [vmem:[%s6 + $0x60] sm:$0xff]
    %v4061 = vld [vmem:[%s6 + $0x68] sm:$0xff]
    %v4062 = vld [vmem:[%s6 + $0x70] sm:$0xff]
    %v4063 = vld [vmem:[%s6 + $0x78] sm:$0xff]
    %v4064 = vld [vmem:[%s6 + $0x80] sm:$0xff]
    %v4065 = vld [vmem:[%s6 + $0x88] sm:$0xff]
    %v4066 = vld [vmem:[%s6 + $0x90] sm:$0xff]
    %v4067 = vld [vmem:[%s6 + $0x98] sm:$0xff]
    %v4068 = vld [vmem:[%s6 + $0xa0] sm:$0xff]
    %v4069 = vld [vmem:[%s6 + $0xa8] sm:$0xff]
    %v4070 = vld [vmem:[%s6 + $0xb0] sm:$0xff]
    %v4071 = vld [vmem:[%s6 + $0xb8] sm:$0xff]
    %v4072 = vld [vmem:[%s6 + $0xc0] sm:$0xff]
    %v4073 = vld [vmem:[%s6 + $0xc8] sm:$0xff]
    %v4074 = vld [vmem:[%s6 + $0xd0] sm:$0xff]
    %v4075 = vld [vmem:[%s6 + $0xd8] sm:$0xff]
    %v4076 = vld [vmem:[%s6 + $0xe0] sm:$0xff]
    %v4077 = vld [vmem:[%s6 + $0xe8] sm:$0xff]
    %v4078 = vld [vmem:[%s6 + $0xf0] sm:$0xff]
    %v4079 = vld [vmem:[%s6 + $0xf8] sm:$0xff]
    %v4112 = vunpack.c.l.b16 %v4048
    %v4113 = vunpack.c.h.b16 %v4048
    %v4114 = vunpack.c.l.b16 %v4049
    %v4115 = vunpack.c.h.b16 %v4049
    %v4116 = vunpack.c.l.b16 %v4050
    %v4117 = vunpack.c.h.b16 %v4050
    %v4118 = vunpack.c.l.b16 %v4051
    %v4119 = vunpack.c.h.b16 %v4051
    %v4120 = vunpack.c.l.b16 %v4052
    %v4121 = vunpack.c.h.b16 %v4052
    %v4122 = vunpack.c.l.b16 %v4053
    %v4123 = vunpack.c.h.b16 %v4053
    %v4124 = vunpack.c.l.b16 %v4054
    %v4125 = vunpack.c.h.b16 %v4054
    %v4126 = vunpack.c.l.b16 %v4055
    %v4127 = vunpack.c.h.b16 %v4055
    %v4128 = vunpack.c.l.b16 %v4056
    %v4129 = vunpack.c.h.b16 %v4056
    %v4130 = vunpack.c.l.b16 %v4057
    %v4131 = vunpack.c.h.b16 %v4057
    %v4132 = vunpack.c.l.b16 %v4058
    %v4133 = vunpack.c.h.b16 %v4058
    %v4134 = vunpack.c.l.b16 %v4059
    %v4135 = vunpack.c.h.b16 %v4059
    %v4136 = vunpack.c.l.b16 %v4060
    %v4137 = vunpack.c.h.b16 %v4060
    %v4138 = vunpack.c.l.b16 %v4061
    %v4139 = vunpack.c.h.b16 %v4061
    %v4140 = vunpack.c.l.b16 %v4062
    %v4141 = vunpack.c.h.b16 %v4062
    %v4142 = vunpack.c.l.b16 %v4063
    %v4143 = vunpack.c.h.b16 %v4063
    %v4144 = vunpack.c.l.b16 %v4064
    %v4145 = vunpack.c.h.b16 %v4064
    %v4146 = vunpack.c.l.b16 %v4065
    %v4147 = vunpack.c.h.b16 %v4065
    %v4148 = vunpack.c.l.b16 %v4066
    %v4149 = vunpack.c.h.b16 %v4066
    %v4150 = vunpack.c.l.b16 %v4067
    %v4151 = vunpack.c.h.b16 %v4067
    %v4152 = vunpack.c.l.b16 %v4068
    %v4153 = vunpack.c.h.b16 %v4068
    %v4154 = vunpack.c.l.b16 %v4069
    %v4155 = vunpack.c.h.b16 %v4069
    %v4156 = vunpack.c.l.b16 %v4070
    %v4157 = vunpack.c.h.b16 %v4070
    %v4158 = vunpack.c.l.b16 %v4071
    %v4159 = vunpack.c.h.b16 %v4071
    %v4160 = vunpack.c.l.b16 %v4072
    %v4161 = vunpack.c.h.b16 %v4072
    %v4162 = vunpack.c.l.b16 %v4073
    %v4163 = vunpack.c.h.b16 %v4073
    %v4164 = vunpack.c.l.b16 %v4074
    %v4165 = vunpack.c.h.b16 %v4074
    %v4166 = vunpack.c.l.b16 %v4075
    %v4167 = vunpack.c.h.b16 %v4075
    %v4168 = vunpack.c.l.b16 %v4076
    %v4169 = vunpack.c.h.b16 %v4076
    %v4170 = vunpack.c.l.b16 %v4077
    %v4171 = vunpack.c.h.b16 %v4077
    %v4172 = vunpack.c.l.b16 %v4078
    %v4173 = vunpack.c.h.b16 %v4078
    %v4174 = vunpack.c.l.b16 %v4079
    %v4175 = vunpack.c.h.b16 %v4079
    %v4176 = vpack.c.b16 %v4116, %v4112
    %v4177 = vpack.c.b16 %v4117, %v4113
    %v4178 = vpack.c.b16 %v4118, %v4114
    %v4179 = vpack.c.b16 %v4119, %v4115
    %v4180 = vpack.c.b16 %v4124, %v4120
    %v4181 = vpack.c.b16 %v4125, %v4121
    %v4182 = vpack.c.b16 %v4126, %v4122
    %v4183 = vpack.c.b16 %v4127, %v4123
    %v4184 = vpack.c.b16 %v4132, %v4128
    %v4185 = vpack.c.b16 %v4133, %v4129
    %v4186 = vpack.c.b16 %v4134, %v4130
    %v4187 = vpack.c.b16 %v4135, %v4131
    %v4188 = vpack.c.b16 %v4140, %v4136
    %v4189 = vpack.c.b16 %v4141, %v4137
    %v4190 = vpack.c.b16 %v4142, %v4138
    %v4191 = vpack.c.b16 %v4143, %v4139
    %v4192 = vpack.c.b16 %v4148, %v4144
    %v4193 = vpack.c.b16 %v4149, %v4145
    %v4194 = vpack.c.b16 %v4150, %v4146
    %v4195 = vpack.c.b16 %v4151, %v4147
    %v4196 = vpack.c.b16 %v4156, %v4152
    %v4197 = vpack.c.b16 %v4157, %v4153
    %v4198 = vpack.c.b16 %v4158, %v4154
    %v4199 = vpack.c.b16 %v4159, %v4155
    %v4200 = vpack.c.b16 %v4164, %v4160
    %v4201 = vpack.c.b16 %v4165, %v4161
    %v4202 = vpack.c.b16 %v4166, %v4162
    %v4203 = vpack.c.b16 %v4167, %v4163
    %v4204 = vpack.c.b16 %v4172, %v4168
    %v4205 = vpack.c.b16 %v4173, %v4169
    %v4206 = vpack.c.b16 %v4174, %v4170
    %v4207 = vpack.c.b16 %v4175, %v4171
    %4240 = vmatpush.bf16.msra.mxu0 %v4204
    %4241 = vmatpush.bf16.msra.mxu0 %v4200
    %4242 = vmatpush.bf16.msra.mxu0 %v4196
    %4243 = vmatpush.bf16.msra.mxu0 %v4192
    %4244 = vmatpush.bf16.msra.mxu0 %v4188
    %4245 = vmatpush.bf16.msra.mxu0 %v4184
    %4246 = vmatpush.bf16.msra.mxu0 %v4180
    %4247 = vmatpush.bf16.msra.mxu0 %v4176
    %4248 = vmatmul.bf16.gmra.mxu0 %v4047
    %v4249 = vpop.f32.mrf.mxu0
    %v4250 = vadd.f32 0.0, %v4249
    %v4251 = vpop.f32.mrf.mxu0
    %4252 = vdwg.mxu0
    %4253 = vmatpush.bf16.msra.mxu0 %v4205
    %4254 = vmatpush.bf16.msra.mxu0 %v4201
    %4255 = vmatpush.bf16.msra.mxu0 %v4197
    %4256 = vmatpush.bf16.msra.mxu0 %v4193
    %4257 = vmatpush.bf16.msra.mxu0 %v4189
    %4258 = vmatpush.bf16.msra.mxu0 %v4185
    %4259 = vmatpush.bf16.msra.mxu0 %v4181
    %4260 = vmatpush.bf16.msra.mxu0 %v4177
    %4261 = vmatmul.bf16.gmra.mxu0 %v4047
    %v4262 = vpop.f32.mrf.mxu0
    %v4263 = vadd.f32 0.0, %v4262
    %v4264 = vpop.f32.mrf.mxu0
    %4265 = vdwg.mxu0
    %4266 = vmatpush.bf16.msra.mxu0 %v4206
    %4267 = vmatpush.bf16.msra.mxu0 %v4202
    %4268 = vmatpush.bf16.msra.mxu0 %v4198
    %4269 = vmatpush.bf16.msra.mxu0 %v4194
    %4270 = vmatpush.bf16.msra.mxu0 %v4190
    %4271 = vmatpush.bf16.msra.mxu0 %v4186
    %4272 = vmatpush.bf16.msra.mxu0 %v4182
    %4273 = vmatpush.bf16.msra.mxu0 %v4178
    %4274 = vmatmul.bf16.gmra.mxu0 %v4047
    %v4275 = vpop.f32.mrf.mxu0
    %v4276 = vadd.f32 0.0, %v4275
    %v4277 = vpop.f32.mrf.mxu0
    %4278 = vdwg.mxu0
    %4279 = vmatpush.bf16.msra.mxu0 %v4207
    %4280 = vmatpush.bf16.msra.mxu0 %v4203
    %4281 = vmatpush.bf16.msra.mxu0 %v4199
    %4282 = vmatpush.bf16.msra.mxu0 %v4195
    %4283 = vmatpush.bf16.msra.mxu0 %v4191
    %4284 = vmatpush.bf16.msra.mxu0 %v4187
    %4285 = vmatpush.bf16.msra.mxu0 %v4183
    %4286 = vmatpush.bf16.msra.mxu0 %v4179
    %4287 = vmatmul.bf16.gmra.mxu0 %v4047
    %v4288 = vpop.f32.mrf.mxu0
    %v4289 = vadd.f32 0.0, %v4288
    %v4290 = vpop.f32.mrf.mxu0
    %4291 = vdwg.mxu0
    %v4292 = vld [vmem:[%s2321] sm:$0xff]
    %v4293 = vld [vmem:[%s2321 + $0x8] sm:$0xff]
    %v4294 = vld [vmem:[%s2321 + $0x10] sm:$0xff]
    %v4295 = vld [vmem:[%s2321 + $0x18] sm:$0xff]
    %v4296 = vld [vmem:[%s2316 + $0x20] sm:$0xff]
    %v4297 = vld [vmem:[%s2316 + $0x28] sm:$0xff]
    %v4298 = vld [vmem:[%s2316 + $0x30] sm:$0xff]
    %v4299 = vld [vmem:[%s2316 + $0x38] sm:$0xff]
    %v4300 = vadd.f32 %v4292, %v4005
    %v4301 = vadd.f32 %v4293, %v4018
    %v4302 = vadd.f32 %v4294, %v4031
    %v4303 = vadd.f32 %v4295, %v4044
    %v4304 = vxor.u32 %v4300, 2147483648
    %v4305 = vmul.f32 %v4304, 1.442695
    %v4306 = vpow.pop %v4305
    %v4307 = vadd.f32 %v4306, 1.0
    %v4308 = vrcp.pop %v4307
    %v4309 = vmul.f32 %v4307, %v4308
    %v4310 = vsub.f32 1.0, %v4309
    %v4311 = vmul.f32 %v4308, %v4310
    %v4312 = vadd.f32 %v4308, %v4311
    %vm4313 = vweird.f32 %v4307
    %vm4314 = vweird.f32 %v4308
    %vm4315 = vmor %vm4313, %vm4314
    %v4316 = vsel %vm4315, %v4308, %v4312
    %v4317 = vand.u32 2147483647, %v4307
    %vm4318 = vcmp.eq.f32.partialorder %v4317, 8.507059e+37
    %v4319 = vand.u32 %v4307, 2147483648
    %v4320 = vor.u32 1.1754944e-38, %v4319
    %v4321 = vsel %vm4318, %v4320, %v4316
    %v4322 = vmul.f32 1.0, %v4321
    %v4323 = vxor.u32 %v4301, 2147483648
    %v4324 = vmul.f32 %v4323, 1.442695
    %v4325 = vpow.pop %v4324
    %v4326 = vadd.f32 %v4325, 1.0
    %v4327 = vrcp.pop %v4326
    %v4328 = vmul.f32 %v4326, %v4327
    %v4329 = vsub.f32 1.0, %v4328
    %v4330 = vmul.f32 %v4327, %v4329
    %v4331 = vadd.f32 %v4327, %v4330
    %vm4332 = vweird.f32 %v4326
    %vm4333 = vweird.f32 %v4327
    %vm4334 = vmor %vm4332, %vm4333
    %v4335 = vsel %vm4334, %v4327, %v4331
    %v4336 = vand.u32 2147483647, %v4326
    %vm4337 = vcmp.eq.f32.partialorder %v4336, 8.507059e+37
    %v4338 = vand.u32 %v4326, 2147483648
    %v4339 = vor.u32 1.1754944e-38, %v4338
    %v4340 = vsel %vm4337, %v4339, %v4335
    %v4341 = vmul.f32 1.0, %v4340
    %v4342 = vtanh.pop %v4302
    %v4343 = vxor.u32 %v4303, 2147483648
    %v4344 = vmul.f32 %v4343, 1.442695
    %v4345 = vpow.pop %v4344
    %v4346 = vadd.f32 %v4345, 1.0
    %v4347 = vrcp.pop %v4346
    %v4348 = vmul.f32 %v4346, %v4347
    %v4349 = vsub.f32 1.0, %v4348
    %v4350 = vmul.f32 %v4347, %v4349
    %v4351 = vadd.f32 %v4347, %v4350
    %vm4352 = vweird.f32 %v4346
    %vm4353 = vweird.f32 %v4347
    %vm4354 = vmor %vm4352, %vm4353
    %v4355 = vsel %vm4354, %v4347, %v4351
    %v4356 = vand.u32 2147483647, %v4346
    %vm4357 = vcmp.eq.f32.partialorder %v4356, 8.507059e+37
    %v4358 = vand.u32 %v4346, 2147483648
    %v4359 = vor.u32 1.1754944e-38, %v4358
    %v4360 = vsel %vm4357, %v4359, %v4355
    %v4361 = vmul.f32 1.0, %v4360
    %v4362 = vmul.f32 %v4341, %v3799
    %v4363 = vmul.f32 %v4322, %v4342
    %v4364 = vadd.f32 %v4362, %v4363
    %v4365 = vtanh.pop %v4364
    %v4366 = vmul.f32 %v4361, %v4365
    %v4367 = vadd.f32 %v4296, %v4250
    %v4368 = vadd.f32 %v4297, %v4263
    %v4369 = vadd.f32 %v4298, %v4276
    %v4370 = vadd.f32 %v4299, %v4289
    %v4371 = vxor.u32 %v4367, 2147483648
    %v4372 = vmul.f32 %v4371, 1.442695
    %v4373 = vpow.pop %v4372
    %v4374 = vadd.f32 %v4373, 1.0
    %v4375 = vrcp.pop %v4374
    %v4376 = vmul.f32 %v4374, %v4375
    %v4377 = vsub.f32 1.0, %v4376
    %v4378 = vmul.f32 %v4375, %v4377
    %v4379 = vadd.f32 %v4375, %v4378
    %vm4380 = vweird.f32 %v4374
    %vm4381 = vweird.f32 %v4375
    %vm4382 = vmor %vm4380, %vm4381
    %v4383 = vsel %vm4382, %v4375, %v4379
    %v4384 = vand.u32 2147483647, %v4374
    %vm4385 = vcmp.eq.f32.partialorder %v4384, 8.507059e+37
    %v4386 = vand.u32 %v4374, 2147483648
    %v4387 = vor.u32 1.1754944e-38, %v4386
    %v4388 = vsel %vm4385, %v4387, %v4383
    %v4389 = vmul.f32 1.0, %v4388
    %v4390 = vxor.u32 %v4368, 2147483648
    %v4391 = vmul.f32 %v4390, 1.442695
    %v4392 = vpow.pop %v4391
    %v4393 = vadd.f32 %v4392, 1.0
    %v4394 = vrcp.pop %v4393
    %v4395 = vmul.f32 %v4393, %v4394
    %v4396 = vsub.f32 1.0, %v4395
    %v4397 = vmul.f32 %v4394, %v4396
    %v4398 = vadd.f32 %v4394, %v4397
    %vm4399 = vweird.f32 %v4393
    %vm4400 = vweird.f32 %v4394
    %vm4401 = vmor %vm4399, %vm4400
    %v4402 = vsel %vm4401, %v4394, %v4398
    %v4403 = vand.u32 2147483647, %v4393
    %vm4404 = vcmp.eq.f32.partialorder %v4403, 8.507059e+37
    %v4405 = vand.u32 %v4393, 2147483648
    %v4406 = vor.u32 1.1754944e-38, %v4405
    %v4407 = vsel %vm4404, %v4406, %v4402
    %v4408 = vmul.f32 1.0, %v4407
    %v4409 = vtanh.pop %v4369
    %v4410 = vxor.u32 %v4370, 2147483648
    %v4411 = vmul.f32 %v4410, 1.442695
    %v4412 = vpow.pop %v4411
    %v4413 = vadd.f32 %v4412, 1.0
    %v4414 = vrcp.pop %v4413
    %v4415 = vmul.f32 %v4413, %v4414
    %v4416 = vsub.f32 1.0, %v4415
    %v4417 = vmul.f32 %v4414, %v4416
    %v4418 = vadd.f32 %v4414, %v4417
    %vm4419 = vweird.f32 %v4413
    %vm4420 = vweird.f32 %v4414
    %vm4421 = vmor %vm4419, %vm4420
    %v4422 = vsel %vm4421, %v4414, %v4418
    %v4423 = vand.u32 2147483647, %v4413
    %vm4424 = vcmp.eq.f32.partialorder %v4423, 8.507059e+37
    %v4425 = vand.u32 %v4413, 2147483648
    %v4426 = vor.u32 1.1754944e-38, %v4425
    %v4427 = vsel %vm4424, %v4426, %v4422
    %v4428 = vmul.f32 1.0, %v4427
    %v4429 = vmul.f32 %v4408, %v3801
    %v4430 = vmul.f32 %v4389, %v4409
    %v4431 = vadd.f32 %v4429, %v4430
    %v4432 = vtanh.pop %v4431
    %v4433 = vmul.f32 %v4428, %v4432
    %v4434 = vsel %vm2475, %v4366, %v3798
    %4435 = vst [vmem:[#allocation3] sm:$0xff] %v4434
    %v4436 = vsel %vm2475, %v4364, %v3799
    %4437 = vst [vmem:[#allocation4] sm:$0xff] %v4436
    %v4438 = vsel %vm2466, %v4433, %v3800
    %4439 = vst [vmem:[#allocation5] sm:$0xff] %v4438
    %v4440 = vsel %vm2466, %v4431, %v3801
    %4441 = vst [vmem:[#allocation6] sm:$0xff] %v4440
    %v4442 = vsel %vm2475, %v4366, 0.0
    %4443 = vst [vmem:[%s2484] sm:$0xff] %v4442
    %v4444 = vsel %vm2466, %v4433, 0.0
    %4445 = vst [vmem:[%s2481 + $0x8] sm:$0xff] %v4444
    %v4446 = vld [vmem:[#allocation3] sm:$0xff]
    %v4447 = vld [vmem:[#allocation4] sm:$0xff]
    %v4448 = vld [vmem:[#allocation5] sm:$0xff]
    %v4449 = vld [vmem:[#allocation6] sm:$0xff]
    %v4450 = vpack.c.bf16 %v4446, %v4446
    %v4451 = vld [vmem:[%s5] sm:$0xff]
    %v4452 = vld [vmem:[%s5 + $0x8] sm:$0xff]
    %v4453 = vld [vmem:[%s5 + $0x10] sm:$0xff]
    %v4454 = vld [vmem:[%s5 + $0x18] sm:$0xff]
    %v4455 = vld [vmem:[%s5 + $0x20] sm:$0xff]
    %v4456 = vld [vmem:[%s5 + $0x28] sm:$0xff]
    %v4457 = vld [vmem:[%s5 + $0x30] sm:$0xff]
    %v4458 = vld [vmem:[%s5 + $0x38] sm:$0xff]
    %v4459 = vld [vmem:[%s5 + $0x40] sm:$0xff]
    %v4460 = vld [vmem:[%s5 + $0x48] sm:$0xff]
    %v4461 = vld [vmem:[%s5 + $0x50] sm:$0xff]
    %v4462 = vld [vmem:[%s5 + $0x58] sm:$0xff]
    %v4463 = vld [vmem:[%s5 + $0x60] sm:$0xff]
    %v4464 = vld [vmem:[%s5 + $0x68] sm:$0xff]
    %v4465 = vld [vmem:[%s5 + $0x70] sm:$0xff]
    %v4466 = vld [vmem:[%s5 + $0x78] sm:$0xff]
    %v4467 = vld [vmem:[%s5 + $0x80] sm:$0xff]
    %v4468 = vld [vmem:[%s5 + $0x88] sm:$0xff]
    %v4469 = vld [vmem:[%s5 + $0x90] sm:$0xff]
    %v4470 = vld [vmem:[%s5 + $0x98] sm:$0xff]
    %v4471 = vld [vmem:[%s5 + $0xa0] sm:$0xff]
    %v4472 = vld [vmem:[%s5 + $0xa8] sm:$0xff]
    %v4473 = vld [vmem:[%s5 + $0xb0] sm:$0xff]
    %v4474 = vld [vmem:[%s5 + $0xb8] sm:$0xff]
    %v4475 = vld [vmem:[%s5 + $0xc0] sm:$0xff]
    %v4476 = vld [vmem:[%s5 + $0xc8] sm:$0xff]
    %v4477 = vld [vmem:[%s5 + $0xd0] sm:$0xff]
    %v4478 = vld [vmem:[%s5 + $0xd8] sm:$0xff]
    %v4479 = vld [vmem:[%s5 + $0xe0] sm:$0xff]
    %v4480 = vld [vmem:[%s5 + $0xe8] sm:$0xff]
    %v4481 = vld [vmem:[%s5 + $0xf0] sm:$0xff]
    %v4482 = vld [vmem:[%s5 + $0xf8] sm:$0xff]
    %v4515 = vunpack.c.l.b16 %v4451
    %v4516 = vunpack.c.h.b16 %v4451
    %v4517 = vunpack.c.l.b16 %v4452
    %v4518 = vunpack.c.h.b16 %v4452
    %v4519 = vunpack.c.l.b16 %v4453
    %v4520 = vunpack.c.h.b16 %v4453
    %v4521 = vunpack.c.l.b16 %v4454
    %v4522 = vunpack.c.h.b16 %v4454
    %v4523 = vunpack.c.l.b16 %v4455
    %v4524 = vunpack.c.h.b16 %v4455
    %v4525 = vunpack.c.l.b16 %v4456
    %v4526 = vunpack.c.h.b16 %v4456
    %v4527 = vunpack.c.l.b16 %v4457
    %v4528 = vunpack.c.h.b16 %v4457
    %v4529 = vunpack.c.l.b16 %v4458
    %v4530 = vunpack.c.h.b16 %v4458
    %v4531 = vunpack.c.l.b16 %v4459
    %v4532 = vunpack.c.h.b16 %v4459
    %v4533 = vunpack.c.l.b16 %v4460
    %v4534 = vunpack.c.h.b16 %v4460
    %v4535 = vunpack.c.l.b16 %v4461
    %v4536 = vunpack.c.h.b16 %v4461
    %v4537 = vunpack.c.l.b16 %v4462
    %v4538 = vunpack.c.h.b16 %v4462
    %v4539 = vunpack.c.l.b16 %v4463
    %v4540 = vunpack.c.h.b16 %v4463
    %v4541 = vunpack.c.l.b16 %v4464
    %v4542 = vunpack.c.h.b16 %v4464
    %v4543 = vunpack.c.l.b16 %v4465
    %v4544 = vunpack.c.h.b16 %v4465
    %v4545 = vunpack.c.l.b16 %v4466
    %v4546 = vunpack.c.h.b16 %v4466
    %v4547 = vunpack.c.l.b16 %v4467
    %v4548 = vunpack.c.h.b16 %v4467
    %v4549 = vunpack.c.l.b16 %v4468
    %v4550 = vunpack.c.h.b16 %v4468
    %v4551 = vunpack.c.l.b16 %v4469
    %v4552 = vunpack.c.h.b16 %v4469
    %v4553 = vunpack.c.l.b16 %v4470
    %v4554 = vunpack.c.h.b16 %v4470
    %v4555 = vunpack.c.l.b16 %v4471
    %v4556 = vunpack.c.h.b16 %v4471
    %v4557 = vunpack.c.l.b16 %v4472
    %v4558 = vunpack.c.h.b16 %v4472
    %v4559 = vunpack.c.l.b16 %v4473
    %v4560 = vunpack.c.h.b16 %v4473
    %v4561 = vunpack.c.l.b16 %v4474
    %v4562 = vunpack.c.h.b16 %v4474
    %v4563 = vunpack.c.l.b16 %v4475
    %v4564 = vunpack.c.h.b16 %v4475
    %v4565 = vunpack.c.l.b16 %v4476
    %v4566 = vunpack.c.h.b16 %v4476
    %v4567 = vunpack.c.l.b16 %v4477
    %v4568 = vunpack.c.h.b16 %v4477
    %v4569 = vunpack.c.l.b16 %v4478
    %v4570 = vunpack.c.h.b16 %v4478
    %v4571 = vunpack.c.l.b16 %v4479
    %v4572 = vunpack.c.h.b16 %v4479
    %v4573 = vunpack.c.l.b16 %v4480
    %v4574 = vunpack.c.h.b16 %v4480
    %v4575 = vunpack.c.l.b16 %v4481
    %v4576 = vunpack.c.h.b16 %v4481
    %v4577 = vunpack.c.l.b16 %v4482
    %v4578 = vunpack.c.h.b16 %v4482
    %v4579 = vpack.c.b16 %v4519, %v4515
    %v4580 = vpack.c.b16 %v4520, %v4516
    %v4581 = vpack.c.b16 %v4521, %v4517
    %v4582 = vpack.c.b16 %v4522, %v4518
    %v4583 = vpack.c.b16 %v4527, %v4523
    %v4584 = vpack.c.b16 %v4528, %v4524
    %v4585 = vpack.c.b16 %v4529, %v4525
    %v4586 = vpack.c.b16 %v4530, %v4526
    %v4587 = vpack.c.b16 %v4535, %v4531
    %v4588 = vpack.c.b16 %v4536, %v4532
    %v4589 = vpack.c.b16 %v4537, %v4533
    %v4590 = vpack.c.b16 %v4538, %v4534
    %v4591 = vpack.c.b16 %v4543, %v4539
    %v4592 = vpack.c.b16 %v4544, %v4540
    %v4593 = vpack.c.b16 %v4545, %v4541
    %v4594 = vpack.c.b16 %v4546, %v4542
    %v4595 = vpack.c.b16 %v4551, %v4547
    %v4596 = vpack.c.b16 %v4552, %v4548
    %v4597 = vpack.c.b16 %v4553, %v4549
    %v4598 = vpack.c.b16 %v4554, %v4550
    %v4599 = vpack.c.b16 %v4559, %v4555
    %v4600 = vpack.c.b16 %v4560, %v4556
    %v4601 = vpack.c.b16 %v4561, %v4557
    %v4602 = vpack.c.b16 %v4562, %v4558
    %v4603 = vpack.c.b16 %v4567, %v4563
    %v4604 = vpack.c.b16 %v4568, %v4564
    %v4605 = vpack.c.b16 %v4569, %v4565
    %v4606 = vpack.c.b16 %v4570, %v4566
    %v4607 = vpack.c.b16 %v4575, %v4571
    %v4608 = vpack.c.b16 %v4576, %v4572
    %v4609 = vpack.c.b16 %v4577, %v4573
    %v4610 = vpack.c.b16 %v4578, %v4574
    %4643 = vmatpush.bf16.msra.mxu0 %v4607
    %4644 = vmatpush.bf16.msra.mxu0 %v4603
    %4645 = vmatpush.bf16.msra.mxu0 %v4599
    %4646 = vmatpush.bf16.msra.mxu0 %v4595
    %4647 = vmatpush.bf16.msra.mxu0 %v4591
    %4648 = vmatpush.bf16.msra.mxu0 %v4587
    %4649 = vmatpush.bf16.msra.mxu0 %v4583
    %4650 = vmatpush.bf16.msra.mxu0 %v4579
    %4651 = vmatmul.bf16.gmra.mxu0 %v4450
    %v4652 = vpop.f32.mrf.mxu0
    %v4653 = vadd.f32 0.0, %v4652
    %v4654 = vpop.f32.mrf.mxu0
    %4655 = vdwg.mxu0
    %4656 = vmatpush.bf16.msra.mxu0 %v4608
    %4657 = vmatpush.bf16.msra.mxu0 %v4604
    %4658 = vmatpush.bf16.msra.mxu0 %v4600
    %4659 = vmatpush.bf16.msra.mxu0 %v4596
    %4660 = vmatpush.bf16.msra.mxu0 %v4592
    %4661 = vmatpush.bf16.msra.mxu0 %v4588
    %4662 = vmatpush.bf16.msra.mxu0 %v4584
    %4663 = vmatpush.bf16.msra.mxu0 %v4580
    %4664 = vmatmul.bf16.gmra.mxu0 %v4450
    %v4665 = vpop.f32.mrf.mxu0
    %v4666 = vadd.f32 0.0, %v4665
    %v4667 = vpop.f32.mrf.mxu0
    %4668 = vdwg.mxu0
    %4669 = vmatpush.bf16.msra.mxu0 %v4609
    %4670 = vmatpush.bf16.msra.mxu0 %v4605
    %4671 = vmatpush.bf16.msra.mxu0 %v4601
    %4672 = vmatpush.bf16.msra.mxu0 %v4597
    %4673 = vmatpush.bf16.msra.mxu0 %v4593
    %4674 = vmatpush.bf16.msra.mxu0 %v4589
    %4675 = vmatpush.bf16.msra.mxu0 %v4585
    %4676 = vmatpush.bf16.msra.mxu0 %v4581
    %4677 = vmatmul.bf16.gmra.mxu0 %v4450
    %v4678 = vpop.f32.mrf.mxu0
    %v4679 = vadd.f32 0.0, %v4678
    %v4680 = vpop.f32.mrf.mxu0
    %4681 = vdwg.mxu0
    %4682 = vmatpush.bf16.msra.mxu0 %v4610
    %4683 = vmatpush.bf16.msra.mxu0 %v4606
    %4684 = vmatpush.bf16.msra.mxu0 %v4602
    %4685 = vmatpush.bf16.msra.mxu0 %v4598
    %4686 = vmatpush.bf16.msra.mxu0 %v4594
    %4687 = vmatpush.bf16.msra.mxu0 %v4590
    %4688 = vmatpush.bf16.msra.mxu0 %v4586
    %4689 = vmatpush.bf16.msra.mxu0 %v4582
    %4690 = vmatmul.bf16.gmra.mxu0 %v4450
    %v4691 = vpop.f32.mrf.mxu0
    %v4692 = vadd.f32 0.0, %v4691
    %v4693 = vpop.f32.mrf.mxu0
    %4694 = vdwg.mxu0
    %v4695 = vpack.c.bf16 %v4448, %v4448
    %v4696 = vld [vmem:[%s6] sm:$0xff]
    %v4697 = vld [vmem:[%s6 + $0x8] sm:$0xff]
    %v4698 = vld [vmem:[%s6 + $0x10] sm:$0xff]
    %v4699 = vld [vmem:[%s6 + $0x18] sm:$0xff]
    %v4700 = vld [vmem:[%s6 + $0x20] sm:$0xff]
    %v4701 = vld [vmem:[%s6 + $0x28] sm:$0xff]
    %v4702 = vld [vmem:[%s6 + $0x30] sm:$0xff]
    %v4703 = vld [vmem:[%s6 + $0x38] sm:$0xff]
    %v4704 = vld [vmem:[%s6 + $0x40] sm:$0xff]
    %v4705 = vld [vmem:[%s6 + $0x48] sm:$0xff]
    %v4706 = vld [vmem:[%s6 + $0x50] sm:$0xff]
    %v4707 = vld [vmem:[%s6 + $0x58] sm:$0xff]
    %v4708 = vld [vmem:[%s6 + $0x60] sm:$0xff]
    %v4709 = vld [vmem:[%s6 + $0x68] sm:$0xff]
    %v4710 = vld [vmem:[%s6 + $0x70] sm:$0xff]
    %v4711 = vld [vmem:[%s6 + $0x78] sm:$0xff]
    %v4712 = vld [vmem:[%s6 + $0x80] sm:$0xff]
    %v4713 = vld [vmem:[%s6 + $0x88] sm:$0xff]
    %v4714 = vld [vmem:[%s6 + $0x90] sm:$0xff]
    %v4715 = vld [vmem:[%s6 + $0x98] sm:$0xff]
    %v4716 = vld [vmem:[%s6 + $0xa0] sm:$0xff]
    %v4717 = vld [vmem:[%s6 + $0xa8] sm:$0xff]
    %v4718 = vld [vmem:[%s6 + $0xb0] sm:$0xff]
    %v4719 = vld [vmem:[%s6 + $0xb8] sm:$0xff]
    %v4720 = vld [vmem:[%s6 + $0xc0] sm:$0xff]
    %v4721 = vld [vmem:[%s6 + $0xc8] sm:$0xff]
    %v4722 = vld [vmem:[%s6 + $0xd0] sm:$0xff]
    %v4723 = vld [vmem:[%s6 + $0xd8] sm:$0xff]
    %v4724 = vld [vmem:[%s6 + $0xe0] sm:$0xff]
    %v4725 = vld [vmem:[%s6 + $0xe8] sm:$0xff]
    %v4726 = vld [vmem:[%s6 + $0xf0] sm:$0xff]
    %v4727 = vld [vmem:[%s6 + $0xf8] sm:$0xff]
    %v4760 = vunpack.c.l.b16 %v4696
    %v4761 = vunpack.c.h.b16 %v4696
    %v4762 = vunpack.c.l.b16 %v4697
    %v4763 = vunpack.c.h.b16 %v4697
    %v4764 = vunpack.c.l.b16 %v4698
    %v4765 = vunpack.c.h.b16 %v4698
    %v4766 = vunpack.c.l.b16 %v4699
    %v4767 = vunpack.c.h.b16 %v4699
    %v4768 = vunpack.c.l.b16 %v4700
    %v4769 = vunpack.c.h.b16 %v4700
    %v4770 = vunpack.c.l.b16 %v4701
    %v4771 = vunpack.c.h.b16 %v4701
    %v4772 = vunpack.c.l.b16 %v4702
    %v4773 = vunpack.c.h.b16 %v4702
    %v4774 = vunpack.c.l.b16 %v4703
    %v4775 = vunpack.c.h.b16 %v4703
    %v4776 = vunpack.c.l.b16 %v4704
    %v4777 = vunpack.c.h.b16 %v4704
    %v4778 = vunpack.c.l.b16 %v4705
    %v4779 = vunpack.c.h.b16 %v4705
    %v4780 = vunpack.c.l.b16 %v4706
    %v4781 = vunpack.c.h.b16 %v4706
    %v4782 = vunpack.c.l.b16 %v4707
    %v4783 = vunpack.c.h.b16 %v4707
    %v4784 = vunpack.c.l.b16 %v4708
    %v4785 = vunpack.c.h.b16 %v4708
    %v4786 = vunpack.c.l.b16 %v4709
    %v4787 = vunpack.c.h.b16 %v4709
    %v4788 = vunpack.c.l.b16 %v4710
    %v4789 = vunpack.c.h.b16 %v4710
    %v4790 = vunpack.c.l.b16 %v4711
    %v4791 = vunpack.c.h.b16 %v4711
    %v4792 = vunpack.c.l.b16 %v4712
    %v4793 = vunpack.c.h.b16 %v4712
    %v4794 = vunpack.c.l.b16 %v4713
    %v4795 = vunpack.c.h.b16 %v4713
    %v4796 = vunpack.c.l.b16 %v4714
    %v4797 = vunpack.c.h.b16 %v4714
    %v4798 = vunpack.c.l.b16 %v4715
    %v4799 = vunpack.c.h.b16 %v4715
    %v4800 = vunpack.c.l.b16 %v4716
    %v4801 = vunpack.c.h.b16 %v4716
    %v4802 = vunpack.c.l.b16 %v4717
    %v4803 = vunpack.c.h.b16 %v4717
    %v4804 = vunpack.c.l.b16 %v4718
    %v4805 = vunpack.c.h.b16 %v4718
    %v4806 = vunpack.c.l.b16 %v4719
    %v4807 = vunpack.c.h.b16 %v4719
    %v4808 = vunpack.c.l.b16 %v4720
    %v4809 = vunpack.c.h.b16 %v4720
    %v4810 = vunpack.c.l.b16 %v4721
    %v4811 = vunpack.c.h.b16 %v4721
    %v4812 = vunpack.c.l.b16 %v4722
    %v4813 = vunpack.c.h.b16 %v4722
    %v4814 = vunpack.c.l.b16 %v4723
    %v4815 = vunpack.c.h.b16 %v4723
    %v4816 = vunpack.c.l.b16 %v4724
    %v4817 = vunpack.c.h.b16 %v4724
    %v4818 = vunpack.c.l.b16 %v4725
    %v4819 = vunpack.c.h.b16 %v4725
    %v4820 = vunpack.c.l.b16 %v4726
    %v4821 = vunpack.c.h.b16 %v4726
    %v4822 = vunpack.c.l.b16 %v4727
    %v4823 = vunpack.c.h.b16 %v4727
    %v4824 = vpack.c.b16 %v4764, %v4760
    %v4825 = vpack.c.b16 %v4765, %v4761
    %v4826 = vpack.c.b16 %v4766, %v4762
    %v4827 = vpack.c.b16 %v4767, %v4763
    %v4828 = vpack.c.b16 %v4772, %v4768
    %v4829 = vpack.c.b16 %v4773, %v4769
    %v4830 = vpack.c.b16 %v4774, %v4770
    %v4831 = vpack.c.b16 %v4775, %v4771
    %v4832 = vpack.c.b16 %v4780, %v4776
    %v4833 = vpack.c.b16 %v4781, %v4777
    %v4834 = vpack.c.b16 %v4782, %v4778
    %v4835 = vpack.c.b16 %v4783, %v4779
    %v4836 = vpack.c.b16 %v4788, %v4784
    %v4837 = vpack.c.b16 %v4789, %v4785
    %v4838 = vpack.c.b16 %v4790, %v4786
    %v4839 = vpack.c.b16 %v4791, %v4787
    %v4840 = vpack.c.b16 %v4796, %v4792
    %v4841 = vpack.c.b16 %v4797, %v4793
    %v4842 = vpack.c.b16 %v4798, %v4794
    %v4843 = vpack.c.b16 %v4799, %v4795
    %v4844 = vpack.c.b16 %v4804, %v4800
    %v4845 = vpack.c.b16 %v4805, %v4801
    %v4846 = vpack.c.b16 %v4806, %v4802
    %v4847 = vpack.c.b16 %v4807, %v4803
    %v4848 = vpack.c.b16 %v4812, %v4808
    %v4849 = vpack.c.b16 %v4813, %v4809
    %v4850 = vpack.c.b16 %v4814, %v4810
    %v4851 = vpack.c.b16 %v4815, %v4811
    %v4852 = vpack.c.b16 %v4820, %v4816
    %v4853 = vpack.c.b16 %v4821, %v4817
    %v4854 = vpack.c.b16 %v4822, %v4818
    %v4855 = vpack.c.b16 %v4823, %v4819
    %4888 = vmatpush.bf16.msra.mxu0 %v4852
    %4889 = vmatpush.bf16.msra.mxu0 %v4848
    %4890 = vmatpush.bf16.msra.mxu0 %v4844
    %4891 = vmatpush.bf16.msra.mxu0 %v4840
    %4892 = vmatpush.bf16.msra.mxu0 %v4836
    %4893 = vmatpush.bf16.msra.mxu0 %v4832
    %4894 = vmatpush.bf16.msra.mxu0 %v4828
    %4895 = vmatpush.bf16.msra.mxu0 %v4824
    %4896 = vmatmul.bf16.gmra.mxu0 %v4695
    %v4897 = vpop.f32.mrf.mxu0
    %v4898 = vadd.f32 0.0, %v4897
    %v4899 = vpop.f32.mrf.mxu0
    %4900 = vdwg.mxu0
    %4901 = vmatpush.bf16.msra.mxu0 %v4853
    %4902 = vmatpush.bf16.msra.mxu0 %v4849
    %4903 = vmatpush.bf16.msra.mxu0 %v4845
    %4904 = vmatpush.bf16.msra.mxu0 %v4841
    %4905 = vmatpush.bf16.msra.mxu0 %v4837
    %4906 = vmatpush.bf16.msra.mxu0 %v4833
    %4907 = vmatpush.bf16.msra.mxu0 %v4829
    %4908 = vmatpush.bf16.msra.mxu0 %v4825
    %4909 = vmatmul.bf16.gmra.mxu0 %v4695
    %v4910 = vpop.f32.mrf.mxu0
    %v4911 = vadd.f32 0.0, %v4910
    %v4912 = vpop.f32.mrf.mxu0
    %4913 = vdwg.mxu0
    %4914 = vmatpush.bf16.msra.mxu0 %v4854
    %4915 = vmatpush.bf16.msra.mxu0 %v4850
    %4916 = vmatpush.bf16.msra.mxu0 %v4846
    %4917 = vmatpush.bf16.msra.mxu0 %v4842
    %4918 = vmatpush.bf16.msra.mxu0 %v4838
    %4919 = vmatpush.bf16.msra.mxu0 %v4834
    %4920 = vmatpush.bf16.msra.mxu0 %v4830
    %4921 = vmatpush.bf16.msra.mxu0 %v4826
    %4922 = vmatmul.bf16.gmra.mxu0 %v4695
    %v4923 = vpop.f32.mrf.mxu0
    %v4924 = vadd.f32 0.0, %v4923
    %v4925 = vpop.f32.mrf.mxu0
    %4926 = vdwg.mxu0
    %4927 = vmatpush.bf16.msra.mxu0 %v4855
    %4928 = vmatpush.bf16.msra.mxu0 %v4851
    %4929 = vmatpush.bf16.msra.mxu0 %v4847
    %4930 = vmatpush.bf16.msra.mxu0 %v4843
    %4931 = vmatpush.bf16.msra.mxu0 %v4839
    %4932 = vmatpush.bf16.msra.mxu0 %v4835
    %4933 = vmatpush.bf16.msra.mxu0 %v4831
    %4934 = vmatpush.bf16.msra.mxu0 %v4827
    %4935 = vmatmul.bf16.gmra.mxu0 %v4695
    %v4936 = vpop.f32.mrf.mxu0
    %v4937 = vadd.f32 0.0, %v4936
    %v4938 = vpop.f32.mrf.mxu0
    %4939 = vdwg.mxu0
    %v4940 = vld [vmem:[%s1657] sm:$0xff]
    %v4941 = vld [vmem:[%s1657 + $0x8] sm:$0xff]
    %v4942 = vld [vmem:[%s1657 + $0x10] sm:$0xff]
    %v4943 = vld [vmem:[%s1657 + $0x18] sm:$0xff]
    %v4944 = vld [vmem:[%s1652 + $0x20] sm:$0xff]
    %v4945 = vld [vmem:[%s1652 + $0x28] sm:$0xff]
    %v4946 = vld [vmem:[%s1652 + $0x30] sm:$0xff]
    %v4947 = vld [vmem:[%s1652 + $0x38] sm:$0xff]
    %v4948 = vadd.f32 %v4940, %v4653
    %v4949 = vadd.f32 %v4941, %v4666
    %v4950 = vadd.f32 %v4942, %v4679
    %v4951 = vadd.f32 %v4943, %v4692
    %v4952 = vxor.u32 %v4948, 2147483648
    %v4953 = vmul.f32 %v4952, 1.442695
    %v4954 = vpow.pop %v4953
    %v4955 = vadd.f32 %v4954, 1.0
    %v4956 = vrcp.pop %v4955
    %v4957 = vmul.f32 %v4955, %v4956
    %v4958 = vsub.f32 1.0, %v4957
    %v4959 = vmul.f32 %v4956, %v4958
    %v4960 = vadd.f32 %v4956, %v4959
    %vm4961 = vweird.f32 %v4955
    %vm4962 = vweird.f32 %v4956
    %vm4963 = vmor %vm4961, %vm4962
    %v4964 = vsel %vm4963, %v4956, %v4960
    %v4965 = vand.u32 2147483647, %v4955
    %vm4966 = vcmp.eq.f32.partialorder %v4965, 8.507059e+37
    %v4967 = vand.u32 %v4955, 2147483648
    %v4968 = vor.u32 1.1754944e-38, %v4967
    %v4969 = vsel %vm4966, %v4968, %v4964
    %v4970 = vmul.f32 1.0, %v4969
    %v4971 = vxor.u32 %v4949, 2147483648
    %v4972 = vmul.f32 %v4971, 1.442695
    %v4973 = vpow.pop %v4972
    %v4974 = vadd.f32 %v4973, 1.0
    %v4975 = vrcp.pop %v4974
    %v4976 = vmul.f32 %v4974, %v4975
    %v4977 = vsub.f32 1.0, %v4976
    %v4978 = vmul.f32 %v4975, %v4977
    %v4979 = vadd.f32 %v4975, %v4978
    %vm4980 = vweird.f32 %v4974
    %vm4981 = vweird.f32 %v4975
    %vm4982 = vmor %vm4980, %vm4981
    %v4983 = vsel %vm4982, %v4975, %v4979
    %v4984 = vand.u32 2147483647, %v4974
    %vm4985 = vcmp.eq.f32.partialorder %v4984, 8.507059e+37
    %v4986 = vand.u32 %v4974, 2147483648
    %v4987 = vor.u32 1.1754944e-38, %v4986
    %v4988 = vsel %vm4985, %v4987, %v4983
    %v4989 = vmul.f32 1.0, %v4988
    %v4990 = vtanh.pop %v4950
    %v4991 = vxor.u32 %v4951, 2147483648
    %v4992 = vmul.f32 %v4991, 1.442695
    %v4993 = vpow.pop %v4992
    %v4994 = vadd.f32 %v4993, 1.0
    %v4995 = vrcp.pop %v4994
    %v4996 = vmul.f32 %v4994, %v4995
    %v4997 = vsub.f32 1.0, %v4996
    %v4998 = vmul.f32 %v4995, %v4997
    %v4999 = vadd.f32 %v4995, %v4998
    %vm5000 = vweird.f32 %v4994
    %vm5001 = vweird.f32 %v4995
    %vm5002 = vmor %vm5000, %vm5001
    %v5003 = vsel %vm5002, %v4995, %v4999
    %v5004 = vand.u32 2147483647, %v4994
    %vm5005 = vcmp.eq.f32.partialorder %v5004, 8.507059e+37
    %v5006 = vand.u32 %v4994, 2147483648
    %v5007 = vor.u32 1.1754944e-38, %v5006
    %v5008 = vsel %vm5005, %v5007, %v5003
    %v5009 = vmul.f32 1.0, %v5008
    %v5010 = vmul.f32 %v4989, %v4447
    %v5011 = vmul.f32 %v4970, %v4990
    %v5012 = vadd.f32 %v5010, %v5011
    %v5013 = vtanh.pop %v5012
    %v5014 = vmul.f32 %v5009, %v5013
    %v5015 = vadd.f32 %v4944, %v4898
    %v5016 = vadd.f32 %v4945, %v4911
    %v5017 = vadd.f32 %v4946, %v4924
    %v5018 = vadd.f32 %v4947, %v4937
    %v5019 = vxor.u32 %v5015, 2147483648
    %v5020 = vmul.f32 %v5019, 1.442695
    %v5021 = vpow.pop %v5020
    %v5022 = vadd.f32 %v5021, 1.0
    %v5023 = vrcp.pop %v5022
    %v5024 = vmul.f32 %v5022, %v5023
    %v5025 = vsub.f32 1.0, %v5024
    %v5026 = vmul.f32 %v5023, %v5025
    %v5027 = vadd.f32 %v5023, %v5026
    %vm5028 = vweird.f32 %v5022
    %vm5029 = vweird.f32 %v5023
    %vm5030 = vmor %vm5028, %vm5029
    %v5031 = vsel %vm5030, %v5023, %v5027
    %v5032 = vand.u32 2147483647, %v5022
    %vm5033 = vcmp.eq.f32.partialorder %v5032, 8.507059e+37
    %v5034 = vand.u32 %v5022, 2147483648
    %v5035 = vor.u32 1.1754944e-38, %v5034
    %v5036 = vsel %vm5033, %v5035, %v5031
    %v5037 = vmul.f32 1.0, %v5036
    %v5038 = vxor.u32 %v5016, 2147483648
    %v5039 = vmul.f32 %v5038, 1.442695
    %v5040 = vpow.pop %v5039
    %v5041 = vadd.f32 %v5040, 1.0
    %v5042 = vrcp.pop %v5041
    %v5043 = vmul.f32 %v5041, %v5042
    %v5044 = vsub.f32 1.0, %v5043
    %v5045 = vmul.f32 %v5042, %v5044
    %v5046 = vadd.f32 %v5042, %v5045
    %vm5047 = vweird.f32 %v5041
    %vm5048 = vweird.f32 %v5042
    %vm5049 = vmor %vm5047, %vm5048
    %v5050 = vsel %vm5049, %v5042, %v5046
    %v5051 = vand.u32 2147483647, %v5041
    %vm5052 = vcmp.eq.f32.partialorder %v5051, 8.507059e+37
    %v5053 = vand.u32 %v5041, 2147483648
    %v5054 = vor.u32 1.1754944e-38, %v5053
    %v5055 = vsel %vm5052, %v5054, %v5050
    %v5056 = vmul.f32 1.0, %v5055
    %v5057 = vtanh.pop %v5017
    %v5058 = vxor.u32 %v5018, 2147483648
    %v5059 = vmul.f32 %v5058, 1.442695
    %v5060 = vpow.pop %v5059
    %v5061 = vadd.f32 %v5060, 1.0
    %v5062 = vrcp.pop %v5061
    %v5063 = vmul.f32 %v5061, %v5062
    %v5064 = vsub.f32 1.0, %v5063
    %v5065 = vmul.f32 %v5062, %v5064
    %v5066 = vadd.f32 %v5062, %v5065
    %vm5067 = vweird.f32 %v5061
    %vm5068 = vweird.f32 %v5062
    %vm5069 = vmor %vm5067, %vm5068
    %v5070 = vsel %vm5069, %v5062, %v5066
    %v5071 = vand.u32 2147483647, %v5061
    %vm5072 = vcmp.eq.f32.partialorder %v5071, 8.507059e+37
    %v5073 = vand.u32 %v5061, 2147483648
    %v5074 = vor.u32 1.1754944e-38, %v5073
    %v5075 = vsel %vm5072, %v5074, %v5070
    %v5076 = vmul.f32 1.0, %v5075
    %v5077 = vmul.f32 %v5056, %v4449
    %v5078 = vmul.f32 %v5037, %v5057
    %v5079 = vadd.f32 %v5077, %v5078
    %v5080 = vtanh.pop %v5079
    %v5081 = vmul.f32 %v5076, %v5080
    %v5082 = vsel %vm1811, %v5014, %v4446
    %5083 = vst [vmem:[#allocation3] sm:$0xff] %v5082
    %v5084 = vsel %vm1811, %v5012, %v4447
    %5085 = vst [vmem:[#allocation4] sm:$0xff] %v5084
    %v5086 = vsel %vm1802, %v5081, %v4448
    %5087 = vst [vmem:[#allocation5] sm:$0xff] %v5086
    %v5088 = vsel %vm1802, %v5079, %v4449
    %5089 = vst [vmem:[#allocation6] sm:$0xff] %v5088
    %v5090 = vsel %vm1811, %v5014, 0.0
    %5091 = vst [vmem:[%s1820] sm:$0xff] %v5090
    %v5092 = vsel %vm1802, %v5081, 0.0
    %5093 = vst [vmem:[%s1817 + $0x8] sm:$0xff] %v5092
    %v5094 = vld [vmem:[#allocation3] sm:$0xff]
    %v5095 = vld [vmem:[#allocation4] sm:$0xff]
    %v5096 = vld [vmem:[#allocation5] sm:$0xff]
    %v5097 = vld [vmem:[#allocation6] sm:$0xff]
    %v5098 = vpack.c.bf16 %v5094, %v5094
    %v5099 = vld [vmem:[%s5] sm:$0xff]
    %v5100 = vld [vmem:[%s5 + $0x8] sm:$0xff]
    %v5101 = vld [vmem:[%s5 + $0x10] sm:$0xff]
    %v5102 = vld [vmem:[%s5 + $0x18] sm:$0xff]
    %v5103 = vld [vmem:[%s5 + $0x20] sm:$0xff]
    %v5104 = vld [vmem:[%s5 + $0x28] sm:$0xff]
    %v5105 = vld [vmem:[%s5 + $0x30] sm:$0xff]
    %v5106 = vld [vmem:[%s5 + $0x38] sm:$0xff]
    %v5107 = vld [vmem:[%s5 + $0x40] sm:$0xff]
    %v5108 = vld [vmem:[%s5 + $0x48] sm:$0xff]
    %v5109 = vld [vmem:[%s5 + $0x50] sm:$0xff]
    %v5110 = vld [vmem:[%s5 + $0x58] sm:$0xff]
    %v5111 = vld [vmem:[%s5 + $0x60] sm:$0xff]
    %v5112 = vld [vmem:[%s5 + $0x68] sm:$0xff]
    %v5113 = vld [vmem:[%s5 + $0x70] sm:$0xff]
    %v5114 = vld [vmem:[%s5 + $0x78] sm:$0xff]
    %v5115 = vld [vmem:[%s5 + $0x80] sm:$0xff]
    %v5116 = vld [vmem:[%s5 + $0x88] sm:$0xff]
    %v5117 = vld [vmem:[%s5 + $0x90] sm:$0xff]
    %v5118 = vld [vmem:[%s5 + $0x98] sm:$0xff]
    %v5119 = vld [vmem:[%s5 + $0xa0] sm:$0xff]
    %v5120 = vld [vmem:[%s5 + $0xa8] sm:$0xff]
    %v5121 = vld [vmem:[%s5 + $0xb0] sm:$0xff]
    %v5122 = vld [vmem:[%s5 + $0xb8] sm:$0xff]
    %v5123 = vld [vmem:[%s5 + $0xc0] sm:$0xff]
    %v5124 = vld [vmem:[%s5 + $0xc8] sm:$0xff]
    %v5125 = vld [vmem:[%s5 + $0xd0] sm:$0xff]
    %v5126 = vld [vmem:[%s5 + $0xd8] sm:$0xff]
    %v5127 = vld [vmem:[%s5 + $0xe0] sm:$0xff]
    %v5128 = vld [vmem:[%s5 + $0xe8] sm:$0xff]
    %v5129 = vld [vmem:[%s5 + $0xf0] sm:$0xff]
    %v5130 = vld [vmem:[%s5 + $0xf8] sm:$0xff]
    %v5163 = vunpack.c.l.b16 %v5099
    %v5164 = vunpack.c.h.b16 %v5099
    %v5165 = vunpack.c.l.b16 %v5100
    %v5166 = vunpack.c.h.b16 %v5100
    %v5167 = vunpack.c.l.b16 %v5101
    %v5168 = vunpack.c.h.b16 %v5101
    %v5169 = vunpack.c.l.b16 %v5102
    %v5170 = vunpack.c.h.b16 %v5102
    %v5171 = vunpack.c.l.b16 %v5103
    %v5172 = vunpack.c.h.b16 %v5103
    %v5173 = vunpack.c.l.b16 %v5104
    %v5174 = vunpack.c.h.b16 %v5104
    %v5175 = vunpack.c.l.b16 %v5105
    %v5176 = vunpack.c.h.b16 %v5105
    %v5177 = vunpack.c.l.b16 %v5106
    %v5178 = vunpack.c.h.b16 %v5106
    %v5179 = vunpack.c.l.b16 %v5107
    %v5180 = vunpack.c.h.b16 %v5107
    %v5181 = vunpack.c.l.b16 %v5108
    %v5182 = vunpack.c.h.b16 %v5108
    %v5183 = vunpack.c.l.b16 %v5109
    %v5184 = vunpack.c.h.b16 %v5109
    %v5185 = vunpack.c.l.b16 %v5110
    %v5186 = vunpack.c.h.b16 %v5110
    %v5187 = vunpack.c.l.b16 %v5111
    %v5188 = vunpack.c.h.b16 %v5111
    %v5189 = vunpack.c.l.b16 %v5112
    %v5190 = vunpack.c.h.b16 %v5112
    %v5191 = vunpack.c.l.b16 %v5113
    %v5192 = vunpack.c.h.b16 %v5113
    %v5193 = vunpack.c.l.b16 %v5114
    %v5194 = vunpack.c.h.b16 %v5114
    %v5195 = vunpack.c.l.b16 %v5115
    %v5196 = vunpack.c.h.b16 %v5115
    %v5197 = vunpack.c.l.b16 %v5116
    %v5198 = vunpack.c.h.b16 %v5116
    %v5199 = vunpack.c.l.b16 %v5117
    %v5200 = vunpack.c.h.b16 %v5117
    %v5201 = vunpack.c.l.b16 %v5118
    %v5202 = vunpack.c.h.b16 %v5118
    %v5203 = vunpack.c.l.b16 %v5119
    %v5204 = vunpack.c.h.b16 %v5119
    %v5205 = vunpack.c.l.b16 %v5120
    %v5206 = vunpack.c.h.b16 %v5120
    %v5207 = vunpack.c.l.b16 %v5121
    %v5208 = vunpack.c.h.b16 %v5121
    %v5209 = vunpack.c.l.b16 %v5122
    %v5210 = vunpack.c.h.b16 %v5122
    %v5211 = vunpack.c.l.b16 %v5123
    %v5212 = vunpack.c.h.b16 %v5123
    %v5213 = vunpack.c.l.b16 %v5124
    %v5214 = vunpack.c.h.b16 %v5124
    %v5215 = vunpack.c.l.b16 %v5125
    %v5216 = vunpack.c.h.b16 %v5125
    %v5217 = vunpack.c.l.b16 %v5126
    %v5218 = vunpack.c.h.b16 %v5126
    %v5219 = vunpack.c.l.b16 %v5127
    %v5220 = vunpack.c.h.b16 %v5127
    %v5221 = vunpack.c.l.b16 %v5128
    %v5222 = vunpack.c.h.b16 %v5128
    %v5223 = vunpack.c.l.b16 %v5129
    %v5224 = vunpack.c.h.b16 %v5129
    %v5225 = vunpack.c.l.b16 %v5130
    %v5226 = vunpack.c.h.b16 %v5130
    %v5227 = vpack.c.b16 %v5167, %v5163
    %v5228 = vpack.c.b16 %v5168, %v5164
    %v5229 = vpack.c.b16 %v5169, %v5165
    %v5230 = vpack.c.b16 %v5170, %v5166
    %v5231 = vpack.c.b16 %v5175, %v5171
    %v5232 = vpack.c.b16 %v5176, %v5172
    %v5233 = vpack.c.b16 %v5177, %v5173
    %v5234 = vpack.c.b16 %v5178, %v5174
    %v5235 = vpack.c.b16 %v5183, %v5179
    %v5236 = vpack.c.b16 %v5184, %v5180
    %v5237 = vpack.c.b16 %v5185, %v5181
    %v5238 = vpack.c.b16 %v5186, %v5182
    %v5239 = vpack.c.b16 %v5191, %v5187
    %v5240 = vpack.c.b16 %v5192, %v5188
    %v5241 = vpack.c.b16 %v5193, %v5189
    %v5242 = vpack.c.b16 %v5194, %v5190
    %v5243 = vpack.c.b16 %v5199, %v5195
    %v5244 = vpack.c.b16 %v5200, %v5196
    %v5245 = vpack.c.b16 %v5201, %v5197
    %v5246 = vpack.c.b16 %v5202, %v5198
    %v5247 = vpack.c.b16 %v5207, %v5203
    %v5248 = vpack.c.b16 %v5208, %v5204
    %v5249 = vpack.c.b16 %v5209, %v5205
    %v5250 = vpack.c.b16 %v5210, %v5206
    %v5251 = vpack.c.b16 %v5215, %v5211
    %v5252 = vpack.c.b16 %v5216, %v5212
    %v5253 = vpack.c.b16 %v5217, %v5213
    %v5254 = vpack.c.b16 %v5218, %v5214
    %v5255 = vpack.c.b16 %v5223, %v5219
    %v5256 = vpack.c.b16 %v5224, %v5220
    %v5257 = vpack.c.b16 %v5225, %v5221
    %v5258 = vpack.c.b16 %v5226, %v5222
    %5291 = vmatpush.bf16.msra.mxu0 %v5255
    %5292 = vmatpush.bf16.msra.mxu0 %v5251
    %5293 = vmatpush.bf16.msra.mxu0 %v5247
    %5294 = vmatpush.bf16.msra.mxu0 %v5243
    %5295 = vmatpush.bf16.msra.mxu0 %v5239
    %5296 = vmatpush.bf16.msra.mxu0 %v5235
    %5297 = vmatpush.bf16.msra.mxu0 %v5231
    %5298 = vmatpush.bf16.msra.mxu0 %v5227
    %5299 = vmatmul.bf16.gmra.mxu0 %v5098
    %v5300 = vpop.f32.mrf.mxu0
    %v5301 = vadd.f32 0.0, %v5300
    %v5302 = vpop.f32.mrf.mxu0
    %5303 = vdwg.mxu0
    %5304 = vmatpush.bf16.msra.mxu0 %v5256
    %5305 = vmatpush.bf16.msra.mxu0 %v5252
    %5306 = vmatpush.bf16.msra.mxu0 %v5248
    %5307 = vmatpush.bf16.msra.mxu0 %v5244
    %5308 = vmatpush.bf16.msra.mxu0 %v5240
    %5309 = vmatpush.bf16.msra.mxu0 %v5236
    %5310 = vmatpush.bf16.msra.mxu0 %v5232
    %5311 = vmatpush.bf16.msra.mxu0 %v5228
    %5312 = vmatmul.bf16.gmra.mxu0 %v5098
    %v5313 = vpop.f32.mrf.mxu0
    %v5314 = vadd.f32 0.0, %v5313
    %v5315 = vpop.f32.mrf.mxu0
    %5316 = vdwg.mxu0
    %5317 = vmatpush.bf16.msra.mxu0 %v5257
    %5318 = vmatpush.bf16.msra.mxu0 %v5253
    %5319 = vmatpush.bf16.msra.mxu0 %v5249
    %5320 = vmatpush.bf16.msra.mxu0 %v5245
    %5321 = vmatpush.bf16.msra.mxu0 %v5241
    %5322 = vmatpush.bf16.msra.mxu0 %v5237
    %5323 = vmatpush.bf16.msra.mxu0 %v5233
    %5324 = vmatpush.bf16.msra.mxu0 %v5229
    %5325 = vmatmul.bf16.gmra.mxu0 %v5098
    %v5326 = vpop.f32.mrf.mxu0
    %v5327 = vadd.f32 0.0, %v5326
    %v5328 = vpop.f32.mrf.mxu0
    %5329 = vdwg.mxu0
    %5330 = vmatpush.bf16.msra.mxu0 %v5258
    %5331 = vmatpush.bf16.msra.mxu0 %v5254
    %5332 = vmatpush.bf16.msra.mxu0 %v5250
    %5333 = vmatpush.bf16.msra.mxu0 %v5246
    %5334 = vmatpush.bf16.msra.mxu0 %v5242
    %5335 = vmatpush.bf16.msra.mxu0 %v5238
    %5336 = vmatpush.bf16.msra.mxu0 %v5234
    %5337 = vmatpush.bf16.msra.mxu0 %v5230
    %5338 = vmatmul.bf16.gmra.mxu0 %v5098
    %v5339 = vpop.f32.mrf.mxu0
    %v5340 = vadd.f32 0.0, %v5339
    %v5341 = vpop.f32.mrf.mxu0
    %5342 = vdwg.mxu0
    %v5343 = vpack.c.bf16 %v5096, %v5096
    %v5344 = vld [vmem:[%s6] sm:$0xff]
    %v5345 = vld [vmem:[%s6 + $0x8] sm:$0xff]
    %v5346 = vld [vmem:[%s6 + $0x10] sm:$0xff]
    %v5347 = vld [vmem:[%s6 + $0x18] sm:$0xff]
    %v5348 = vld [vmem:[%s6 + $0x20] sm:$0xff]
    %v5349 = vld [vmem:[%s6 + $0x28] sm:$0xff]
    %v5350 = vld [vmem:[%s6 + $0x30] sm:$0xff]
    %v5351 = vld [vmem:[%s6 + $0x38] sm:$0xff]
    %v5352 = vld [vmem:[%s6 + $0x40] sm:$0xff]
    %v5353 = vld [vmem:[%s6 + $0x48] sm:$0xff]
    %v5354 = vld [vmem:[%s6 + $0x50] sm:$0xff]
    %v5355 = vld [vmem:[%s6 + $0x58] sm:$0xff]
    %v5356 = vld [vmem:[%s6 + $0x60] sm:$0xff]
    %v5357 = vld [vmem:[%s6 + $0x68] sm:$0xff]
    %v5358 = vld [vmem:[%s6 + $0x70] sm:$0xff]
    %v5359 = vld [vmem:[%s6 + $0x78] sm:$0xff]
    %v5360 = vld [vmem:[%s6 + $0x80] sm:$0xff]
    %v5361 = vld [vmem:[%s6 + $0x88] sm:$0xff]
    %v5362 = vld [vmem:[%s6 + $0x90] sm:$0xff]
    %v5363 = vld [vmem:[%s6 + $0x98] sm:$0xff]
    %v5364 = vld [vmem:[%s6 + $0xa0] sm:$0xff]
    %v5365 = vld [vmem:[%s6 + $0xa8] sm:$0xff]
    %v5366 = vld [vmem:[%s6 + $0xb0] sm:$0xff]
    %v5367 = vld [vmem:[%s6 + $0xb8] sm:$0xff]
    %v5368 = vld [vmem:[%s6 + $0xc0] sm:$0xff]
    %v5369 = vld [vmem:[%s6 + $0xc8] sm:$0xff]
    %v5370 = vld [vmem:[%s6 + $0xd0] sm:$0xff]
    %v5371 = vld [vmem:[%s6 + $0xd8] sm:$0xff]
    %v5372 = vld [vmem:[%s6 + $0xe0] sm:$0xff]
    %v5373 = vld [vmem:[%s6 + $0xe8] sm:$0xff]
    %v5374 = vld [vmem:[%s6 + $0xf0] sm:$0xff]
    %v5375 = vld [vmem:[%s6 + $0xf8] sm:$0xff]
    %v5408 = vunpack.c.l.b16 %v5344
    %v5409 = vunpack.c.h.b16 %v5344
    %v5410 = vunpack.c.l.b16 %v5345
    %v5411 = vunpack.c.h.b16 %v5345
    %v5412 = vunpack.c.l.b16 %v5346
    %v5413 = vunpack.c.h.b16 %v5346
    %v5414 = vunpack.c.l.b16 %v5347
    %v5415 = vunpack.c.h.b16 %v5347
    %v5416 = vunpack.c.l.b16 %v5348
    %v5417 = vunpack.c.h.b16 %v5348
    %v5418 = vunpack.c.l.b16 %v5349
    %v5419 = vunpack.c.h.b16 %v5349
    %v5420 = vunpack.c.l.b16 %v5350
    %v5421 = vunpack.c.h.b16 %v5350
    %v5422 = vunpack.c.l.b16 %v5351
    %v5423 = vunpack.c.h.b16 %v5351
    %v5424 = vunpack.c.l.b16 %v5352
    %v5425 = vunpack.c.h.b16 %v5352
    %v5426 = vunpack.c.l.b16 %v5353
    %v5427 = vunpack.c.h.b16 %v5353
    %v5428 = vunpack.c.l.b16 %v5354
    %v5429 = vunpack.c.h.b16 %v5354
    %v5430 = vunpack.c.l.b16 %v5355
    %v5431 = vunpack.c.h.b16 %v5355
    %v5432 = vunpack.c.l.b16 %v5356
    %v5433 = vunpack.c.h.b16 %v5356
    %v5434 = vunpack.c.l.b16 %v5357
    %v5435 = vunpack.c.h.b16 %v5357
    %v5436 = vunpack.c.l.b16 %v5358
    %v5437 = vunpack.c.h.b16 %v5358
    %v5438 = vunpack.c.l.b16 %v5359
    %v5439 = vunpack.c.h.b16 %v5359
    %v5440 = vunpack.c.l.b16 %v5360
    %v5441 = vunpack.c.h.b16 %v5360
    %v5442 = vunpack.c.l.b16 %v5361
    %v5443 = vunpack.c.h.b16 %v5361
    %v5444 = vunpack.c.l.b16 %v5362
    %v5445 = vunpack.c.h.b16 %v5362
    %v5446 = vunpack.c.l.b16 %v5363
    %v5447 = vunpack.c.h.b16 %v5363
    %v5448 = vunpack.c.l.b16 %v5364
    %v5449 = vunpack.c.h.b16 %v5364
    %v5450 = vunpack.c.l.b16 %v5365
    %v5451 = vunpack.c.h.b16 %v5365
    %v5452 = vunpack.c.l.b16 %v5366
    %v5453 = vunpack.c.h.b16 %v5366
    %v5454 = vunpack.c.l.b16 %v5367
    %v5455 = vunpack.c.h.b16 %v5367
    %v5456 = vunpack.c.l.b16 %v5368
    %v5457 = vunpack.c.h.b16 %v5368
    %v5458 = vunpack.c.l.b16 %v5369
    %v5459 = vunpack.c.h.b16 %v5369
    %v5460 = vunpack.c.l.b16 %v5370
    %v5461 = vunpack.c.h.b16 %v5370
    %v5462 = vunpack.c.l.b16 %v5371
    %v5463 = vunpack.c.h.b16 %v5371
    %v5464 = vunpack.c.l.b16 %v5372
    %v5465 = vunpack.c.h.b16 %v5372
    %v5466 = vunpack.c.l.b16 %v5373
    %v5467 = vunpack.c.h.b16 %v5373
    %v5468 = vunpack.c.l.b16 %v5374
    %v5469 = vunpack.c.h.b16 %v5374
    %v5470 = vunpack.c.l.b16 %v5375
    %v5471 = vunpack.c.h.b16 %v5375
    %v5472 = vpack.c.b16 %v5412, %v5408
    %v5473 = vpack.c.b16 %v5413, %v5409
    %v5474 = vpack.c.b16 %v5414, %v5410
    %v5475 = vpack.c.b16 %v5415, %v5411
    %v5476 = vpack.c.b16 %v5420, %v5416
    %v5477 = vpack.c.b16 %v5421, %v5417
    %v5478 = vpack.c.b16 %v5422, %v5418
    %v5479 = vpack.c.b16 %v5423, %v5419
    %v5480 = vpack.c.b16 %v5428, %v5424
    %v5481 = vpack.c.b16 %v5429, %v5425
    %v5482 = vpack.c.b16 %v5430, %v5426
    %v5483 = vpack.c.b16 %v5431, %v5427
    %v5484 = vpack.c.b16 %v5436, %v5432
    %v5485 = vpack.c.b16 %v5437, %v5433
    %v5486 = vpack.c.b16 %v5438, %v5434
    %v5487 = vpack.c.b16 %v5439, %v5435
    %v5488 = vpack.c.b16 %v5444, %v5440
    %v5489 = vpack.c.b16 %v5445, %v5441
    %v5490 = vpack.c.b16 %v5446, %v5442
    %v5491 = vpack.c.b16 %v5447, %v5443
    %v5492 = vpack.c.b16 %v5452, %v5448
    %v5493 = vpack.c.b16 %v5453, %v5449
    %v5494 = vpack.c.b16 %v5454, %v5450
    %v5495 = vpack.c.b16 %v5455, %v5451
    %v5496 = vpack.c.b16 %v5460, %v5456
    %v5497 = vpack.c.b16 %v5461, %v5457
    %v5498 = vpack.c.b16 %v5462, %v5458
    %v5499 = vpack.c.b16 %v5463, %v5459
    %v5500 = vpack.c.b16 %v5468, %v5464
    %v5501 = vpack.c.b16 %v5469, %v5465
    %v5502 = vpack.c.b16 %v5470, %v5466
    %v5503 = vpack.c.b16 %v5471, %v5467
    %5536 = vmatpush.bf16.msra.mxu0 %v5500
    %5537 = vmatpush.bf16.msra.mxu0 %v5496
    %5538 = vmatpush.bf16.msra.mxu0 %v5492
    %5539 = vmatpush.bf16.msra.mxu0 %v5488
    %5540 = vmatpush.bf16.msra.mxu0 %v5484
    %5541 = vmatpush.bf16.msra.mxu0 %v5480
    %5542 = vmatpush.bf16.msra.mxu0 %v5476
    %5543 = vmatpush.bf16.msra.mxu0 %v5472
    %5544 = vmatmul.bf16.gmra.mxu0 %v5343
    %v5545 = vpop.f32.mrf.mxu0
    %v5546 = vadd.f32 0.0, %v5545
    %v5547 = vpop.f32.mrf.mxu0
    %5548 = vdwg.mxu0
    %5549 = vmatpush.bf16.msra.mxu0 %v5501
    %5550 = vmatpush.bf16.msra.mxu0 %v5497
    %5551 = vmatpush.bf16.msra.mxu0 %v5493
    %5552 = vmatpush.bf16.msra.mxu0 %v5489
    %5553 = vmatpush.bf16.msra.mxu0 %v5485
    %5554 = vmatpush.bf16.msra.mxu0 %v5481
    %5555 = vmatpush.bf16.msra.mxu0 %v5477
    %5556 = vmatpush.bf16.msra.mxu0 %v5473
    %5557 = vmatmul.bf16.gmra.mxu0 %v5343
    %v5558 = vpop.f32.mrf.mxu0
    %v5559 = vadd.f32 0.0, %v5558
    %v5560 = vpop.f32.mrf.mxu0
    %5561 = vdwg.mxu0
    %5562 = vmatpush.bf16.msra.mxu0 %v5502
    %5563 = vmatpush.bf16.msra.mxu0 %v5498
    %5564 = vmatpush.bf16.msra.mxu0 %v5494
    %5565 = vmatpush.bf16.msra.mxu0 %v5490
    %5566 = vmatpush.bf16.msra.mxu0 %v5486
    %5567 = vmatpush.bf16.msra.mxu0 %v5482
    %5568 = vmatpush.bf16.msra.mxu0 %v5478
    %5569 = vmatpush.bf16.msra.mxu0 %v5474
    %5570 = vmatmul.bf16.gmra.mxu0 %v5343
    %v5571 = vpop.f32.mrf.mxu0
    %v5572 = vadd.f32 0.0, %v5571
    %v5573 = vpop.f32.mrf.mxu0
    %5574 = vdwg.mxu0
    %5575 = vmatpush.bf16.msra.mxu0 %v5503
    %5576 = vmatpush.bf16.msra.mxu0 %v5499
    %5577 = vmatpush.bf16.msra.mxu0 %v5495
    %5578 = vmatpush.bf16.msra.mxu0 %v5491
    %5579 = vmatpush.bf16.msra.mxu0 %v5487
    %5580 = vmatpush.bf16.msra.mxu0 %v5483
    %5581 = vmatpush.bf16.msra.mxu0 %v5479
    %5582 = vmatpush.bf16.msra.mxu0 %v5475
    %5583 = vmatmul.bf16.gmra.mxu0 %v5343
    %v5584 = vpop.f32.mrf.mxu0
    %v5585 = vadd.f32 0.0, %v5584
    %v5586 = vpop.f32.mrf.mxu0
    %5587 = vdwg.mxu0
    %v5588 = vld [vmem:[%s994] sm:$0xff]
    %v5589 = vld [vmem:[%s994 + $0x8] sm:$0xff]
    %v5590 = vld [vmem:[%s994 + $0x10] sm:$0xff]
    %v5591 = vld [vmem:[%s994 + $0x18] sm:$0xff]
    %v5592 = vld [vmem:[#allocation2 + $0x20] sm:$0xff]
    %v5593 = vld [vmem:[#allocation2 + $0x28] sm:$0xff]
    %v5594 = vld [vmem:[#allocation2 + $0x30] sm:$0xff]
    %v5595 = vld [vmem:[#allocation2 + $0x38] sm:$0xff]
    %v5596 = vadd.f32 %v5588, %v5301
    %v5597 = vadd.f32 %v5589, %v5314
    %v5598 = vadd.f32 %v5590, %v5327
    %v5599 = vadd.f32 %v5591, %v5340
    %v5600 = vxor.u32 %v5596, 2147483648
    %v5601 = vmul.f32 %v5600, 1.442695
    %v5602 = vpow.pop %v5601
    %v5603 = vadd.f32 %v5602, 1.0
    %v5604 = vrcp.pop %v5603
    %v5605 = vmul.f32 %v5603, %v5604
    %v5606 = vsub.f32 1.0, %v5605
    %v5607 = vmul.f32 %v5604, %v5606
    %v5608 = vadd.f32 %v5604, %v5607
    %vm5609 = vweird.f32 %v5603
    %vm5610 = vweird.f32 %v5604
    %vm5611 = vmor %vm5609, %vm5610
    %v5612 = vsel %vm5611, %v5604, %v5608
    %v5613 = vand.u32 2147483647, %v5603
    %vm5614 = vcmp.eq.f32.partialorder %v5613, 8.507059e+37
    %v5615 = vand.u32 %v5603, 2147483648
    %v5616 = vor.u32 1.1754944e-38, %v5615
    %v5617 = vsel %vm5614, %v5616, %v5612
    %v5618 = vmul.f32 1.0, %v5617
    %v5619 = vxor.u32 %v5597, 2147483648
    %v5620 = vmul.f32 %v5619, 1.442695
    %v5621 = vpow.pop %v5620
    %v5622 = vadd.f32 %v5621, 1.0
    %v5623 = vrcp.pop %v5622
    %v5624 = vmul.f32 %v5622, %v5623
    %v5625 = vsub.f32 1.0, %v5624
    %v5626 = vmul.f32 %v5623, %v5625
    %v5627 = vadd.f32 %v5623, %v5626
    %vm5628 = vweird.f32 %v5622
    %vm5629 = vweird.f32 %v5623
    %vm5630 = vmor %vm5628, %vm5629
    %v5631 = vsel %vm5630, %v5623, %v5627
    %v5632 = vand.u32 2147483647, %v5622
    %vm5633 = vcmp.eq.f32.partialorder %v5632, 8.507059e+37
    %v5634 = vand.u32 %v5622, 2147483648
    %v5635 = vor.u32 1.1754944e-38, %v5634
    %v5636 = vsel %vm5633, %v5635, %v5631
    %v5637 = vmul.f32 1.0, %v5636
    %v5638 = vtanh.pop %v5598
    %v5639 = vxor.u32 %v5599, 2147483648
    %v5640 = vmul.f32 %v5639, 1.442695
    %v5641 = vpow.pop %v5640
    %v5642 = vadd.f32 %v5641, 1.0
    %v5643 = vrcp.pop %v5642
    %v5644 = vmul.f32 %v5642, %v5643
    %v5645 = vsub.f32 1.0, %v5644
    %v5646 = vmul.f32 %v5643, %v5645
    %v5647 = vadd.f32 %v5643, %v5646
    %vm5648 = vweird.f32 %v5642
    %vm5649 = vweird.f32 %v5643
    %vm5650 = vmor %vm5648, %vm5649
    %v5651 = vsel %vm5650, %v5643, %v5647
    %v5652 = vand.u32 2147483647, %v5642
    %vm5653 = vcmp.eq.f32.partialorder %v5652, 8.507059e+37
    %v5654 = vand.u32 %v5642, 2147483648
    %v5655 = vor.u32 1.1754944e-38, %v5654
    %v5656 = vsel %vm5653, %v5655, %v5651
    %v5657 = vmul.f32 1.0, %v5656
    %v5658 = vmul.f32 %v5637, %v5095
    %v5659 = vmul.f32 %v5618, %v5638
    %v5660 = vadd.f32 %v5658, %v5659
    %v5661 = vtanh.pop %v5660
    %v5662 = vmul.f32 %v5657, %v5661
    %v5663 = vadd.f32 %v5592, %v5546
    %v5664 = vadd.f32 %v5593, %v5559
    %v5665 = vadd.f32 %v5594, %v5572
    %v5666 = vadd.f32 %v5595, %v5585
    %v5667 = vxor.u32 %v5663, 2147483648
    %v5668 = vmul.f32 %v5667, 1.442695
    %v5669 = vpow.pop %v5668
    %v5670 = vadd.f32 %v5669, 1.0
    %v5671 = vrcp.pop %v5670
    %v5672 = vmul.f32 %v5670, %v5671
    %v5673 = vsub.f32 1.0, %v5672
    %v5674 = vmul.f32 %v5671, %v5673
    %v5675 = vadd.f32 %v5671, %v5674
    %vm5676 = vweird.f32 %v5670
    %vm5677 = vweird.f32 %v5671
    %vm5678 = vmor %vm5676, %vm5677
    %v5679 = vsel %vm5678, %v5671, %v5675
    %v5680 = vand.u32 2147483647, %v5670
    %vm5681 = vcmp.eq.f32.partialorder %v5680, 8.507059e+37
    %v5682 = vand.u32 %v5670, 2147483648
    %v5683 = vor.u32 1.1754944e-38, %v5682
    %v5684 = vsel %vm5681, %v5683, %v5679
    %v5685 = vmul.f32 1.0, %v5684
    %v5686 = vxor.u32 %v5664, 2147483648
    %v5687 = vmul.f32 %v5686, 1.442695
    %v5688 = vpow.pop %v5687
    %v5689 = vadd.f32 %v5688, 1.0
    %v5690 = vrcp.pop %v5689
    %v5691 = vmul.f32 %v5689, %v5690
    %v5692 = vsub.f32 1.0, %v5691
    %v5693 = vmul.f32 %v5690, %v5692
    %v5694 = vadd.f32 %v5690, %v5693
    %vm5695 = vweird.f32 %v5689
    %vm5696 = vweird.f32 %v5690
    %vm5697 = vmor %vm5695, %vm5696
    %v5698 = vsel %vm5697, %v5690, %v5694
    %v5699 = vand.u32 2147483647, %v5689
    %vm5700 = vcmp.eq.f32.partialorder %v5699, 8.507059e+37
    %v5701 = vand.u32 %v5689, 2147483648
    %v5702 = vor.u32 1.1754944e-38, %v5701
    %v5703 = vsel %vm5700, %v5702, %v5698
    %v5704 = vmul.f32 1.0, %v5703
    %v5705 = vtanh.pop %v5665
    %v5706 = vxor.u32 %v5666, 2147483648
    %v5707 = vmul.f32 %v5706, 1.442695
    %v5708 = vpow.pop %v5707
    %v5709 = vadd.f32 %v5708, 1.0
    %v5710 = vrcp.pop %v5709
    %v5711 = vmul.f32 %v5709, %v5710
    %v5712 = vsub.f32 1.0, %v5711
    %v5713 = vmul.f32 %v5710, %v5712
    %v5714 = vadd.f32 %v5710, %v5713
    %vm5715 = vweird.f32 %v5709
    %vm5716 = vweird.f32 %v5710
    %vm5717 = vmor %vm5715, %vm5716
    %v5718 = vsel %vm5717, %v5710, %v5714
    %v5719 = vand.u32 2147483647, %v5709
    %vm5720 = vcmp.eq.f32.partialorder %v5719, 8.507059e+37
    %v5721 = vand.u32 %v5709, 2147483648
    %v5722 = vor.u32 1.1754944e-38, %v5721
    %v5723 = vsel %vm5720, %v5722, %v5718
    %v5724 = vmul.f32 1.0, %v5723
    %v5725 = vmul.f32 %v5704, %v5097
    %v5726 = vmul.f32 %v5685, %v5705
    %v5727 = vadd.f32 %v5725, %v5726
    %v5728 = vtanh.pop %v5727
    %v5729 = vmul.f32 %v5724, %v5728
    %v5730 = vsel %vm1148, %v5662, %v5094
    %5731 = vst [vmem:[#allocation3] sm:$0xff] %v5730
    %v5732 = vsel %vm1148, %v5660, %v5095
    %5733 = vst [vmem:[#allocation4] sm:$0xff] %v5732
    %v5734 = vsel %vm1139, %v5729, %v5096
    %5735 = vst [vmem:[#allocation5] sm:$0xff] %v5734
    %v5736 = vsel %vm1139, %v5727, %v5097
    %5737 = vst [vmem:[#allocation6] sm:$0xff] %v5736
    %v5738 = vsel %vm1148, %v5662, 0.0
    %5739 = vst [vmem:[%s1156] sm:$0xff] %v5738
    %v5740 = vsel %vm1139, %v5729, 0.0
    %5741 = vst [vmem:[%s8 + $0x8] sm:$0xff] %v5740
    %v5742 = vld [vmem:[#allocation3] sm:$0xff]
    %5743 = vst [vmem:[%s9] sm:$0xff] %v5742
    %v5744 = vld [vmem:[#allocation5] sm:$0xff]
    %s5745 = scalar_lea.vmem %s9, 8
    %5746 = vst [vmem:[%s5745] sm:$0xff] %v5744
    %v5747 = vld [vmem:[#allocation4] sm:$0xff]
    %5748 = vst [vmem:[#allocation7] sm:$0xff] %v5747
    %v5749 = vld [vmem:[#allocation6] sm:$0xff]
    %s5750 = scalar_lea.vmem [#allocation7], 8
    %5751 = vst [vmem:[%s5750] sm:$0xff] %v5749
    // Predicated region
    $region34: #{_lambda_.1} parent=1 // pred_check
      _
    $region35: #{_lambda_.1} parent=1 // pred_check_branch
      %5753 = sbr.rel (0) target = $region37
    $region36: #{_lambda_.1} parent=1 // pred_region
      _
    $region37: #{_lambda_.1} parent=1 // pred_fallthru
      _
    // Predicated region
    $region38: #{_lambda_.1} parent=1 // pred_check
      _
    $region39: #{_lambda_.1} parent=1 // pred_check_branch
      %5755 = sbr.rel (0) target = $region41
    $region40: #{_lambda_.1} parent=1 // pred_region
      _
    $region41: #{_lambda_.1} parent=1 // pred_fallthru
      _
    // Predicated region
    $region42: #{_lambda_.1} parent=1 // pred_check
      _
    $region43: #{_lambda_.1} parent=1 // pred_check_branch
      %5757 = sbr.rel (0) target = $region45
    $region44: #{_lambda_.1} parent=1 // pred_region
      %5759 = vsyncadd [#allocation8], 0
      %s5760 = sshll.u32 [#allocation7], 4
      %s5761 = int_to_ptr.vmem [resolvable:$true] %s5760
      %s5762 = sshll.u32 %s10, 4
      %s5763 = int_to_ptr.hbm [resolvable:$true] %s5762
      %5768 = dma.vmem_to_hbm [thread:$0]  %s5761, 256, %s5763, [#allocation8], 128, 128, 8
    $region45: #{_lambda_.1} parent=1 // pred_fallthru
      _
    // Predicated region
    $region46: #{_lambda_.1} parent=1 // pred_check
      _
    $region47: #{_lambda_.1} parent=1 // pred_check_branch
      %5770 = sbr.rel (0) target = $region49
    $region48: #{_lambda_.1} parent=1 // pred_region
      _
    $region49: #{_lambda_.1} parent=1 // pred_fallthru
      _
    // Predicated region
    $region50: #{_lambda_.1} parent=1 // pred_check
      _
    $region51: #{_lambda_.1} parent=1 // pred_check_branch
      %5772 = sbr.rel (0) target = $region53
    $region52: #{_lambda_.1} parent=1 // pred_region
      _
    $region53: #{_lambda_.1} parent=1 // pred_fallthru
      _
    // Predicated region
    $region54: #{_lambda_.1} parent=1 // pred_check
      _
    $region55: #{_lambda_.1} parent=1 // pred_check_branch
      %5774 = sbr.rel (0) target = $region57
    $region56: #{_lambda_.1} parent=1 // pred_region
      %5776 = dma.done [#allocation8], 256
    $region57: #{_lambda_.1} parent=1 // pred_fallthru
      _
    %5777 = vsyncpa [#allocation8], 1

</llo_original>
